<compile_context>
chip_gen: v7x
topology: tpu7x:2x2x1
jax: 0.10.0
libtpu: 0.0.40
codegen_flags: <defaults>
</compile_context>

<pallas_src>
import functools

import jax
import jax.numpy as jnp
import numpy as np
from jax import lax
from jax.experimental import pallas as pl
from jax.experimental.pallas import tpu as pltpu


def _lrelu(v, alpha=0.2):
    return jnp.where(v >= 0, v, alpha * v)


def _disc_kernel(x_ref, ew_ref, eb_ref, wq_ref, bq_ref, wk_ref, bk_ref,
                 wv_ref, bv_ref, gamma_ref, bnw_ref, bnb_ref,
                 wl_ref, bl_ref, wih_ref, bih_ref, whh_ref, bhh_ref,
                 out_ref, *, ne, B, T, H, O):
    f32 = jnp.float32
    G = ne * B                                     # effective batch

    # ---- embeddings: all `ne` spectral-norm Linears as ONE lane-dense matmul.
    # x_ref: (B*T, Din); ew_ref: (Din, ne*H); result lanes ordered e-major.
    emb_pk = _lrelu(
        jnp.dot(x_ref[...], ew_ref[...], preferred_element_type=f32)
        + eb_ref[...])                                            # (B*T, ne*H)

    # Split back into per-embedding blocks and fold e into the batch dim.
    # Rows end up ordered g = e*B + b, which matches torch's stack + view.
    emb_stack = jnp.stack(
        [emb_pk[:, e * H:(e + 1) * H] for e in range(ne)], axis=0)  # (ne, B*T, H)
    emb_flat = emb_stack.reshape(G * T, H)      # flat rows for 1x1 projections
    emb_g = emb_stack.reshape(G, T, H)          # batched view for attention

    # ---- SAGAN-style conv1d self-attention (1x1 conv == per-timestep linear),
    # shared weights across embeddings -> single 2D matmuls for q / k / v.
    q = jnp.dot(emb_flat, wq_ref[...], preferred_element_type=f32) + bq_ref[...]
    k = jnp.dot(emb_flat, wk_ref[...], preferred_element_type=f32) + bk_ref[...]
    v = jnp.dot(emb_flat, wv_ref[...], preferred_element_type=f32) + bv_ref[...]
    C8 = q.shape[-1]
    q3 = q.reshape(G, T, C8)
    k3 = k.reshape(G, T, C8)
    v3 = v.reshape(G, T, H)

    energy = jnp.einsum('gic,gjc->gij', q3, k3,
                        preferred_element_type=f32)               # (G, T, T)
    energy = energy - jnp.max(energy, axis=-1, keepdims=True)
    p = jnp.exp(energy)
    attn = p * pl.reciprocal(jnp.sum(p, axis=-1, keepdims=True), approx=True)
    att = jnp.einsum('gij,gjc->gic', attn, v3,
                     preferred_element_type=f32)                  # (G, T, H)

    y = _lrelu(gamma_ref[...] * att + emb_g)     # gamma*out + x, then LeakyReLU

    # ---- BatchNorm1d (training mode): per-embedding, per-channel stats over
    # (B, T); single-pass mean / E[x^2] (one reduction sweep each).
    y_grp = y.reshape(ne, B * T, H)
    mean = jnp.mean(y_grp, axis=1, keepdims=True)
    m2 = jnp.mean(y_grp * y_grp, axis=1, keepdims=True)
    var = m2 - mean * mean
    y_bn = (y_grp - mean) * lax.rsqrt(var + 1e-5) * bnw_ref[...] + bnb_ref[...]

    # ---- spectral-norm Linear + LeakyReLU (shared) ----
    z = _lrelu(jnp.dot(y_bn.reshape(G * T, H), wl_ref[...],
                       preferred_element_type=f32) + bl_ref[...])   # (G*T, R)

    # ---- GRU (batch_first, h0 = 0), ONE recurrence over effective batch G.
    # Input projection hoisted out of the time loop: one (G*T, R) x (R, 3O)
    # matmul; gate inputs / weights / biases split once, lane-aligned at 0.
    gi = jnp.dot(z, wih_ref[...], preferred_element_type=f32) + bih_ref[...]
    gi_r = gi[:, :O].reshape(G, T, O)
    gi_z = gi[:, O:2 * O].reshape(G, T, O)
    gi_n = gi[:, 2 * O:].reshape(G, T, O)
    whh = whh_ref[...]
    whh_r, whh_z, whh_n = whh[:, :O], whh[:, O:2 * O], whh[:, 2 * O:]
    bhh = bhh_ref[...]
    bhh_r, bhh_z, bhh_n = bhh[:, :O], bhh[:, O:2 * O], bhh[:, 2 * O:]

    # T is a small compile-time constant; with gi hoisted, only the (G, O)
    # carry `h` is live across iterations, so a full static unroll is cheap
    # and keeps all indices static (no dynamic value slicing needed).
    h = jnp.zeros((G, O), f32)
    for t in range(T):
        gh_r = jnp.dot(h, whh_r, preferred_element_type=f32) + bhh_r
        gh_z = jnp.dot(h, whh_z, preferred_element_type=f32) + bhh_z
        gh_n = jnp.dot(h, whh_n, preferred_element_type=f32) + bhh_n
        r = jax.nn.sigmoid(gi_r[:, t, :] + gh_r)
        zg = jax.nn.sigmoid(gi_z[:, t, :] + gh_z)
        n = jnp.tanh(gi_n[:, t, :] + r * gh_n)
        h = (1.0 - zg) * n + zg * h

    out_ref[...] = h        # single store of all final hidden states (G, O)


def gumbel_rel_rnn_discriminator(x, params):
    B, T, Din = x.shape
    ne, _, H = params['emb_w'].shape
    O = params['whh'].shape[0]
    G = ne * B

    # Pack the ne per-embedding Linear weights along the output-channel (lane)
    # axis so the embedding stage is one lane-dense matmul inside the kernel.
    ew_pk = jnp.transpose(params['emb_w'], (1, 0, 2)).reshape(Din, ne * H)
    eb_pk = params['emb_b'].reshape(1, ne * H)
    x_flat = x.reshape(B * T, Din)

    kernel = functools.partial(_disc_kernel, ne=ne, B=B, T=T, H=H, O=O)
    vmem = pl.BlockSpec(memory_space=pltpu.MemorySpace.VMEM)

    h_all = pl.pallas_call(
        kernel,
        out_shape=jax.ShapeDtypeStruct((G, O), jnp.float32),
        in_specs=[vmem] * 18,
        out_specs=vmem,
    )(x_flat, ew_pk, eb_pk, params['wq'], params['bq'], params['wk'],
      params['bk'], params['wv'], params['bv'], params['gamma'],
      params['bn_w'], params['bn_b'], params['wl'], params['bl'],
      params['wih'], params['bih'], params['whh'], params['bhh'])

    # torch: stack([h_n (1,B,O)], dim=1) -> (1, ne, B, O); then .view(-1, ne, O).
    # h_all rows are ordered (e, b), so a raw reshape reproduces the same
    # (interleaved) semantics.
    return h_all.reshape(-1, ne, O)


# ------------------------- parameter setup (plain JAX glue) -------------------------

def spectral_normalize(w, n_iter=30):
    """Divide a torch-layout (out, in) weight by its spectral norm (power iteration)."""
    u = jnp.ones((w.shape[0],), jnp.float32)
    v = jnp.ones((w.shape[1],), jnp.float32)
    for _ in range(n_iter):
        v = w.T @ u
        v = v / (jnp.linalg.norm(v) + 1e-12)
        u = w @ v
        u = u / (jnp.linalg.norm(u) + 1e-12)
    sigma = u @ (w @ v)
    return w / sigma


def make_params(key, input_size, hidden_size, rnn_size, output_size, ne):
    ks = jax.random.split(key, 14)
    C8 = max(hidden_size // 8, 1)

    def nrm(k, shape, scale=0.2):
        return scale * jax.random.normal(k, shape, jnp.float32)

    emb_w = jnp.stack(
        [spectral_normalize(nrm(jax.random.fold_in(ks[0], e),
                                (hidden_size, input_size))).T for e in range(ne)],
        axis=0)                                               # (ne, Din, H)
    emb_b = nrm(ks[1], (ne, 1, hidden_size), 0.1)
    wq = nrm(ks[2], (C8, hidden_size)).T
    bq = nrm(ks[3], (1, C8), 0.1)
    wk = nrm(ks[4], (C8, hidden_size)).T
    bk = nrm(ks[5], (1, C8), 0.1)
    wv = nrm(ks[6], (hidden_size, hidden_size)).T
    bv = nrm(ks[7], (1, hidden_size), 0.1)
    gamma = jnp.full((1, hidden_size), 0.5, jnp.float32)  # scalar gamma, lane-broadcast
    bn_w = jnp.ones((1, hidden_size), jnp.float32)        # torch BatchNorm1d default init
    bn_b = jnp.zeros((1, hidden_size), jnp.float32)
    wl = spectral_normalize(nrm(ks[8], (rnn_size, hidden_size))).T
    bl = nrm(ks[9], (1, rnn_size), 0.1)
    wih = nrm(ks[10], (3 * output_size, rnn_size)).T
    bih = nrm(ks[11], (1, 3 * output_size), 0.1)
    whh = nrm(ks[12], (3 * output_size, output_size)).T
    bhh = nrm(ks[13], (1, 3 * output_size), 0.1)
    return dict(emb_w=emb_w, emb_b=emb_b, wq=wq, bq=bq, wk=wk, bk=bk, wv=wv,
                bv=bv, gamma=gamma, bn_w=bn_w, bn_b=bn_b, wl=wl, bl=bl,
                wih=wih, bih=bih, whh=whh, bhh=bhh)


# ------------------------- pure-JAX reference for validation -------------------------

def reference(x, p):
    ne = p['emb_w'].shape[0]
    O = p['whh'].shape[0]
    outs = []
    for e in range(ne):
        emb = _lrelu(x @ p['emb_w'][e] + p['emb_b'][e])
        q = emb @ p['wq'] + p['bq']
        k = emb @ p['wk'] + p['bk']
        v = emb @ p['wv'] + p['bv']
        attn = jax.nn.softmax(jnp.einsum('bic,bjc->bij', q, k), axis=-1)
        att = jnp.einsum('bij,bjc->bic', attn, v)
        y = _lrelu(p['gamma'] * att + emb)
        mean = jnp.mean(y, axis=(0, 1), keepdims=True)
        var = jnp.mean((y - mean) ** 2, axis=(0, 1), keepdims=True)
        y = (y - mean) / jnp.sqrt(var + 1e-5) * p['bn_w'] + p['bn_b']
        z = _lrelu(y @ p['wl'] + p['bl'])
        B, T, _ = z.shape
        h = jnp.zeros((B, O), jnp.float32)
        for t in range(T):
            gi = z[:, t, :] @ p['wih'] + p['bih']
            gh = h @ p['whh'] + p['bhh']
            r = jax.nn.sigmoid(gi[:, :O] + gh[:, :O])
            zg = jax.nn.sigmoid(gi[:, O:2 * O] + gh[:, O:2 * O])
            n = jnp.tanh(gi[:, 2 * O:] + r * gh[:, 2 * O:])
            h = (1.0 - zg) * n + zg * h
        outs.append(h)
    h_all = jnp.stack(outs, axis=0)            # (ne, B, O)
    return h_all.reshape(-1, ne, O)


if __name__ == "__main__":
    key = jax.random.PRNGKey(0)
    B, T = 2, 8
    input_size, hidden_size, rnn_size, output_size, num_embeddings = 4, 32, 16, 8, 6

    params = make_params(key, input_size, hidden_size, rnn_size, output_size,
                         num_embeddings)
    x = jax.random.normal(jax.random.fold_in(key, 999), (B, T, input_size),
                          jnp.float32)

    fwd = jax.jit(gumbel_rel_rnn_discriminator)
    out = jax.block_until_ready(fwd(x, params))

    ref = reference(x, params)
    assert out.shape == (B, num_embeddings, output_size)
    # Tolerance accommodates the approximate (EUP) reciprocal in the softmax.
    np.testing.assert_allclose(np.asarray(out), np.asarray(ref),
                               rtol=5e-3, atol=5e-3)
    print("KERNEL_OK")
</pallas_src>

<mosaic_0001>
module attributes {stable_mosaic.version = 11 : i64} {
  func.func @_disc_kernel(%arg0: memref<16x4xf32, #tpu.memory_space<vmem>>, %arg1: memref<4x192xf32, #tpu.memory_space<vmem>>, %arg2: memref<1x192xf32, #tpu.memory_space<vmem>>, %arg3: memref<32x4xf32, #tpu.memory_space<vmem>>, %arg4: memref<1x4xf32, #tpu.memory_space<vmem>>, %arg5: memref<32x4xf32, #tpu.memory_space<vmem>>, %arg6: memref<1x4xf32, #tpu.memory_space<vmem>>, %arg7: memref<32x32xf32, #tpu.memory_space<vmem>>, %arg8: memref<1x32xf32, #tpu.memory_space<vmem>>, %arg9: memref<1x32xf32, #tpu.memory_space<vmem>>, %arg10: memref<1x32xf32, #tpu.memory_space<vmem>>, %arg11: memref<1x32xf32, #tpu.memory_space<vmem>>, %arg12: memref<32x16xf32, #tpu.memory_space<vmem>>, %arg13: memref<1x16xf32, #tpu.memory_space<vmem>>, %arg14: memref<16x24xf32, #tpu.memory_space<vmem>>, %arg15: memref<1x24xf32, #tpu.memory_space<vmem>>, %arg16: memref<8x24xf32, #tpu.memory_space<vmem>>, %arg17: memref<1x24xf32, #tpu.memory_space<vmem>>, %arg18: memref<12x8xf32, #tpu.memory_space<vmem>>) attributes {dimension_semantics = [], scalar_prefetch = 0 : i64, scratch_operands = 0 : i64, tpu.core_type = #tpu.core_type<tc>} {
    %c0 = arith.constant 0 : index
    %c0_0 = arith.constant 0 : index
    %0 = vector.load %arg0[%c0, %c0_0] : memref<16x4xf32, #tpu.memory_space<vmem>>, vector<16x4xf32>
    %c0_1 = arith.constant 0 : index
    %c0_2 = arith.constant 0 : index
    %1 = vector.load %arg1[%c0_1, %c0_2] : memref<4x192xf32, #tpu.memory_space<vmem>>, vector<4x192xf32>
    %cst = arith.constant dense<0.000000e+00> : vector<16x192xf32>
    %2 = tpu.matmul %0, %1, %cst {dimension_numbers = #tpu.dot_dimension_numbers<[1], [0], [0], [1], [0, 0, 1, 1], [], []>} : vector<16x4xf32>, vector<4x192xf32>, vector<16x192xf32> -> vector<16x192xf32>
    %c0_3 = arith.constant 0 : index
    %c0_4 = arith.constant 0 : index
    %3 = vector.load %arg2[%c0_3, %c0_4] : memref<1x192xf32, #tpu.memory_space<vmem>>, vector<1x192xf32>
    %4 = vector.broadcast %3 : vector<1x192xf32> to vector<16x192xf32>
    %5 = arith.addf %2, %4 : vector<16x192xf32>
    %cst_5 = arith.constant 0.000000e+00 : f32
    %6 = vector.broadcast %cst_5 : f32 to vector<16x192xf32>
    %7 = arith.cmpf oge, %5, %6 : vector<16x192xf32>
    %cst_6 = arith.constant 2.000000e-01 : f32
    %8 = vector.broadcast %cst_6 : f32 to vector<16x192xf32>
    %9 = arith.mulf %8, %5 : vector<16x192xf32>
    %10 = arith.select %7, %5, %9 : vector<16x192xi1>, vector<16x192xf32>
    %11 = vector.extract_strided_slice %10 {offsets = [0, 0], sizes = [16, 32], strides = [1, 1]} : vector<16x192xf32> to vector<16x32xf32>
    %12 = vector.extract_strided_slice %10 {offsets = [0, 32], sizes = [16, 32], strides = [1, 1]} : vector<16x192xf32> to vector<16x32xf32>
    %13 = vector.extract_strided_slice %10 {offsets = [0, 64], sizes = [16, 32], strides = [1, 1]} : vector<16x192xf32> to vector<16x32xf32>
    %14 = vector.extract_strided_slice %10 {offsets = [0, 96], sizes = [16, 32], strides = [1, 1]} : vector<16x192xf32> to vector<16x32xf32>
    %15 = vector.extract_strided_slice %10 {offsets = [0, 128], sizes = [16, 32], strides = [1, 1]} : vector<16x192xf32> to vector<16x32xf32>
    %16 = vector.extract_strided_slice %10 {offsets = [0, 160], sizes = [16, 32], strides = [1, 1]} : vector<16x192xf32> to vector<16x32xf32>
    %17 = vector.shape_cast %11 : vector<16x32xf32> to vector<1x16x32xf32>
    %18 = vector.shape_cast %12 : vector<16x32xf32> to vector<1x16x32xf32>
    %19 = vector.shape_cast %13 : vector<16x32xf32> to vector<1x16x32xf32>
    %20 = vector.shape_cast %14 : vector<16x32xf32> to vector<1x16x32xf32>
    %21 = vector.shape_cast %15 : vector<16x32xf32> to vector<1x16x32xf32>
    %22 = vector.shape_cast %16 : vector<16x32xf32> to vector<1x16x32xf32>
    %23 = tpu.concatenate %17, %18, %19, %20, %21, %22 in 0 : vector<1x16x32xf32>, vector<1x16x32xf32>, vector<1x16x32xf32>, vector<1x16x32xf32>, vector<1x16x32xf32>, vector<1x16x32xf32> -> vector<6x16x32xf32>
    %24 = vector.shape_cast %23 : vector<6x16x32xf32> to vector<96x32xf32>
    %25 = vector.shape_cast %23 : vector<6x16x32xf32> to vector<12x8x32xf32>
    %c0_7 = arith.constant 0 : index
    %c0_8 = arith.constant 0 : index
    %26 = vector.load %arg3[%c0_7, %c0_8] : memref<32x4xf32, #tpu.memory_space<vmem>>, vector<32x4xf32>
    %cst_9 = arith.constant dense<0.000000e+00> : vector<96x4xf32>
    %27 = tpu.matmul %24, %26, %cst_9 {dimension_numbers = #tpu.dot_dimension_numbers<[1], [0], [0], [1], [0, 0, 1, 1], [], []>} : vector<96x32xf32>, vector<32x4xf32>, vector<96x4xf32> -> vector<96x4xf32>
    %c0_10 = arith.constant 0 : index
    %c0_11 = arith.constant 0 : index
    %28 = vector.load %arg4[%c0_10, %c0_11] : memref<1x4xf32, #tpu.memory_space<vmem>>, vector<1x4xf32>
    %29 = vector.broadcast %28 : vector<1x4xf32> to vector<96x4xf32>
    %30 = arith.addf %27, %29 : vector<96x4xf32>
    %c0_12 = arith.constant 0 : index
    %c0_13 = arith.constant 0 : index
    %31 = vector.load %arg5[%c0_12, %c0_13] : memref<32x4xf32, #tpu.memory_space<vmem>>, vector<32x4xf32>
    %cst_14 = arith.constant dense<0.000000e+00> : vector<96x4xf32>
    %32 = tpu.matmul %24, %31, %cst_14 {dimension_numbers = #tpu.dot_dimension_numbers<[1], [0], [0], [1], [0, 0, 1, 1], [], []>} : vector<96x32xf32>, vector<32x4xf32>, vector<96x4xf32> -> vector<96x4xf32>
    %c0_15 = arith.constant 0 : index
    %c0_16 = arith.constant 0 : index
    %33 = vector.load %arg6[%c0_15, %c0_16] : memref<1x4xf32, #tpu.memory_space<vmem>>, vector<1x4xf32>
    %34 = vector.broadcast %33 : vector<1x4xf32> to vector<96x4xf32>
    %35 = arith.addf %32, %34 : vector<96x4xf32>
    %c0_17 = arith.constant 0 : index
    %c0_18 = arith.constant 0 : index
    %36 = vector.load %arg7[%c0_17, %c0_18] : memref<32x32xf32, #tpu.memory_space<vmem>>, vector<32x32xf32>
    %cst_19 = arith.constant dense<0.000000e+00> : vector<96x32xf32>
    %37 = tpu.matmul %24, %36, %cst_19 {dimension_numbers = #tpu.dot_dimension_numbers<[1], [0], [0], [1], [0, 0, 1, 1], [], []>} : vector<96x32xf32>, vector<32x32xf32>, vector<96x32xf32> -> vector<96x32xf32>
    %c0_20 = arith.constant 0 : index
    %c0_21 = arith.constant 0 : index
    %38 = vector.load %arg8[%c0_20, %c0_21] : memref<1x32xf32, #tpu.memory_space<vmem>>, vector<1x32xf32>
    %39 = vector.broadcast %38 : vector<1x32xf32> to vector<96x32xf32>
    %40 = arith.addf %37, %39 : vector<96x32xf32>
    %41 = vector.shape_cast %30 : vector<96x4xf32> to vector<12x8x4xf32>
    %42 = vector.shape_cast %35 : vector<96x4xf32> to vector<12x8x4xf32>
    %43 = vector.shape_cast %40 : vector<96x32xf32> to vector<12x8x32xf32>
    "tpu.trace_start"() <{level = 10 : i32, message = "gic,gjc->gij"}> : () -> ()
    %cst_22 = arith.constant dense<0.000000e+00> : vector<12x8x8xf32>
    %44 = tpu.matmul %41, %42, %cst_22 {dimension_numbers = #tpu.dot_dimension_numbers<[2], [2], [1], [1], [0, 0, 0, 1, 1, 1], [0], [0]>} : vector<12x8x4xf32>, vector<12x8x4xf32>, vector<12x8x8xf32> -> vector<12x8x8xf32>
    "tpu.trace_stop"() : () -> ()
    %cst_23 = arith.constant dense<0xFF800000> : vector<12x8xf32>
    %45 = vector.multi_reduction <maximumf>, %44, %cst_23 [2] : vector<12x8x8xf32> to vector<12x8xf32>
    %46 = vector.shape_cast %45 : vector<12x8xf32> to vector<12x8x1xf32>
    %47 = vector.broadcast %46 : vector<12x8x1xf32> to vector<12x8x8xf32>
    %48 = arith.subf %44, %47 : vector<12x8x8xf32>
    %49 = math.exp %48 : vector<12x8x8xf32>
    %cst_24 = arith.constant dense<0.000000e+00> : vector<12x8xf32>
    %50 = vector.multi_reduction <add>, %49, %cst_24 [2] : vector<12x8x8xf32> to vector<12x8xf32>
    %51 = vector.shape_cast %50 : vector<12x8xf32> to vector<12x8x1xf32>
    %52 = tpu.reciprocal %51 {approx = true} : vector<12x8x1xf32> -> vector<12x8x1xf32>
    %53 = vector.broadcast %52 : vector<12x8x1xf32> to vector<12x8x8xf32>
    %54 = arith.mulf %49, %53 : vector<12x8x8xf32>
    "tpu.trace_start"() <{level = 10 : i32, message = "gij,gjc->gic"}> : () -> ()
    %cst_25 = arith.constant dense<0.000000e+00> : vector<12x8x32xf32>
    %55 = tpu.matmul %54, %43, %cst_25 {dimension_numbers = #tpu.dot_dimension_numbers<[2], [1], [1], [2], [0, 0, 0, 1, 1, 2], [0], [0]>} : vector<12x8x8xf32>, vector<12x8x32xf32>, vector<12x8x32xf32> -> vector<12x8x32xf32>
    "tpu.trace_stop"() : () -> ()
    %c0_26 = arith.constant 0 : index
    %c0_27 = arith.constant 0 : index
    %56 = vector.load %arg9[%c0_26, %c0_27] : memref<1x32xf32, #tpu.memory_space<vmem>>, vector<1x32xf32>
    %57 = vector.shape_cast %56 : vector<1x32xf32> to vector<1x1x32xf32>
    %58 = vector.broadcast %57 : vector<1x1x32xf32> to vector<12x8x32xf32>
    %59 = arith.mulf %58, %55 : vector<12x8x32xf32>
    %60 = arith.addf %59, %25 : vector<12x8x32xf32>
    %cst_28 = arith.constant 0.000000e+00 : f32
    %61 = vector.broadcast %cst_28 : f32 to vector<12x8x32xf32>
    %62 = arith.cmpf oge, %60, %61 : vector<12x8x32xf32>
    %cst_29 = arith.constant 2.000000e-01 : f32
    %63 = vector.broadcast %cst_29 : f32 to vector<12x8x32xf32>
    %64 = arith.mulf %63, %60 : vector<12x8x32xf32>
    %65 = arith.select %62, %60, %64 : vector<12x8x32xi1>, vector<12x8x32xf32>
    %66 = vector.shape_cast %65 : vector<12x8x32xf32> to vector<6x16x32xf32>
    %cst_30 = arith.constant dense<0.000000e+00> : vector<6x32xf32>
    %67 = vector.multi_reduction <add>, %66, %cst_30 [1] : vector<6x16x32xf32> to vector<6x32xf32>
    %68 = vector.shape_cast %67 : vector<6x32xf32> to vector<6x1x32xf32>
    %cst_31 = arith.constant 1.600000e+01 : f32
    %69 = vector.broadcast %cst_31 : f32 to vector<6x1x32xf32>
    %70 = arith.divf %68, %69 : vector<6x1x32xf32>
    %71 = arith.mulf %66, %66 : vector<6x16x32xf32>
    %cst_32 = arith.constant dense<0.000000e+00> : vector<6x32xf32>
    %72 = vector.multi_reduction <add>, %71, %cst_32 [1] : vector<6x16x32xf32> to vector<6x32xf32>
    %73 = vector.shape_cast %72 : vector<6x32xf32> to vector<6x1x32xf32>
    %cst_33 = arith.constant 1.600000e+01 : f32
    %74 = vector.broadcast %cst_33 : f32 to vector<6x1x32xf32>
    %75 = arith.divf %73, %74 : vector<6x1x32xf32>
    %76 = arith.mulf %70, %70 : vector<6x1x32xf32>
    %77 = arith.subf %75, %76 : vector<6x1x32xf32>
    %78 = vector.broadcast %70 : vector<6x1x32xf32> to vector<6x16x32xf32>
    %79 = arith.subf %66, %78 : vector<6x16x32xf32>
    %cst_34 = arith.constant 9.99999974E-6 : f32
    %80 = vector.broadcast %cst_34 : f32 to vector<6x1x32xf32>
    %81 = arith.addf %77, %80 : vector<6x1x32xf32>
    %82 = math.rsqrt %81 : vector<6x1x32xf32>
    %83 = vector.broadcast %82 : vector<6x1x32xf32> to vector<6x16x32xf32>
    %84 = arith.mulf %79, %83 : vector<6x16x32xf32>
    %c0_35 = arith.constant 0 : index
    %c0_36 = arith.constant 0 : index
    %85 = vector.load %arg10[%c0_35, %c0_36] : memref<1x32xf32, #tpu.memory_space<vmem>>, vector<1x32xf32>
    %86 = vector.shape_cast %85 : vector<1x32xf32> to vector<1x1x32xf32>
    %87 = vector.broadcast %86 : vector<1x1x32xf32> to vector<6x16x32xf32>
    %88 = arith.mulf %84, %87 : vector<6x16x32xf32>
    %c0_37 = arith.constant 0 : index
    %c0_38 = arith.constant 0 : index
    %89 = vector.load %arg11[%c0_37, %c0_38] : memref<1x32xf32, #tpu.memory_space<vmem>>, vector<1x32xf32>
    %90 = vector.shape_cast %89 : vector<1x32xf32> to vector<1x1x32xf32>
    %91 = vector.broadcast %90 : vector<1x1x32xf32> to vector<6x16x32xf32>
    %92 = arith.addf %88, %91 : vector<6x16x32xf32>
    %93 = vector.shape_cast %92 : vector<6x16x32xf32> to vector<96x32xf32>
    %c0_39 = arith.constant 0 : index
    %c0_40 = arith.constant 0 : index
    %94 = vector.load %arg12[%c0_39, %c0_40] : memref<32x16xf32, #tpu.memory_space<vmem>>, vector<32x16xf32>
    %cst_41 = arith.constant dense<0.000000e+00> : vector<96x16xf32>
    %95 = tpu.matmul %93, %94, %cst_41 {dimension_numbers = #tpu.dot_dimension_numbers<[1], [0], [0], [1], [0, 0, 1, 1], [], []>} : vector<96x32xf32>, vector<32x16xf32>, vector<96x16xf32> -> vector<96x16xf32>
    %c0_42 = arith.constant 0 : index
    %c0_43 = arith.constant 0 : index
    %96 = vector.load %arg13[%c0_42, %c0_43] : memref<1x16xf32, #tpu.memory_space<vmem>>, vector<1x16xf32>
    %97 = vector.broadcast %96 : vector<1x16xf32> to vector<96x16xf32>
    %98 = arith.addf %95, %97 : vector<96x16xf32>
    %cst_44 = arith.constant 0.000000e+00 : f32
    %99 = vector.broadcast %cst_44 : f32 to vector<96x16xf32>
    %100 = arith.cmpf oge, %98, %99 : vector<96x16xf32>
    %cst_45 = arith.constant 2.000000e-01 : f32
    %101 = vector.broadcast %cst_45 : f32 to vector<96x16xf32>
    %102 = arith.mulf %101, %98 : vector<96x16xf32>
    %103 = arith.select %100, %98, %102 : vector<96x16xi1>, vector<96x16xf32>
    %c0_46 = arith.constant 0 : index
    %c0_47 = arith.constant 0 : index
    %104 = vector.load %arg14[%c0_46, %c0_47] : memref<16x24xf32, #tpu.memory_space<vmem>>, vector<16x24xf32>
    %cst_48 = arith.constant dense<0.000000e+00> : vector<96x24xf32>
    %105 = tpu.matmul %103, %104, %cst_48 {dimension_numbers = #tpu.dot_dimension_numbers<[1], [0], [0], [1], [0, 0, 1, 1], [], []>} : vector<96x16xf32>, vector<16x24xf32>, vector<96x24xf32> -> vector<96x24xf32>
    %c0_49 = arith.constant 0 : index
    %c0_50 = arith.constant 0 : index
    %106 = vector.load %arg15[%c0_49, %c0_50] : memref<1x24xf32, #tpu.memory_space<vmem>>, vector<1x24xf32>
    %107 = vector.broadcast %106 : vector<1x24xf32> to vector<96x24xf32>
    %108 = arith.addf %105, %107 : vector<96x24xf32>
    %109 = vector.extract_strided_slice %108 {offsets = [0, 0], sizes = [96, 8], strides = [1, 1]} : vector<96x24xf32> to vector<96x8xf32>
    %110 = vector.shape_cast %109 : vector<96x8xf32> to vector<12x8x8xf32>
    %111 = vector.extract_strided_slice %108 {offsets = [0, 8], sizes = [96, 8], strides = [1, 1]} : vector<96x24xf32> to vector<96x8xf32>
    %112 = vector.shape_cast %111 : vector<96x8xf32> to vector<12x8x8xf32>
    %113 = vector.extract_strided_slice %108 {offsets = [0, 16], sizes = [96, 8], strides = [1, 1]} : vector<96x24xf32> to vector<96x8xf32>
    %114 = vector.shape_cast %113 : vector<96x8xf32> to vector<12x8x8xf32>
    %c0_51 = arith.constant 0 : index
    %c0_52 = arith.constant 0 : index
    %115 = vector.load %arg16[%c0_51, %c0_52] : memref<8x24xf32, #tpu.memory_space<vmem>>, vector<8x24xf32>
    %116 = vector.extract_strided_slice %115 {offsets = [0, 0], sizes = [8, 8], strides = [1, 1]} : vector<8x24xf32> to vector<8x8xf32>
    %117 = vector.extract_strided_slice %115 {offsets = [0, 8], sizes = [8, 8], strides = [1, 1]} : vector<8x24xf32> to vector<8x8xf32>
    %118 = vector.extract_strided_slice %115 {offsets = [0, 16], sizes = [8, 8], strides = [1, 1]} : vector<8x24xf32> to vector<8x8xf32>
    %c0_53 = arith.constant 0 : index
    %c0_54 = arith.constant 0 : index
    %119 = vector.load %arg17[%c0_53, %c0_54] : memref<1x24xf32, #tpu.memory_space<vmem>>, vector<1x24xf32>
    %120 = vector.extract_strided_slice %119 {offsets = [0, 0], sizes = [1, 8], strides = [1, 1]} : vector<1x24xf32> to vector<1x8xf32>
    %121 = vector.extract_strided_slice %119 {offsets = [0, 8], sizes = [1, 8], strides = [1, 1]} : vector<1x24xf32> to vector<1x8xf32>
    %122 = vector.extract_strided_slice %119 {offsets = [0, 16], sizes = [1, 8], strides = [1, 1]} : vector<1x24xf32> to vector<1x8xf32>
    %cst_55 = arith.constant 0.000000e+00 : f32
    %123 = vector.broadcast %cst_55 : f32 to vector<12x8xf32>
    %cst_56 = arith.constant dense<0.000000e+00> : vector<12x8xf32>
    %124 = tpu.matmul %123, %116, %cst_56 {dimension_numbers = #tpu.dot_dimension_numbers<[1], [0], [0], [1], [0, 0, 1, 1], [], []>} : vector<12x8xf32>, vector<8x8xf32>, vector<12x8xf32> -> vector<12x8xf32>
    %125 = vector.broadcast %120 : vector<1x8xf32> to vector<12x8xf32>
    %126 = arith.addf %124, %125 : vector<12x8xf32>
    %cst_57 = arith.constant dense<0.000000e+00> : vector<12x8xf32>
    %127 = tpu.matmul %123, %117, %cst_57 {dimension_numbers = #tpu.dot_dimension_numbers<[1], [0], [0], [1], [0, 0, 1, 1], [], []>} : vector<12x8xf32>, vector<8x8xf32>, vector<12x8xf32> -> vector<12x8xf32>
    %128 = vector.broadcast %121 : vector<1x8xf32> to vector<12x8xf32>
    %129 = arith.addf %127, %128 : vector<12x8xf32>
    %cst_58 = arith.constant dense<0.000000e+00> : vector<12x8xf32>
    %130 = tpu.matmul %123, %118, %cst_58 {dimension_numbers = #tpu.dot_dimension_numbers<[1], [0], [0], [1], [0, 0, 1, 1], [], []>} : vector<12x8xf32>, vector<8x8xf32>, vector<12x8xf32> -> vector<12x8xf32>
    %131 = vector.broadcast %122 : vector<1x8xf32> to vector<12x8xf32>
    %132 = arith.addf %130, %131 : vector<12x8xf32>
    %133 = vector.extract_strided_slice %110 {offsets = [0, 0, 0], sizes = [12, 1, 8], strides = [1, 1, 1]} : vector<12x8x8xf32> to vector<12x1x8xf32>
    %134 = vector.shape_cast %133 : vector<12x1x8xf32> to vector<12x8xf32>
    %135 = arith.addf %134, %126 : vector<12x8xf32>
    %136 = arith.negf %135 : vector<12x8xf32>
    %137 = math.exp %136 : vector<12x8xf32>
    %cst_59 = arith.constant 1.000000e+00 : f32
    %138 = vector.broadcast %cst_59 : f32 to vector<12x8xf32>
    %139 = arith.addf %138, %137 : vector<12x8xf32>
    %140 = arith.divf %138, %139 : vector<12x8xf32>
    %141 = vector.extract_strided_slice %112 {offsets = [0, 0, 0], sizes = [12, 1, 8], strides = [1, 1, 1]} : vector<12x8x8xf32> to vector<12x1x8xf32>
    %142 = vector.shape_cast %141 : vector<12x1x8xf32> to vector<12x8xf32>
    %143 = arith.addf %142, %129 : vector<12x8xf32>
    %144 = arith.negf %143 : vector<12x8xf32>
    %145 = math.exp %144 : vector<12x8xf32>
    %cst_60 = arith.constant 1.000000e+00 : f32
    %146 = vector.broadcast %cst_60 : f32 to vector<12x8xf32>
    %147 = arith.addf %146, %145 : vector<12x8xf32>
    %148 = arith.divf %146, %147 : vector<12x8xf32>
    %149 = vector.extract_strided_slice %114 {offsets = [0, 0, 0], sizes = [12, 1, 8], strides = [1, 1, 1]} : vector<12x8x8xf32> to vector<12x1x8xf32>
    %150 = vector.shape_cast %149 : vector<12x1x8xf32> to vector<12x8xf32>
    %151 = arith.mulf %140, %132 : vector<12x8xf32>
    %152 = arith.addf %150, %151 : vector<12x8xf32>
    %153 = math.tanh %152 : vector<12x8xf32>
    %cst_61 = arith.constant 1.000000e+00 : f32
    %154 = vector.broadcast %cst_61 : f32 to vector<12x8xf32>
    %155 = arith.subf %154, %148 : vector<12x8xf32>
    %156 = arith.mulf %155, %153 : vector<12x8xf32>
    %157 = arith.mulf %148, %123 : vector<12x8xf32>
    %158 = arith.addf %156, %157 : vector<12x8xf32>
    %cst_62 = arith.constant dense<0.000000e+00> : vector<12x8xf32>
    %159 = tpu.matmul %158, %116, %cst_62 {dimension_numbers = #tpu.dot_dimension_numbers<[1], [0], [0], [1], [0, 0, 1, 1], [], []>} : vector<12x8xf32>, vector<8x8xf32>, vector<12x8xf32> -> vector<12x8xf32>
    %160 = vector.broadcast %120 : vector<1x8xf32> to vector<12x8xf32>
    %161 = arith.addf %159, %160 : vector<12x8xf32>
    %cst_63 = arith.constant dense<0.000000e+00> : vector<12x8xf32>
    %162 = tpu.matmul %158, %117, %cst_63 {dimension_numbers = #tpu.dot_dimension_numbers<[1], [0], [0], [1], [0, 0, 1, 1], [], []>} : vector<12x8xf32>, vector<8x8xf32>, vector<12x8xf32> -> vector<12x8xf32>
    %163 = vector.broadcast %121 : vector<1x8xf32> to vector<12x8xf32>
    %164 = arith.addf %162, %163 : vector<12x8xf32>
    %cst_64 = arith.constant dense<0.000000e+00> : vector<12x8xf32>
    %165 = tpu.matmul %158, %118, %cst_64 {dimension_numbers = #tpu.dot_dimension_numbers<[1], [0], [0], [1], [0, 0, 1, 1], [], []>} : vector<12x8xf32>, vector<8x8xf32>, vector<12x8xf32> -> vector<12x8xf32>
    %166 = vector.broadcast %122 : vector<1x8xf32> to vector<12x8xf32>
    %167 = arith.addf %165, %166 : vector<12x8xf32>
    %168 = vector.extract_strided_slice %110 {offsets = [0, 1, 0], sizes = [12, 1, 8], strides = [1, 1, 1]} : vector<12x8x8xf32> to vector<12x1x8xf32>
    %169 = vector.shape_cast %168 : vector<12x1x8xf32> to vector<12x8xf32>
    %170 = arith.addf %169, %161 : vector<12x8xf32>
    %171 = arith.negf %170 : vector<12x8xf32>
    %172 = math.exp %171 : vector<12x8xf32>
    %cst_65 = arith.constant 1.000000e+00 : f32
    %173 = vector.broadcast %cst_65 : f32 to vector<12x8xf32>
    %174 = arith.addf %173, %172 : vector<12x8xf32>
    %175 = arith.divf %173, %174 : vector<12x8xf32>
    %176 = vector.extract_strided_slice %112 {offsets = [0, 1, 0], sizes = [12, 1, 8], strides = [1, 1, 1]} : vector<12x8x8xf32> to vector<12x1x8xf32>
    %177 = vector.shape_cast %176 : vector<12x1x8xf32> to vector<12x8xf32>
    %178 = arith.addf %177, %164 : vector<12x8xf32>
    %179 = arith.negf %178 : vector<12x8xf32>
    %180 = math.exp %179 : vector<12x8xf32>
    %cst_66 = arith.constant 1.000000e+00 : f32
    %181 = vector.broadcast %cst_66 : f32 to vector<12x8xf32>
    %182 = arith.addf %181, %180 : vector<12x8xf32>
    %183 = arith.divf %181, %182 : vector<12x8xf32>
    %184 = vector.extract_strided_slice %114 {offsets = [0, 1, 0], sizes = [12, 1, 8], strides = [1, 1, 1]} : vector<12x8x8xf32> to vector<12x1x8xf32>
    %185 = vector.shape_cast %184 : vector<12x1x8xf32> to vector<12x8xf32>
    %186 = arith.mulf %175, %167 : vector<12x8xf32>
    %187 = arith.addf %185, %186 : vector<12x8xf32>
    %188 = math.tanh %187 : vector<12x8xf32>
    %cst_67 = arith.constant 1.000000e+00 : f32
    %189 = vector.broadcast %cst_67 : f32 to vector<12x8xf32>
    %190 = arith.subf %189, %183 : vector<12x8xf32>
    %191 = arith.mulf %190, %188 : vector<12x8xf32>
    %192 = arith.mulf %183, %158 : vector<12x8xf32>
    %193 = arith.addf %191, %192 : vector<12x8xf32>
    %cst_68 = arith.constant dense<0.000000e+00> : vector<12x8xf32>
    %194 = tpu.matmul %193, %116, %cst_68 {dimension_numbers = #tpu.dot_dimension_numbers<[1], [0], [0], [1], [0, 0, 1, 1], [], []>} : vector<12x8xf32>, vector<8x8xf32>, vector<12x8xf32> -> vector<12x8xf32>
    %195 = vector.broadcast %120 : vector<1x8xf32> to vector<12x8xf32>
    %196 = arith.addf %194, %195 : vector<12x8xf32>
    %cst_69 = arith.constant dense<0.000000e+00> : vector<12x8xf32>
    %197 = tpu.matmul %193, %117, %cst_69 {dimension_numbers = #tpu.dot_dimension_numbers<[1], [0], [0], [1], [0, 0, 1, 1], [], []>} : vector<12x8xf32>, vector<8x8xf32>, vector<12x8xf32> -> vector<12x8xf32>
    %198 = vector.broadcast %121 : vector<1x8xf32> to vector<12x8xf32>
    %199 = arith.addf %197, %198 : vector<12x8xf32>
    %cst_70 = arith.constant dense<0.000000e+00> : vector<12x8xf32>
    %200 = tpu.matmul %193, %118, %cst_70 {dimension_numbers = #tpu.dot_dimension_numbers<[1], [0], [0], [1], [0, 0, 1, 1], [], []>} : vector<12x8xf32>, vector<8x8xf32>, vector<12x8xf32> -> vector<12x8xf32>
    %201 = vector.broadcast %122 : vector<1x8xf32> to vector<12x8xf32>
    %202 = arith.addf %200, %201 : vector<12x8xf32>
    %203 = vector.extract_strided_slice %110 {offsets = [0, 2, 0], sizes = [12, 1, 8], strides = [1, 1, 1]} : vector<12x8x8xf32> to vector<12x1x8xf32>
    %204 = vector.shape_cast %203 : vector<12x1x8xf32> to vector<12x8xf32>
    %205 = arith.addf %204, %196 : vector<12x8xf32>
    %206 = arith.negf %205 : vector<12x8xf32>
    %207 = math.exp %206 : vector<12x8xf32>
    %cst_71 = arith.constant 1.000000e+00 : f32
    %208 = vector.broadcast %cst_71 : f32 to vector<12x8xf32>
    %209 = arith.addf %208, %207 : vector<12x8xf32>
    %210 = arith.divf %208, %209 : vector<12x8xf32>
    %211 = vector.extract_strided_slice %112 {offsets = [0, 2, 0], sizes = [12, 1, 8], strides = [1, 1, 1]} : vector<12x8x8xf32> to vector<12x1x8xf32>
    %212 = vector.shape_cast %211 : vector<12x1x8xf32> to vector<12x8xf32>
    %213 = arith.addf %212, %199 : vector<12x8xf32>
    %214 = arith.negf %213 : vector<12x8xf32>
    %215 = math.exp %214 : vector<12x8xf32>
    %cst_72 = arith.constant 1.000000e+00 : f32
    %216 = vector.broadcast %cst_72 : f32 to vector<12x8xf32>
    %217 = arith.addf %216, %215 : vector<12x8xf32>
    %218 = arith.divf %216, %217 : vector<12x8xf32>
    %219 = vector.extract_strided_slice %114 {offsets = [0, 2, 0], sizes = [12, 1, 8], strides = [1, 1, 1]} : vector<12x8x8xf32> to vector<12x1x8xf32>
    %220 = vector.shape_cast %219 : vector<12x1x8xf32> to vector<12x8xf32>
    %221 = arith.mulf %210, %202 : vector<12x8xf32>
    %222 = arith.addf %220, %221 : vector<12x8xf32>
    %223 = math.tanh %222 : vector<12x8xf32>
    %cst_73 = arith.constant 1.000000e+00 : f32
    %224 = vector.broadcast %cst_73 : f32 to vector<12x8xf32>
    %225 = arith.subf %224, %218 : vector<12x8xf32>
    %226 = arith.mulf %225, %223 : vector<12x8xf32>
    %227 = arith.mulf %218, %193 : vector<12x8xf32>
    %228 = arith.addf %226, %227 : vector<12x8xf32>
    %cst_74 = arith.constant dense<0.000000e+00> : vector<12x8xf32>
    %229 = tpu.matmul %228, %116, %cst_74 {dimension_numbers = #tpu.dot_dimension_numbers<[1], [0], [0], [1], [0, 0, 1, 1], [], []>} : vector<12x8xf32>, vector<8x8xf32>, vector<12x8xf32> -> vector<12x8xf32>
    %230 = vector.broadcast %120 : vector<1x8xf32> to vector<12x8xf32>
    %231 = arith.addf %229, %230 : vector<12x8xf32>
    %cst_75 = arith.constant dense<0.000000e+00> : vector<12x8xf32>
    %232 = tpu.matmul %228, %117, %cst_75 {dimension_numbers = #tpu.dot_dimension_numbers<[1], [0], [0], [1], [0, 0, 1, 1], [], []>} : vector<12x8xf32>, vector<8x8xf32>, vector<12x8xf32> -> vector<12x8xf32>
    %233 = vector.broadcast %121 : vector<1x8xf32> to vector<12x8xf32>
    %234 = arith.addf %232, %233 : vector<12x8xf32>
    %cst_76 = arith.constant dense<0.000000e+00> : vector<12x8xf32>
    %235 = tpu.matmul %228, %118, %cst_76 {dimension_numbers = #tpu.dot_dimension_numbers<[1], [0], [0], [1], [0, 0, 1, 1], [], []>} : vector<12x8xf32>, vector<8x8xf32>, vector<12x8xf32> -> vector<12x8xf32>
    %236 = vector.broadcast %122 : vector<1x8xf32> to vector<12x8xf32>
    %237 = arith.addf %235, %236 : vector<12x8xf32>
    %238 = vector.extract_strided_slice %110 {offsets = [0, 3, 0], sizes = [12, 1, 8], strides = [1, 1, 1]} : vector<12x8x8xf32> to vector<12x1x8xf32>
    %239 = vector.shape_cast %238 : vector<12x1x8xf32> to vector<12x8xf32>
    %240 = arith.addf %239, %231 : vector<12x8xf32>
    %241 = arith.negf %240 : vector<12x8xf32>
    %242 = math.exp %241 : vector<12x8xf32>
    %cst_77 = arith.constant 1.000000e+00 : f32
    %243 = vector.broadcast %cst_77 : f32 to vector<12x8xf32>
    %244 = arith.addf %243, %242 : vector<12x8xf32>
    %245 = arith.divf %243, %244 : vector<12x8xf32>
    %246 = vector.extract_strided_slice %112 {offsets = [0, 3, 0], sizes = [12, 1, 8], strides = [1, 1, 1]} : vector<12x8x8xf32> to vector<12x1x8xf32>
    %247 = vector.shape_cast %246 : vector<12x1x8xf32> to vector<12x8xf32>
    %248 = arith.addf %247, %234 : vector<12x8xf32>
    %249 = arith.negf %248 : vector<12x8xf32>
    %250 = math.exp %249 : vector<12x8xf32>
    %cst_78 = arith.constant 1.000000e+00 : f32
    %251 = vector.broadcast %cst_78 : f32 to vector<12x8xf32>
    %252 = arith.addf %251, %250 : vector<12x8xf32>
    %253 = arith.divf %251, %252 : vector<12x8xf32>
    %254 = vector.extract_strided_slice %114 {offsets = [0, 3, 0], sizes = [12, 1, 8], strides = [1, 1, 1]} : vector<12x8x8xf32> to vector<12x1x8xf32>
    %255 = vector.shape_cast %254 : vector<12x1x8xf32> to vector<12x8xf32>
    %256 = arith.mulf %245, %237 : vector<12x8xf32>
    %257 = arith.addf %255, %256 : vector<12x8xf32>
    %258 = math.tanh %257 : vector<12x8xf32>
    %cst_79 = arith.constant 1.000000e+00 : f32
    %259 = vector.broadcast %cst_79 : f32 to vector<12x8xf32>
    %260 = arith.subf %259, %253 : vector<12x8xf32>
    %261 = arith.mulf %260, %258 : vector<12x8xf32>
    %262 = arith.mulf %253, %228 : vector<12x8xf32>
    %263 = arith.addf %261, %262 : vector<12x8xf32>
    %cst_80 = arith.constant dense<0.000000e+00> : vector<12x8xf32>
    %264 = tpu.matmul %263, %116, %cst_80 {dimension_numbers = #tpu.dot_dimension_numbers<[1], [0], [0], [1], [0, 0, 1, 1], [], []>} : vector<12x8xf32>, vector<8x8xf32>, vector<12x8xf32> -> vector<12x8xf32>
    %265 = vector.broadcast %120 : vector<1x8xf32> to vector<12x8xf32>
    %266 = arith.addf %264, %265 : vector<12x8xf32>
    %cst_81 = arith.constant dense<0.000000e+00> : vector<12x8xf32>
    %267 = tpu.matmul %263, %117, %cst_81 {dimension_numbers = #tpu.dot_dimension_numbers<[1], [0], [0], [1], [0, 0, 1, 1], [], []>} : vector<12x8xf32>, vector<8x8xf32>, vector<12x8xf32> -> vector<12x8xf32>
    %268 = vector.broadcast %121 : vector<1x8xf32> to vector<12x8xf32>
    %269 = arith.addf %267, %268 : vector<12x8xf32>
    %cst_82 = arith.constant dense<0.000000e+00> : vector<12x8xf32>
    %270 = tpu.matmul %263, %118, %cst_82 {dimension_numbers = #tpu.dot_dimension_numbers<[1], [0], [0], [1], [0, 0, 1, 1], [], []>} : vector<12x8xf32>, vector<8x8xf32>, vector<12x8xf32> -> vector<12x8xf32>
    %271 = vector.broadcast %122 : vector<1x8xf32> to vector<12x8xf32>
    %272 = arith.addf %270, %271 : vector<12x8xf32>
    %273 = vector.extract_strided_slice %110 {offsets = [0, 4, 0], sizes = [12, 1, 8], strides = [1, 1, 1]} : vector<12x8x8xf32> to vector<12x1x8xf32>
    %274 = vector.shape_cast %273 : vector<12x1x8xf32> to vector<12x8xf32>
    %275 = arith.addf %274, %266 : vector<12x8xf32>
    %276 = arith.negf %275 : vector<12x8xf32>
    %277 = math.exp %276 : vector<12x8xf32>
    %cst_83 = arith.constant 1.000000e+00 : f32
    %278 = vector.broadcast %cst_83 : f32 to vector<12x8xf32>
    %279 = arith.addf %278, %277 : vector<12x8xf32>
    %280 = arith.divf %278, %279 : vector<12x8xf32>
    %281 = vector.extract_strided_slice %112 {offsets = [0, 4, 0], sizes = [12, 1, 8], strides = [1, 1, 1]} : vector<12x8x8xf32> to vector<12x1x8xf32>
    %282 = vector.shape_cast %281 : vector<12x1x8xf32> to vector<12x8xf32>
    %283 = arith.addf %282, %269 : vector<12x8xf32>
    %284 = arith.negf %283 : vector<12x8xf32>
    %285 = math.exp %284 : vector<12x8xf32>
    %cst_84 = arith.constant 1.000000e+00 : f32
    %286 = vector.broadcast %cst_84 : f32 to vector<12x8xf32>
    %287 = arith.addf %286, %285 : vector<12x8xf32>
    %288 = arith.divf %286, %287 : vector<12x8xf32>
    %289 = vector.extract_strided_slice %114 {offsets = [0, 4, 0], sizes = [12, 1, 8], strides = [1, 1, 1]} : vector<12x8x8xf32> to vector<12x1x8xf32>
    %290 = vector.shape_cast %289 : vector<12x1x8xf32> to vector<12x8xf32>
    %291 = arith.mulf %280, %272 : vector<12x8xf32>
    %292 = arith.addf %290, %291 : vector<12x8xf32>
    %293 = math.tanh %292 : vector<12x8xf32>
    %cst_85 = arith.constant 1.000000e+00 : f32
    %294 = vector.broadcast %cst_85 : f32 to vector<12x8xf32>
    %295 = arith.subf %294, %288 : vector<12x8xf32>
    %296 = arith.mulf %295, %293 : vector<12x8xf32>
    %297 = arith.mulf %288, %263 : vector<12x8xf32>
    %298 = arith.addf %296, %297 : vector<12x8xf32>
    %cst_86 = arith.constant dense<0.000000e+00> : vector<12x8xf32>
    %299 = tpu.matmul %298, %116, %cst_86 {dimension_numbers = #tpu.dot_dimension_numbers<[1], [0], [0], [1], [0, 0, 1, 1], [], []>} : vector<12x8xf32>, vector<8x8xf32>, vector<12x8xf32> -> vector<12x8xf32>
    %300 = vector.broadcast %120 : vector<1x8xf32> to vector<12x8xf32>
    %301 = arith.addf %299, %300 : vector<12x8xf32>
    %cst_87 = arith.constant dense<0.000000e+00> : vector<12x8xf32>
    %302 = tpu.matmul %298, %117, %cst_87 {dimension_numbers = #tpu.dot_dimension_numbers<[1], [0], [0], [1], [0, 0, 1, 1], [], []>} : vector<12x8xf32>, vector<8x8xf32>, vector<12x8xf32> -> vector<12x8xf32>
    %303 = vector.broadcast %121 : vector<1x8xf32> to vector<12x8xf32>
    %304 = arith.addf %302, %303 : vector<12x8xf32>
    %cst_88 = arith.constant dense<0.000000e+00> : vector<12x8xf32>
    %305 = tpu.matmul %298, %118, %cst_88 {dimension_numbers = #tpu.dot_dimension_numbers<[1], [0], [0], [1], [0, 0, 1, 1], [], []>} : vector<12x8xf32>, vector<8x8xf32>, vector<12x8xf32> -> vector<12x8xf32>
    %306 = vector.broadcast %122 : vector<1x8xf32> to vector<12x8xf32>
    %307 = arith.addf %305, %306 : vector<12x8xf32>
    %308 = vector.extract_strided_slice %110 {offsets = [0, 5, 0], sizes = [12, 1, 8], strides = [1, 1, 1]} : vector<12x8x8xf32> to vector<12x1x8xf32>
    %309 = vector.shape_cast %308 : vector<12x1x8xf32> to vector<12x8xf32>
    %310 = arith.addf %309, %301 : vector<12x8xf32>
    %311 = arith.negf %310 : vector<12x8xf32>
    %312 = math.exp %311 : vector<12x8xf32>
    %cst_89 = arith.constant 1.000000e+00 : f32
    %313 = vector.broadcast %cst_89 : f32 to vector<12x8xf32>
    %314 = arith.addf %313, %312 : vector<12x8xf32>
    %315 = arith.divf %313, %314 : vector<12x8xf32>
    %316 = vector.extract_strided_slice %112 {offsets = [0, 5, 0], sizes = [12, 1, 8], strides = [1, 1, 1]} : vector<12x8x8xf32> to vector<12x1x8xf32>
    %317 = vector.shape_cast %316 : vector<12x1x8xf32> to vector<12x8xf32>
    %318 = arith.addf %317, %304 : vector<12x8xf32>
    %319 = arith.negf %318 : vector<12x8xf32>
    %320 = math.exp %319 : vector<12x8xf32>
    %cst_90 = arith.constant 1.000000e+00 : f32
    %321 = vector.broadcast %cst_90 : f32 to vector<12x8xf32>
    %322 = arith.addf %321, %320 : vector<12x8xf32>
    %323 = arith.divf %321, %322 : vector<12x8xf32>
    %324 = vector.extract_strided_slice %114 {offsets = [0, 5, 0], sizes = [12, 1, 8], strides = [1, 1, 1]} : vector<12x8x8xf32> to vector<12x1x8xf32>
    %325 = vector.shape_cast %324 : vector<12x1x8xf32> to vector<12x8xf32>
    %326 = arith.mulf %315, %307 : vector<12x8xf32>
    %327 = arith.addf %325, %326 : vector<12x8xf32>
    %328 = math.tanh %327 : vector<12x8xf32>
    %cst_91 = arith.constant 1.000000e+00 : f32
    %329 = vector.broadcast %cst_91 : f32 to vector<12x8xf32>
    %330 = arith.subf %329, %323 : vector<12x8xf32>
    %331 = arith.mulf %330, %328 : vector<12x8xf32>
    %332 = arith.mulf %323, %298 : vector<12x8xf32>
    %333 = arith.addf %331, %332 : vector<12x8xf32>
    %cst_92 = arith.constant dense<0.000000e+00> : vector<12x8xf32>
    %334 = tpu.matmul %333, %116, %cst_92 {dimension_numbers = #tpu.dot_dimension_numbers<[1], [0], [0], [1], [0, 0, 1, 1], [], []>} : vector<12x8xf32>, vector<8x8xf32>, vector<12x8xf32> -> vector<12x8xf32>
    %335 = vector.broadcast %120 : vector<1x8xf32> to vector<12x8xf32>
    %336 = arith.addf %334, %335 : vector<12x8xf32>
    %cst_93 = arith.constant dense<0.000000e+00> : vector<12x8xf32>
    %337 = tpu.matmul %333, %117, %cst_93 {dimension_numbers = #tpu.dot_dimension_numbers<[1], [0], [0], [1], [0, 0, 1, 1], [], []>} : vector<12x8xf32>, vector<8x8xf32>, vector<12x8xf32> -> vector<12x8xf32>
    %338 = vector.broadcast %121 : vector<1x8xf32> to vector<12x8xf32>
    %339 = arith.addf %337, %338 : vector<12x8xf32>
    %cst_94 = arith.constant dense<0.000000e+00> : vector<12x8xf32>
    %340 = tpu.matmul %333, %118, %cst_94 {dimension_numbers = #tpu.dot_dimension_numbers<[1], [0], [0], [1], [0, 0, 1, 1], [], []>} : vector<12x8xf32>, vector<8x8xf32>, vector<12x8xf32> -> vector<12x8xf32>
    %341 = vector.broadcast %122 : vector<1x8xf32> to vector<12x8xf32>
    %342 = arith.addf %340, %341 : vector<12x8xf32>
    %343 = vector.extract_strided_slice %110 {offsets = [0, 6, 0], sizes = [12, 1, 8], strides = [1, 1, 1]} : vector<12x8x8xf32> to vector<12x1x8xf32>
    %344 = vector.shape_cast %343 : vector<12x1x8xf32> to vector<12x8xf32>
    %345 = arith.addf %344, %336 : vector<12x8xf32>
    %346 = arith.negf %345 : vector<12x8xf32>
    %347 = math.exp %346 : vector<12x8xf32>
    %cst_95 = arith.constant 1.000000e+00 : f32
    %348 = vector.broadcast %cst_95 : f32 to vector<12x8xf32>
    %349 = arith.addf %348, %347 : vector<12x8xf32>
    %350 = arith.divf %348, %349 : vector<12x8xf32>
    %351 = vector.extract_strided_slice %112 {offsets = [0, 6, 0], sizes = [12, 1, 8], strides = [1, 1, 1]} : vector<12x8x8xf32> to vector<12x1x8xf32>
    %352 = vector.shape_cast %351 : vector<12x1x8xf32> to vector<12x8xf32>
    %353 = arith.addf %352, %339 : vector<12x8xf32>
    %354 = arith.negf %353 : vector<12x8xf32>
    %355 = math.exp %354 : vector<12x8xf32>
    %cst_96 = arith.constant 1.000000e+00 : f32
    %356 = vector.broadcast %cst_96 : f32 to vector<12x8xf32>
    %357 = arith.addf %356, %355 : vector<12x8xf32>
    %358 = arith.divf %356, %357 : vector<12x8xf32>
    %359 = vector.extract_strided_slice %114 {offsets = [0, 6, 0], sizes = [12, 1, 8], strides = [1, 1, 1]} : vector<12x8x8xf32> to vector<12x1x8xf32>
    %360 = vector.shape_cast %359 : vector<12x1x8xf32> to vector<12x8xf32>
    %361 = arith.mulf %350, %342 : vector<12x8xf32>
    %362 = arith.addf %360, %361 : vector<12x8xf32>
    %363 = math.tanh %362 : vector<12x8xf32>
    %cst_97 = arith.constant 1.000000e+00 : f32
    %364 = vector.broadcast %cst_97 : f32 to vector<12x8xf32>
    %365 = arith.subf %364, %358 : vector<12x8xf32>
    %366 = arith.mulf %365, %363 : vector<12x8xf32>
    %367 = arith.mulf %358, %333 : vector<12x8xf32>
    %368 = arith.addf %366, %367 : vector<12x8xf32>
    %cst_98 = arith.constant dense<0.000000e+00> : vector<12x8xf32>
    %369 = tpu.matmul %368, %116, %cst_98 {dimension_numbers = #tpu.dot_dimension_numbers<[1], [0], [0], [1], [0, 0, 1, 1], [], []>} : vector<12x8xf32>, vector<8x8xf32>, vector<12x8xf32> -> vector<12x8xf32>
    %370 = vector.broadcast %120 : vector<1x8xf32> to vector<12x8xf32>
    %371 = arith.addf %369, %370 : vector<12x8xf32>
    %cst_99 = arith.constant dense<0.000000e+00> : vector<12x8xf32>
    %372 = tpu.matmul %368, %117, %cst_99 {dimension_numbers = #tpu.dot_dimension_numbers<[1], [0], [0], [1], [0, 0, 1, 1], [], []>} : vector<12x8xf32>, vector<8x8xf32>, vector<12x8xf32> -> vector<12x8xf32>
    %373 = vector.broadcast %121 : vector<1x8xf32> to vector<12x8xf32>
    %374 = arith.addf %372, %373 : vector<12x8xf32>
    %cst_100 = arith.constant dense<0.000000e+00> : vector<12x8xf32>
    %375 = tpu.matmul %368, %118, %cst_100 {dimension_numbers = #tpu.dot_dimension_numbers<[1], [0], [0], [1], [0, 0, 1, 1], [], []>} : vector<12x8xf32>, vector<8x8xf32>, vector<12x8xf32> -> vector<12x8xf32>
    %376 = vector.broadcast %122 : vector<1x8xf32> to vector<12x8xf32>
    %377 = arith.addf %375, %376 : vector<12x8xf32>
    %378 = vector.extract_strided_slice %110 {offsets = [0, 7, 0], sizes = [12, 1, 8], strides = [1, 1, 1]} : vector<12x8x8xf32> to vector<12x1x8xf32>
    %379 = vector.shape_cast %378 : vector<12x1x8xf32> to vector<12x8xf32>
    %380 = arith.addf %379, %371 : vector<12x8xf32>
    %381 = arith.negf %380 : vector<12x8xf32>
    %382 = math.exp %381 : vector<12x8xf32>
    %cst_101 = arith.constant 1.000000e+00 : f32
    %383 = vector.broadcast %cst_101 : f32 to vector<12x8xf32>
    %384 = arith.addf %383, %382 : vector<12x8xf32>
    %385 = arith.divf %383, %384 : vector<12x8xf32>
    %386 = vector.extract_strided_slice %112 {offsets = [0, 7, 0], sizes = [12, 1, 8], strides = [1, 1, 1]} : vector<12x8x8xf32> to vector<12x1x8xf32>
    %387 = vector.shape_cast %386 : vector<12x1x8xf32> to vector<12x8xf32>
    %388 = arith.addf %387, %374 : vector<12x8xf32>
    %389 = arith.negf %388 : vector<12x8xf32>
    %390 = math.exp %389 : vector<12x8xf32>
    %cst_102 = arith.constant 1.000000e+00 : f32
    %391 = vector.broadcast %cst_102 : f32 to vector<12x8xf32>
    %392 = arith.addf %391, %390 : vector<12x8xf32>
    %393 = arith.divf %391, %392 : vector<12x8xf32>
    %394 = vector.extract_strided_slice %114 {offsets = [0, 7, 0], sizes = [12, 1, 8], strides = [1, 1, 1]} : vector<12x8x8xf32> to vector<12x1x8xf32>
    %395 = vector.shape_cast %394 : vector<12x1x8xf32> to vector<12x8xf32>
    %396 = arith.mulf %385, %377 : vector<12x8xf32>
    %397 = arith.addf %395, %396 : vector<12x8xf32>
    %398 = math.tanh %397 : vector<12x8xf32>
    %cst_103 = arith.constant 1.000000e+00 : f32
    %399 = vector.broadcast %cst_103 : f32 to vector<12x8xf32>
    %400 = arith.subf %399, %393 : vector<12x8xf32>
    %401 = arith.mulf %400, %398 : vector<12x8xf32>
    %402 = arith.mulf %393, %368 : vector<12x8xf32>
    %403 = arith.addf %401, %402 : vector<12x8xf32>
    %c0_104 = arith.constant 0 : index
    %c0_105 = arith.constant 0 : index
    %404 = vector.load %arg18[%c0_104, %c0_105] : memref<12x8xf32, #tpu.memory_space<vmem>>, vector<12x8xf32>
    tpu.vector_store %arg18[%c0_104, %c0_105], %403 {strides = array<i32>} : memref<12x8xf32, #tpu.memory_space<vmem>>, vector<12x8xf32>,
    return
  }
}

</mosaic_0001>

<llo_original>
// kernel: gumbel_rel_rnn_discriminator.1
$region0: #{gumbel_rel_rnn_discriminator.1}
  #allocation0 [shape = 'u32[]', space=smem, size = 0x4, offset = 0x4, fixed_abs, tag = 'smem constant byte address 0x4 - core index']
  #allocation1 [shape = 'u32[144,128]{1,0:T(1,128)}', space=vmem, size = 0x12000, scoped, tag = 'internal scratch']
  %s0 = inlined_call_operand.vmem [shape: f32[16,4], index: 0, kind: input, shape index: {}]
  %s1 = inlined_call_operand.vmem [shape: f32[4,192], index: 1, kind: input, shape index: {}]
  %s2 = inlined_call_operand.vmem [shape: f32[1,192], index: 2, kind: input, shape index: {}]
  %s3 = inlined_call_operand.vmem [shape: f32[32,4], index: 3, kind: input, shape index: {}]
  %s4 = inlined_call_operand.vmem [shape: f32[1,4], index: 4, kind: input, shape index: {}]
  %s5 = inlined_call_operand.vmem [shape: f32[32,4], index: 5, kind: input, shape index: {}]
  %s6 = inlined_call_operand.vmem [shape: f32[1,4], index: 6, kind: input, shape index: {}]
  %s7 = inlined_call_operand.vmem [shape: f32[32,32], index: 7, kind: input, shape index: {}]
  %s8 = inlined_call_operand.vmem [shape: f32[1,32], index: 8, kind: input, shape index: {}]
  %s9 = inlined_call_operand.vmem [shape: f32[1,32], index: 9, kind: input, shape index: {}]
  %s10 = inlined_call_operand.vmem [shape: f32[1,32], index: 10, kind: input, shape index: {}]
  %s11 = inlined_call_operand.vmem [shape: f32[1,32], index: 11, kind: input, shape index: {}]
  %s12 = inlined_call_operand.vmem [shape: f32[32,16], index: 12, kind: input, shape index: {}]
  %s13 = inlined_call_operand.vmem [shape: f32[1,16], index: 13, kind: input, shape index: {}]
  %s14 = inlined_call_operand.vmem [shape: f32[16,24], index: 14, kind: input, shape index: {}]
  %s15 = inlined_call_operand.vmem [shape: f32[1,24], index: 15, kind: input, shape index: {}]
  %s16 = inlined_call_operand.vmem [shape: f32[8,24], index: 16, kind: input, shape index: {}]
  %s17 = inlined_call_operand.vmem [shape: f32[1,24], index: 17, kind: input, shape index: {}]
  %s18 = inlined_call_operand.vmem [shape: f32[12,8], index: 18, kind: output, shape index: {}]
  %s19 = sld [smem:[#allocation0]]
  $region82: #{gumbel_rel_rnn_discriminator.1} parent=0
    _
  %s21 = ssub.s32 1, %s19
  %s22 = scalar_select 0, %s21, %s19
  // Predicated region
  $region2: #{gumbel_rel_rnn_discriminator.1} parent=0 // pred_check
    _
  $region3: #{gumbel_rel_rnn_discriminator.1} parent=0 // pred_check_branch
    %24 = sbr.rel (0) target = $region5
  $region4: #{gumbel_rel_rnn_discriminator.1} parent=0 // pred_region
    _
  $region5: #{gumbel_rel_rnn_discriminator.1} parent=0 // pred_fallthru
    _
  // Predicated region
  $region6: #{gumbel_rel_rnn_discriminator.1} parent=0 // pred_check
    _
  $region7: #{gumbel_rel_rnn_discriminator.1} parent=0 // pred_check_branch
    %26 = sbr.rel (0) target = $region9
  $region8: #{gumbel_rel_rnn_discriminator.1} parent=0 // pred_region
    _
  $region9: #{gumbel_rel_rnn_discriminator.1} parent=0 // pred_fallthru
    _
  // Predicated region
  $region10: #{gumbel_rel_rnn_discriminator.1} parent=0 // pred_check
    _
  $region11: #{gumbel_rel_rnn_discriminator.1} parent=0 // pred_check_branch
    %28 = sbr.rel (0) target = $region13
  $region12: #{gumbel_rel_rnn_discriminator.1} parent=0 // pred_region
    _
  $region13: #{gumbel_rel_rnn_discriminator.1} parent=0 // pred_fallthru
    _
  // Predicated region
  $region14: #{gumbel_rel_rnn_discriminator.1} parent=0 // pred_check
    _
  $region15: #{gumbel_rel_rnn_discriminator.1} parent=0 // pred_check_branch
    %30 = sbr.rel (0) target = $region17
  $region16: #{gumbel_rel_rnn_discriminator.1} parent=0 // pred_region
    _
  $region17: #{gumbel_rel_rnn_discriminator.1} parent=0 // pred_fallthru
    _
  // Predicated region
  $region18: #{gumbel_rel_rnn_discriminator.1} parent=0 // pred_check
    _
  $region19: #{gumbel_rel_rnn_discriminator.1} parent=0 // pred_check_branch
    %32 = sbr.rel (0) target = $region21
  $region20: #{gumbel_rel_rnn_discriminator.1} parent=0 // pred_region
    _
  $region21: #{gumbel_rel_rnn_discriminator.1} parent=0 // pred_fallthru
    _
  // Predicated region
  $region22: #{gumbel_rel_rnn_discriminator.1} parent=0 // pred_check
    _
  $region23: #{gumbel_rel_rnn_discriminator.1} parent=0 // pred_check_branch
    %34 = sbr.rel (0) target = $region25
  $region24: #{gumbel_rel_rnn_discriminator.1} parent=0 // pred_region
    _
  $region25: #{gumbel_rel_rnn_discriminator.1} parent=0 // pred_fallthru
    _
  // Predicated region
  $region26: #{gumbel_rel_rnn_discriminator.1} parent=0 // pred_check
    _
  $region27: #{gumbel_rel_rnn_discriminator.1} parent=0 // pred_check_branch
    %36 = sbr.rel (0) target = $region29
  $region28: #{gumbel_rel_rnn_discriminator.1} parent=0 // pred_region
    _
  $region29: #{gumbel_rel_rnn_discriminator.1} parent=0 // pred_fallthru
    _
  // Predicated region
  $region30: #{gumbel_rel_rnn_discriminator.1} parent=0 // pred_check
    _
  $region31: #{gumbel_rel_rnn_discriminator.1} parent=0 // pred_check_branch
    %38 = sbr.rel (0) target = $region33
  $region32: #{gumbel_rel_rnn_discriminator.1} parent=0 // pred_region
    _
  $region33: #{gumbel_rel_rnn_discriminator.1} parent=0 // pred_fallthru
    _
  // Predicated region
  $region34: #{gumbel_rel_rnn_discriminator.1} parent=0 // pred_check
    _
  $region35: #{gumbel_rel_rnn_discriminator.1} parent=0 // pred_check_branch
    %40 = sbr.rel (0) target = $region37
  $region36: #{gumbel_rel_rnn_discriminator.1} parent=0 // pred_region
    _
  $region37: #{gumbel_rel_rnn_discriminator.1} parent=0 // pred_fallthru
    _
  // Predicated region
  $region38: #{gumbel_rel_rnn_discriminator.1} parent=0 // pred_check
    _
  $region39: #{gumbel_rel_rnn_discriminator.1} parent=0 // pred_check_branch
    %42 = sbr.rel (0) target = $region41
  $region40: #{gumbel_rel_rnn_discriminator.1} parent=0 // pred_region
    _
  $region41: #{gumbel_rel_rnn_discriminator.1} parent=0 // pred_fallthru
    _
  // Predicated region
  $region42: #{gumbel_rel_rnn_discriminator.1} parent=0 // pred_check
    _
  $region43: #{gumbel_rel_rnn_discriminator.1} parent=0 // pred_check_branch
    %44 = sbr.rel (0) target = $region45
  $region44: #{gumbel_rel_rnn_discriminator.1} parent=0 // pred_region
    _
  $region45: #{gumbel_rel_rnn_discriminator.1} parent=0 // pred_fallthru
    _
  // Predicated region
  $region46: #{gumbel_rel_rnn_discriminator.1} parent=0 // pred_check
    _
  $region47: #{gumbel_rel_rnn_discriminator.1} parent=0 // pred_check_branch
    %46 = sbr.rel (0) target = $region49
  $region48: #{gumbel_rel_rnn_discriminator.1} parent=0 // pred_region
    _
  $region49: #{gumbel_rel_rnn_discriminator.1} parent=0 // pred_fallthru
    _
  // Predicated region
  $region50: #{gumbel_rel_rnn_discriminator.1} parent=0 // pred_check
    _
  $region51: #{gumbel_rel_rnn_discriminator.1} parent=0 // pred_check_branch
    %48 = sbr.rel (0) target = $region53
  $region52: #{gumbel_rel_rnn_discriminator.1} parent=0 // pred_region
    _
  $region53: #{gumbel_rel_rnn_discriminator.1} parent=0 // pred_fallthru
    _
  // Predicated region
  $region54: #{gumbel_rel_rnn_discriminator.1} parent=0 // pred_check
    _
  $region55: #{gumbel_rel_rnn_discriminator.1} parent=0 // pred_check_branch
    %50 = sbr.rel (0) target = $region57
  $region56: #{gumbel_rel_rnn_discriminator.1} parent=0 // pred_region
    _
  $region57: #{gumbel_rel_rnn_discriminator.1} parent=0 // pred_fallthru
    _
  // Predicated region
  $region58: #{gumbel_rel_rnn_discriminator.1} parent=0 // pred_check
    _
  $region59: #{gumbel_rel_rnn_discriminator.1} parent=0 // pred_check_branch
    %52 = sbr.rel (0) target = $region61
  $region60: #{gumbel_rel_rnn_discriminator.1} parent=0 // pred_region
    _
  $region61: #{gumbel_rel_rnn_discriminator.1} parent=0 // pred_fallthru
    _
  // Predicated region
  $region62: #{gumbel_rel_rnn_discriminator.1} parent=0 // pred_check
    _
  $region63: #{gumbel_rel_rnn_discriminator.1} parent=0 // pred_check_branch
    %54 = sbr.rel (0) target = $region65
  $region64: #{gumbel_rel_rnn_discriminator.1} parent=0 // pred_region
    _
  $region65: #{gumbel_rel_rnn_discriminator.1} parent=0 // pred_fallthru
    _
  // Predicated region
  $region66: #{gumbel_rel_rnn_discriminator.1} parent=0 // pred_check
    _
  $region67: #{gumbel_rel_rnn_discriminator.1} parent=0 // pred_check_branch
    %56 = sbr.rel (0) target = $region69
  $region68: #{gumbel_rel_rnn_discriminator.1} parent=0 // pred_region
    _
  $region69: #{gumbel_rel_rnn_discriminator.1} parent=0 // pred_fallthru
    _
  // Predicated region
  $region70: #{gumbel_rel_rnn_discriminator.1} parent=0 // pred_check
    _
  $region71: #{gumbel_rel_rnn_discriminator.1} parent=0 // pred_check_branch
    %58 = sbr.rel (0) target = $region73
  $region72: #{gumbel_rel_rnn_discriminator.1} parent=0 // pred_region
    _
  $region73: #{gumbel_rel_rnn_discriminator.1} parent=0 // pred_fallthru
    _
  %v59 = vld [vmem:[%s0] sm:$0xff]
  %v60 = vld [vmem:[%s0 + $0x8] sm:$0xff]
  %v61 = vld [vmem:[%s1] sm:$0xff]
  %v62 = vld [vmem:[%s2] sm:$0x3]
  %v64 = vlaneseq
  %v65 = vshrl.u32 %v64, 7
  %v66 = vsub.s32 0, %v65
  %v67 = vrot.slane %v62, %v66
  %v68 = vlaneseq
  %v69 = vshrl.u32 %v68, 7
  %v70 = vsub.s32 1, %v69
  %v71 = vrot.slane %v62, %v70
  %v75 = vcombine.high %v61, %v61
  %vm76 = vcmask 31744
  %v78 = vsel %vm76, %v59, 0
  %v81 = vsel %vm76, %v60, 0
  %vm83 = vcmask 1043456
  %v84 = vsel %vm83, %v61, 0
  %v86 = vsel %vm83, %v75, 0
  %88 = vmatprep.subr.mxu0 %v86
  %89 = vmatpush1.msra.mxu0 %v84
  %90 = vmatprep.subr.mxu0 0.0
  %91 = vmatpush1.msra.mxu0 0.0
  %92 = vmatprep.subr.mxu0 0.0
  %93 = vmatpush1.msra.mxu0 0.0
  %94 = vmatprep.subr.mxu0 0.0
  %95 = vmatpush1.msra.mxu0 0.0
  %96 = vmatprep.subr.mxu0 0.0
  %97 = vmatpush1.msra.mxu0 0.0
  %98 = vmatprep.subr.mxu0 0.0
  %99 = vmatpush1.msra.mxu0 0.0
  %100 = vmatprep.subr.mxu0 0.0
  %101 = vmatpush1.msra.mxu0 0.0
  %102 = vmatprep.subr.mxu0 0.0
  %103 = vmatpush1.msra.mxu0 0.0
  %104 = vmatprep.subr.mxu0 0.0
  %105 = vmatpush1.msra.mxu0 0.0
  %106 = vmatprep.subr.mxu0 0.0
  %107 = vmatpush1.msra.mxu0 0.0
  %108 = vmatprep.subr.mxu0 0.0
  %109 = vmatpush1.msra.mxu0 0.0
  %110 = vmatprep.subr.mxu0 0.0
  %111 = vmatpush1.msra.mxu0 0.0
  %112 = vmatprep.subr.mxu0 0.0
  %113 = vmatpush1.msra.mxu0 0.0
  %114 = vmatprep.subr.mxu0 0.0
  %115 = vmatpush1.msra.mxu0 0.0
  %116 = vmatprep.subr.mxu0 0.0
  %117 = vmatpush1.msra.mxu0 0.0
  %118 = vmatprep.subr.mxu0 0.0
  %119 = vmatpush1.msra.mxu0 0.0
  %120 = vmatprep.subr.mxu0 0.0
  %121 = vmatpush1.msra.mxu0 0.0
  %122 = vmatprep.subr.mxu0 0.0
  %123 = vmatpush1.msra.mxu0 0.0
  %124 = vmatprep.subr.mxu0 0.0
  %125 = vmatpush1.msra.mxu0 0.0
  %126 = vmatprep.subr.mxu0 0.0
  %127 = vmatpush1.msra.mxu0 0.0
  %128 = vmatprep.subr.mxu0 0.0
  %129 = vmatpush1.msra.mxu0 0.0
  %130 = vmatprep.subr.mxu0 0.0
  %131 = vmatpush1.msra.mxu0 0.0
  %132 = vmatprep.subr.mxu0 0.0
  %133 = vmatpush1.msra.mxu0 0.0
  %134 = vmatprep.subr.mxu0 0.0
  %135 = vmatpush1.msra.mxu0 0.0
  %136 = vmatprep.subr.mxu0 0.0
  %137 = vmatpush1.msra.mxu0 0.0
  %138 = vmatprep.subr.mxu0 0.0
  %139 = vmatpush1.msra.mxu0 0.0
  %140 = vmatprep.subr.mxu0 0.0
  %141 = vmatpush1.msra.mxu0 0.0
  %142 = vmatprep.subr.mxu0 0.0
  %143 = vmatpush1.msra.mxu0 0.0
  %144 = vmatprep.subr.mxu0 0.0
  %145 = vmatpush1.msra.mxu0 0.0
  %146 = vmatprep.subr.mxu0 0.0
  %147 = vmatpush1.msra.mxu0 0.0
  %148 = vmatprep.subr.mxu0 0.0
  %149 = vmatpush1.msra.mxu0 0.0
  %150 = vmatprep.subr.mxu0 0.0
  %151 = vmatpush1.msra.mxu0 0.0
  %152 = vmatprep.mubr.f32.mxu0 0.0
  %153 = vmatmul.mubr.f32.gmra.mrb[0].mxu0 %v78
  %v154 = vpop.f32.mrb[0].mxu0
  %v155 = vadd.f32 %v67, %v154
  %v156 = vpop.f32.mrb[0].mxu0
  %v157 = vadd.f32 %v71, %v156
  %158 = vmatprep.mubr.f32.mxu0 0.0
  %159 = vmatmul.mubr.f32.gmra.mrb[0].mxu0 %v81
  %v160 = vpop.f32.mrb[0].mxu0
  %v161 = vadd.f32 %v67, %v160
  %v162 = vpop.f32.mrb[0].mxu0
  %v163 = vadd.f32 %v71, %v162
  %164 = vdwg.mxu0
  %vm165 = vcmp.ge.f32.partialorder %v155, 0.0
  %vm166 = vcmp.ge.f32.partialorder %v157, 0.0
  %vm167 = vcmp.ge.f32.partialorder %v161, 0.0
  %vm168 = vcmp.ge.f32.partialorder %v163, 0.0
  %v169 = vmul.f32 %v155, 0.2
  %v170 = vmul.f32 %v157, 0.2
  %v171 = vmul.f32 %v161, 0.2
  %v172 = vmul.f32 %v163, 0.2
  %v173 = vsel %vm165, %v155, %v169
  %v174 = vsel %vm166, %v157, %v170
  %v175 = vsel %vm167, %v161, %v171
  %v176 = vsel %vm168, %v163, %v172
  %179 = vrot.lane.b32.xlu0 %v173, 96
  %v180 = vpop.permute.xlu0 %179
  %181 = vrot.lane.b32.xlu0 %v175, 96
  %v182 = vpop.permute.xlu0 %181
  %185 = vrot.lane.b32.xlu0 %v173, 64
  %v186 = vpop.permute.xlu0 %185
  %187 = vrot.lane.b32.xlu0 %v175, 64
  %v188 = vpop.permute.xlu0 %187
  %191 = vrot.lane.b32.xlu0 %v173, 32
  %v192 = vpop.permute.xlu0 %191
  %193 = vrot.lane.b32.xlu0 %v175, 32
  %v194 = vpop.permute.xlu0 %193
  %199 = vrot.lane.b32.xlu0 %v174, 96
  %v200 = vpop.permute.xlu0 %199
  %201 = vrot.lane.b32.xlu0 %v176, 96
  %v202 = vpop.permute.xlu0 %201
  %v205 = vld [vmem:[%s3] sm:$0xff]
  %v206 = vld [vmem:[%s3 + $0x8] sm:$0xff]
  %v207 = vld [vmem:[%s3 + $0x10] sm:$0xff]
  %v208 = vld [vmem:[%s3 + $0x18] sm:$0xff]
  %v209 = vld [vmem:[%s4] sm:$0x1]
  %v211 = vlaneseq
  %v212 = vshrl.u32 %v211, 7
  %v213 = vsub.s32 0, %v212
  %v214 = vrot.slane %v209, %v213
  %vm216 = vcmask 261120
  %v217 = vsel %vm216, %v173, 0
  %v219 = vsel %vm216, %v175, 0
  %v221 = vsel %vm216, %v180, 0
  %v223 = vsel %vm216, %v182, 0
  %v225 = vsel %vm216, %v186, 0
  %v227 = vsel %vm216, %v188, 0
  %v229 = vsel %vm216, %v192, 0
  %v231 = vsel %vm216, %v194, 0
  %v233 = vsel %vm216, %v174, 0
  %v235 = vsel %vm216, %v176, 0
  %v237 = vsel %vm216, %v200, 0
  %v239 = vsel %vm216, %v202, 0
  %241 = vmatprep.subr.mxu0 0.0
  %242 = vmatpush1.msra.mxu0 %v205
  %243 = vmatprep.subr.mxu0 0.0
  %244 = vmatpush1.msra.mxu0 %v206
  %245 = vmatprep.subr.mxu0 0.0
  %246 = vmatpush1.msra.mxu0 %v207
  %247 = vmatprep.subr.mxu0 0.0
  %248 = vmatpush1.msra.mxu0 %v208
  %249 = vmatprep.subr.mxu0 0.0
  %250 = vmatpush1.msra.mxu0 0.0
  %251 = vmatprep.subr.mxu0 0.0
  %252 = vmatpush1.msra.mxu0 0.0
  %253 = vmatprep.subr.mxu0 0.0
  %254 = vmatpush1.msra.mxu0 0.0
  %255 = vmatprep.subr.mxu0 0.0
  %256 = vmatpush1.msra.mxu0 0.0
  %257 = vmatprep.subr.mxu0 0.0
  %258 = vmatpush1.msra.mxu0 0.0
  %259 = vmatprep.subr.mxu0 0.0
  %260 = vmatpush1.msra.mxu0 0.0
  %261 = vmatprep.subr.mxu0 0.0
  %262 = vmatpush1.msra.mxu0 0.0
  %263 = vmatprep.subr.mxu0 0.0
  %264 = vmatpush1.msra.mxu0 0.0
  %265 = vmatprep.subr.mxu0 0.0
  %266 = vmatpush1.msra.mxu0 0.0
  %267 = vmatprep.subr.mxu0 0.0
  %268 = vmatpush1.msra.mxu0 0.0
  %269 = vmatprep.subr.mxu0 0.0
  %270 = vmatpush1.msra.mxu0 0.0
  %271 = vmatprep.subr.mxu0 0.0
  %272 = vmatpush1.msra.mxu0 0.0
  %273 = vmatprep.subr.mxu0 0.0
  %274 = vmatpush1.msra.mxu0 0.0
  %275 = vmatprep.subr.mxu0 0.0
  %276 = vmatpush1.msra.mxu0 0.0
  %277 = vmatprep.subr.mxu0 0.0
  %278 = vmatpush1.msra.mxu0 0.0
  %279 = vmatprep.subr.mxu0 0.0
  %280 = vmatpush1.msra.mxu0 0.0
  %281 = vmatprep.subr.mxu0 0.0
  %282 = vmatpush1.msra.mxu0 0.0
  %283 = vmatprep.subr.mxu0 0.0
  %284 = vmatpush1.msra.mxu0 0.0
  %285 = vmatprep.subr.mxu0 0.0
  %286 = vmatpush1.msra.mxu0 0.0
  %287 = vmatprep.subr.mxu0 0.0
  %288 = vmatpush1.msra.mxu0 0.0
  %289 = vmatprep.subr.mxu0 0.0
  %290 = vmatpush1.msra.mxu0 0.0
  %291 = vmatprep.subr.mxu0 0.0
  %292 = vmatpush1.msra.mxu0 0.0
  %293 = vmatprep.subr.mxu0 0.0
  %294 = vmatpush1.msra.mxu0 0.0
  %295 = vmatprep.subr.mxu0 0.0
  %296 = vmatpush1.msra.mxu0 0.0
  %297 = vmatprep.subr.mxu0 0.0
  %298 = vmatpush1.msra.mxu0 0.0
  %299 = vmatprep.subr.mxu0 0.0
  %300 = vmatpush1.msra.mxu0 0.0
  %301 = vmatprep.subr.mxu0 0.0
  %302 = vmatpush1.msra.mxu0 0.0
  %303 = vmatprep.subr.mxu0 0.0
  %304 = vmatpush1.msra.mxu0 0.0
  %305 = vmatprep.mubr.f32.mxu0 0.0
  %306 = vmatmul.mubr.f32.gmra.mrb[0].mxu0 %v217
  %v307 = vpop.f32.mrb[0].mxu0
  %v308 = vadd.f32 %v214, %v307
  %v309 = vpop.f32.mrb[0].mxu0
  %310 = vmatprep.mubr.f32.mxu0 0.0
  %311 = vmatmul.mubr.f32.gmra.mrb[0].mxu0 %v219
  %v312 = vpop.f32.mrb[0].mxu0
  %v313 = vadd.f32 %v214, %v312
  %v314 = vpop.f32.mrb[0].mxu0
  %315 = vmatprep.mubr.f32.mxu0 0.0
  %316 = vmatmul.mubr.f32.gmra.mrb[0].mxu0 %v221
  %v317 = vpop.f32.mrb[0].mxu0
  %v318 = vadd.f32 %v214, %v317
  %v319 = vpop.f32.mrb[0].mxu0
  %320 = vmatprep.mubr.f32.mxu0 0.0
  %321 = vmatmul.mubr.f32.gmra.mrb[0].mxu0 %v223
  %v322 = vpop.f32.mrb[0].mxu0
  %v323 = vadd.f32 %v214, %v322
  %v324 = vpop.f32.mrb[0].mxu0
  %325 = vmatprep.mubr.f32.mxu0 0.0
  %326 = vmatmul.mubr.f32.gmra.mrb[0].mxu0 %v225
  %v327 = vpop.f32.mrb[0].mxu0
  %v328 = vadd.f32 %v214, %v327
  %v329 = vpop.f32.mrb[0].mxu0
  %330 = vmatprep.mubr.f32.mxu0 0.0
  %331 = vmatmul.mubr.f32.gmra.mrb[0].mxu0 %v227
  %v332 = vpop.f32.mrb[0].mxu0
  %v333 = vadd.f32 %v214, %v332
  %v334 = vpop.f32.mrb[0].mxu0
  %335 = vmatprep.mubr.f32.mxu0 0.0
  %336 = vmatmul.mubr.f32.gmra.mrb[0].mxu0 %v229
  %v337 = vpop.f32.mrb[0].mxu0
  %v338 = vadd.f32 %v214, %v337
  %v339 = vpop.f32.mrb[0].mxu0
  %340 = vmatprep.mubr.f32.mxu0 0.0
  %341 = vmatmul.mubr.f32.gmra.mrb[0].mxu0 %v231
  %v342 = vpop.f32.mrb[0].mxu0
  %v343 = vadd.f32 %v214, %v342
  %v344 = vpop.f32.mrb[0].mxu0
  %345 = vmatprep.mubr.f32.mxu0 0.0
  %346 = vmatmul.mubr.f32.gmra.mrb[0].mxu0 %v233
  %v347 = vpop.f32.mrb[0].mxu0
  %v348 = vadd.f32 %v214, %v347
  %v349 = vpop.f32.mrb[0].mxu0
  %350 = vmatprep.mubr.f32.mxu0 0.0
  %351 = vmatmul.mubr.f32.gmra.mrb[0].mxu0 %v235
  %v352 = vpop.f32.mrb[0].mxu0
  %v353 = vadd.f32 %v214, %v352
  %v354 = vpop.f32.mrb[0].mxu0
  %355 = vmatprep.mubr.f32.mxu0 0.0
  %356 = vmatmul.mubr.f32.gmra.mrb[0].mxu0 %v237
  %v357 = vpop.f32.mrb[0].mxu0
  %v358 = vadd.f32 %v214, %v357
  %v359 = vpop.f32.mrb[0].mxu0
  %360 = vmatprep.mubr.f32.mxu0 0.0
  %361 = vmatmul.mubr.f32.gmra.mrb[0].mxu0 %v239
  %v362 = vpop.f32.mrb[0].mxu0
  %v363 = vadd.f32 %v214, %v362
  %v364 = vpop.f32.mrb[0].mxu0
  %365 = vdwg.mxu0
  %v366 = vld [vmem:[%s5] sm:$0xff]
  %v367 = vld [vmem:[%s5 + $0x8] sm:$0xff]
  %v368 = vld [vmem:[%s5 + $0x10] sm:$0xff]
  %v369 = vld [vmem:[%s5 + $0x18] sm:$0xff]
  %v370 = vld [vmem:[%s6] sm:$0x1]
  %v372 = vlaneseq
  %v373 = vshrl.u32 %v372, 7
  %v374 = vsub.s32 0, %v373
  %v375 = vrot.slane %v370, %v374
  %377 = vmatprep.subr.mxu0 0.0
  %378 = vmatpush1.msra.mxu0 %v366
  %379 = vmatprep.subr.mxu0 0.0
  %380 = vmatpush1.msra.mxu0 %v367
  %381 = vmatprep.subr.mxu0 0.0
  %382 = vmatpush1.msra.mxu0 %v368
  %383 = vmatprep.subr.mxu0 0.0
  %384 = vmatpush1.msra.mxu0 %v369
  %385 = vmatprep.subr.mxu0 0.0
  %386 = vmatpush1.msra.mxu0 0.0
  %387 = vmatprep.subr.mxu0 0.0
  %388 = vmatpush1.msra.mxu0 0.0
  %389 = vmatprep.subr.mxu0 0.0
  %390 = vmatpush1.msra.mxu0 0.0
  %391 = vmatprep.subr.mxu0 0.0
  %392 = vmatpush1.msra.mxu0 0.0
  %393 = vmatprep.subr.mxu0 0.0
  %394 = vmatpush1.msra.mxu0 0.0
  %395 = vmatprep.subr.mxu0 0.0
  %396 = vmatpush1.msra.mxu0 0.0
  %397 = vmatprep.subr.mxu0 0.0
  %398 = vmatpush1.msra.mxu0 0.0
  %399 = vmatprep.subr.mxu0 0.0
  %400 = vmatpush1.msra.mxu0 0.0
  %401 = vmatprep.subr.mxu0 0.0
  %402 = vmatpush1.msra.mxu0 0.0
  %403 = vmatprep.subr.mxu0 0.0
  %404 = vmatpush1.msra.mxu0 0.0
  %405 = vmatprep.subr.mxu0 0.0
  %406 = vmatpush1.msra.mxu0 0.0
  %407 = vmatprep.subr.mxu0 0.0
  %408 = vmatpush1.msra.mxu0 0.0
  %409 = vmatprep.subr.mxu0 0.0
  %410 = vmatpush1.msra.mxu0 0.0
  %411 = vmatprep.subr.mxu0 0.0
  %412 = vmatpush1.msra.mxu0 0.0
  %413 = vmatprep.subr.mxu0 0.0
  %414 = vmatpush1.msra.mxu0 0.0
  %415 = vmatprep.subr.mxu0 0.0
  %416 = vmatpush1.msra.mxu0 0.0
  %417 = vmatprep.subr.mxu0 0.0
  %418 = vmatpush1.msra.mxu0 0.0
  %419 = vmatprep.subr.mxu0 0.0
  %420 = vmatpush1.msra.mxu0 0.0
  %421 = vmatprep.subr.mxu0 0.0
  %422 = vmatpush1.msra.mxu0 0.0
  %423 = vmatprep.subr.mxu0 0.0
  %424 = vmatpush1.msra.mxu0 0.0
  %425 = vmatprep.subr.mxu0 0.0
  %426 = vmatpush1.msra.mxu0 0.0
  %427 = vmatprep.subr.mxu0 0.0
  %428 = vmatpush1.msra.mxu0 0.0
  %429 = vmatprep.subr.mxu0 0.0
  %430 = vmatpush1.msra.mxu0 0.0
  %431 = vmatprep.subr.mxu0 0.0
  %432 = vmatpush1.msra.mxu0 0.0
  %433 = vmatprep.subr.mxu0 0.0
  %434 = vmatpush1.msra.mxu0 0.0
  %435 = vmatprep.subr.mxu0 0.0
  %436 = vmatpush1.msra.mxu0 0.0
  %437 = vmatprep.subr.mxu0 0.0
  %438 = vmatpush1.msra.mxu0 0.0
  %439 = vmatprep.subr.mxu0 0.0
  %440 = vmatpush1.msra.mxu0 0.0
  %441 = vmatprep.mubr.f32.mxu0 0.0
  %442 = vmatmul.mubr.f32.gmra.mrb[0].mxu0 %v217
  %v443 = vpop.f32.mrb[0].mxu0
  %v444 = vadd.f32 %v375, %v443
  %v445 = vpop.f32.mrb[0].mxu0
  %446 = vmatprep.mubr.f32.mxu0 0.0
  %447 = vmatmul.mubr.f32.gmra.mrb[0].mxu0 %v219
  %v448 = vpop.f32.mrb[0].mxu0
  %v449 = vadd.f32 %v375, %v448
  %v450 = vpop.f32.mrb[0].mxu0
  %451 = vmatprep.mubr.f32.mxu0 0.0
  %452 = vmatmul.mubr.f32.gmra.mrb[0].mxu0 %v221
  %v453 = vpop.f32.mrb[0].mxu0
  %v454 = vadd.f32 %v375, %v453
  %v455 = vpop.f32.mrb[0].mxu0
  %456 = vmatprep.mubr.f32.mxu0 0.0
  %457 = vmatmul.mubr.f32.gmra.mrb[0].mxu0 %v223
  %v458 = vpop.f32.mrb[0].mxu0
  %v459 = vadd.f32 %v375, %v458
  %v460 = vpop.f32.mrb[0].mxu0
  %461 = vmatprep.mubr.f32.mxu0 0.0
  %462 = vmatmul.mubr.f32.gmra.mrb[0].mxu0 %v225
  %v463 = vpop.f32.mrb[0].mxu0
  %v464 = vadd.f32 %v375, %v463
  %v465 = vpop.f32.mrb[0].mxu0
  %466 = vmatprep.mubr.f32.mxu0 0.0
  %467 = vmatmul.mubr.f32.gmra.mrb[0].mxu0 %v227
  %v468 = vpop.f32.mrb[0].mxu0
  %v469 = vadd.f32 %v375, %v468
  %v470 = vpop.f32.mrb[0].mxu0
  %471 = vmatprep.mubr.f32.mxu0 0.0
  %472 = vmatmul.mubr.f32.gmra.mrb[0].mxu0 %v229
  %v473 = vpop.f32.mrb[0].mxu0
  %v474 = vadd.f32 %v375, %v473
  %v475 = vpop.f32.mrb[0].mxu0
  %476 = vmatprep.mubr.f32.mxu0 0.0
  %477 = vmatmul.mubr.f32.gmra.mrb[0].mxu0 %v231
  %v478 = vpop.f32.mrb[0].mxu0
  %v479 = vadd.f32 %v375, %v478
  %v480 = vpop.f32.mrb[0].mxu0
  %481 = vmatprep.mubr.f32.mxu0 0.0
  %482 = vmatmul.mubr.f32.gmra.mrb[0].mxu0 %v233
  %v483 = vpop.f32.mrb[0].mxu0
  %v484 = vadd.f32 %v375, %v483
  %v485 = vpop.f32.mrb[0].mxu0
  %486 = vmatprep.mubr.f32.mxu0 0.0
  %487 = vmatmul.mubr.f32.gmra.mrb[0].mxu0 %v235
  %v488 = vpop.f32.mrb[0].mxu0
  %v489 = vadd.f32 %v375, %v488
  %v490 = vpop.f32.mrb[0].mxu0
  %491 = vmatprep.mubr.f32.mxu0 0.0
  %492 = vmatmul.mubr.f32.gmra.mrb[0].mxu0 %v237
  %v493 = vpop.f32.mrb[0].mxu0
  %v494 = vadd.f32 %v375, %v493
  %v495 = vpop.f32.mrb[0].mxu0
  %496 = vmatprep.mubr.f32.mxu0 0.0
  %497 = vmatmul.mubr.f32.gmra.mrb[0].mxu0 %v239
  %v498 = vpop.f32.mrb[0].mxu0
  %v499 = vadd.f32 %v375, %v498
  %v500 = vpop.f32.mrb[0].mxu0
  %501 = vdwg.mxu0
  %v502 = vld [vmem:[%s7] sm:$0xff]
  %v503 = vld [vmem:[%s7 + $0x8] sm:$0xff]
  %v504 = vld [vmem:[%s7 + $0x10] sm:$0xff]
  %v505 = vld [vmem:[%s7 + $0x18] sm:$0xff]
  %v506 = vld [vmem:[%s8] sm:$0x1]
  %v508 = vlaneseq
  %v509 = vshrl.u32 %v508, 7
  %v510 = vsub.s32 0, %v509
  %v511 = vrot.slane %v506, %v510
  %513 = vmatprep.subr.mxu0 0.0
  %514 = vmatpush1.msra.mxu0 %v502
  %515 = vmatprep.subr.mxu0 0.0
  %516 = vmatpush1.msra.mxu0 %v503
  %517 = vmatprep.subr.mxu0 0.0
  %518 = vmatpush1.msra.mxu0 %v504
  %519 = vmatprep.subr.mxu0 0.0
  %520 = vmatpush1.msra.mxu0 %v505
  %521 = vmatprep.subr.mxu0 0.0
  %522 = vmatpush1.msra.mxu0 0.0
  %523 = vmatprep.subr.mxu0 0.0
  %524 = vmatpush1.msra.mxu0 0.0
  %525 = vmatprep.subr.mxu0 0.0
  %526 = vmatpush1.msra.mxu0 0.0
  %527 = vmatprep.subr.mxu0 0.0
  %528 = vmatpush1.msra.mxu0 0.0
  %529 = vmatprep.subr.mxu0 0.0
  %530 = vmatpush1.msra.mxu0 0.0
  %531 = vmatprep.subr.mxu0 0.0
  %532 = vmatpush1.msra.mxu0 0.0
  %533 = vmatprep.subr.mxu0 0.0
  %534 = vmatpush1.msra.mxu0 0.0
  %535 = vmatprep.subr.mxu0 0.0
  %536 = vmatpush1.msra.mxu0 0.0
  %537 = vmatprep.subr.mxu0 0.0
  %538 = vmatpush1.msra.mxu0 0.0
  %539 = vmatprep.subr.mxu0 0.0
  %540 = vmatpush1.msra.mxu0 0.0
  %541 = vmatprep.subr.mxu0 0.0
  %542 = vmatpush1.msra.mxu0 0.0
  %543 = vmatprep.subr.mxu0 0.0
  %544 = vmatpush1.msra.mxu0 0.0
  %545 = vmatprep.subr.mxu0 0.0
  %546 = vmatpush1.msra.mxu0 0.0
  %547 = vmatprep.subr.mxu0 0.0
  %548 = vmatpush1.msra.mxu0 0.0
  %549 = vmatprep.subr.mxu0 0.0
  %550 = vmatpush1.msra.mxu0 0.0
  %551 = vmatprep.subr.mxu0 0.0
  %552 = vmatpush1.msra.mxu0 0.0
  %553 = vmatprep.subr.mxu0 0.0
  %554 = vmatpush1.msra.mxu0 0.0
  %555 = vmatprep.subr.mxu0 0.0
  %556 = vmatpush1.msra.mxu0 0.0
  %557 = vmatprep.subr.mxu0 0.0
  %558 = vmatpush1.msra.mxu0 0.0
  %559 = vmatprep.subr.mxu0 0.0
  %560 = vmatpush1.msra.mxu0 0.0
  %561 = vmatprep.subr.mxu0 0.0
  %562 = vmatpush1.msra.mxu0 0.0
  %563 = vmatprep.subr.mxu0 0.0
  %564 = vmatpush1.msra.mxu0 0.0
  %565 = vmatprep.subr.mxu0 0.0
  %566 = vmatpush1.msra.mxu0 0.0
  %567 = vmatprep.subr.mxu0 0.0
  %568 = vmatpush1.msra.mxu0 0.0
  %569 = vmatprep.subr.mxu0 0.0
  %570 = vmatpush1.msra.mxu0 0.0
  %571 = vmatprep.subr.mxu0 0.0
  %572 = vmatpush1.msra.mxu0 0.0
  %573 = vmatprep.subr.mxu0 0.0
  %574 = vmatpush1.msra.mxu0 0.0
  %575 = vmatprep.subr.mxu0 0.0
  %576 = vmatpush1.msra.mxu0 0.0
  %577 = vmatprep.mubr.f32.mxu0 0.0
  %578 = vmatmul.mubr.f32.gmra.mrb[0].mxu0 %v217
  %v579 = vpop.f32.mrb[0].mxu0
  %v580 = vadd.f32 %v511, %v579
  %v581 = vpop.f32.mrb[0].mxu0
  %582 = vmatprep.mubr.f32.mxu0 0.0
  %583 = vmatmul.mubr.f32.gmra.mrb[0].mxu0 %v219
  %v584 = vpop.f32.mrb[0].mxu0
  %v585 = vadd.f32 %v511, %v584
  %v586 = vpop.f32.mrb[0].mxu0
  %587 = vmatprep.mubr.f32.mxu0 0.0
  %588 = vmatmul.mubr.f32.gmra.mrb[0].mxu0 %v221
  %v589 = vpop.f32.mrb[0].mxu0
  %v590 = vadd.f32 %v511, %v589
  %v591 = vpop.f32.mrb[0].mxu0
  %592 = vmatprep.mubr.f32.mxu0 0.0
  %593 = vmatmul.mubr.f32.gmra.mrb[0].mxu0 %v223
  %v594 = vpop.f32.mrb[0].mxu0
  %v595 = vadd.f32 %v511, %v594
  %v596 = vpop.f32.mrb[0].mxu0
  %597 = vmatprep.mubr.f32.mxu0 0.0
  %598 = vmatmul.mubr.f32.gmra.mrb[0].mxu0 %v225
  %v599 = vpop.f32.mrb[0].mxu0
  %v600 = vadd.f32 %v511, %v599
  %v601 = vpop.f32.mrb[0].mxu0
  %602 = vmatprep.mubr.f32.mxu0 0.0
  %603 = vmatmul.mubr.f32.gmra.mrb[0].mxu0 %v227
  %v604 = vpop.f32.mrb[0].mxu0
  %v605 = vadd.f32 %v511, %v604
  %v606 = vpop.f32.mrb[0].mxu0
  %607 = vmatprep.mubr.f32.mxu0 0.0
  %608 = vmatmul.mubr.f32.gmra.mrb[0].mxu0 %v229
  %v609 = vpop.f32.mrb[0].mxu0
  %v610 = vadd.f32 %v511, %v609
  %v611 = vpop.f32.mrb[0].mxu0
  %612 = vmatprep.mubr.f32.mxu0 0.0
  %613 = vmatmul.mubr.f32.gmra.mrb[0].mxu0 %v231
  %v614 = vpop.f32.mrb[0].mxu0
  %v615 = vadd.f32 %v511, %v614
  %v616 = vpop.f32.mrb[0].mxu0
  %617 = vmatprep.mubr.f32.mxu0 0.0
  %618 = vmatmul.mubr.f32.gmra.mrb[0].mxu0 %v233
  %v619 = vpop.f32.mrb[0].mxu0
  %v620 = vadd.f32 %v511, %v619
  %v621 = vpop.f32.mrb[0].mxu0
  %622 = vmatprep.mubr.f32.mxu0 0.0
  %623 = vmatmul.mubr.f32.gmra.mrb[0].mxu0 %v235
  %v624 = vpop.f32.mrb[0].mxu0
  %v625 = vadd.f32 %v511, %v624
  %v626 = vpop.f32.mrb[0].mxu0
  %627 = vmatprep.mubr.f32.mxu0 0.0
  %628 = vmatmul.mubr.f32.gmra.mrb[0].mxu0 %v237
  %v629 = vpop.f32.mrb[0].mxu0
  %v630 = vadd.f32 %v511, %v629
  %v631 = vpop.f32.mrb[0].mxu0
  %632 = vmatprep.mubr.f32.mxu0 0.0
  %633 = vmatmul.mubr.f32.gmra.mrb[0].mxu0 %v239
  %v634 = vpop.f32.mrb[0].mxu0
  %v635 = vadd.f32 %v511, %v634
  %v636 = vpop.f32.mrb[0].mxu0
  %637 = vdwg.mxu0
  %v639 = vsel %vm76, %v308, 0
  %v642 = vsel %vm76, %v444, 0
  %644 = vmatprep.subr.mxu0 0.0
  %645 = vmatpush1.xpose.msra.mxu0 %v642
  %646 = vmatprep.subr.mxu0 0.0
  %647 = vmatpush1.xpose.msra.mxu0 0.0
  %648 = vmatprep.subr.mxu0 0.0
  %649 = vmatpush1.xpose.msra.mxu0 0.0
  %650 = vmatprep.subr.mxu0 0.0
  %651 = vmatpush1.xpose.msra.mxu0 0.0
  %652 = vmatprep.subr.mxu0 0.0
  %653 = vmatpush1.xpose.msra.mxu0 0.0
  %654 = vmatprep.subr.mxu0 0.0
  %655 = vmatpush1.xpose.msra.mxu0 0.0
  %656 = vmatprep.subr.mxu0 0.0
  %657 = vmatpush1.xpose.msra.mxu0 0.0
  %658 = vmatprep.subr.mxu0 0.0
  %659 = vmatpush1.xpose.msra.mxu0 0.0
  %660 = vmatprep.subr.mxu0 0.0
  %661 = vmatpush1.xpose.msra.mxu0 0.0
  %662 = vmatprep.subr.mxu0 0.0
  %663 = vmatpush1.xpose.msra.mxu0 0.0
  %664 = vmatprep.subr.mxu0 0.0
  %665 = vmatpush1.xpose.msra.mxu0 0.0
  %666 = vmatprep.subr.mxu0 0.0
  %667 = vmatpush1.xpose.msra.mxu0 0.0
  %668 = vmatprep.subr.mxu0 0.0
  %669 = vmatpush1.xpose.msra.mxu0 0.0
  %670 = vmatprep.subr.mxu0 0.0
  %671 = vmatpush1.xpose.msra.mxu0 0.0
  %672 = vmatprep.subr.mxu0 0.0
  %673 = vmatpush1.xpose.msra.mxu0 0.0
  %674 = vmatprep.subr.mxu0 0.0
  %675 = vmatpush1.xpose.msra.mxu0 0.0
  %676 = vmatprep.subr.mxu0 0.0
  %677 = vmatpush1.xpose.msra.mxu0 0.0
  %678 = vmatprep.subr.mxu0 0.0
  %679 = vmatpush1.xpose.msra.mxu0 0.0
  %680 = vmatprep.subr.mxu0 0.0
  %681 = vmatpush1.xpose.msra.mxu0 0.0
  %682 = vmatprep.subr.mxu0 0.0
  %683 = vmatpush1.xpose.msra.mxu0 0.0
  %684 = vmatprep.subr.mxu0 0.0
  %685 = vmatpush1.xpose.msra.mxu0 0.0
  %686 = vmatprep.subr.mxu0 0.0
  %687 = vmatpush1.xpose.msra.mxu0 0.0
  %688 = vmatprep.subr.mxu0 0.0
  %689 = vmatpush1.xpose.msra.mxu0 0.0
  %690 = vmatprep.subr.mxu0 0.0
  %691 = vmatpush1.xpose.msra.mxu0 0.0
  %692 = vmatprep.subr.mxu0 0.0
  %693 = vmatpush1.xpose.msra.mxu0 0.0
  %694 = vmatprep.subr.mxu0 0.0
  %695 = vmatpush1.xpose.msra.mxu0 0.0
  %696 = vmatprep.subr.mxu0 0.0
  %697 = vmatpush1.xpose.msra.mxu0 0.0
  %698 = vmatprep.subr.mxu0 0.0
  %699 = vmatpush1.xpose.msra.mxu0 0.0
  %700 = vmatprep.subr.mxu0 0.0
  %701 = vmatpush1.xpose.msra.mxu0 0.0
  %702 = vmatprep.subr.mxu0 0.0
  %703 = vmatpush1.xpose.msra.mxu0 0.0
  %704 = vmatprep.subr.mxu0 0.0
  %705 = vmatpush1.xpose.msra.mxu0 0.0
  %706 = vmatprep.subr.mxu0 0.0
  %707 = vmatpush1.xpose.msra.mxu0 0.0
  %708 = vmatprep.mubr.f32.mxu0 0.0
  %709 = vmatmul.mubr.f32.gmra.mrb[0].mxu0 %v639
  %v710 = vpop.f32.mrb[0].mxu0
  %v711 = vadd.f32 0.0, %v710
  %v712 = vpop.f32.mrb[0].mxu0
  %713 = vdwg.mxu0
  %v715 = vsel %vm76, %v313, 0
  %v718 = vsel %vm76, %v449, 0
  %720 = vmatprep.subr.mxu0 0.0
  %721 = vmatpush1.xpose.msra.mxu0 %v718
  %722 = vmatprep.subr.mxu0 0.0
  %723 = vmatpush1.xpose.msra.mxu0 0.0
  %724 = vmatprep.subr.mxu0 0.0
  %725 = vmatpush1.xpose.msra.mxu0 0.0
  %726 = vmatprep.subr.mxu0 0.0
  %727 = vmatpush1.xpose.msra.mxu0 0.0
  %728 = vmatprep.subr.mxu0 0.0
  %729 = vmatpush1.xpose.msra.mxu0 0.0
  %730 = vmatprep.subr.mxu0 0.0
  %731 = vmatpush1.xpose.msra.mxu0 0.0
  %732 = vmatprep.subr.mxu0 0.0
  %733 = vmatpush1.xpose.msra.mxu0 0.0
  %734 = vmatprep.subr.mxu0 0.0
  %735 = vmatpush1.xpose.msra.mxu0 0.0
  %736 = vmatprep.subr.mxu0 0.0
  %737 = vmatpush1.xpose.msra.mxu0 0.0
  %738 = vmatprep.subr.mxu0 0.0
  %739 = vmatpush1.xpose.msra.mxu0 0.0
  %740 = vmatprep.subr.mxu0 0.0
  %741 = vmatpush1.xpose.msra.mxu0 0.0
  %742 = vmatprep.subr.mxu0 0.0
  %743 = vmatpush1.xpose.msra.mxu0 0.0
  %744 = vmatprep.subr.mxu0 0.0
  %745 = vmatpush1.xpose.msra.mxu0 0.0
  %746 = vmatprep.subr.mxu0 0.0
  %747 = vmatpush1.xpose.msra.mxu0 0.0
  %748 = vmatprep.subr.mxu0 0.0
  %749 = vmatpush1.xpose.msra.mxu0 0.0
  %750 = vmatprep.subr.mxu0 0.0
  %751 = vmatpush1.xpose.msra.mxu0 0.0
  %752 = vmatprep.subr.mxu0 0.0
  %753 = vmatpush1.xpose.msra.mxu0 0.0
  %754 = vmatprep.subr.mxu0 0.0
  %755 = vmatpush1.xpose.msra.mxu0 0.0
  %756 = vmatprep.subr.mxu0 0.0
  %757 = vmatpush1.xpose.msra.mxu0 0.0
  %758 = vmatprep.subr.mxu0 0.0
  %759 = vmatpush1.xpose.msra.mxu0 0.0
  %760 = vmatprep.subr.mxu0 0.0
  %761 = vmatpush1.xpose.msra.mxu0 0.0
  %762 = vmatprep.subr.mxu0 0.0
  %763 = vmatpush1.xpose.msra.mxu0 0.0
  %764 = vmatprep.subr.mxu0 0.0
  %765 = vmatpush1.xpose.msra.mxu0 0.0
  %766 = vmatprep.subr.mxu0 0.0
  %767 = vmatpush1.xpose.msra.mxu0 0.0
  %768 = vmatprep.subr.mxu0 0.0
  %769 = vmatpush1.xpose.msra.mxu0 0.0
  %770 = vmatprep.subr.mxu0 0.0
  %771 = vmatpush1.xpose.msra.mxu0 0.0
  %772 = vmatprep.subr.mxu0 0.0
  %773 = vmatpush1.xpose.msra.mxu0 0.0
  %774 = vmatprep.subr.mxu0 0.0
  %775 = vmatpush1.xpose.msra.mxu0 0.0
  %776 = vmatprep.subr.mxu0 0.0
  %777 = vmatpush1.xpose.msra.mxu0 0.0
  %778 = vmatprep.subr.mxu0 0.0
  %779 = vmatpush1.xpose.msra.mxu0 0.0
  %780 = vmatprep.subr.mxu0 0.0
  %781 = vmatpush1.xpose.msra.mxu0 0.0
  %782 = vmatprep.subr.mxu0 0.0
  %783 = vmatpush1.xpose.msra.mxu0 0.0
  %784 = vmatprep.mubr.f32.mxu0 0.0
  %785 = vmatmul.mubr.f32.gmra.mrb[0].mxu0 %v715
  %v786 = vpop.f32.mrb[0].mxu0
  %v787 = vadd.f32 0.0, %v786
  %v788 = vpop.f32.mrb[0].mxu0
  %789 = vdwg.mxu0
  %v791 = vsel %vm76, %v318, 0
  %v794 = vsel %vm76, %v454, 0
  %796 = vmatprep.subr.mxu0 0.0
  %797 = vmatpush1.xpose.msra.mxu0 %v794
  %798 = vmatprep.subr.mxu0 0.0
  %799 = vmatpush1.xpose.msra.mxu0 0.0
  %800 = vmatprep.subr.mxu0 0.0
  %801 = vmatpush1.xpose.msra.mxu0 0.0
  %802 = vmatprep.subr.mxu0 0.0
  %803 = vmatpush1.xpose.msra.mxu0 0.0
  %804 = vmatprep.subr.mxu0 0.0
  %805 = vmatpush1.xpose.msra.mxu0 0.0
  %806 = vmatprep.subr.mxu0 0.0
  %807 = vmatpush1.xpose.msra.mxu0 0.0
  %808 = vmatprep.subr.mxu0 0.0
  %809 = vmatpush1.xpose.msra.mxu0 0.0
  %810 = vmatprep.subr.mxu0 0.0
  %811 = vmatpush1.xpose.msra.mxu0 0.0
  %812 = vmatprep.subr.mxu0 0.0
  %813 = vmatpush1.xpose.msra.mxu0 0.0
  %814 = vmatprep.subr.mxu0 0.0
  %815 = vmatpush1.xpose.msra.mxu0 0.0
  %816 = vmatprep.subr.mxu0 0.0
  %817 = vmatpush1.xpose.msra.mxu0 0.0
  %818 = vmatprep.subr.mxu0 0.0
  %819 = vmatpush1.xpose.msra.mxu0 0.0
  %820 = vmatprep.subr.mxu0 0.0
  %821 = vmatpush1.xpose.msra.mxu0 0.0
  %822 = vmatprep.subr.mxu0 0.0
  %823 = vmatpush1.xpose.msra.mxu0 0.0
  %824 = vmatprep.subr.mxu0 0.0
  %825 = vmatpush1.xpose.msra.mxu0 0.0
  %826 = vmatprep.subr.mxu0 0.0
  %827 = vmatpush1.xpose.msra.mxu0 0.0
  %828 = vmatprep.subr.mxu0 0.0
  %829 = vmatpush1.xpose.msra.mxu0 0.0
  %830 = vmatprep.subr.mxu0 0.0
  %831 = vmatpush1.xpose.msra.mxu0 0.0
  %832 = vmatprep.subr.mxu0 0.0
  %833 = vmatpush1.xpose.msra.mxu0 0.0
  %834 = vmatprep.subr.mxu0 0.0
  %835 = vmatpush1.xpose.msra.mxu0 0.0
  %836 = vmatprep.subr.mxu0 0.0
  %837 = vmatpush1.xpose.msra.mxu0 0.0
  %838 = vmatprep.subr.mxu0 0.0
  %839 = vmatpush1.xpose.msra.mxu0 0.0
  %840 = vmatprep.subr.mxu0 0.0
  %841 = vmatpush1.xpose.msra.mxu0 0.0
  %842 = vmatprep.subr.mxu0 0.0
  %843 = vmatpush1.xpose.msra.mxu0 0.0
  %844 = vmatprep.subr.mxu0 0.0
  %845 = vmatpush1.xpose.msra.mxu0 0.0
  %846 = vmatprep.subr.mxu0 0.0
  %847 = vmatpush1.xpose.msra.mxu0 0.0
  %848 = vmatprep.subr.mxu0 0.0
  %849 = vmatpush1.xpose.msra.mxu0 0.0
  %850 = vmatprep.subr.mxu0 0.0
  %851 = vmatpush1.xpose.msra.mxu0 0.0
  %852 = vmatprep.subr.mxu0 0.0
  %853 = vmatpush1.xpose.msra.mxu0 0.0
  %854 = vmatprep.subr.mxu0 0.0
  %855 = vmatpush1.xpose.msra.mxu0 0.0
  %856 = vmatprep.subr.mxu0 0.0
  %857 = vmatpush1.xpose.msra.mxu0 0.0
  %858 = vmatprep.subr.mxu0 0.0
  %859 = vmatpush1.xpose.msra.mxu0 0.0
  %860 = vmatprep.mubr.f32.mxu0 0.0
  %861 = vmatmul.mubr.f32.gmra.mrb[0].mxu0 %v791
  %v862 = vpop.f32.mrb[0].mxu0
  %v863 = vadd.f32 0.0, %v862
  %v864 = vpop.f32.mrb[0].mxu0
  %865 = vdwg.mxu0
  %v867 = vsel %vm76, %v323, 0
  %v870 = vsel %vm76, %v459, 0
  %872 = vmatprep.subr.mxu0 0.0
  %873 = vmatpush1.xpose.msra.mxu0 %v870
  %874 = vmatprep.subr.mxu0 0.0
  %875 = vmatpush1.xpose.msra.mxu0 0.0
  %876 = vmatprep.subr.mxu0 0.0
  %877 = vmatpush1.xpose.msra.mxu0 0.0
  %878 = vmatprep.subr.mxu0 0.0
  %879 = vmatpush1.xpose.msra.mxu0 0.0
  %880 = vmatprep.subr.mxu0 0.0
  %881 = vmatpush1.xpose.msra.mxu0 0.0
  %882 = vmatprep.subr.mxu0 0.0
  %883 = vmatpush1.xpose.msra.mxu0 0.0
  %884 = vmatprep.subr.mxu0 0.0
  %885 = vmatpush1.xpose.msra.mxu0 0.0
  %886 = vmatprep.subr.mxu0 0.0
  %887 = vmatpush1.xpose.msra.mxu0 0.0
  %888 = vmatprep.subr.mxu0 0.0
  %889 = vmatpush1.xpose.msra.mxu0 0.0
  %890 = vmatprep.subr.mxu0 0.0
  %891 = vmatpush1.xpose.msra.mxu0 0.0
  %892 = vmatprep.subr.mxu0 0.0
  %893 = vmatpush1.xpose.msra.mxu0 0.0
  %894 = vmatprep.subr.mxu0 0.0
  %895 = vmatpush1.xpose.msra.mxu0 0.0
  %896 = vmatprep.subr.mxu0 0.0
  %897 = vmatpush1.xpose.msra.mxu0 0.0
  %898 = vmatprep.subr.mxu0 0.0
  %899 = vmatpush1.xpose.msra.mxu0 0.0
  %900 = vmatprep.subr.mxu0 0.0
  %901 = vmatpush1.xpose.msra.mxu0 0.0
  %902 = vmatprep.subr.mxu0 0.0
  %903 = vmatpush1.xpose.msra.mxu0 0.0
  %904 = vmatprep.subr.mxu0 0.0
  %905 = vmatpush1.xpose.msra.mxu0 0.0
  %906 = vmatprep.subr.mxu0 0.0
  %907 = vmatpush1.xpose.msra.mxu0 0.0
  %908 = vmatprep.subr.mxu0 0.0
  %909 = vmatpush1.xpose.msra.mxu0 0.0
  %910 = vmatprep.subr.mxu0 0.0
  %911 = vmatpush1.xpose.msra.mxu0 0.0
  %912 = vmatprep.subr.mxu0 0.0
  %913 = vmatpush1.xpose.msra.mxu0 0.0
  %914 = vmatprep.subr.mxu0 0.0
  %915 = vmatpush1.xpose.msra.mxu0 0.0
  %916 = vmatprep.subr.mxu0 0.0
  %917 = vmatpush1.xpose.msra.mxu0 0.0
  %918 = vmatprep.subr.mxu0 0.0
  %919 = vmatpush1.xpose.msra.mxu0 0.0
  %920 = vmatprep.subr.mxu0 0.0
  %921 = vmatpush1.xpose.msra.mxu0 0.0
  %922 = vmatprep.subr.mxu0 0.0
  %923 = vmatpush1.xpose.msra.mxu0 0.0
  %924 = vmatprep.subr.mxu0 0.0
  %925 = vmatpush1.xpose.msra.mxu0 0.0
  %926 = vmatprep.subr.mxu0 0.0
  %927 = vmatpush1.xpose.msra.mxu0 0.0
  %928 = vmatprep.subr.mxu0 0.0
  %929 = vmatpush1.xpose.msra.mxu0 0.0
  %930 = vmatprep.subr.mxu0 0.0
  %931 = vmatpush1.xpose.msra.mxu0 0.0
  %932 = vmatprep.subr.mxu0 0.0
  %933 = vmatpush1.xpose.msra.mxu0 0.0
  %934 = vmatprep.subr.mxu0 0.0
  %935 = vmatpush1.xpose.msra.mxu0 0.0
  %936 = vmatprep.mubr.f32.mxu0 0.0
  %937 = vmatmul.mubr.f32.gmra.mrb[0].mxu0 %v867
  %v938 = vpop.f32.mrb[0].mxu0
  %v939 = vadd.f32 0.0, %v938
  %v940 = vpop.f32.mrb[0].mxu0
  %941 = vdwg.mxu0
  %v943 = vsel %vm76, %v328, 0
  %v946 = vsel %vm76, %v464, 0
  %948 = vmatprep.subr.mxu0 0.0
  %949 = vmatpush1.xpose.msra.mxu0 %v946
  %950 = vmatprep.subr.mxu0 0.0
  %951 = vmatpush1.xpose.msra.mxu0 0.0
  %952 = vmatprep.subr.mxu0 0.0
  %953 = vmatpush1.xpose.msra.mxu0 0.0
  %954 = vmatprep.subr.mxu0 0.0
  %955 = vmatpush1.xpose.msra.mxu0 0.0
  %956 = vmatprep.subr.mxu0 0.0
  %957 = vmatpush1.xpose.msra.mxu0 0.0
  %958 = vmatprep.subr.mxu0 0.0
  %959 = vmatpush1.xpose.msra.mxu0 0.0
  %960 = vmatprep.subr.mxu0 0.0
  %961 = vmatpush1.xpose.msra.mxu0 0.0
  %962 = vmatprep.subr.mxu0 0.0
  %963 = vmatpush1.xpose.msra.mxu0 0.0
  %964 = vmatprep.subr.mxu0 0.0
  %965 = vmatpush1.xpose.msra.mxu0 0.0
  %966 = vmatprep.subr.mxu0 0.0
  %967 = vmatpush1.xpose.msra.mxu0 0.0
  %968 = vmatprep.subr.mxu0 0.0
  %969 = vmatpush1.xpose.msra.mxu0 0.0
  %970 = vmatprep.subr.mxu0 0.0
  %971 = vmatpush1.xpose.msra.mxu0 0.0
  %972 = vmatprep.subr.mxu0 0.0
  %973 = vmatpush1.xpose.msra.mxu0 0.0
  %974 = vmatprep.subr.mxu0 0.0
  %975 = vmatpush1.xpose.msra.mxu0 0.0
  %976 = vmatprep.subr.mxu0 0.0
  %977 = vmatpush1.xpose.msra.mxu0 0.0
  %978 = vmatprep.subr.mxu0 0.0
  %979 = vmatpush1.xpose.msra.mxu0 0.0
  %980 = vmatprep.subr.mxu0 0.0
  %981 = vmatpush1.xpose.msra.mxu0 0.0
  %982 = vmatprep.subr.mxu0 0.0
  %983 = vmatpush1.xpose.msra.mxu0 0.0
  %984 = vmatprep.subr.mxu0 0.0
  %985 = vmatpush1.xpose.msra.mxu0 0.0
  %986 = vmatprep.subr.mxu0 0.0
  %987 = vmatpush1.xpose.msra.mxu0 0.0
  %988 = vmatprep.subr.mxu0 0.0
  %989 = vmatpush1.xpose.msra.mxu0 0.0
  %990 = vmatprep.subr.mxu0 0.0
  %991 = vmatpush1.xpose.msra.mxu0 0.0
  %992 = vmatprep.subr.mxu0 0.0
  %993 = vmatpush1.xpose.msra.mxu0 0.0
  %994 = vmatprep.subr.mxu0 0.0
  %995 = vmatpush1.xpose.msra.mxu0 0.0
  %996 = vmatprep.subr.mxu0 0.0
  %997 = vmatpush1.xpose.msra.mxu0 0.0
  %998 = vmatprep.subr.mxu0 0.0
  %999 = vmatpush1.xpose.msra.mxu0 0.0
  %1000 = vmatprep.subr.mxu0 0.0
  %1001 = vmatpush1.xpose.msra.mxu0 0.0
  %1002 = vmatprep.subr.mxu0 0.0
  %1003 = vmatpush1.xpose.msra.mxu0 0.0
  %1004 = vmatprep.subr.mxu0 0.0
  %1005 = vmatpush1.xpose.msra.mxu0 0.0
  %1006 = vmatprep.subr.mxu0 0.0
  %1007 = vmatpush1.xpose.msra.mxu0 0.0
  %1008 = vmatprep.subr.mxu0 0.0
  %1009 = vmatpush1.xpose.msra.mxu0 0.0
  %1010 = vmatprep.subr.mxu0 0.0
  %1011 = vmatpush1.xpose.msra.mxu0 0.0
  %1012 = vmatprep.mubr.f32.mxu0 0.0
  %1013 = vmatmul.mubr.f32.gmra.mrb[0].mxu0 %v943
  %v1014 = vpop.f32.mrb[0].mxu0
  %v1015 = vadd.f32 0.0, %v1014
  %v1016 = vpop.f32.mrb[0].mxu0
  %1017 = vdwg.mxu0
  %v1019 = vsel %vm76, %v333, 0
  %v1022 = vsel %vm76, %v469, 0
  %1024 = vmatprep.subr.mxu0 0.0
  %1025 = vmatpush1.xpose.msra.mxu0 %v1022
  %1026 = vmatprep.subr.mxu0 0.0
  %1027 = vmatpush1.xpose.msra.mxu0 0.0
  %1028 = vmatprep.subr.mxu0 0.0
  %1029 = vmatpush1.xpose.msra.mxu0 0.0
  %1030 = vmatprep.subr.mxu0 0.0
  %1031 = vmatpush1.xpose.msra.mxu0 0.0
  %1032 = vmatprep.subr.mxu0 0.0
  %1033 = vmatpush1.xpose.msra.mxu0 0.0
  %1034 = vmatprep.subr.mxu0 0.0
  %1035 = vmatpush1.xpose.msra.mxu0 0.0
  %1036 = vmatprep.subr.mxu0 0.0
  %1037 = vmatpush1.xpose.msra.mxu0 0.0
  %1038 = vmatprep.subr.mxu0 0.0
  %1039 = vmatpush1.xpose.msra.mxu0 0.0
  %1040 = vmatprep.subr.mxu0 0.0
  %1041 = vmatpush1.xpose.msra.mxu0 0.0
  %1042 = vmatprep.subr.mxu0 0.0
  %1043 = vmatpush1.xpose.msra.mxu0 0.0
  %1044 = vmatprep.subr.mxu0 0.0
  %1045 = vmatpush1.xpose.msra.mxu0 0.0
  %1046 = vmatprep.subr.mxu0 0.0
  %1047 = vmatpush1.xpose.msra.mxu0 0.0
  %1048 = vmatprep.subr.mxu0 0.0
  %1049 = vmatpush1.xpose.msra.mxu0 0.0
  %1050 = vmatprep.subr.mxu0 0.0
  %1051 = vmatpush1.xpose.msra.mxu0 0.0
  %1052 = vmatprep.subr.mxu0 0.0
  %1053 = vmatpush1.xpose.msra.mxu0 0.0
  %1054 = vmatprep.subr.mxu0 0.0
  %1055 = vmatpush1.xpose.msra.mxu0 0.0
  %1056 = vmatprep.subr.mxu0 0.0
  %1057 = vmatpush1.xpose.msra.mxu0 0.0
  %1058 = vmatprep.subr.mxu0 0.0
  %1059 = vmatpush1.xpose.msra.mxu0 0.0
  %1060 = vmatprep.subr.mxu0 0.0
  %1061 = vmatpush1.xpose.msra.mxu0 0.0
  %1062 = vmatprep.subr.mxu0 0.0
  %1063 = vmatpush1.xpose.msra.mxu0 0.0
  %1064 = vmatprep.subr.mxu0 0.0
  %1065 = vmatpush1.xpose.msra.mxu0 0.0
  %1066 = vmatprep.subr.mxu0 0.0
  %1067 = vmatpush1.xpose.msra.mxu0 0.0
  %1068 = vmatprep.subr.mxu0 0.0
  %1069 = vmatpush1.xpose.msra.mxu0 0.0
  %1070 = vmatprep.subr.mxu0 0.0
  %1071 = vmatpush1.xpose.msra.mxu0 0.0
  %1072 = vmatprep.subr.mxu0 0.0
  %1073 = vmatpush1.xpose.msra.mxu0 0.0
  %1074 = vmatprep.subr.mxu0 0.0
  %1075 = vmatpush1.xpose.msra.mxu0 0.0
  %1076 = vmatprep.subr.mxu0 0.0
  %1077 = vmatpush1.xpose.msra.mxu0 0.0
  %1078 = vmatprep.subr.mxu0 0.0
  %1079 = vmatpush1.xpose.msra.mxu0 0.0
  %1080 = vmatprep.subr.mxu0 0.0
  %1081 = vmatpush1.xpose.msra.mxu0 0.0
  %1082 = vmatprep.subr.mxu0 0.0
  %1083 = vmatpush1.xpose.msra.mxu0 0.0
  %1084 = vmatprep.subr.mxu0 0.0
  %1085 = vmatpush1.xpose.msra.mxu0 0.0
  %1086 = vmatprep.subr.mxu0 0.0
  %1087 = vmatpush1.xpose.msra.mxu0 0.0
  %1088 = vmatprep.mubr.f32.mxu0 0.0
  %1089 = vmatmul.mubr.f32.gmra.mrb[0].mxu0 %v1019
  %v1090 = vpop.f32.mrb[0].mxu0
  %v1091 = vadd.f32 0.0, %v1090
  %v1092 = vpop.f32.mrb[0].mxu0
  %1093 = vdwg.mxu0
  %v1095 = vsel %vm76, %v338, 0
  %v1098 = vsel %vm76, %v474, 0
  %1100 = vmatprep.subr.mxu0 0.0
  %1101 = vmatpush1.xpose.msra.mxu0 %v1098
  %1102 = vmatprep.subr.mxu0 0.0
  %1103 = vmatpush1.xpose.msra.mxu0 0.0
  %1104 = vmatprep.subr.mxu0 0.0
  %1105 = vmatpush1.xpose.msra.mxu0 0.0
  %1106 = vmatprep.subr.mxu0 0.0
  %1107 = vmatpush1.xpose.msra.mxu0 0.0
  %1108 = vmatprep.subr.mxu0 0.0
  %1109 = vmatpush1.xpose.msra.mxu0 0.0
  %1110 = vmatprep.subr.mxu0 0.0
  %1111 = vmatpush1.xpose.msra.mxu0 0.0
  %1112 = vmatprep.subr.mxu0 0.0
  %1113 = vmatpush1.xpose.msra.mxu0 0.0
  %1114 = vmatprep.subr.mxu0 0.0
  %1115 = vmatpush1.xpose.msra.mxu0 0.0
  %1116 = vmatprep.subr.mxu0 0.0
  %1117 = vmatpush1.xpose.msra.mxu0 0.0
  %1118 = vmatprep.subr.mxu0 0.0
  %1119 = vmatpush1.xpose.msra.mxu0 0.0
  %1120 = vmatprep.subr.mxu0 0.0
  %1121 = vmatpush1.xpose.msra.mxu0 0.0
  %1122 = vmatprep.subr.mxu0 0.0
  %1123 = vmatpush1.xpose.msra.mxu0 0.0
  %1124 = vmatprep.subr.mxu0 0.0
  %1125 = vmatpush1.xpose.msra.mxu0 0.0
  %1126 = vmatprep.subr.mxu0 0.0
  %1127 = vmatpush1.xpose.msra.mxu0 0.0
  %1128 = vmatprep.subr.mxu0 0.0
  %1129 = vmatpush1.xpose.msra.mxu0 0.0
  %1130 = vmatprep.subr.mxu0 0.0
  %1131 = vmatpush1.xpose.msra.mxu0 0.0
  %1132 = vmatprep.subr.mxu0 0.0
  %1133 = vmatpush1.xpose.msra.mxu0 0.0
  %1134 = vmatprep.subr.mxu0 0.0
  %1135 = vmatpush1.xpose.msra.mxu0 0.0
  %1136 = vmatprep.subr.mxu0 0.0
  %1137 = vmatpush1.xpose.msra.mxu0 0.0
  %1138 = vmatprep.subr.mxu0 0.0
  %1139 = vmatpush1.xpose.msra.mxu0 0.0
  %1140 = vmatprep.subr.mxu0 0.0
  %1141 = vmatpush1.xpose.msra.mxu0 0.0
  %1142 = vmatprep.subr.mxu0 0.0
  %1143 = vmatpush1.xpose.msra.mxu0 0.0
  %1144 = vmatprep.subr.mxu0 0.0
  %1145 = vmatpush1.xpose.msra.mxu0 0.0
  %1146 = vmatprep.subr.mxu0 0.0
  %1147 = vmatpush1.xpose.msra.mxu0 0.0
  %1148 = vmatprep.subr.mxu0 0.0
  %1149 = vmatpush1.xpose.msra.mxu0 0.0
  %1150 = vmatprep.subr.mxu0 0.0
  %1151 = vmatpush1.xpose.msra.mxu0 0.0
  %1152 = vmatprep.subr.mxu0 0.0
  %1153 = vmatpush1.xpose.msra.mxu0 0.0
  %1154 = vmatprep.subr.mxu0 0.0
  %1155 = vmatpush1.xpose.msra.mxu0 0.0
  %1156 = vmatprep.subr.mxu0 0.0
  %1157 = vmatpush1.xpose.msra.mxu0 0.0
  %1158 = vmatprep.subr.mxu0 0.0
  %1159 = vmatpush1.xpose.msra.mxu0 0.0
  %1160 = vmatprep.subr.mxu0 0.0
  %1161 = vmatpush1.xpose.msra.mxu0 0.0
  %1162 = vmatprep.subr.mxu0 0.0
  %1163 = vmatpush1.xpose.msra.mxu0 0.0
  %1164 = vmatprep.mubr.f32.mxu0 0.0
  %1165 = vmatmul.mubr.f32.gmra.mrb[0].mxu0 %v1095
  %v1166 = vpop.f32.mrb[0].mxu0
  %v1167 = vadd.f32 0.0, %v1166
  %v1168 = vpop.f32.mrb[0].mxu0
  %1169 = vdwg.mxu0
  %v1171 = vsel %vm76, %v343, 0
  %v1174 = vsel %vm76, %v479, 0
  %1176 = vmatprep.subr.mxu0 0.0
  %1177 = vmatpush1.xpose.msra.mxu0 %v1174
  %1178 = vmatprep.subr.mxu0 0.0
  %1179 = vmatpush1.xpose.msra.mxu0 0.0
  %1180 = vmatprep.subr.mxu0 0.0
  %1181 = vmatpush1.xpose.msra.mxu0 0.0
  %1182 = vmatprep.subr.mxu0 0.0
  %1183 = vmatpush1.xpose.msra.mxu0 0.0
  %1184 = vmatprep.subr.mxu0 0.0
  %1185 = vmatpush1.xpose.msra.mxu0 0.0
  %1186 = vmatprep.subr.mxu0 0.0
  %1187 = vmatpush1.xpose.msra.mxu0 0.0
  %1188 = vmatprep.subr.mxu0 0.0
  %1189 = vmatpush1.xpose.msra.mxu0 0.0
  %1190 = vmatprep.subr.mxu0 0.0
  %1191 = vmatpush1.xpose.msra.mxu0 0.0
  %1192 = vmatprep.subr.mxu0 0.0
  %1193 = vmatpush1.xpose.msra.mxu0 0.0
  %1194 = vmatprep.subr.mxu0 0.0
  %1195 = vmatpush1.xpose.msra.mxu0 0.0
  %1196 = vmatprep.subr.mxu0 0.0
  %1197 = vmatpush1.xpose.msra.mxu0 0.0
  %1198 = vmatprep.subr.mxu0 0.0
  %1199 = vmatpush1.xpose.msra.mxu0 0.0
  %1200 = vmatprep.subr.mxu0 0.0
  %1201 = vmatpush1.xpose.msra.mxu0 0.0
  %1202 = vmatprep.subr.mxu0 0.0
  %1203 = vmatpush1.xpose.msra.mxu0 0.0
  %1204 = vmatprep.subr.mxu0 0.0
  %1205 = vmatpush1.xpose.msra.mxu0 0.0
  %1206 = vmatprep.subr.mxu0 0.0
  %1207 = vmatpush1.xpose.msra.mxu0 0.0
  %1208 = vmatprep.subr.mxu0 0.0
  %1209 = vmatpush1.xpose.msra.mxu0 0.0
  %1210 = vmatprep.subr.mxu0 0.0
  %1211 = vmatpush1.xpose.msra.mxu0 0.0
  %1212 = vmatprep.subr.mxu0 0.0
  %1213 = vmatpush1.xpose.msra.mxu0 0.0
  %1214 = vmatprep.subr.mxu0 0.0
  %1215 = vmatpush1.xpose.msra.mxu0 0.0
  %1216 = vmatprep.subr.mxu0 0.0
  %1217 = vmatpush1.xpose.msra.mxu0 0.0
  %1218 = vmatprep.subr.mxu0 0.0
  %1219 = vmatpush1.xpose.msra.mxu0 0.0
  %1220 = vmatprep.subr.mxu0 0.0
  %1221 = vmatpush1.xpose.msra.mxu0 0.0
  %1222 = vmatprep.subr.mxu0 0.0
  %1223 = vmatpush1.xpose.msra.mxu0 0.0
  %1224 = vmatprep.subr.mxu0 0.0
  %1225 = vmatpush1.xpose.msra.mxu0 0.0
  %1226 = vmatprep.subr.mxu0 0.0
  %1227 = vmatpush1.xpose.msra.mxu0 0.0
  %1228 = vmatprep.subr.mxu0 0.0
  %1229 = vmatpush1.xpose.msra.mxu0 0.0
  %1230 = vmatprep.subr.mxu0 0.0
  %1231 = vmatpush1.xpose.msra.mxu0 0.0
  %1232 = vmatprep.subr.mxu0 0.0
  %1233 = vmatpush1.xpose.msra.mxu0 0.0
  %1234 = vmatprep.subr.mxu0 0.0
  %1235 = vmatpush1.xpose.msra.mxu0 0.0
  %1236 = vmatprep.subr.mxu0 0.0
  %1237 = vmatpush1.xpose.msra.mxu0 0.0
  %1238 = vmatprep.subr.mxu0 0.0
  %1239 = vmatpush1.xpose.msra.mxu0 0.0
  %1240 = vmatprep.mubr.f32.mxu0 0.0
  %1241 = vmatmul.mubr.f32.gmra.mrb[0].mxu0 %v1171
  %v1242 = vpop.f32.mrb[0].mxu0
  %v1243 = vadd.f32 0.0, %v1242
  %v1244 = vpop.f32.mrb[0].mxu0
  %1245 = vdwg.mxu0
  %v1247 = vsel %vm76, %v348, 0
  %v1250 = vsel %vm76, %v484, 0
  %1252 = vmatprep.subr.mxu0 0.0
  %1253 = vmatpush1.xpose.msra.mxu0 %v1250
  %1254 = vmatprep.subr.mxu0 0.0
  %1255 = vmatpush1.xpose.msra.mxu0 0.0
  %1256 = vmatprep.subr.mxu0 0.0
  %1257 = vmatpush1.xpose.msra.mxu0 0.0
  %1258 = vmatprep.subr.mxu0 0.0
  %1259 = vmatpush1.xpose.msra.mxu0 0.0
  %1260 = vmatprep.subr.mxu0 0.0
  %1261 = vmatpush1.xpose.msra.mxu0 0.0
  %1262 = vmatprep.subr.mxu0 0.0
  %1263 = vmatpush1.xpose.msra.mxu0 0.0
  %1264 = vmatprep.subr.mxu0 0.0
  %1265 = vmatpush1.xpose.msra.mxu0 0.0
  %1266 = vmatprep.subr.mxu0 0.0
  %1267 = vmatpush1.xpose.msra.mxu0 0.0
  %1268 = vmatprep.subr.mxu0 0.0
  %1269 = vmatpush1.xpose.msra.mxu0 0.0
  %1270 = vmatprep.subr.mxu0 0.0
  %1271 = vmatpush1.xpose.msra.mxu0 0.0
  %1272 = vmatprep.subr.mxu0 0.0
  %1273 = vmatpush1.xpose.msra.mxu0 0.0
  %1274 = vmatprep.subr.mxu0 0.0
  %1275 = vmatpush1.xpose.msra.mxu0 0.0
  %1276 = vmatprep.subr.mxu0 0.0
  %1277 = vmatpush1.xpose.msra.mxu0 0.0
  %1278 = vmatprep.subr.mxu0 0.0
  %1279 = vmatpush1.xpose.msra.mxu0 0.0
  %1280 = vmatprep.subr.mxu0 0.0
  %1281 = vmatpush1.xpose.msra.mxu0 0.0
  %1282 = vmatprep.subr.mxu0 0.0
  %1283 = vmatpush1.xpose.msra.mxu0 0.0
  %1284 = vmatprep.subr.mxu0 0.0
  %1285 = vmatpush1.xpose.msra.mxu0 0.0
  %1286 = vmatprep.subr.mxu0 0.0
  %1287 = vmatpush1.xpose.msra.mxu0 0.0
  %1288 = vmatprep.subr.mxu0 0.0
  %1289 = vmatpush1.xpose.msra.mxu0 0.0
  %1290 = vmatprep.subr.mxu0 0.0
  %1291 = vmatpush1.xpose.msra.mxu0 0.0
  %1292 = vmatprep.subr.mxu0 0.0
  %1293 = vmatpush1.xpose.msra.mxu0 0.0
  %1294 = vmatprep.subr.mxu0 0.0
  %1295 = vmatpush1.xpose.msra.mxu0 0.0
  %1296 = vmatprep.subr.mxu0 0.0
  %1297 = vmatpush1.xpose.msra.mxu0 0.0
  %1298 = vmatprep.subr.mxu0 0.0
  %1299 = vmatpush1.xpose.msra.mxu0 0.0
  %1300 = vmatprep.subr.mxu0 0.0
  %1301 = vmatpush1.xpose.msra.mxu0 0.0
  %1302 = vmatprep.subr.mxu0 0.0
  %1303 = vmatpush1.xpose.msra.mxu0 0.0
  %1304 = vmatprep.subr.mxu0 0.0
  %1305 = vmatpush1.xpose.msra.mxu0 0.0
  %1306 = vmatprep.subr.mxu0 0.0
  %1307 = vmatpush1.xpose.msra.mxu0 0.0
  %1308 = vmatprep.subr.mxu0 0.0
  %1309 = vmatpush1.xpose.msra.mxu0 0.0
  %1310 = vmatprep.subr.mxu0 0.0
  %1311 = vmatpush1.xpose.msra.mxu0 0.0
  %1312 = vmatprep.subr.mxu0 0.0
  %1313 = vmatpush1.xpose.msra.mxu0 0.0
  %1314 = vmatprep.subr.mxu0 0.0
  %1315 = vmatpush1.xpose.msra.mxu0 0.0
  %1316 = vmatprep.mubr.f32.mxu0 0.0
  %1317 = vmatmul.mubr.f32.gmra.mrb[0].mxu0 %v1247
  %v1318 = vpop.f32.mrb[0].mxu0
  %v1319 = vadd.f32 0.0, %v1318
  %v1320 = vpop.f32.mrb[0].mxu0
  %1321 = vdwg.mxu0
  %v1323 = vsel %vm76, %v353, 0
  %v1326 = vsel %vm76, %v489, 0
  %1328 = vmatprep.subr.mxu0 0.0
  %1329 = vmatpush1.xpose.msra.mxu0 %v1326
  %1330 = vmatprep.subr.mxu0 0.0
  %1331 = vmatpush1.xpose.msra.mxu0 0.0
  %1332 = vmatprep.subr.mxu0 0.0
  %1333 = vmatpush1.xpose.msra.mxu0 0.0
  %1334 = vmatprep.subr.mxu0 0.0
  %1335 = vmatpush1.xpose.msra.mxu0 0.0
  %1336 = vmatprep.subr.mxu0 0.0
  %1337 = vmatpush1.xpose.msra.mxu0 0.0
  %1338 = vmatprep.subr.mxu0 0.0
  %1339 = vmatpush1.xpose.msra.mxu0 0.0
  %1340 = vmatprep.subr.mxu0 0.0
  %1341 = vmatpush1.xpose.msra.mxu0 0.0
  %1342 = vmatprep.subr.mxu0 0.0
  %1343 = vmatpush1.xpose.msra.mxu0 0.0
  %1344 = vmatprep.subr.mxu0 0.0
  %1345 = vmatpush1.xpose.msra.mxu0 0.0
  %1346 = vmatprep.subr.mxu0 0.0
  %1347 = vmatpush1.xpose.msra.mxu0 0.0
  %1348 = vmatprep.subr.mxu0 0.0
  %1349 = vmatpush1.xpose.msra.mxu0 0.0
  %1350 = vmatprep.subr.mxu0 0.0
  %1351 = vmatpush1.xpose.msra.mxu0 0.0
  %1352 = vmatprep.subr.mxu0 0.0
  %1353 = vmatpush1.xpose.msra.mxu0 0.0
  %1354 = vmatprep.subr.mxu0 0.0
  %1355 = vmatpush1.xpose.msra.mxu0 0.0
  %1356 = vmatprep.subr.mxu0 0.0
  %1357 = vmatpush1.xpose.msra.mxu0 0.0
  %1358 = vmatprep.subr.mxu0 0.0
  %1359 = vmatpush1.xpose.msra.mxu0 0.0
  %1360 = vmatprep.subr.mxu0 0.0
  %1361 = vmatpush1.xpose.msra.mxu0 0.0
  %1362 = vmatprep.subr.mxu0 0.0
  %1363 = vmatpush1.xpose.msra.mxu0 0.0
  %1364 = vmatprep.subr.mxu0 0.0
  %1365 = vmatpush1.xpose.msra.mxu0 0.0
  %1366 = vmatprep.subr.mxu0 0.0
  %1367 = vmatpush1.xpose.msra.mxu0 0.0
  %1368 = vmatprep.subr.mxu0 0.0
  %1369 = vmatpush1.xpose.msra.mxu0 0.0
  %1370 = vmatprep.subr.mxu0 0.0
  %1371 = vmatpush1.xpose.msra.mxu0 0.0
  %1372 = vmatprep.subr.mxu0 0.0
  %1373 = vmatpush1.xpose.msra.mxu0 0.0
  %1374 = vmatprep.subr.mxu0 0.0
  %1375 = vmatpush1.xpose.msra.mxu0 0.0
  %1376 = vmatprep.subr.mxu0 0.0
  %1377 = vmatpush1.xpose.msra.mxu0 0.0
  %1378 = vmatprep.subr.mxu0 0.0
  %1379 = vmatpush1.xpose.msra.mxu0 0.0
  %1380 = vmatprep.subr.mxu0 0.0
  %1381 = vmatpush1.xpose.msra.mxu0 0.0
  %1382 = vmatprep.subr.mxu0 0.0
  %1383 = vmatpush1.xpose.msra.mxu0 0.0
  %1384 = vmatprep.subr.mxu0 0.0
  %1385 = vmatpush1.xpose.msra.mxu0 0.0
  %1386 = vmatprep.subr.mxu0 0.0
  %1387 = vmatpush1.xpose.msra.mxu0 0.0
  %1388 = vmatprep.subr.mxu0 0.0
  %1389 = vmatpush1.xpose.msra.mxu0 0.0
  %1390 = vmatprep.subr.mxu0 0.0
  %1391 = vmatpush1.xpose.msra.mxu0 0.0
  %1392 = vmatprep.mubr.f32.mxu0 0.0
  %1393 = vmatmul.mubr.f32.gmra.mrb[0].mxu0 %v1323
  %v1394 = vpop.f32.mrb[0].mxu0
  %v1395 = vadd.f32 0.0, %v1394
  %v1396 = vpop.f32.mrb[0].mxu0
  %1397 = vdwg.mxu0
  %v1399 = vsel %vm76, %v358, 0
  %v1402 = vsel %vm76, %v494, 0
  %1404 = vmatprep.subr.mxu0 0.0
  %1405 = vmatpush1.xpose.msra.mxu0 %v1402
  %1406 = vmatprep.subr.mxu0 0.0
  %1407 = vmatpush1.xpose.msra.mxu0 0.0
  %1408 = vmatprep.subr.mxu0 0.0
  %1409 = vmatpush1.xpose.msra.mxu0 0.0
  %1410 = vmatprep.subr.mxu0 0.0
  %1411 = vmatpush1.xpose.msra.mxu0 0.0
  %1412 = vmatprep.subr.mxu0 0.0
  %1413 = vmatpush1.xpose.msra.mxu0 0.0
  %1414 = vmatprep.subr.mxu0 0.0
  %1415 = vmatpush1.xpose.msra.mxu0 0.0
  %1416 = vmatprep.subr.mxu0 0.0
  %1417 = vmatpush1.xpose.msra.mxu0 0.0
  %1418 = vmatprep.subr.mxu0 0.0
  %1419 = vmatpush1.xpose.msra.mxu0 0.0
  %1420 = vmatprep.subr.mxu0 0.0
  %1421 = vmatpush1.xpose.msra.mxu0 0.0
  %1422 = vmatprep.subr.mxu0 0.0
  %1423 = vmatpush1.xpose.msra.mxu0 0.0
  %1424 = vmatprep.subr.mxu0 0.0
  %1425 = vmatpush1.xpose.msra.mxu0 0.0
  %1426 = vmatprep.subr.mxu0 0.0
  %1427 = vmatpush1.xpose.msra.mxu0 0.0
  %1428 = vmatprep.subr.mxu0 0.0
  %1429 = vmatpush1.xpose.msra.mxu0 0.0
  %1430 = vmatprep.subr.mxu0 0.0
  %1431 = vmatpush1.xpose.msra.mxu0 0.0
  %1432 = vmatprep.subr.mxu0 0.0
  %1433 = vmatpush1.xpose.msra.mxu0 0.0
  %1434 = vmatprep.subr.mxu0 0.0
  %1435 = vmatpush1.xpose.msra.mxu0 0.0
  %1436 = vmatprep.subr.mxu0 0.0
  %1437 = vmatpush1.xpose.msra.mxu0 0.0
  %1438 = vmatprep.subr.mxu0 0.0
  %1439 = vmatpush1.xpose.msra.mxu0 0.0
  %1440 = vmatprep.subr.mxu0 0.0
  %1441 = vmatpush1.xpose.msra.mxu0 0.0
  %1442 = vmatprep.subr.mxu0 0.0
  %1443 = vmatpush1.xpose.msra.mxu0 0.0
  %1444 = vmatprep.subr.mxu0 0.0
  %1445 = vmatpush1.xpose.msra.mxu0 0.0
  %1446 = vmatprep.subr.mxu0 0.0
  %1447 = vmatpush1.xpose.msra.mxu0 0.0
  %1448 = vmatprep.subr.mxu0 0.0
  %1449 = vmatpush1.xpose.msra.mxu0 0.0
  %1450 = vmatprep.subr.mxu0 0.0
  %1451 = vmatpush1.xpose.msra.mxu0 0.0
  %1452 = vmatprep.subr.mxu0 0.0
  %1453 = vmatpush1.xpose.msra.mxu0 0.0
  %1454 = vmatprep.subr.mxu0 0.0
  %1455 = vmatpush1.xpose.msra.mxu0 0.0
  %1456 = vmatprep.subr.mxu0 0.0
  %1457 = vmatpush1.xpose.msra.mxu0 0.0
  %1458 = vmatprep.subr.mxu0 0.0
  %1459 = vmatpush1.xpose.msra.mxu0 0.0
  %1460 = vmatprep.subr.mxu0 0.0
  %1461 = vmatpush1.xpose.msra.mxu0 0.0
  %1462 = vmatprep.subr.mxu0 0.0
  %1463 = vmatpush1.xpose.msra.mxu0 0.0
  %1464 = vmatprep.subr.mxu0 0.0
  %1465 = vmatpush1.xpose.msra.mxu0 0.0
  %1466 = vmatprep.subr.mxu0 0.0
  %1467 = vmatpush1.xpose.msra.mxu0 0.0
  %1468 = vmatprep.mubr.f32.mxu0 0.0
  %1469 = vmatmul.mubr.f32.gmra.mrb[0].mxu0 %v1399
  %v1470 = vpop.f32.mrb[0].mxu0
  %v1471 = vadd.f32 0.0, %v1470
  %v1472 = vpop.f32.mrb[0].mxu0
  %1473 = vdwg.mxu0
  %v1475 = vsel %vm76, %v363, 0
  %v1478 = vsel %vm76, %v499, 0
  %1480 = vmatprep.subr.mxu0 0.0
  %1481 = vmatpush1.xpose.msra.mxu0 %v1478
  %1482 = vmatprep.subr.mxu0 0.0
  %1483 = vmatpush1.xpose.msra.mxu0 0.0
  %1484 = vmatprep.subr.mxu0 0.0
  %1485 = vmatpush1.xpose.msra.mxu0 0.0
  %1486 = vmatprep.subr.mxu0 0.0
  %1487 = vmatpush1.xpose.msra.mxu0 0.0
  %1488 = vmatprep.subr.mxu0 0.0
  %1489 = vmatpush1.xpose.msra.mxu0 0.0
  %1490 = vmatprep.subr.mxu0 0.0
  %1491 = vmatpush1.xpose.msra.mxu0 0.0
  %1492 = vmatprep.subr.mxu0 0.0
  %1493 = vmatpush1.xpose.msra.mxu0 0.0
  %1494 = vmatprep.subr.mxu0 0.0
  %1495 = vmatpush1.xpose.msra.mxu0 0.0
  %1496 = vmatprep.subr.mxu0 0.0
  %1497 = vmatpush1.xpose.msra.mxu0 0.0
  %1498 = vmatprep.subr.mxu0 0.0
  %1499 = vmatpush1.xpose.msra.mxu0 0.0
  %1500 = vmatprep.subr.mxu0 0.0
  %1501 = vmatpush1.xpose.msra.mxu0 0.0
  %1502 = vmatprep.subr.mxu0 0.0
  %1503 = vmatpush1.xpose.msra.mxu0 0.0
  %1504 = vmatprep.subr.mxu0 0.0
  %1505 = vmatpush1.xpose.msra.mxu0 0.0
  %1506 = vmatprep.subr.mxu0 0.0
  %1507 = vmatpush1.xpose.msra.mxu0 0.0
  %1508 = vmatprep.subr.mxu0 0.0
  %1509 = vmatpush1.xpose.msra.mxu0 0.0
  %1510 = vmatprep.subr.mxu0 0.0
  %1511 = vmatpush1.xpose.msra.mxu0 0.0
  %1512 = vmatprep.subr.mxu0 0.0
  %1513 = vmatpush1.xpose.msra.mxu0 0.0
  %1514 = vmatprep.subr.mxu0 0.0
  %1515 = vmatpush1.xpose.msra.mxu0 0.0
  %1516 = vmatprep.subr.mxu0 0.0
  %1517 = vmatpush1.xpose.msra.mxu0 0.0
  %1518 = vmatprep.subr.mxu0 0.0
  %1519 = vmatpush1.xpose.msra.mxu0 0.0
  %1520 = vmatprep.subr.mxu0 0.0
  %1521 = vmatpush1.xpose.msra.mxu0 0.0
  %1522 = vmatprep.subr.mxu0 0.0
  %1523 = vmatpush1.xpose.msra.mxu0 0.0
  %1524 = vmatprep.subr.mxu0 0.0
  %1525 = vmatpush1.xpose.msra.mxu0 0.0
  %1526 = vmatprep.subr.mxu0 0.0
  %1527 = vmatpush1.xpose.msra.mxu0 0.0
  %1528 = vmatprep.subr.mxu0 0.0
  %1529 = vmatpush1.xpose.msra.mxu0 0.0
  %1530 = vmatprep.subr.mxu0 0.0
  %1531 = vmatpush1.xpose.msra.mxu0 0.0
  %1532 = vmatprep.subr.mxu0 0.0
  %1533 = vmatpush1.xpose.msra.mxu0 0.0
  %1534 = vmatprep.subr.mxu0 0.0
  %1535 = vmatpush1.xpose.msra.mxu0 0.0
  %1536 = vmatprep.subr.mxu0 0.0
  %1537 = vmatpush1.xpose.msra.mxu0 0.0
  %1538 = vmatprep.subr.mxu0 0.0
  %1539 = vmatpush1.xpose.msra.mxu0 0.0
  %1540 = vmatprep.subr.mxu0 0.0
  %1541 = vmatpush1.xpose.msra.mxu0 0.0
  %1542 = vmatprep.subr.mxu0 0.0
  %1543 = vmatpush1.xpose.msra.mxu0 0.0
  %1544 = vmatprep.mubr.f32.mxu0 0.0
  %1545 = vmatmul.mubr.f32.gmra.mrb[0].mxu0 %v1475
  %v1546 = vpop.f32.mrb[0].mxu0
  %v1547 = vadd.f32 0.0, %v1546
  %v1548 = vpop.f32.mrb[0].mxu0
  %1549 = vdwg.mxu0
  %vm1550 = vcmask 64512
  %v1551 = vsel %vm1550, %v711, -inf
  %1552 = vmax.xlane.f32.xlu0 %v1551
  %v1553 = vpop.xlane.xlu0 %1552
  %v1554 = vsel %vm1550, %v787, -inf
  %1555 = vmax.xlane.f32.xlu0 %v1554
  %v1556 = vpop.xlane.xlu0 %1555
  %v1557 = vsel %vm1550, %v863, -inf
  %1558 = vmax.xlane.f32.xlu0 %v1557
  %v1559 = vpop.xlane.xlu0 %1558
  %v1560 = vsel %vm1550, %v939, -inf
  %1561 = vmax.xlane.f32.xlu0 %v1560
  %v1562 = vpop.xlane.xlu0 %1561
  %v1563 = vsel %vm1550, %v1015, -inf
  %1564 = vmax.xlane.f32.xlu0 %v1563
  %v1565 = vpop.xlane.xlu0 %1564
  %v1566 = vsel %vm1550, %v1091, -inf
  %1567 = vmax.xlane.f32.xlu0 %v1566
  %v1568 = vpop.xlane.xlu0 %1567
  %v1569 = vsel %vm1550, %v1167, -inf
  %1570 = vmax.xlane.f32.xlu0 %v1569
  %v1571 = vpop.xlane.xlu0 %1570
  %v1572 = vsel %vm1550, %v1243, -inf
  %1573 = vmax.xlane.f32.xlu0 %v1572
  %v1574 = vpop.xlane.xlu0 %1573
  %v1575 = vsel %vm1550, %v1319, -inf
  %1576 = vmax.xlane.f32.xlu0 %v1575
  %v1577 = vpop.xlane.xlu0 %1576
  %v1578 = vsel %vm1550, %v1395, -inf
  %1579 = vmax.xlane.f32.xlu0 %v1578
  %v1580 = vpop.xlane.xlu0 %1579
  %v1581 = vsel %vm1550, %v1471, -inf
  %1582 = vmax.xlane.f32.xlu0 %v1581
  %v1583 = vpop.xlane.xlu0 %1582
  %v1584 = vsel %vm1550, %v1547, -inf
  %1585 = vmax.xlane.f32.xlu0 %v1584
  %v1586 = vpop.xlane.xlu0 %1585
  %v1587 = vsub.f32 %v711, %v1553
  %v1588 = vsub.f32 %v787, %v1556
  %v1589 = vsub.f32 %v863, %v1559
  %v1590 = vsub.f32 %v939, %v1562
  %v1591 = vsub.f32 %v1015, %v1565
  %v1592 = vsub.f32 %v1091, %v1568
  %v1593 = vsub.f32 %v1167, %v1571
  %v1594 = vsub.f32 %v1243, %v1574
  %v1595 = vsub.f32 %v1319, %v1577
  %v1596 = vsub.f32 %v1395, %v1580
  %v1597 = vsub.f32 %v1471, %v1583
  %v1598 = vsub.f32 %v1547, %v1586
  %v1599 = vmul.f32 %v1587, 1.442695
  %v1600 = vpow.pop %v1599
  %v1601 = vmul.f32 %v1588, 1.442695
  %v1602 = vpow.pop %v1601
  %v1603 = vmul.f32 %v1589, 1.442695
  %v1604 = vpow.pop %v1603
  %v1605 = vmul.f32 %v1590, 1.442695
  %v1606 = vpow.pop %v1605
  %v1607 = vmul.f32 %v1591, 1.442695
  %v1608 = vpow.pop %v1607
  %v1609 = vmul.f32 %v1592, 1.442695
  %v1610 = vpow.pop %v1609
  %v1611 = vmul.f32 %v1593, 1.442695
  %v1612 = vpow.pop %v1611
  %v1613 = vmul.f32 %v1594, 1.442695
  %v1614 = vpow.pop %v1613
  %v1615 = vmul.f32 %v1595, 1.442695
  %v1616 = vpow.pop %v1615
  %v1617 = vmul.f32 %v1596, 1.442695
  %v1618 = vpow.pop %v1617
  %v1619 = vmul.f32 %v1597, 1.442695
  %v1620 = vpow.pop %v1619
  %v1621 = vmul.f32 %v1598, 1.442695
  %v1622 = vpow.pop %v1621
  %v1623 = vsel %vm1550, %v1600, 0.0
  %1624 = vadd.xlane.f32.xlu0 %v1623
  %v1625 = vpop.xlane.xlu0 %1624
  %v1626 = vsel %vm1550, %v1602, 0.0
  %1627 = vadd.xlane.f32.xlu0 %v1626
  %v1628 = vpop.xlane.xlu0 %1627
  %v1629 = vsel %vm1550, %v1604, 0.0
  %1630 = vadd.xlane.f32.xlu0 %v1629
  %v1631 = vpop.xlane.xlu0 %1630
  %v1632 = vsel %vm1550, %v1606, 0.0
  %1633 = vadd.xlane.f32.xlu0 %v1632
  %v1634 = vpop.xlane.xlu0 %1633
  %v1635 = vsel %vm1550, %v1608, 0.0
  %1636 = vadd.xlane.f32.xlu0 %v1635
  %v1637 = vpop.xlane.xlu0 %1636
  %v1638 = vsel %vm1550, %v1610, 0.0
  %1639 = vadd.xlane.f32.xlu0 %v1638
  %v1640 = vpop.xlane.xlu0 %1639
  %v1641 = vsel %vm1550, %v1612, 0.0
  %1642 = vadd.xlane.f32.xlu0 %v1641
  %v1643 = vpop.xlane.xlu0 %1642
  %v1644 = vsel %vm1550, %v1614, 0.0
  %1645 = vadd.xlane.f32.xlu0 %v1644
  %v1646 = vpop.xlane.xlu0 %1645
  %v1647 = vsel %vm1550, %v1616, 0.0
  %1648 = vadd.xlane.f32.xlu0 %v1647
  %v1649 = vpop.xlane.xlu0 %1648
  %v1650 = vsel %vm1550, %v1618, 0.0
  %1651 = vadd.xlane.f32.xlu0 %v1650
  %v1652 = vpop.xlane.xlu0 %1651
  %v1653 = vsel %vm1550, %v1620, 0.0
  %1654 = vadd.xlane.f32.xlu0 %v1653
  %v1655 = vpop.xlane.xlu0 %1654
  %v1656 = vsel %vm1550, %v1622, 0.0
  %1657 = vadd.xlane.f32.xlu0 %v1656
  %v1658 = vpop.xlane.xlu0 %1657
  %v1659 = vrcp.pop %v1625
  %v1660 = vrcp.pop %v1628
  %v1661 = vrcp.pop %v1631
  %v1662 = vrcp.pop %v1634
  %v1663 = vrcp.pop %v1637
  %v1664 = vrcp.pop %v1640
  %v1665 = vrcp.pop %v1643
  %v1666 = vrcp.pop %v1646
  %v1667 = vrcp.pop %v1649
  %v1668 = vrcp.pop %v1652
  %v1669 = vrcp.pop %v1655
  %v1670 = vrcp.pop %v1658
  %v1671 = vmul.f32 %v1600, %v1659
  %v1672 = vmul.f32 %v1602, %v1660
  %v1673 = vmul.f32 %v1604, %v1661
  %v1674 = vmul.f32 %v1606, %v1662
  %v1675 = vmul.f32 %v1608, %v1663
  %v1676 = vmul.f32 %v1610, %v1664
  %v1677 = vmul.f32 %v1612, %v1665
  %v1678 = vmul.f32 %v1614, %v1666
  %v1679 = vmul.f32 %v1616, %v1667
  %v1680 = vmul.f32 %v1618, %v1668
  %v1681 = vmul.f32 %v1620, %v1669
  %v1682 = vmul.f32 %v1622, %v1670
  %v1684 = vsel %vm1550, %v1671, 0
  %1686 = vmatprep.subr.mxu0 0.0
  %1687 = vmatpush1.msra.mxu0 %v580
  %1688 = vmatprep.subr.mxu0 0.0
  %1689 = vmatpush1.msra.mxu0 0.0
  %1690 = vmatprep.subr.mxu0 0.0
  %1691 = vmatpush1.msra.mxu0 0.0
  %1692 = vmatprep.subr.mxu0 0.0
  %1693 = vmatpush1.msra.mxu0 0.0
  %1694 = vmatprep.subr.mxu0 0.0
  %1695 = vmatpush1.msra.mxu0 0.0
  %1696 = vmatprep.subr.mxu0 0.0
  %1697 = vmatpush1.msra.mxu0 0.0
  %1698 = vmatprep.subr.mxu0 0.0
  %1699 = vmatpush1.msra.mxu0 0.0
  %1700 = vmatprep.subr.mxu0 0.0
  %1701 = vmatpush1.msra.mxu0 0.0
  %1702 = vmatprep.subr.mxu0 0.0
  %1703 = vmatpush1.msra.mxu0 0.0
  %1704 = vmatprep.subr.mxu0 0.0
  %1705 = vmatpush1.msra.mxu0 0.0
  %1706 = vmatprep.subr.mxu0 0.0
  %1707 = vmatpush1.msra.mxu0 0.0
  %1708 = vmatprep.subr.mxu0 0.0
  %1709 = vmatpush1.msra.mxu0 0.0
  %1710 = vmatprep.subr.mxu0 0.0
  %1711 = vmatpush1.msra.mxu0 0.0
  %1712 = vmatprep.subr.mxu0 0.0
  %1713 = vmatpush1.msra.mxu0 0.0
  %1714 = vmatprep.subr.mxu0 0.0
  %1715 = vmatpush1.msra.mxu0 0.0
  %1716 = vmatprep.subr.mxu0 0.0
  %1717 = vmatpush1.msra.mxu0 0.0
  %1718 = vmatprep.subr.mxu0 0.0
  %1719 = vmatpush1.msra.mxu0 0.0
  %1720 = vmatprep.subr.mxu0 0.0
  %1721 = vmatpush1.msra.mxu0 0.0
  %1722 = vmatprep.subr.mxu0 0.0
  %1723 = vmatpush1.msra.mxu0 0.0
  %1724 = vmatprep.subr.mxu0 0.0
  %1725 = vmatpush1.msra.mxu0 0.0
  %1726 = vmatprep.subr.mxu0 0.0
  %1727 = vmatpush1.msra.mxu0 0.0
  %1728 = vmatprep.subr.mxu0 0.0
  %1729 = vmatpush1.msra.mxu0 0.0
  %1730 = vmatprep.subr.mxu0 0.0
  %1731 = vmatpush1.msra.mxu0 0.0
  %1732 = vmatprep.subr.mxu0 0.0
  %1733 = vmatpush1.msra.mxu0 0.0
  %1734 = vmatprep.subr.mxu0 0.0
  %1735 = vmatpush1.msra.mxu0 0.0
  %1736 = vmatprep.subr.mxu0 0.0
  %1737 = vmatpush1.msra.mxu0 0.0
  %1738 = vmatprep.subr.mxu0 0.0
  %1739 = vmatpush1.msra.mxu0 0.0
  %1740 = vmatprep.subr.mxu0 0.0
  %1741 = vmatpush1.msra.mxu0 0.0
  %1742 = vmatprep.subr.mxu0 0.0
  %1743 = vmatpush1.msra.mxu0 0.0
  %1744 = vmatprep.subr.mxu0 0.0
  %1745 = vmatpush1.msra.mxu0 0.0
  %1746 = vmatprep.subr.mxu0 0.0
  %1747 = vmatpush1.msra.mxu0 0.0
  %1748 = vmatprep.subr.mxu0 0.0
  %1749 = vmatpush1.msra.mxu0 0.0
  %1750 = vmatprep.mubr.f32.mxu0 0.0
  %1751 = vmatmul.mubr.f32.gmra.mrb[0].mxu0 %v1684
  %v1752 = vpop.f32.mrb[0].mxu0
  %v1753 = vadd.f32 0.0, %v1752
  %v1754 = vpop.f32.mrb[0].mxu0
  %1755 = vdwg.mxu0
  %v1757 = vsel %vm1550, %v1672, 0
  %1759 = vmatprep.subr.mxu0 0.0
  %1760 = vmatpush1.msra.mxu0 %v585
  %1761 = vmatprep.subr.mxu0 0.0
  %1762 = vmatpush1.msra.mxu0 0.0
  %1763 = vmatprep.subr.mxu0 0.0
  %1764 = vmatpush1.msra.mxu0 0.0
  %1765 = vmatprep.subr.mxu0 0.0
  %1766 = vmatpush1.msra.mxu0 0.0
  %1767 = vmatprep.subr.mxu0 0.0
  %1768 = vmatpush1.msra.mxu0 0.0
  %1769 = vmatprep.subr.mxu0 0.0
  %1770 = vmatpush1.msra.mxu0 0.0
  %1771 = vmatprep.subr.mxu0 0.0
  %1772 = vmatpush1.msra.mxu0 0.0
  %1773 = vmatprep.subr.mxu0 0.0
  %1774 = vmatpush1.msra.mxu0 0.0
  %1775 = vmatprep.subr.mxu0 0.0
  %1776 = vmatpush1.msra.mxu0 0.0
  %1777 = vmatprep.subr.mxu0 0.0
  %1778 = vmatpush1.msra.mxu0 0.0
  %1779 = vmatprep.subr.mxu0 0.0
  %1780 = vmatpush1.msra.mxu0 0.0
  %1781 = vmatprep.subr.mxu0 0.0
  %1782 = vmatpush1.msra.mxu0 0.0
  %1783 = vmatprep.subr.mxu0 0.0
  %1784 = vmatpush1.msra.mxu0 0.0
  %1785 = vmatprep.subr.mxu0 0.0
  %1786 = vmatpush1.msra.mxu0 0.0
  %1787 = vmatprep.subr.mxu0 0.0
  %1788 = vmatpush1.msra.mxu0 0.0
  %1789 = vmatprep.subr.mxu0 0.0
  %1790 = vmatpush1.msra.mxu0 0.0
  %1791 = vmatprep.subr.mxu0 0.0
  %1792 = vmatpush1.msra.mxu0 0.0
  %1793 = vmatprep.subr.mxu0 0.0
  %1794 = vmatpush1.msra.mxu0 0.0
  %1795 = vmatprep.subr.mxu0 0.0
  %1796 = vmatpush1.msra.mxu0 0.0
  %1797 = vmatprep.subr.mxu0 0.0
  %1798 = vmatpush1.msra.mxu0 0.0
  %1799 = vmatprep.subr.mxu0 0.0
  %1800 = vmatpush1.msra.mxu0 0.0
  %1801 = vmatprep.subr.mxu0 0.0
  %1802 = vmatpush1.msra.mxu0 0.0
  %1803 = vmatprep.subr.mxu0 0.0
  %1804 = vmatpush1.msra.mxu0 0.0
  %1805 = vmatprep.subr.mxu0 0.0
  %1806 = vmatpush1.msra.mxu0 0.0
  %1807 = vmatprep.subr.mxu0 0.0
  %1808 = vmatpush1.msra.mxu0 0.0
  %1809 = vmatprep.subr.mxu0 0.0
  %1810 = vmatpush1.msra.mxu0 0.0
  %1811 = vmatprep.subr.mxu0 0.0
  %1812 = vmatpush1.msra.mxu0 0.0
  %1813 = vmatprep.subr.mxu0 0.0
  %1814 = vmatpush1.msra.mxu0 0.0
  %1815 = vmatprep.subr.mxu0 0.0
  %1816 = vmatpush1.msra.mxu0 0.0
  %1817 = vmatprep.subr.mxu0 0.0
  %1818 = vmatpush1.msra.mxu0 0.0
  %1819 = vmatprep.subr.mxu0 0.0
  %1820 = vmatpush1.msra.mxu0 0.0
  %1821 = vmatprep.subr.mxu0 0.0
  %1822 = vmatpush1.msra.mxu0 0.0
  %1823 = vmatprep.mubr.f32.mxu0 0.0
  %1824 = vmatmul.mubr.f32.gmra.mrb[0].mxu0 %v1757
  %v1825 = vpop.f32.mrb[0].mxu0
  %v1826 = vadd.f32 0.0, %v1825
  %v1827 = vpop.f32.mrb[0].mxu0
  %1828 = vdwg.mxu0
  %v1830 = vsel %vm1550, %v1673, 0
  %1832 = vmatprep.subr.mxu0 0.0
  %1833 = vmatpush1.msra.mxu0 %v590
  %1834 = vmatprep.subr.mxu0 0.0
  %1835 = vmatpush1.msra.mxu0 0.0
  %1836 = vmatprep.subr.mxu0 0.0
  %1837 = vmatpush1.msra.mxu0 0.0
  %1838 = vmatprep.subr.mxu0 0.0
  %1839 = vmatpush1.msra.mxu0 0.0
  %1840 = vmatprep.subr.mxu0 0.0
  %1841 = vmatpush1.msra.mxu0 0.0
  %1842 = vmatprep.subr.mxu0 0.0
  %1843 = vmatpush1.msra.mxu0 0.0
  %1844 = vmatprep.subr.mxu0 0.0
  %1845 = vmatpush1.msra.mxu0 0.0
  %1846 = vmatprep.subr.mxu0 0.0
  %1847 = vmatpush1.msra.mxu0 0.0
  %1848 = vmatprep.subr.mxu0 0.0
  %1849 = vmatpush1.msra.mxu0 0.0
  %1850 = vmatprep.subr.mxu0 0.0
  %1851 = vmatpush1.msra.mxu0 0.0
  %1852 = vmatprep.subr.mxu0 0.0
  %1853 = vmatpush1.msra.mxu0 0.0
  %1854 = vmatprep.subr.mxu0 0.0
  %1855 = vmatpush1.msra.mxu0 0.0
  %1856 = vmatprep.subr.mxu0 0.0
  %1857 = vmatpush1.msra.mxu0 0.0
  %1858 = vmatprep.subr.mxu0 0.0
  %1859 = vmatpush1.msra.mxu0 0.0
  %1860 = vmatprep.subr.mxu0 0.0
  %1861 = vmatpush1.msra.mxu0 0.0
  %1862 = vmatprep.subr.mxu0 0.0
  %1863 = vmatpush1.msra.mxu0 0.0
  %1864 = vmatprep.subr.mxu0 0.0
  %1865 = vmatpush1.msra.mxu0 0.0
  %1866 = vmatprep.subr.mxu0 0.0
  %1867 = vmatpush1.msra.mxu0 0.0
  %1868 = vmatprep.subr.mxu0 0.0
  %1869 = vmatpush1.msra.mxu0 0.0
  %1870 = vmatprep.subr.mxu0 0.0
  %1871 = vmatpush1.msra.mxu0 0.0
  %1872 = vmatprep.subr.mxu0 0.0
  %1873 = vmatpush1.msra.mxu0 0.0
  %1874 = vmatprep.subr.mxu0 0.0
  %1875 = vmatpush1.msra.mxu0 0.0
  %1876 = vmatprep.subr.mxu0 0.0
  %1877 = vmatpush1.msra.mxu0 0.0
  %1878 = vmatprep.subr.mxu0 0.0
  %1879 = vmatpush1.msra.mxu0 0.0
  %1880 = vmatprep.subr.mxu0 0.0
  %1881 = vmatpush1.msra.mxu0 0.0
  %1882 = vmatprep.subr.mxu0 0.0
  %1883 = vmatpush1.msra.mxu0 0.0
  %1884 = vmatprep.subr.mxu0 0.0
  %1885 = vmatpush1.msra.mxu0 0.0
  %1886 = vmatprep.subr.mxu0 0.0
  %1887 = vmatpush1.msra.mxu0 0.0
  %1888 = vmatprep.subr.mxu0 0.0
  %1889 = vmatpush1.msra.mxu0 0.0
  %1890 = vmatprep.subr.mxu0 0.0
  %1891 = vmatpush1.msra.mxu0 0.0
  %1892 = vmatprep.subr.mxu0 0.0
  %1893 = vmatpush1.msra.mxu0 0.0
  %1894 = vmatprep.subr.mxu0 0.0
  %1895 = vmatpush1.msra.mxu0 0.0
  %1896 = vmatprep.mubr.f32.mxu0 0.0
  %1897 = vmatmul.mubr.f32.gmra.mrb[0].mxu0 %v1830
  %v1898 = vpop.f32.mrb[0].mxu0
  %v1899 = vadd.f32 0.0, %v1898
  %v1900 = vpop.f32.mrb[0].mxu0
  %1901 = vdwg.mxu0
  %v1903 = vsel %vm1550, %v1674, 0
  %1905 = vmatprep.subr.mxu0 0.0
  %1906 = vmatpush1.msra.mxu0 %v595
  %1907 = vmatprep.subr.mxu0 0.0
  %1908 = vmatpush1.msra.mxu0 0.0
  %1909 = vmatprep.subr.mxu0 0.0
  %1910 = vmatpush1.msra.mxu0 0.0
  %1911 = vmatprep.subr.mxu0 0.0
  %1912 = vmatpush1.msra.mxu0 0.0
  %1913 = vmatprep.subr.mxu0 0.0
  %1914 = vmatpush1.msra.mxu0 0.0
  %1915 = vmatprep.subr.mxu0 0.0
  %1916 = vmatpush1.msra.mxu0 0.0
  %1917 = vmatprep.subr.mxu0 0.0
  %1918 = vmatpush1.msra.mxu0 0.0
  %1919 = vmatprep.subr.mxu0 0.0
  %1920 = vmatpush1.msra.mxu0 0.0
  %1921 = vmatprep.subr.mxu0 0.0
  %1922 = vmatpush1.msra.mxu0 0.0
  %1923 = vmatprep.subr.mxu0 0.0
  %1924 = vmatpush1.msra.mxu0 0.0
  %1925 = vmatprep.subr.mxu0 0.0
  %1926 = vmatpush1.msra.mxu0 0.0
  %1927 = vmatprep.subr.mxu0 0.0
  %1928 = vmatpush1.msra.mxu0 0.0
  %1929 = vmatprep.subr.mxu0 0.0
  %1930 = vmatpush1.msra.mxu0 0.0
  %1931 = vmatprep.subr.mxu0 0.0
  %1932 = vmatpush1.msra.mxu0 0.0
  %1933 = vmatprep.subr.mxu0 0.0
  %1934 = vmatpush1.msra.mxu0 0.0
  %1935 = vmatprep.subr.mxu0 0.0
  %1936 = vmatpush1.msra.mxu0 0.0
  %1937 = vmatprep.subr.mxu0 0.0
  %1938 = vmatpush1.msra.mxu0 0.0
  %1939 = vmatprep.subr.mxu0 0.0
  %1940 = vmatpush1.msra.mxu0 0.0
  %1941 = vmatprep.subr.mxu0 0.0
  %1942 = vmatpush1.msra.mxu0 0.0
  %1943 = vmatprep.subr.mxu0 0.0
  %1944 = vmatpush1.msra.mxu0 0.0
  %1945 = vmatprep.subr.mxu0 0.0
  %1946 = vmatpush1.msra.mxu0 0.0
  %1947 = vmatprep.subr.mxu0 0.0
  %1948 = vmatpush1.msra.mxu0 0.0
  %1949 = vmatprep.subr.mxu0 0.0
  %1950 = vmatpush1.msra.mxu0 0.0
  %1951 = vmatprep.subr.mxu0 0.0
  %1952 = vmatpush1.msra.mxu0 0.0
  %1953 = vmatprep.subr.mxu0 0.0
  %1954 = vmatpush1.msra.mxu0 0.0
  %1955 = vmatprep.subr.mxu0 0.0
  %1956 = vmatpush1.msra.mxu0 0.0
  %1957 = vmatprep.subr.mxu0 0.0
  %1958 = vmatpush1.msra.mxu0 0.0
  %1959 = vmatprep.subr.mxu0 0.0
  %1960 = vmatpush1.msra.mxu0 0.0
  %1961 = vmatprep.subr.mxu0 0.0
  %1962 = vmatpush1.msra.mxu0 0.0
  %1963 = vmatprep.subr.mxu0 0.0
  %1964 = vmatpush1.msra.mxu0 0.0
  %1965 = vmatprep.subr.mxu0 0.0
  %1966 = vmatpush1.msra.mxu0 0.0
  %1967 = vmatprep.subr.mxu0 0.0
  %1968 = vmatpush1.msra.mxu0 0.0
  %1969 = vmatprep.mubr.f32.mxu0 0.0
  %1970 = vmatmul.mubr.f32.gmra.mrb[0].mxu0 %v1903
  %v1971 = vpop.f32.mrb[0].mxu0
  %v1972 = vadd.f32 0.0, %v1971
  %v1973 = vpop.f32.mrb[0].mxu0
  %1974 = vdwg.mxu0
  %v1976 = vsel %vm1550, %v1675, 0
  %1978 = vmatprep.subr.mxu0 0.0
  %1979 = vmatpush1.msra.mxu0 %v600
  %1980 = vmatprep.subr.mxu0 0.0
  %1981 = vmatpush1.msra.mxu0 0.0
  %1982 = vmatprep.subr.mxu0 0.0
  %1983 = vmatpush1.msra.mxu0 0.0
  %1984 = vmatprep.subr.mxu0 0.0
  %1985 = vmatpush1.msra.mxu0 0.0
  %1986 = vmatprep.subr.mxu0 0.0
  %1987 = vmatpush1.msra.mxu0 0.0
  %1988 = vmatprep.subr.mxu0 0.0
  %1989 = vmatpush1.msra.mxu0 0.0
  %1990 = vmatprep.subr.mxu0 0.0
  %1991 = vmatpush1.msra.mxu0 0.0
  %1992 = vmatprep.subr.mxu0 0.0
  %1993 = vmatpush1.msra.mxu0 0.0
  %1994 = vmatprep.subr.mxu0 0.0
  %1995 = vmatpush1.msra.mxu0 0.0
  %1996 = vmatprep.subr.mxu0 0.0
  %1997 = vmatpush1.msra.mxu0 0.0
  %1998 = vmatprep.subr.mxu0 0.0
  %1999 = vmatpush1.msra.mxu0 0.0
  %2000 = vmatprep.subr.mxu0 0.0
  %2001 = vmatpush1.msra.mxu0 0.0
  %2002 = vmatprep.subr.mxu0 0.0
  %2003 = vmatpush1.msra.mxu0 0.0
  %2004 = vmatprep.subr.mxu0 0.0
  %2005 = vmatpush1.msra.mxu0 0.0
  %2006 = vmatprep.subr.mxu0 0.0
  %2007 = vmatpush1.msra.mxu0 0.0
  %2008 = vmatprep.subr.mxu0 0.0
  %2009 = vmatpush1.msra.mxu0 0.0
  %2010 = vmatprep.subr.mxu0 0.0
  %2011 = vmatpush1.msra.mxu0 0.0
  %2012 = vmatprep.subr.mxu0 0.0
  %2013 = vmatpush1.msra.mxu0 0.0
  %2014 = vmatprep.subr.mxu0 0.0
  %2015 = vmatpush1.msra.mxu0 0.0
  %2016 = vmatprep.subr.mxu0 0.0
  %2017 = vmatpush1.msra.mxu0 0.0
  %2018 = vmatprep.subr.mxu0 0.0
  %2019 = vmatpush1.msra.mxu0 0.0
  %2020 = vmatprep.subr.mxu0 0.0
  %2021 = vmatpush1.msra.mxu0 0.0
  %2022 = vmatprep.subr.mxu0 0.0
  %2023 = vmatpush1.msra.mxu0 0.0
  %2024 = vmatprep.subr.mxu0 0.0
  %2025 = vmatpush1.msra.mxu0 0.0
  %2026 = vmatprep.subr.mxu0 0.0
  %2027 = vmatpush1.msra.mxu0 0.0
  %2028 = vmatprep.subr.mxu0 0.0
  %2029 = vmatpush1.msra.mxu0 0.0
  %2030 = vmatprep.subr.mxu0 0.0
  %2031 = vmatpush1.msra.mxu0 0.0
  %2032 = vmatprep.subr.mxu0 0.0
  %2033 = vmatpush1.msra.mxu0 0.0
  %2034 = vmatprep.subr.mxu0 0.0
  %2035 = vmatpush1.msra.mxu0 0.0
  %2036 = vmatprep.subr.mxu0 0.0
  %2037 = vmatpush1.msra.mxu0 0.0
  %2038 = vmatprep.subr.mxu0 0.0
  %2039 = vmatpush1.msra.mxu0 0.0
  %2040 = vmatprep.subr.mxu0 0.0
  %2041 = vmatpush1.msra.mxu0 0.0
  %2042 = vmatprep.mubr.f32.mxu0 0.0
  %2043 = vmatmul.mubr.f32.gmra.mrb[0].mxu0 %v1976
  %v2044 = vpop.f32.mrb[0].mxu0
  %v2045 = vadd.f32 0.0, %v2044
  %v2046 = vpop.f32.mrb[0].mxu0
  %2047 = vdwg.mxu0
  %v2049 = vsel %vm1550, %v1676, 0
  %2051 = vmatprep.subr.mxu0 0.0
  %2052 = vmatpush1.msra.mxu0 %v605
  %2053 = vmatprep.subr.mxu0 0.0
  %2054 = vmatpush1.msra.mxu0 0.0
  %2055 = vmatprep.subr.mxu0 0.0
  %2056 = vmatpush1.msra.mxu0 0.0
  %2057 = vmatprep.subr.mxu0 0.0
  %2058 = vmatpush1.msra.mxu0 0.0
  %2059 = vmatprep.subr.mxu0 0.0
  %2060 = vmatpush1.msra.mxu0 0.0
  %2061 = vmatprep.subr.mxu0 0.0
  %2062 = vmatpush1.msra.mxu0 0.0
  %2063 = vmatprep.subr.mxu0 0.0
  %2064 = vmatpush1.msra.mxu0 0.0
  %2065 = vmatprep.subr.mxu0 0.0
  %2066 = vmatpush1.msra.mxu0 0.0
  %2067 = vmatprep.subr.mxu0 0.0
  %2068 = vmatpush1.msra.mxu0 0.0
  %2069 = vmatprep.subr.mxu0 0.0
  %2070 = vmatpush1.msra.mxu0 0.0
  %2071 = vmatprep.subr.mxu0 0.0
  %2072 = vmatpush1.msra.mxu0 0.0
  %2073 = vmatprep.subr.mxu0 0.0
  %2074 = vmatpush1.msra.mxu0 0.0
  %2075 = vmatprep.subr.mxu0 0.0
  %2076 = vmatpush1.msra.mxu0 0.0
  %2077 = vmatprep.subr.mxu0 0.0
  %2078 = vmatpush1.msra.mxu0 0.0
  %2079 = vmatprep.subr.mxu0 0.0
  %2080 = vmatpush1.msra.mxu0 0.0
  %2081 = vmatprep.subr.mxu0 0.0
  %2082 = vmatpush1.msra.mxu0 0.0
  %2083 = vmatprep.subr.mxu0 0.0
  %2084 = vmatpush1.msra.mxu0 0.0
  %2085 = vmatprep.subr.mxu0 0.0
  %2086 = vmatpush1.msra.mxu0 0.0
  %2087 = vmatprep.subr.mxu0 0.0
  %2088 = vmatpush1.msra.mxu0 0.0
  %2089 = vmatprep.subr.mxu0 0.0
  %2090 = vmatpush1.msra.mxu0 0.0
  %2091 = vmatprep.subr.mxu0 0.0
  %2092 = vmatpush1.msra.mxu0 0.0
  %2093 = vmatprep.subr.mxu0 0.0
  %2094 = vmatpush1.msra.mxu0 0.0
  %2095 = vmatprep.subr.mxu0 0.0
  %2096 = vmatpush1.msra.mxu0 0.0
  %2097 = vmatprep.subr.mxu0 0.0
  %2098 = vmatpush1.msra.mxu0 0.0
  %2099 = vmatprep.subr.mxu0 0.0
  %2100 = vmatpush1.msra.mxu0 0.0
  %2101 = vmatprep.subr.mxu0 0.0
  %2102 = vmatpush1.msra.mxu0 0.0
  %2103 = vmatprep.subr.mxu0 0.0
  %2104 = vmatpush1.msra.mxu0 0.0
  %2105 = vmatprep.subr.mxu0 0.0
  %2106 = vmatpush1.msra.mxu0 0.0
  %2107 = vmatprep.subr.mxu0 0.0
  %2108 = vmatpush1.msra.mxu0 0.0
  %2109 = vmatprep.subr.mxu0 0.0
  %2110 = vmatpush1.msra.mxu0 0.0
  %2111 = vmatprep.subr.mxu0 0.0
  %2112 = vmatpush1.msra.mxu0 0.0
  %2113 = vmatprep.subr.mxu0 0.0
  %2114 = vmatpush1.msra.mxu0 0.0
  %2115 = vmatprep.mubr.f32.mxu0 0.0
  %2116 = vmatmul.mubr.f32.gmra.mrb[0].mxu0 %v2049
  %v2117 = vpop.f32.mrb[0].mxu0
  %v2118 = vadd.f32 0.0, %v2117
  %v2119 = vpop.f32.mrb[0].mxu0
  %2120 = vdwg.mxu0
  %v2122 = vsel %vm1550, %v1677, 0
  %2124 = vmatprep.subr.mxu0 0.0
  %2125 = vmatpush1.msra.mxu0 %v610
  %2126 = vmatprep.subr.mxu0 0.0
  %2127 = vmatpush1.msra.mxu0 0.0
  %2128 = vmatprep.subr.mxu0 0.0
  %2129 = vmatpush1.msra.mxu0 0.0
  %2130 = vmatprep.subr.mxu0 0.0
  %2131 = vmatpush1.msra.mxu0 0.0
  %2132 = vmatprep.subr.mxu0 0.0
  %2133 = vmatpush1.msra.mxu0 0.0
  %2134 = vmatprep.subr.mxu0 0.0
  %2135 = vmatpush1.msra.mxu0 0.0
  %2136 = vmatprep.subr.mxu0 0.0
  %2137 = vmatpush1.msra.mxu0 0.0
  %2138 = vmatprep.subr.mxu0 0.0
  %2139 = vmatpush1.msra.mxu0 0.0
  %2140 = vmatprep.subr.mxu0 0.0
  %2141 = vmatpush1.msra.mxu0 0.0
  %2142 = vmatprep.subr.mxu0 0.0
  %2143 = vmatpush1.msra.mxu0 0.0
  %2144 = vmatprep.subr.mxu0 0.0
  %2145 = vmatpush1.msra.mxu0 0.0
  %2146 = vmatprep.subr.mxu0 0.0
  %2147 = vmatpush1.msra.mxu0 0.0
  %2148 = vmatprep.subr.mxu0 0.0
  %2149 = vmatpush1.msra.mxu0 0.0
  %2150 = vmatprep.subr.mxu0 0.0
  %2151 = vmatpush1.msra.mxu0 0.0
  %2152 = vmatprep.subr.mxu0 0.0
  %2153 = vmatpush1.msra.mxu0 0.0
  %2154 = vmatprep.subr.mxu0 0.0
  %2155 = vmatpush1.msra.mxu0 0.0
  %2156 = vmatprep.subr.mxu0 0.0
  %2157 = vmatpush1.msra.mxu0 0.0
  %2158 = vmatprep.subr.mxu0 0.0
  %2159 = vmatpush1.msra.mxu0 0.0
  %2160 = vmatprep.subr.mxu0 0.0
  %2161 = vmatpush1.msra.mxu0 0.0
  %2162 = vmatprep.subr.mxu0 0.0
  %2163 = vmatpush1.msra.mxu0 0.0
  %2164 = vmatprep.subr.mxu0 0.0
  %2165 = vmatpush1.msra.mxu0 0.0
  %2166 = vmatprep.subr.mxu0 0.0
  %2167 = vmatpush1.msra.mxu0 0.0
  %2168 = vmatprep.subr.mxu0 0.0
  %2169 = vmatpush1.msra.mxu0 0.0
  %2170 = vmatprep.subr.mxu0 0.0
  %2171 = vmatpush1.msra.mxu0 0.0
  %2172 = vmatprep.subr.mxu0 0.0
  %2173 = vmatpush1.msra.mxu0 0.0
  %2174 = vmatprep.subr.mxu0 0.0
  %2175 = vmatpush1.msra.mxu0 0.0
  %2176 = vmatprep.subr.mxu0 0.0
  %2177 = vmatpush1.msra.mxu0 0.0
  %2178 = vmatprep.subr.mxu0 0.0
  %2179 = vmatpush1.msra.mxu0 0.0
  %2180 = vmatprep.subr.mxu0 0.0
  %2181 = vmatpush1.msra.mxu0 0.0
  %2182 = vmatprep.subr.mxu0 0.0
  %2183 = vmatpush1.msra.mxu0 0.0
  %2184 = vmatprep.subr.mxu0 0.0
  %2185 = vmatpush1.msra.mxu0 0.0
  %2186 = vmatprep.subr.mxu0 0.0
  %2187 = vmatpush1.msra.mxu0 0.0
  %2188 = vmatprep.mubr.f32.mxu0 0.0
  %2189 = vmatmul.mubr.f32.gmra.mrb[0].mxu0 %v2122
  %v2190 = vpop.f32.mrb[0].mxu0
  %v2191 = vadd.f32 0.0, %v2190
  %v2192 = vpop.f32.mrb[0].mxu0
  %2193 = vdwg.mxu0
  %v2195 = vsel %vm1550, %v1678, 0
  %2197 = vmatprep.subr.mxu0 0.0
  %2198 = vmatpush1.msra.mxu0 %v615
  %2199 = vmatprep.subr.mxu0 0.0
  %2200 = vmatpush1.msra.mxu0 0.0
  %2201 = vmatprep.subr.mxu0 0.0
  %2202 = vmatpush1.msra.mxu0 0.0
  %2203 = vmatprep.subr.mxu0 0.0
  %2204 = vmatpush1.msra.mxu0 0.0
  %2205 = vmatprep.subr.mxu0 0.0
  %2206 = vmatpush1.msra.mxu0 0.0
  %2207 = vmatprep.subr.mxu0 0.0
  %2208 = vmatpush1.msra.mxu0 0.0
  %2209 = vmatprep.subr.mxu0 0.0
  %2210 = vmatpush1.msra.mxu0 0.0
  %2211 = vmatprep.subr.mxu0 0.0
  %2212 = vmatpush1.msra.mxu0 0.0
  %2213 = vmatprep.subr.mxu0 0.0
  %2214 = vmatpush1.msra.mxu0 0.0
  %2215 = vmatprep.subr.mxu0 0.0
  %2216 = vmatpush1.msra.mxu0 0.0
  %2217 = vmatprep.subr.mxu0 0.0
  %2218 = vmatpush1.msra.mxu0 0.0
  %2219 = vmatprep.subr.mxu0 0.0
  %2220 = vmatpush1.msra.mxu0 0.0
  %2221 = vmatprep.subr.mxu0 0.0
  %2222 = vmatpush1.msra.mxu0 0.0
  %2223 = vmatprep.subr.mxu0 0.0
  %2224 = vmatpush1.msra.mxu0 0.0
  %2225 = vmatprep.subr.mxu0 0.0
  %2226 = vmatpush1.msra.mxu0 0.0
  %2227 = vmatprep.subr.mxu0 0.0
  %2228 = vmatpush1.msra.mxu0 0.0
  %2229 = vmatprep.subr.mxu0 0.0
  %2230 = vmatpush1.msra.mxu0 0.0
  %2231 = vmatprep.subr.mxu0 0.0
  %2232 = vmatpush1.msra.mxu0 0.0
  %2233 = vmatprep.subr.mxu0 0.0
  %2234 = vmatpush1.msra.mxu0 0.0
  %2235 = vmatprep.subr.mxu0 0.0
  %2236 = vmatpush1.msra.mxu0 0.0
  %2237 = vmatprep.subr.mxu0 0.0
  %2238 = vmatpush1.msra.mxu0 0.0
  %2239 = vmatprep.subr.mxu0 0.0
  %2240 = vmatpush1.msra.mxu0 0.0
  %2241 = vmatprep.subr.mxu0 0.0
  %2242 = vmatpush1.msra.mxu0 0.0
  %2243 = vmatprep.subr.mxu0 0.0
  %2244 = vmatpush1.msra.mxu0 0.0
  %2245 = vmatprep.subr.mxu0 0.0
  %2246 = vmatpush1.msra.mxu0 0.0
  %2247 = vmatprep.subr.mxu0 0.0
  %2248 = vmatpush1.msra.mxu0 0.0
  %2249 = vmatprep.subr.mxu0 0.0
  %2250 = vmatpush1.msra.mxu0 0.0
  %2251 = vmatprep.subr.mxu0 0.0
  %2252 = vmatpush1.msra.mxu0 0.0
  %2253 = vmatprep.subr.mxu0 0.0
  %2254 = vmatpush1.msra.mxu0 0.0
  %2255 = vmatprep.subr.mxu0 0.0
  %2256 = vmatpush1.msra.mxu0 0.0
  %2257 = vmatprep.subr.mxu0 0.0
  %2258 = vmatpush1.msra.mxu0 0.0
  %2259 = vmatprep.subr.mxu0 0.0
  %2260 = vmatpush1.msra.mxu0 0.0
  %2261 = vmatprep.mubr.f32.mxu0 0.0
  %2262 = vmatmul.mubr.f32.gmra.mrb[0].mxu0 %v2195
  %v2263 = vpop.f32.mrb[0].mxu0
  %v2264 = vadd.f32 0.0, %v2263
  %v2265 = vpop.f32.mrb[0].mxu0
  %2266 = vdwg.mxu0
  %v2268 = vsel %vm1550, %v1679, 0
  %2270 = vmatprep.subr.mxu0 0.0
  %2271 = vmatpush1.msra.mxu0 %v620
  %2272 = vmatprep.subr.mxu0 0.0
  %2273 = vmatpush1.msra.mxu0 0.0
  %2274 = vmatprep.subr.mxu0 0.0
  %2275 = vmatpush1.msra.mxu0 0.0
  %2276 = vmatprep.subr.mxu0 0.0
  %2277 = vmatpush1.msra.mxu0 0.0
  %2278 = vmatprep.subr.mxu0 0.0
  %2279 = vmatpush1.msra.mxu0 0.0
  %2280 = vmatprep.subr.mxu0 0.0
  %2281 = vmatpush1.msra.mxu0 0.0
  %2282 = vmatprep.subr.mxu0 0.0
  %2283 = vmatpush1.msra.mxu0 0.0
  %2284 = vmatprep.subr.mxu0 0.0
  %2285 = vmatpush1.msra.mxu0 0.0
  %2286 = vmatprep.subr.mxu0 0.0
  %2287 = vmatpush1.msra.mxu0 0.0
  %2288 = vmatprep.subr.mxu0 0.0
  %2289 = vmatpush1.msra.mxu0 0.0
  %2290 = vmatprep.subr.mxu0 0.0
  %2291 = vmatpush1.msra.mxu0 0.0
  %2292 = vmatprep.subr.mxu0 0.0
  %2293 = vmatpush1.msra.mxu0 0.0
  %2294 = vmatprep.subr.mxu0 0.0
  %2295 = vmatpush1.msra.mxu0 0.0
  %2296 = vmatprep.subr.mxu0 0.0
  %2297 = vmatpush1.msra.mxu0 0.0
  %2298 = vmatprep.subr.mxu0 0.0
  %2299 = vmatpush1.msra.mxu0 0.0
  %2300 = vmatprep.subr.mxu0 0.0
  %2301 = vmatpush1.msra.mxu0 0.0
  %2302 = vmatprep.subr.mxu0 0.0
  %2303 = vmatpush1.msra.mxu0 0.0
  %2304 = vmatprep.subr.mxu0 0.0
  %2305 = vmatpush1.msra.mxu0 0.0
  %2306 = vmatprep.subr.mxu0 0.0
  %2307 = vmatpush1.msra.mxu0 0.0
  %2308 = vmatprep.subr.mxu0 0.0
  %2309 = vmatpush1.msra.mxu0 0.0
  %2310 = vmatprep.subr.mxu0 0.0
  %2311 = vmatpush1.msra.mxu0 0.0
  %2312 = vmatprep.subr.mxu0 0.0
  %2313 = vmatpush1.msra.mxu0 0.0
  %2314 = vmatprep.subr.mxu0 0.0
  %2315 = vmatpush1.msra.mxu0 0.0
  %2316 = vmatprep.subr.mxu0 0.0
  %2317 = vmatpush1.msra.mxu0 0.0
  %2318 = vmatprep.subr.mxu0 0.0
  %2319 = vmatpush1.msra.mxu0 0.0
  %2320 = vmatprep.subr.mxu0 0.0
  %2321 = vmatpush1.msra.mxu0 0.0
  %2322 = vmatprep.subr.mxu0 0.0
  %2323 = vmatpush1.msra.mxu0 0.0
  %2324 = vmatprep.subr.mxu0 0.0
  %2325 = vmatpush1.msra.mxu0 0.0
  %2326 = vmatprep.subr.mxu0 0.0
  %2327 = vmatpush1.msra.mxu0 0.0
  %2328 = vmatprep.subr.mxu0 0.0
  %2329 = vmatpush1.msra.mxu0 0.0
  %2330 = vmatprep.subr.mxu0 0.0
  %2331 = vmatpush1.msra.mxu0 0.0
  %2332 = vmatprep.subr.mxu0 0.0
  %2333 = vmatpush1.msra.mxu0 0.0
  %2334 = vmatprep.mubr.f32.mxu0 0.0
  %2335 = vmatmul.mubr.f32.gmra.mrb[0].mxu0 %v2268
  %v2336 = vpop.f32.mrb[0].mxu0
  %v2337 = vadd.f32 0.0, %v2336
  %v2338 = vpop.f32.mrb[0].mxu0
  %2339 = vdwg.mxu0
  %v2341 = vsel %vm1550, %v1680, 0
  %2343 = vmatprep.subr.mxu0 0.0
  %2344 = vmatpush1.msra.mxu0 %v625
  %2345 = vmatprep.subr.mxu0 0.0
  %2346 = vmatpush1.msra.mxu0 0.0
  %2347 = vmatprep.subr.mxu0 0.0
  %2348 = vmatpush1.msra.mxu0 0.0
  %2349 = vmatprep.subr.mxu0 0.0
  %2350 = vmatpush1.msra.mxu0 0.0
  %2351 = vmatprep.subr.mxu0 0.0
  %2352 = vmatpush1.msra.mxu0 0.0
  %2353 = vmatprep.subr.mxu0 0.0
  %2354 = vmatpush1.msra.mxu0 0.0
  %2355 = vmatprep.subr.mxu0 0.0
  %2356 = vmatpush1.msra.mxu0 0.0
  %2357 = vmatprep.subr.mxu0 0.0
  %2358 = vmatpush1.msra.mxu0 0.0
  %2359 = vmatprep.subr.mxu0 0.0
  %2360 = vmatpush1.msra.mxu0 0.0
  %2361 = vmatprep.subr.mxu0 0.0
  %2362 = vmatpush1.msra.mxu0 0.0
  %2363 = vmatprep.subr.mxu0 0.0
  %2364 = vmatpush1.msra.mxu0 0.0
  %2365 = vmatprep.subr.mxu0 0.0
  %2366 = vmatpush1.msra.mxu0 0.0
  %2367 = vmatprep.subr.mxu0 0.0
  %2368 = vmatpush1.msra.mxu0 0.0
  %2369 = vmatprep.subr.mxu0 0.0
  %2370 = vmatpush1.msra.mxu0 0.0
  %2371 = vmatprep.subr.mxu0 0.0
  %2372 = vmatpush1.msra.mxu0 0.0
  %2373 = vmatprep.subr.mxu0 0.0
  %2374 = vmatpush1.msra.mxu0 0.0
  %2375 = vmatprep.subr.mxu0 0.0
  %2376 = vmatpush1.msra.mxu0 0.0
  %2377 = vmatprep.subr.mxu0 0.0
  %2378 = vmatpush1.msra.mxu0 0.0
  %2379 = vmatprep.subr.mxu0 0.0
  %2380 = vmatpush1.msra.mxu0 0.0
  %2381 = vmatprep.subr.mxu0 0.0
  %2382 = vmatpush1.msra.mxu0 0.0
  %2383 = vmatprep.subr.mxu0 0.0
  %2384 = vmatpush1.msra.mxu0 0.0
  %2385 = vmatprep.subr.mxu0 0.0
  %2386 = vmatpush1.msra.mxu0 0.0
  %2387 = vmatprep.subr.mxu0 0.0
  %2388 = vmatpush1.msra.mxu0 0.0
  %2389 = vmatprep.subr.mxu0 0.0
  %2390 = vmatpush1.msra.mxu0 0.0
  %2391 = vmatprep.subr.mxu0 0.0
  %2392 = vmatpush1.msra.mxu0 0.0
  %2393 = vmatprep.subr.mxu0 0.0
  %2394 = vmatpush1.msra.mxu0 0.0
  %2395 = vmatprep.subr.mxu0 0.0
  %2396 = vmatpush1.msra.mxu0 0.0
  %2397 = vmatprep.subr.mxu0 0.0
  %2398 = vmatpush1.msra.mxu0 0.0
  %2399 = vmatprep.subr.mxu0 0.0
  %2400 = vmatpush1.msra.mxu0 0.0
  %2401 = vmatprep.subr.mxu0 0.0
  %2402 = vmatpush1.msra.mxu0 0.0
  %2403 = vmatprep.subr.mxu0 0.0
  %2404 = vmatpush1.msra.mxu0 0.0
  %2405 = vmatprep.subr.mxu0 0.0
  %2406 = vmatpush1.msra.mxu0 0.0
  %2407 = vmatprep.mubr.f32.mxu0 0.0
  %2408 = vmatmul.mubr.f32.gmra.mrb[0].mxu0 %v2341
  %v2409 = vpop.f32.mrb[0].mxu0
  %v2410 = vadd.f32 0.0, %v2409
  %v2411 = vpop.f32.mrb[0].mxu0
  %2412 = vdwg.mxu0
  %v2414 = vsel %vm1550, %v1681, 0
  %2416 = vmatprep.subr.mxu0 0.0
  %2417 = vmatpush1.msra.mxu0 %v630
  %2418 = vmatprep.subr.mxu0 0.0
  %2419 = vmatpush1.msra.mxu0 0.0
  %2420 = vmatprep.subr.mxu0 0.0
  %2421 = vmatpush1.msra.mxu0 0.0
  %2422 = vmatprep.subr.mxu0 0.0
  %2423 = vmatpush1.msra.mxu0 0.0
  %2424 = vmatprep.subr.mxu0 0.0
  %2425 = vmatpush1.msra.mxu0 0.0
  %2426 = vmatprep.subr.mxu0 0.0
  %2427 = vmatpush1.msra.mxu0 0.0
  %2428 = vmatprep.subr.mxu0 0.0
  %2429 = vmatpush1.msra.mxu0 0.0
  %2430 = vmatprep.subr.mxu0 0.0
  %2431 = vmatpush1.msra.mxu0 0.0
  %2432 = vmatprep.subr.mxu0 0.0
  %2433 = vmatpush1.msra.mxu0 0.0
  %2434 = vmatprep.subr.mxu0 0.0
  %2435 = vmatpush1.msra.mxu0 0.0
  %2436 = vmatprep.subr.mxu0 0.0
  %2437 = vmatpush1.msra.mxu0 0.0
  %2438 = vmatprep.subr.mxu0 0.0
  %2439 = vmatpush1.msra.mxu0 0.0
  %2440 = vmatprep.subr.mxu0 0.0
  %2441 = vmatpush1.msra.mxu0 0.0
  %2442 = vmatprep.subr.mxu0 0.0
  %2443 = vmatpush1.msra.mxu0 0.0
  %2444 = vmatprep.subr.mxu0 0.0
  %2445 = vmatpush1.msra.mxu0 0.0
  %2446 = vmatprep.subr.mxu0 0.0
  %2447 = vmatpush1.msra.mxu0 0.0
  %2448 = vmatprep.subr.mxu0 0.0
  %2449 = vmatpush1.msra.mxu0 0.0
  %2450 = vmatprep.subr.mxu0 0.0
  %2451 = vmatpush1.msra.mxu0 0.0
  %2452 = vmatprep.subr.mxu0 0.0
  %2453 = vmatpush1.msra.mxu0 0.0
  %2454 = vmatprep.subr.mxu0 0.0
  %2455 = vmatpush1.msra.mxu0 0.0
  %2456 = vmatprep.subr.mxu0 0.0
  %2457 = vmatpush1.msra.mxu0 0.0
  %2458 = vmatprep.subr.mxu0 0.0
  %2459 = vmatpush1.msra.mxu0 0.0
  %2460 = vmatprep.subr.mxu0 0.0
  %2461 = vmatpush1.msra.mxu0 0.0
  %2462 = vmatprep.subr.mxu0 0.0
  %2463 = vmatpush1.msra.mxu0 0.0
  %2464 = vmatprep.subr.mxu0 0.0
  %2465 = vmatpush1.msra.mxu0 0.0
  %2466 = vmatprep.subr.mxu0 0.0
  %2467 = vmatpush1.msra.mxu0 0.0
  %2468 = vmatprep.subr.mxu0 0.0
  %2469 = vmatpush1.msra.mxu0 0.0
  %2470 = vmatprep.subr.mxu0 0.0
  %2471 = vmatpush1.msra.mxu0 0.0
  %2472 = vmatprep.subr.mxu0 0.0
  %2473 = vmatpush1.msra.mxu0 0.0
  %2474 = vmatprep.subr.mxu0 0.0
  %2475 = vmatpush1.msra.mxu0 0.0
  %2476 = vmatprep.subr.mxu0 0.0
  %2477 = vmatpush1.msra.mxu0 0.0
  %2478 = vmatprep.subr.mxu0 0.0
  %2479 = vmatpush1.msra.mxu0 0.0
  %2480 = vmatprep.mubr.f32.mxu0 0.0
  %2481 = vmatmul.mubr.f32.gmra.mrb[0].mxu0 %v2414
  %v2482 = vpop.f32.mrb[0].mxu0
  %v2483 = vadd.f32 0.0, %v2482
  %v2484 = vpop.f32.mrb[0].mxu0
  %2485 = vdwg.mxu0
  %v2487 = vsel %vm1550, %v1682, 0
  %2489 = vmatprep.subr.mxu0 0.0
  %2490 = vmatpush1.msra.mxu0 %v635
  %2491 = vmatprep.subr.mxu0 0.0
  %2492 = vmatpush1.msra.mxu0 0.0
  %2493 = vmatprep.subr.mxu0 0.0
  %2494 = vmatpush1.msra.mxu0 0.0
  %2495 = vmatprep.subr.mxu0 0.0
  %2496 = vmatpush1.msra.mxu0 0.0
  %2497 = vmatprep.subr.mxu0 0.0
  %2498 = vmatpush1.msra.mxu0 0.0
  %2499 = vmatprep.subr.mxu0 0.0
  %2500 = vmatpush1.msra.mxu0 0.0
  %2501 = vmatprep.subr.mxu0 0.0
  %2502 = vmatpush1.msra.mxu0 0.0
  %2503 = vmatprep.subr.mxu0 0.0
  %2504 = vmatpush1.msra.mxu0 0.0
  %2505 = vmatprep.subr.mxu0 0.0
  %2506 = vmatpush1.msra.mxu0 0.0
  %2507 = vmatprep.subr.mxu0 0.0
  %2508 = vmatpush1.msra.mxu0 0.0
  %2509 = vmatprep.subr.mxu0 0.0
  %2510 = vmatpush1.msra.mxu0 0.0
  %2511 = vmatprep.subr.mxu0 0.0
  %2512 = vmatpush1.msra.mxu0 0.0
  %2513 = vmatprep.subr.mxu0 0.0
  %2514 = vmatpush1.msra.mxu0 0.0
  %2515 = vmatprep.subr.mxu0 0.0
  %2516 = vmatpush1.msra.mxu0 0.0
  %2517 = vmatprep.subr.mxu0 0.0
  %2518 = vmatpush1.msra.mxu0 0.0
  %2519 = vmatprep.subr.mxu0 0.0
  %2520 = vmatpush1.msra.mxu0 0.0
  %2521 = vmatprep.subr.mxu0 0.0
  %2522 = vmatpush1.msra.mxu0 0.0
  %2523 = vmatprep.subr.mxu0 0.0
  %2524 = vmatpush1.msra.mxu0 0.0
  %2525 = vmatprep.subr.mxu0 0.0
  %2526 = vmatpush1.msra.mxu0 0.0
  %2527 = vmatprep.subr.mxu0 0.0
  %2528 = vmatpush1.msra.mxu0 0.0
  %2529 = vmatprep.subr.mxu0 0.0
  %2530 = vmatpush1.msra.mxu0 0.0
  %2531 = vmatprep.subr.mxu0 0.0
  %2532 = vmatpush1.msra.mxu0 0.0
  %2533 = vmatprep.subr.mxu0 0.0
  %2534 = vmatpush1.msra.mxu0 0.0
  %2535 = vmatprep.subr.mxu0 0.0
  %2536 = vmatpush1.msra.mxu0 0.0
  %2537 = vmatprep.subr.mxu0 0.0
  %2538 = vmatpush1.msra.mxu0 0.0
  %2539 = vmatprep.subr.mxu0 0.0
  %2540 = vmatpush1.msra.mxu0 0.0
  %2541 = vmatprep.subr.mxu0 0.0
  %2542 = vmatpush1.msra.mxu0 0.0
  %2543 = vmatprep.subr.mxu0 0.0
  %2544 = vmatpush1.msra.mxu0 0.0
  %2545 = vmatprep.subr.mxu0 0.0
  %2546 = vmatpush1.msra.mxu0 0.0
  %2547 = vmatprep.subr.mxu0 0.0
  %2548 = vmatpush1.msra.mxu0 0.0
  %2549 = vmatprep.subr.mxu0 0.0
  %2550 = vmatpush1.msra.mxu0 0.0
  %2551 = vmatprep.subr.mxu0 0.0
  %2552 = vmatpush1.msra.mxu0 0.0
  %2553 = vmatprep.mubr.f32.mxu0 0.0
  %2554 = vmatmul.mubr.f32.gmra.mrb[0].mxu0 %v2487
  %v2555 = vpop.f32.mrb[0].mxu0
  %v2556 = vadd.f32 0.0, %v2555
  %v2557 = vpop.f32.mrb[0].mxu0
  %2558 = vdwg.mxu0
  %v2559 = vld [vmem:[%s9] sm:$0x1]
  %v2561 = vlaneseq
  %v2562 = vshrl.u32 %v2561, 7
  %v2563 = vsub.s32 0, %v2562
  %v2564 = vrot.slane %v2559, %v2563
  %v2566 = vmul.f32 %v2564, %v1753
  %v2567 = vmul.f32 %v2564, %v1826
  %v2568 = vmul.f32 %v2564, %v1899
  %v2569 = vmul.f32 %v2564, %v1972
  %v2570 = vmul.f32 %v2564, %v2045
  %v2571 = vmul.f32 %v2564, %v2118
  %v2572 = vmul.f32 %v2564, %v2191
  %v2573 = vmul.f32 %v2564, %v2264
  %v2574 = vmul.f32 %v2564, %v2337
  %v2575 = vmul.f32 %v2564, %v2410
  %v2576 = vmul.f32 %v2564, %v2483
  %v2577 = vmul.f32 %v2564, %v2556
  %v2578 = vadd.f32 %v2566, %v173
  %v2579 = vadd.f32 %v2567, %v175
  %v2580 = vadd.f32 %v2568, %v180
  %v2581 = vadd.f32 %v2569, %v182
  %v2582 = vadd.f32 %v2570, %v186
  %v2583 = vadd.f32 %v2571, %v188
  %v2584 = vadd.f32 %v2572, %v192
  %v2585 = vadd.f32 %v2573, %v194
  %v2586 = vadd.f32 %v2574, %v174
  %v2587 = vadd.f32 %v2575, %v176
  %v2588 = vadd.f32 %v2576, %v200
  %v2589 = vadd.f32 %v2577, %v202
  %vm2590 = vcmp.ge.f32.partialorder %v2578, 0.0
  %vm2591 = vcmp.ge.f32.partialorder %v2579, 0.0
  %vm2592 = vcmp.ge.f32.partialorder %v2580, 0.0
  %vm2593 = vcmp.ge.f32.partialorder %v2581, 0.0
  %vm2594 = vcmp.ge.f32.partialorder %v2582, 0.0
  %vm2595 = vcmp.ge.f32.partialorder %v2583, 0.0
  %vm2596 = vcmp.ge.f32.partialorder %v2584, 0.0
  %vm2597 = vcmp.ge.f32.partialorder %v2585, 0.0
  %vm2598 = vcmp.ge.f32.partialorder %v2586, 0.0
  %vm2599 = vcmp.ge.f32.partialorder %v2587, 0.0
  %vm2600 = vcmp.ge.f32.partialorder %v2588, 0.0
  %vm2601 = vcmp.ge.f32.partialorder %v2589, 0.0
  %v2602 = vmul.f32 %v2578, 0.2
  %v2603 = vmul.f32 %v2579, 0.2
  %v2604 = vmul.f32 %v2580, 0.2
  %v2605 = vmul.f32 %v2581, 0.2
  %v2606 = vmul.f32 %v2582, 0.2
  %v2607 = vmul.f32 %v2583, 0.2
  %v2608 = vmul.f32 %v2584, 0.2
  %v2609 = vmul.f32 %v2585, 0.2
  %v2610 = vmul.f32 %v2586, 0.2
  %v2611 = vmul.f32 %v2587, 0.2
  %v2612 = vmul.f32 %v2588, 0.2
  %v2613 = vmul.f32 %v2589, 0.2
  %v2614 = vsel %vm2590, %v2578, %v2602
  %v2615 = vsel %vm2591, %v2579, %v2603
  %v2616 = vsel %vm2592, %v2580, %v2604
  %v2617 = vsel %vm2593, %v2581, %v2605
  %v2618 = vsel %vm2594, %v2582, %v2606
  %v2619 = vsel %vm2595, %v2583, %v2607
  %v2620 = vsel %vm2596, %v2584, %v2608
  %v2621 = vsel %vm2597, %v2585, %v2609
  %v2622 = vsel %vm2598, %v2586, %v2610
  %v2623 = vsel %vm2599, %v2587, %v2611
  %v2624 = vsel %vm2600, %v2588, %v2612
  %v2625 = vsel %vm2601, %v2589, %v2613
  %v2626 = vsel %vm216, %v2614, 0.0
  %v2627 = vsel %vm216, %v2615, 0.0
  %v2628 = vadd.f32 %v2626, %v2627
  %v2629 = vrot.slane %v2628, 4
  %v2630 = vadd.f32 %v2628, %v2629
  %v2631 = vrot.slane %v2630, 2
  %v2632 = vadd.f32 %v2630, %v2631
  %v2633 = vrot.slane %v2632, 1
  %v2634 = vadd.f32 %v2632, %v2633
  %v2635 = vsel %vm216, %v2616, 0.0
  %v2636 = vsel %vm216, %v2617, 0.0
  %v2637 = vadd.f32 %v2635, %v2636
  %v2638 = vrot.slane %v2637, 4
  %v2639 = vadd.f32 %v2637, %v2638
  %v2640 = vrot.slane %v2639, 2
  %v2641 = vadd.f32 %v2639, %v2640
  %v2642 = vrot.slane %v2641, 1
  %v2643 = vadd.f32 %v2641, %v2642
  %v2644 = vsel %vm216, %v2618, 0.0
  %v2645 = vsel %vm216, %v2619, 0.0
  %v2646 = vadd.f32 %v2644, %v2645
  %v2647 = vrot.slane %v2646, 4
  %v2648 = vadd.f32 %v2646, %v2647
  %v2649 = vrot.slane %v2648, 2
  %v2650 = vadd.f32 %v2648, %v2649
  %v2651 = vrot.slane %v2650, 1
  %v2652 = vadd.f32 %v2650, %v2651
  %v2653 = vsel %vm216, %v2620, 0.0
  %v2654 = vsel %vm216, %v2621, 0.0
  %v2655 = vadd.f32 %v2653, %v2654
  %v2656 = vrot.slane %v2655, 4
  %v2657 = vadd.f32 %v2655, %v2656
  %v2658 = vrot.slane %v2657, 2
  %v2659 = vadd.f32 %v2657, %v2658
  %v2660 = vrot.slane %v2659, 1
  %v2661 = vadd.f32 %v2659, %v2660
  %v2662 = vsel %vm216, %v2622, 0.0
  %v2663 = vsel %vm216, %v2623, 0.0
  %v2664 = vadd.f32 %v2662, %v2663
  %v2665 = vrot.slane %v2664, 4
  %v2666 = vadd.f32 %v2664, %v2665
  %v2667 = vrot.slane %v2666, 2
  %v2668 = vadd.f32 %v2666, %v2667
  %v2669 = vrot.slane %v2668, 1
  %v2670 = vadd.f32 %v2668, %v2669
  %v2671 = vsel %vm216, %v2624, 0.0
  %v2672 = vsel %vm216, %v2625, 0.0
  %v2673 = vadd.f32 %v2671, %v2672
  %v2674 = vrot.slane %v2673, 4
  %v2675 = vadd.f32 %v2673, %v2674
  %v2676 = vrot.slane %v2675, 2
  %v2677 = vadd.f32 %v2675, %v2676
  %v2678 = vrot.slane %v2677, 1
  %v2679 = vadd.f32 %v2677, %v2678
  %v2680 = vrcp.pop 16.0
  %v2681 = vmul.f32 %v2634, %v2680
  %v2682 = vmul.f32 %v2643, %v2680
  %v2683 = vmul.f32 %v2652, %v2680
  %v2684 = vmul.f32 %v2661, %v2680
  %v2685 = vmul.f32 %v2670, %v2680
  %v2686 = vmul.f32 %v2679, %v2680
  %v2687 = vmul.f32 %v2614, %v2614
  %v2688 = vmul.f32 %v2615, %v2615
  %v2689 = vmul.f32 %v2616, %v2616
  %v2690 = vmul.f32 %v2617, %v2617
  %v2691 = vmul.f32 %v2618, %v2618
  %v2692 = vmul.f32 %v2619, %v2619
  %v2693 = vmul.f32 %v2620, %v2620
  %v2694 = vmul.f32 %v2621, %v2621
  %v2695 = vmul.f32 %v2622, %v2622
  %v2696 = vmul.f32 %v2623, %v2623
  %v2697 = vmul.f32 %v2624, %v2624
  %v2698 = vmul.f32 %v2625, %v2625
  %v2699 = vsel %vm216, %v2687, 0.0
  %v2700 = vsel %vm216, %v2688, 0.0
  %v2701 = vadd.f32 %v2699, %v2700
  %v2702 = vrot.slane %v2701, 4
  %v2703 = vadd.f32 %v2701, %v2702
  %v2704 = vrot.slane %v2703, 2
  %v2705 = vadd.f32 %v2703, %v2704
  %v2706 = vrot.slane %v2705, 1
  %v2707 = vadd.f32 %v2705, %v2706
  %v2708 = vsel %vm216, %v2689, 0.0
  %v2709 = vsel %vm216, %v2690, 0.0
  %v2710 = vadd.f32 %v2708, %v2709
  %v2711 = vrot.slane %v2710, 4
  %v2712 = vadd.f32 %v2710, %v2711
  %v2713 = vrot.slane %v2712, 2
  %v2714 = vadd.f32 %v2712, %v2713
  %v2715 = vrot.slane %v2714, 1
  %v2716 = vadd.f32 %v2714, %v2715
  %v2717 = vsel %vm216, %v2691, 0.0
  %v2718 = vsel %vm216, %v2692, 0.0
  %v2719 = vadd.f32 %v2717, %v2718
  %v2720 = vrot.slane %v2719, 4
  %v2721 = vadd.f32 %v2719, %v2720
  %v2722 = vrot.slane %v2721, 2
  %v2723 = vadd.f32 %v2721, %v2722
  %v2724 = vrot.slane %v2723, 1
  %v2725 = vadd.f32 %v2723, %v2724
  %v2726 = vsel %vm216, %v2693, 0.0
  %v2727 = vsel %vm216, %v2694, 0.0
  %v2728 = vadd.f32 %v2726, %v2727
  %v2729 = vrot.slane %v2728, 4
  %v2730 = vadd.f32 %v2728, %v2729
  %v2731 = vrot.slane %v2730, 2
  %v2732 = vadd.f32 %v2730, %v2731
  %v2733 = vrot.slane %v2732, 1
  %v2734 = vadd.f32 %v2732, %v2733
  %v2735 = vsel %vm216, %v2695, 0.0
  %v2736 = vsel %vm216, %v2696, 0.0
  %v2737 = vadd.f32 %v2735, %v2736
  %v2738 = vrot.slane %v2737, 4
  %v2739 = vadd.f32 %v2737, %v2738
  %v2740 = vrot.slane %v2739, 2
  %v2741 = vadd.f32 %v2739, %v2740
  %v2742 = vrot.slane %v2741, 1
  %v2743 = vadd.f32 %v2741, %v2742
  %v2744 = vsel %vm216, %v2697, 0.0
  %v2745 = vsel %vm216, %v2698, 0.0
  %v2746 = vadd.f32 %v2744, %v2745
  %v2747 = vrot.slane %v2746, 4
  %v2748 = vadd.f32 %v2746, %v2747
  %v2749 = vrot.slane %v2748, 2
  %v2750 = vadd.f32 %v2748, %v2749
  %v2751 = vrot.slane %v2750, 1
  %v2752 = vadd.f32 %v2750, %v2751
  %v2753 = vmul.f32 %v2707, %v2680
  %v2754 = vmul.f32 %v2716, %v2680
  %v2755 = vmul.f32 %v2725, %v2680
  %v2756 = vmul.f32 %v2734, %v2680
  %v2757 = vmul.f32 %v2743, %v2680
  %v2758 = vmul.f32 %v2752, %v2680
  %v2759 = vmul.f32 %v2681, %v2681
  %v2760 = vmul.f32 %v2682, %v2682
  %v2761 = vmul.f32 %v2683, %v2683
  %v2762 = vmul.f32 %v2684, %v2684
  %v2763 = vmul.f32 %v2685, %v2685
  %v2764 = vmul.f32 %v2686, %v2686
  %v2765 = vsub.f32 %v2753, %v2759
  %v2766 = vsub.f32 %v2754, %v2760
  %v2767 = vsub.f32 %v2755, %v2761
  %v2768 = vsub.f32 %v2756, %v2762
  %v2769 = vsub.f32 %v2757, %v2763
  %v2770 = vsub.f32 %v2758, %v2764
  %v2771 = vsub.f32 %v2614, %v2681
  %v2772 = vsub.f32 %v2615, %v2681
  %v2773 = vsub.f32 %v2616, %v2682
  %v2774 = vsub.f32 %v2617, %v2682
  %v2775 = vsub.f32 %v2618, %v2683
  %v2776 = vsub.f32 %v2619, %v2683
  %v2777 = vsub.f32 %v2620, %v2684
  %v2778 = vsub.f32 %v2621, %v2684
  %v2779 = vsub.f32 %v2622, %v2685
  %v2780 = vsub.f32 %v2623, %v2685
  %v2781 = vsub.f32 %v2624, %v2686
  %v2782 = vsub.f32 %v2625, %v2686
  %v2783 = vadd.f32 %v2765, 1e-05
  %v2784 = vadd.f32 %v2766, 1e-05
  %v2785 = vadd.f32 %v2767, 1e-05
  %v2786 = vadd.f32 %v2768, 1e-05
  %v2787 = vadd.f32 %v2769, 1e-05
  %v2788 = vadd.f32 %v2770, 1e-05
  %v2789 = vrsqrt.pop %v2783
  %v2790 = vrsqrt.pop %v2784
  %v2791 = vrsqrt.pop %v2785
  %v2792 = vrsqrt.pop %v2786
  %v2793 = vrsqrt.pop %v2787
  %v2794 = vrsqrt.pop %v2788
  %v2795 = vmul.f32 %v2771, %v2789
  %v2796 = vmul.f32 %v2772, %v2789
  %v2797 = vmul.f32 %v2773, %v2790
  %v2798 = vmul.f32 %v2774, %v2790
  %v2799 = vmul.f32 %v2775, %v2791
  %v2800 = vmul.f32 %v2776, %v2791
  %v2801 = vmul.f32 %v2777, %v2792
  %v2802 = vmul.f32 %v2778, %v2792
  %v2803 = vmul.f32 %v2779, %v2793
  %v2804 = vmul.f32 %v2780, %v2793
  %v2805 = vmul.f32 %v2781, %v2794
  %v2806 = vmul.f32 %v2782, %v2794
  %v2807 = vld [vmem:[%s10] sm:$0x1]
  %v2809 = vlaneseq
  %v2810 = vshrl.u32 %v2809, 7
  %v2811 = vsub.s32 0, %v2810
  %v2812 = vrot.slane %v2807, %v2811
  %v2814 = vmul.f32 %v2795, %v2812
  %v2815 = vmul.f32 %v2796, %v2812
  %v2816 = vmul.f32 %v2797, %v2812
  %v2817 = vmul.f32 %v2798, %v2812
  %v2818 = vmul.f32 %v2799, %v2812
  %v2819 = vmul.f32 %v2800, %v2812
  %v2820 = vmul.f32 %v2801, %v2812
  %v2821 = vmul.f32 %v2802, %v2812
  %v2822 = vmul.f32 %v2803, %v2812
  %v2823 = vmul.f32 %v2804, %v2812
  %v2824 = vmul.f32 %v2805, %v2812
  %v2825 = vmul.f32 %v2806, %v2812
  %v2826 = vld [vmem:[%s11] sm:$0x1]
  %v2828 = vlaneseq
  %v2829 = vshrl.u32 %v2828, 7
  %v2830 = vsub.s32 0, %v2829
  %v2831 = vrot.slane %v2826, %v2830
  %v2833 = vadd.f32 %v2814, %v2831
  %v2834 = vadd.f32 %v2815, %v2831
  %v2835 = vadd.f32 %v2816, %v2831
  %v2836 = vadd.f32 %v2817, %v2831
  %v2837 = vadd.f32 %v2818, %v2831
  %v2838 = vadd.f32 %v2819, %v2831
  %v2839 = vadd.f32 %v2820, %v2831
  %v2840 = vadd.f32 %v2821, %v2831
  %v2841 = vadd.f32 %v2822, %v2831
  %v2842 = vadd.f32 %v2823, %v2831
  %v2843 = vadd.f32 %v2824, %v2831
  %v2844 = vadd.f32 %v2825, %v2831
  %v2845 = vld [vmem:[%s12] sm:$0xff]
  %v2846 = vld [vmem:[%s12 + $0x8] sm:$0xff]
  %v2847 = vld [vmem:[%s12 + $0x10] sm:$0xff]
  %v2848 = vld [vmem:[%s12 + $0x18] sm:$0xff]
  %v2849 = vld [vmem:[%s13] sm:$0x1]
  %v2851 = vlaneseq
  %v2852 = vshrl.u32 %v2851, 7
  %v2853 = vsub.s32 0, %v2852
  %v2854 = vrot.slane %v2849, %v2853
  %v2857 = vsel %vm216, %v2833, 0
  %v2860 = vsel %vm216, %v2834, 0
  %v2863 = vsel %vm216, %v2835, 0
  %v2866 = vsel %vm216, %v2836, 0
  %v2869 = vsel %vm216, %v2837, 0
  %v2872 = vsel %vm216, %v2838, 0
  %v2875 = vsel %vm216, %v2839, 0
  %v2878 = vsel %vm216, %v2840, 0
  %v2881 = vsel %vm216, %v2841, 0
  %v2884 = vsel %vm216, %v2842, 0
  %v2887 = vsel %vm216, %v2843, 0
  %v2890 = vsel %vm216, %v2844, 0
  %2892 = vmatprep.subr.mxu0 0.0
  %2893 = vmatpush1.msra.mxu0 %v2845
  %2894 = vmatprep.subr.mxu0 0.0
  %2895 = vmatpush1.msra.mxu0 %v2846
  %2896 = vmatprep.subr.mxu0 0.0
  %2897 = vmatpush1.msra.mxu0 %v2847
  %2898 = vmatprep.subr.mxu0 0.0
  %2899 = vmatpush1.msra.mxu0 %v2848
  %2900 = vmatprep.subr.mxu0 0.0
  %2901 = vmatpush1.msra.mxu0 0.0
  %2902 = vmatprep.subr.mxu0 0.0
  %2903 = vmatpush1.msra.mxu0 0.0
  %2904 = vmatprep.subr.mxu0 0.0
  %2905 = vmatpush1.msra.mxu0 0.0
  %2906 = vmatprep.subr.mxu0 0.0
  %2907 = vmatpush1.msra.mxu0 0.0
  %2908 = vmatprep.subr.mxu0 0.0
  %2909 = vmatpush1.msra.mxu0 0.0
  %2910 = vmatprep.subr.mxu0 0.0
  %2911 = vmatpush1.msra.mxu0 0.0
  %2912 = vmatprep.subr.mxu0 0.0
  %2913 = vmatpush1.msra.mxu0 0.0
  %2914 = vmatprep.subr.mxu0 0.0
  %2915 = vmatpush1.msra.mxu0 0.0
  %2916 = vmatprep.subr.mxu0 0.0
  %2917 = vmatpush1.msra.mxu0 0.0
  %2918 = vmatprep.subr.mxu0 0.0
  %2919 = vmatpush1.msra.mxu0 0.0
  %2920 = vmatprep.subr.mxu0 0.0
  %2921 = vmatpush1.msra.mxu0 0.0
  %2922 = vmatprep.subr.mxu0 0.0
  %2923 = vmatpush1.msra.mxu0 0.0
  %2924 = vmatprep.subr.mxu0 0.0
  %2925 = vmatpush1.msra.mxu0 0.0
  %2926 = vmatprep.subr.mxu0 0.0
  %2927 = vmatpush1.msra.mxu0 0.0
  %2928 = vmatprep.subr.mxu0 0.0
  %2929 = vmatpush1.msra.mxu0 0.0
  %2930 = vmatprep.subr.mxu0 0.0
  %2931 = vmatpush1.msra.mxu0 0.0
  %2932 = vmatprep.subr.mxu0 0.0
  %2933 = vmatpush1.msra.mxu0 0.0
  %2934 = vmatprep.subr.mxu0 0.0
  %2935 = vmatpush1.msra.mxu0 0.0
  %2936 = vmatprep.subr.mxu0 0.0
  %2937 = vmatpush1.msra.mxu0 0.0
  %2938 = vmatprep.subr.mxu0 0.0
  %2939 = vmatpush1.msra.mxu0 0.0
  %2940 = vmatprep.subr.mxu0 0.0
  %2941 = vmatpush1.msra.mxu0 0.0
  %2942 = vmatprep.subr.mxu0 0.0
  %2943 = vmatpush1.msra.mxu0 0.0
  %2944 = vmatprep.subr.mxu0 0.0
  %2945 = vmatpush1.msra.mxu0 0.0
  %2946 = vmatprep.subr.mxu0 0.0
  %2947 = vmatpush1.msra.mxu0 0.0
  %2948 = vmatprep.subr.mxu0 0.0
  %2949 = vmatpush1.msra.mxu0 0.0
  %2950 = vmatprep.subr.mxu0 0.0
  %2951 = vmatpush1.msra.mxu0 0.0
  %2952 = vmatprep.subr.mxu0 0.0
  %2953 = vmatpush1.msra.mxu0 0.0
  %2954 = vmatprep.subr.mxu0 0.0
  %2955 = vmatpush1.msra.mxu0 0.0
  %2956 = vmatprep.mubr.f32.mxu0 0.0
  %2957 = vmatmul.mubr.f32.gmra.mrb[0].mxu0 %v2857
  %v2958 = vpop.f32.mrb[0].mxu0
  %v2959 = vadd.f32 %v2854, %v2958
  %v2960 = vpop.f32.mrb[0].mxu0
  %2961 = vmatprep.mubr.f32.mxu0 0.0
  %2962 = vmatmul.mubr.f32.gmra.mrb[0].mxu0 %v2860
  %v2963 = vpop.f32.mrb[0].mxu0
  %v2964 = vadd.f32 %v2854, %v2963
  %v2965 = vpop.f32.mrb[0].mxu0
  %2966 = vmatprep.mubr.f32.mxu0 0.0
  %2967 = vmatmul.mubr.f32.gmra.mrb[0].mxu0 %v2863
  %v2968 = vpop.f32.mrb[0].mxu0
  %v2969 = vadd.f32 %v2854, %v2968
  %v2970 = vpop.f32.mrb[0].mxu0
  %2971 = vmatprep.mubr.f32.mxu0 0.0
  %2972 = vmatmul.mubr.f32.gmra.mrb[0].mxu0 %v2866
  %v2973 = vpop.f32.mrb[0].mxu0
  %v2974 = vadd.f32 %v2854, %v2973
  %v2975 = vpop.f32.mrb[0].mxu0
  %2976 = vmatprep.mubr.f32.mxu0 0.0
  %2977 = vmatmul.mubr.f32.gmra.mrb[0].mxu0 %v2869
  %v2978 = vpop.f32.mrb[0].mxu0
  %v2979 = vadd.f32 %v2854, %v2978
  %v2980 = vpop.f32.mrb[0].mxu0
  %2981 = vmatprep.mubr.f32.mxu0 0.0
  %2982 = vmatmul.mubr.f32.gmra.mrb[0].mxu0 %v2872
  %v2983 = vpop.f32.mrb[0].mxu0
  %v2984 = vadd.f32 %v2854, %v2983
  %v2985 = vpop.f32.mrb[0].mxu0
  %2986 = vmatprep.mubr.f32.mxu0 0.0
  %2987 = vmatmul.mubr.f32.gmra.mrb[0].mxu0 %v2875
  %v2988 = vpop.f32.mrb[0].mxu0
  %v2989 = vadd.f32 %v2854, %v2988
  %v2990 = vpop.f32.mrb[0].mxu0
  %2991 = vmatprep.mubr.f32.mxu0 0.0
  %2992 = vmatmul.mubr.f32.gmra.mrb[0].mxu0 %v2878
  %v2993 = vpop.f32.mrb[0].mxu0
  %v2994 = vadd.f32 %v2854, %v2993
  %v2995 = vpop.f32.mrb[0].mxu0
  %2996 = vmatprep.mubr.f32.mxu0 0.0
  %2997 = vmatmul.mubr.f32.gmra.mrb[0].mxu0 %v2881
  %v2998 = vpop.f32.mrb[0].mxu0
  %v2999 = vadd.f32 %v2854, %v2998
  %v3000 = vpop.f32.mrb[0].mxu0
  %3001 = vmatprep.mubr.f32.mxu0 0.0
  %3002 = vmatmul.mubr.f32.gmra.mrb[0].mxu0 %v2884
  %v3003 = vpop.f32.mrb[0].mxu0
  %v3004 = vadd.f32 %v2854, %v3003
  %v3005 = vpop.f32.mrb[0].mxu0
  %3006 = vmatprep.mubr.f32.mxu0 0.0
  %3007 = vmatmul.mubr.f32.gmra.mrb[0].mxu0 %v2887
  %v3008 = vpop.f32.mrb[0].mxu0
  %v3009 = vadd.f32 %v2854, %v3008
  %v3010 = vpop.f32.mrb[0].mxu0
  %3011 = vmatprep.mubr.f32.mxu0 0.0
  %3012 = vmatmul.mubr.f32.gmra.mrb[0].mxu0 %v2890
  %v3013 = vpop.f32.mrb[0].mxu0
  %v3014 = vadd.f32 %v2854, %v3013
  %v3015 = vpop.f32.mrb[0].mxu0
  %3016 = vdwg.mxu0
  %vm3017 = vcmp.ge.f32.partialorder %v2959, 0.0
  %vm3018 = vcmp.ge.f32.partialorder %v2964, 0.0
  %vm3019 = vcmp.ge.f32.partialorder %v2969, 0.0
  %vm3020 = vcmp.ge.f32.partialorder %v2974, 0.0
  %vm3021 = vcmp.ge.f32.partialorder %v2979, 0.0
  %vm3022 = vcmp.ge.f32.partialorder %v2984, 0.0
  %vm3023 = vcmp.ge.f32.partialorder %v2989, 0.0
  %vm3024 = vcmp.ge.f32.partialorder %v2994, 0.0
  %vm3025 = vcmp.ge.f32.partialorder %v2999, 0.0
  %vm3026 = vcmp.ge.f32.partialorder %v3004, 0.0
  %vm3027 = vcmp.ge.f32.partialorder %v3009, 0.0
  %vm3028 = vcmp.ge.f32.partialorder %v3014, 0.0
  %v3029 = vmul.f32 %v2959, 0.2
  %v3030 = vmul.f32 %v2964, 0.2
  %v3031 = vmul.f32 %v2969, 0.2
  %v3032 = vmul.f32 %v2974, 0.2
  %v3033 = vmul.f32 %v2979, 0.2
  %v3034 = vmul.f32 %v2984, 0.2
  %v3035 = vmul.f32 %v2989, 0.2
  %v3036 = vmul.f32 %v2994, 0.2
  %v3037 = vmul.f32 %v2999, 0.2
  %v3038 = vmul.f32 %v3004, 0.2
  %v3039 = vmul.f32 %v3009, 0.2
  %v3040 = vmul.f32 %v3014, 0.2
  %v3041 = vsel %vm3017, %v2959, %v3029
  %v3042 = vsel %vm3018, %v2964, %v3030
  %v3043 = vsel %vm3019, %v2969, %v3031
  %v3044 = vsel %vm3020, %v2974, %v3032
  %v3045 = vsel %vm3021, %v2979, %v3033
  %v3046 = vsel %vm3022, %v2984, %v3034
  %v3047 = vsel %vm3023, %v2989, %v3035
  %v3048 = vsel %vm3024, %v2994, %v3036
  %v3049 = vsel %vm3025, %v2999, %v3037
  %v3050 = vsel %vm3026, %v3004, %v3038
  %v3051 = vsel %vm3027, %v3009, %v3039
  %v3052 = vsel %vm3028, %v3014, %v3040
  %v3053 = vld [vmem:[%s14] sm:$0xff]
  %v3054 = vld [vmem:[%s14 + $0x8] sm:$0xff]
  %v3055 = vld [vmem:[%s15] sm:$0x1]
  %v3057 = vlaneseq
  %v3058 = vshrl.u32 %v3057, 7
  %v3059 = vsub.s32 0, %v3058
  %v3060 = vrot.slane %v3055, %v3059
  %vm3062 = vcmask 130048
  %v3064 = vsel %vm3062, %v3041, 0
  %v3067 = vsel %vm3062, %v3042, 0
  %v3070 = vsel %vm3062, %v3043, 0
  %v3073 = vsel %vm3062, %v3044, 0
  %v3076 = vsel %vm3062, %v3045, 0
  %v3079 = vsel %vm3062, %v3046, 0
  %v3082 = vsel %vm3062, %v3047, 0
  %v3085 = vsel %vm3062, %v3048, 0
  %v3088 = vsel %vm3062, %v3049, 0
  %v3091 = vsel %vm3062, %v3050, 0
  %v3094 = vsel %vm3062, %v3051, 0
  %v3097 = vsel %vm3062, %v3052, 0
  %3099 = vmatprep.subr.mxu0 0.0
  %3100 = vmatpush1.msra.mxu0 %v3053
  %3101 = vmatprep.subr.mxu0 0.0
  %3102 = vmatpush1.msra.mxu0 %v3054
  %3103 = vmatprep.subr.mxu0 0.0
  %3104 = vmatpush1.msra.mxu0 0.0
  %3105 = vmatprep.subr.mxu0 0.0
  %3106 = vmatpush1.msra.mxu0 0.0
  %3107 = vmatprep.subr.mxu0 0.0
  %3108 = vmatpush1.msra.mxu0 0.0
  %3109 = vmatprep.subr.mxu0 0.0
  %3110 = vmatpush1.msra.mxu0 0.0
  %3111 = vmatprep.subr.mxu0 0.0
  %3112 = vmatpush1.msra.mxu0 0.0
  %3113 = vmatprep.subr.mxu0 0.0
  %3114 = vmatpush1.msra.mxu0 0.0
  %3115 = vmatprep.subr.mxu0 0.0
  %3116 = vmatpush1.msra.mxu0 0.0
  %3117 = vmatprep.subr.mxu0 0.0
  %3118 = vmatpush1.msra.mxu0 0.0
  %3119 = vmatprep.subr.mxu0 0.0
  %3120 = vmatpush1.msra.mxu0 0.0
  %3121 = vmatprep.subr.mxu0 0.0
  %3122 = vmatpush1.msra.mxu0 0.0
  %3123 = vmatprep.subr.mxu0 0.0
  %3124 = vmatpush1.msra.mxu0 0.0
  %3125 = vmatprep.subr.mxu0 0.0
  %3126 = vmatpush1.msra.mxu0 0.0
  %3127 = vmatprep.subr.mxu0 0.0
  %3128 = vmatpush1.msra.mxu0 0.0
  %3129 = vmatprep.subr.mxu0 0.0
  %3130 = vmatpush1.msra.mxu0 0.0
  %3131 = vmatprep.subr.mxu0 0.0
  %3132 = vmatpush1.msra.mxu0 0.0
  %3133 = vmatprep.subr.mxu0 0.0
  %3134 = vmatpush1.msra.mxu0 0.0
  %3135 = vmatprep.subr.mxu0 0.0
  %3136 = vmatpush1.msra.mxu0 0.0
  %3137 = vmatprep.subr.mxu0 0.0
  %3138 = vmatpush1.msra.mxu0 0.0
  %3139 = vmatprep.subr.mxu0 0.0
  %3140 = vmatpush1.msra.mxu0 0.0
  %3141 = vmatprep.subr.mxu0 0.0
  %3142 = vmatpush1.msra.mxu0 0.0
  %3143 = vmatprep.subr.mxu0 0.0
  %3144 = vmatpush1.msra.mxu0 0.0
  %3145 = vmatprep.subr.mxu0 0.0
  %3146 = vmatpush1.msra.mxu0 0.0
  %3147 = vmatprep.subr.mxu0 0.0
  %3148 = vmatpush1.msra.mxu0 0.0
  %3149 = vmatprep.subr.mxu0 0.0
  %3150 = vmatpush1.msra.mxu0 0.0
  %3151 = vmatprep.subr.mxu0 0.0
  %3152 = vmatpush1.msra.mxu0 0.0
  %3153 = vmatprep.subr.mxu0 0.0
  %3154 = vmatpush1.msra.mxu0 0.0
  %3155 = vmatprep.subr.mxu0 0.0
  %3156 = vmatpush1.msra.mxu0 0.0
  %3157 = vmatprep.subr.mxu0 0.0
  %3158 = vmatpush1.msra.mxu0 0.0
  %3159 = vmatprep.subr.mxu0 0.0
  %3160 = vmatpush1.msra.mxu0 0.0
  %3161 = vmatprep.subr.mxu0 0.0
  %3162 = vmatpush1.msra.mxu0 0.0
  %3163 = vmatprep.mubr.f32.mxu0 0.0
  %3164 = vmatmul.mubr.f32.gmra.mrb[0].mxu0 %v3064
  %v3165 = vpop.f32.mrb[0].mxu0
  %v3166 = vadd.f32 %v3060, %v3165
  %v3167 = vpop.f32.mrb[0].mxu0
  %3168 = vmatprep.mubr.f32.mxu0 0.0
  %3169 = vmatmul.mubr.f32.gmra.mrb[0].mxu0 %v3067
  %v3170 = vpop.f32.mrb[0].mxu0
  %v3171 = vadd.f32 %v3060, %v3170
  %v3172 = vpop.f32.mrb[0].mxu0
  %3173 = vmatprep.mubr.f32.mxu0 0.0
  %3174 = vmatmul.mubr.f32.gmra.mrb[0].mxu0 %v3070
  %v3175 = vpop.f32.mrb[0].mxu0
  %v3176 = vadd.f32 %v3060, %v3175
  %v3177 = vpop.f32.mrb[0].mxu0
  %3178 = vmatprep.mubr.f32.mxu0 0.0
  %3179 = vmatmul.mubr.f32.gmra.mrb[0].mxu0 %v3073
  %v3180 = vpop.f32.mrb[0].mxu0
  %v3181 = vadd.f32 %v3060, %v3180
  %v3182 = vpop.f32.mrb[0].mxu0
  %3183 = vmatprep.mubr.f32.mxu0 0.0
  %3184 = vmatmul.mubr.f32.gmra.mrb[0].mxu0 %v3076
  %v3185 = vpop.f32.mrb[0].mxu0
  %v3186 = vadd.f32 %v3060, %v3185
  %v3187 = vpop.f32.mrb[0].mxu0
  %3188 = vmatprep.mubr.f32.mxu0 0.0
  %3189 = vmatmul.mubr.f32.gmra.mrb[0].mxu0 %v3079
  %v3190 = vpop.f32.mrb[0].mxu0
  %v3191 = vadd.f32 %v3060, %v3190
  %v3192 = vpop.f32.mrb[0].mxu0
  %3193 = vmatprep.mubr.f32.mxu0 0.0
  %3194 = vmatmul.mubr.f32.gmra.mrb[0].mxu0 %v3082
  %v3195 = vpop.f32.mrb[0].mxu0
  %v3196 = vadd.f32 %v3060, %v3195
  %v3197 = vpop.f32.mrb[0].mxu0
  %3198 = vmatprep.mubr.f32.mxu0 0.0
  %3199 = vmatmul.mubr.f32.gmra.mrb[0].mxu0 %v3085
  %v3200 = vpop.f32.mrb[0].mxu0
  %v3201 = vadd.f32 %v3060, %v3200
  %v3202 = vpop.f32.mrb[0].mxu0
  %3203 = vmatprep.mubr.f32.mxu0 0.0
  %3204 = vmatmul.mubr.f32.gmra.mrb[0].mxu0 %v3088
  %v3205 = vpop.f32.mrb[0].mxu0
  %v3206 = vadd.f32 %v3060, %v3205
  %v3207 = vpop.f32.mrb[0].mxu0
  %3208 = vmatprep.mubr.f32.mxu0 0.0
  %3209 = vmatmul.mubr.f32.gmra.mrb[0].mxu0 %v3091
  %v3210 = vpop.f32.mrb[0].mxu0
  %v3211 = vadd.f32 %v3060, %v3210
  %v3212 = vpop.f32.mrb[0].mxu0
  %3213 = vmatprep.mubr.f32.mxu0 0.0
  %3214 = vmatmul.mubr.f32.gmra.mrb[0].mxu0 %v3094
  %v3215 = vpop.f32.mrb[0].mxu0
  %v3216 = vadd.f32 %v3060, %v3215
  %v3217 = vpop.f32.mrb[0].mxu0
  %3218 = vmatprep.mubr.f32.mxu0 0.0
  %3219 = vmatmul.mubr.f32.gmra.mrb[0].mxu0 %v3097
  %v3220 = vpop.f32.mrb[0].mxu0
  %v3221 = vadd.f32 %v3060, %v3220
  %v3222 = vpop.f32.mrb[0].mxu0
  %3223 = vdwg.mxu0
  %v3224 = vld [vmem:[%s16] sm:$0xff]
  %v3225 = vld [vmem:[%s17] sm:$0x1]
  %v3227 = vlaneseq
  %v3228 = vshrl.u32 %v3227, 7
  %v3229 = vsub.s32 0, %v3228
  %v3230 = vrot.slane %v3225, %v3229
  %v3233 = vsel %vm1550, 0.0, 0
  %3235 = vmatprep.subr.mxu0 0.0
  %3236 = vmatpush1.msra.mxu0 %v3224
  %3237 = vmatprep.subr.mxu0 0.0
  %3238 = vmatpush1.msra.mxu0 0.0
  %3239 = vmatprep.subr.mxu0 0.0
  %3240 = vmatpush1.msra.mxu0 0.0
  %3241 = vmatprep.subr.mxu0 0.0
  %3242 = vmatpush1.msra.mxu0 0.0
  %3243 = vmatprep.subr.mxu0 0.0
  %3244 = vmatpush1.msra.mxu0 0.0
  %3245 = vmatprep.subr.mxu0 0.0
  %3246 = vmatpush1.msra.mxu0 0.0
  %3247 = vmatprep.subr.mxu0 0.0
  %3248 = vmatpush1.msra.mxu0 0.0
  %3249 = vmatprep.subr.mxu0 0.0
  %3250 = vmatpush1.msra.mxu0 0.0
  %3251 = vmatprep.subr.mxu0 0.0
  %3252 = vmatpush1.msra.mxu0 0.0
  %3253 = vmatprep.subr.mxu0 0.0
  %3254 = vmatpush1.msra.mxu0 0.0
  %3255 = vmatprep.subr.mxu0 0.0
  %3256 = vmatpush1.msra.mxu0 0.0
  %3257 = vmatprep.subr.mxu0 0.0
  %3258 = vmatpush1.msra.mxu0 0.0
  %3259 = vmatprep.subr.mxu0 0.0
  %3260 = vmatpush1.msra.mxu0 0.0
  %3261 = vmatprep.subr.mxu0 0.0
  %3262 = vmatpush1.msra.mxu0 0.0
  %3263 = vmatprep.subr.mxu0 0.0
  %3264 = vmatpush1.msra.mxu0 0.0
  %3265 = vmatprep.subr.mxu0 0.0
  %3266 = vmatpush1.msra.mxu0 0.0
  %3267 = vmatprep.subr.mxu0 0.0
  %3268 = vmatpush1.msra.mxu0 0.0
  %3269 = vmatprep.subr.mxu0 0.0
  %3270 = vmatpush1.msra.mxu0 0.0
  %3271 = vmatprep.subr.mxu0 0.0
  %3272 = vmatpush1.msra.mxu0 0.0
  %3273 = vmatprep.subr.mxu0 0.0
  %3274 = vmatpush1.msra.mxu0 0.0
  %3275 = vmatprep.subr.mxu0 0.0
  %3276 = vmatpush1.msra.mxu0 0.0
  %3277 = vmatprep.subr.mxu0 0.0
  %3278 = vmatpush1.msra.mxu0 0.0
  %3279 = vmatprep.subr.mxu0 0.0
  %3280 = vmatpush1.msra.mxu0 0.0
  %3281 = vmatprep.subr.mxu0 0.0
  %3282 = vmatpush1.msra.mxu0 0.0
  %3283 = vmatprep.subr.mxu0 0.0
  %3284 = vmatpush1.msra.mxu0 0.0
  %3285 = vmatprep.subr.mxu0 0.0
  %3286 = vmatpush1.msra.mxu0 0.0
  %3287 = vmatprep.subr.mxu0 0.0
  %3288 = vmatpush1.msra.mxu0 0.0
  %3289 = vmatprep.subr.mxu0 0.0
  %3290 = vmatpush1.msra.mxu0 0.0
  %3291 = vmatprep.subr.mxu0 0.0
  %3292 = vmatpush1.msra.mxu0 0.0
  %3293 = vmatprep.subr.mxu0 0.0
  %3294 = vmatpush1.msra.mxu0 0.0
  %3295 = vmatprep.subr.mxu0 0.0
  %3296 = vmatpush1.msra.mxu0 0.0
  %3297 = vmatprep.subr.mxu0 0.0
  %3298 = vmatpush1.msra.mxu0 0.0
  %3299 = vmatprep.mubr.f32.mxu0 0.0
  %3300 = vmatmul.mubr.f32.gmra.mrb[0].mxu0 %v3233
  %v3301 = vpop.f32.mrb[0].mxu0
  %v3302 = vadd.f32 %v3230, %v3301
  %v3303 = vpop.f32.mrb[0].mxu0
  %3304 = vmatprep.mubr.f32.mxu0 0.0
  %3305 = vmatmul.mubr.f32.gmra.mrb[0].mxu0 %v3233
  %v3306 = vpop.f32.mrb[0].mxu0
  %v3307 = vadd.f32 %v3230, %v3306
  %v3308 = vpop.f32.mrb[0].mxu0
  %3309 = vdwg.mxu0
  %3311 = vrot.lane.b32.xlu0 %v3224, 120
  %v3312 = vpop.permute.xlu0 %3311
  %3314 = vrot.lane.b32.xlu0 %v3230, 120
  %v3315 = vpop.permute.xlu0 %3314
  %3317 = vmatprep.subr.mxu0 0.0
  %3318 = vmatpush1.msra.mxu0 %v3312
  %3319 = vmatprep.subr.mxu0 0.0
  %3320 = vmatpush1.msra.mxu0 0.0
  %3321 = vmatprep.subr.mxu0 0.0
  %3322 = vmatpush1.msra.mxu0 0.0
  %3323 = vmatprep.subr.mxu0 0.0
  %3324 = vmatpush1.msra.mxu0 0.0
  %3325 = vmatprep.subr.mxu0 0.0
  %3326 = vmatpush1.msra.mxu0 0.0
  %3327 = vmatprep.subr.mxu0 0.0
  %3328 = vmatpush1.msra.mxu0 0.0
  %3329 = vmatprep.subr.mxu0 0.0
  %3330 = vmatpush1.msra.mxu0 0.0
  %3331 = vmatprep.subr.mxu0 0.0
  %3332 = vmatpush1.msra.mxu0 0.0
  %3333 = vmatprep.subr.mxu0 0.0
  %3334 = vmatpush1.msra.mxu0 0.0
  %3335 = vmatprep.subr.mxu0 0.0
  %3336 = vmatpush1.msra.mxu0 0.0
  %3337 = vmatprep.subr.mxu0 0.0
  %3338 = vmatpush1.msra.mxu0 0.0
  %3339 = vmatprep.subr.mxu0 0.0
  %3340 = vmatpush1.msra.mxu0 0.0
  %3341 = vmatprep.subr.mxu0 0.0
  %3342 = vmatpush1.msra.mxu0 0.0
  %3343 = vmatprep.subr.mxu0 0.0
  %3344 = vmatpush1.msra.mxu0 0.0
  %3345 = vmatprep.subr.mxu0 0.0
  %3346 = vmatpush1.msra.mxu0 0.0
  %3347 = vmatprep.subr.mxu0 0.0
  %3348 = vmatpush1.msra.mxu0 0.0
  %3349 = vmatprep.subr.mxu0 0.0
  %3350 = vmatpush1.msra.mxu0 0.0
  %3351 = vmatprep.subr.mxu0 0.0
  %3352 = vmatpush1.msra.mxu0 0.0
  %3353 = vmatprep.subr.mxu0 0.0
  %3354 = vmatpush1.msra.mxu0 0.0
  %3355 = vmatprep.subr.mxu0 0.0
  %3356 = vmatpush1.msra.mxu0 0.0
  %3357 = vmatprep.subr.mxu0 0.0
  %3358 = vmatpush1.msra.mxu0 0.0
  %3359 = vmatprep.subr.mxu0 0.0
  %3360 = vmatpush1.msra.mxu0 0.0
  %3361 = vmatprep.subr.mxu0 0.0
  %3362 = vmatpush1.msra.mxu0 0.0
  %3363 = vmatprep.subr.mxu0 0.0
  %3364 = vmatpush1.msra.mxu0 0.0
  %3365 = vmatprep.subr.mxu0 0.0
  %3366 = vmatpush1.msra.mxu0 0.0
  %3367 = vmatprep.subr.mxu0 0.0
  %3368 = vmatpush1.msra.mxu0 0.0
  %3369 = vmatprep.subr.mxu0 0.0
  %3370 = vmatpush1.msra.mxu0 0.0
  %3371 = vmatprep.subr.mxu0 0.0
  %3372 = vmatpush1.msra.mxu0 0.0
  %3373 = vmatprep.subr.mxu0 0.0
  %3374 = vmatpush1.msra.mxu0 0.0
  %3375 = vmatprep.subr.mxu0 0.0
  %3376 = vmatpush1.msra.mxu0 0.0
  %3377 = vmatprep.subr.mxu0 0.0
  %3378 = vmatpush1.msra.mxu0 0.0
  %3379 = vmatprep.subr.mxu0 0.0
  %3380 = vmatpush1.msra.mxu0 0.0
  %3381 = vmatprep.mubr.f32.mxu0 0.0
  %3382 = vmatmul.mubr.f32.gmra.mrb[0].mxu0 %v3233
  %v3383 = vpop.f32.mrb[0].mxu0
  %v3384 = vadd.f32 %v3315, %v3383
  %v3385 = vpop.f32.mrb[0].mxu0
  %3386 = vmatprep.mubr.f32.mxu0 0.0
  %3387 = vmatmul.mubr.f32.gmra.mrb[0].mxu0 %v3233
  %v3388 = vpop.f32.mrb[0].mxu0
  %v3389 = vadd.f32 %v3315, %v3388
  %v3390 = vpop.f32.mrb[0].mxu0
  %3391 = vdwg.mxu0
  %3392 = vrot.lane.b32.xlu0 %v3224, 112
  %v3393 = vpop.permute.xlu0 %3392
  %3395 = vrot.lane.b32.xlu0 %v3230, 112
  %v3396 = vpop.permute.xlu0 %3395
  %3398 = vmatprep.subr.mxu0 0.0
  %3399 = vmatpush1.msra.mxu0 %v3393
  %3400 = vmatprep.subr.mxu0 0.0
  %3401 = vmatpush1.msra.mxu0 0.0
  %3402 = vmatprep.subr.mxu0 0.0
  %3403 = vmatpush1.msra.mxu0 0.0
  %3404 = vmatprep.subr.mxu0 0.0
  %3405 = vmatpush1.msra.mxu0 0.0
  %3406 = vmatprep.subr.mxu0 0.0
  %3407 = vmatpush1.msra.mxu0 0.0
  %3408 = vmatprep.subr.mxu0 0.0
  %3409 = vmatpush1.msra.mxu0 0.0
  %3410 = vmatprep.subr.mxu0 0.0
  %3411 = vmatpush1.msra.mxu0 0.0
  %3412 = vmatprep.subr.mxu0 0.0
  %3413 = vmatpush1.msra.mxu0 0.0
  %3414 = vmatprep.subr.mxu0 0.0
  %3415 = vmatpush1.msra.mxu0 0.0
  %3416 = vmatprep.subr.mxu0 0.0
  %3417 = vmatpush1.msra.mxu0 0.0
  %3418 = vmatprep.subr.mxu0 0.0
  %3419 = vmatpush1.msra.mxu0 0.0
  %3420 = vmatprep.subr.mxu0 0.0
  %3421 = vmatpush1.msra.mxu0 0.0
  %3422 = vmatprep.subr.mxu0 0.0
  %3423 = vmatpush1.msra.mxu0 0.0
  %3424 = vmatprep.subr.mxu0 0.0
  %3425 = vmatpush1.msra.mxu0 0.0
  %3426 = vmatprep.subr.mxu0 0.0
  %3427 = vmatpush1.msra.mxu0 0.0
  %3428 = vmatprep.subr.mxu0 0.0
  %3429 = vmatpush1.msra.mxu0 0.0
  %3430 = vmatprep.subr.mxu0 0.0
  %3431 = vmatpush1.msra.mxu0 0.0
  %3432 = vmatprep.subr.mxu0 0.0
  %3433 = vmatpush1.msra.mxu0 0.0
  %3434 = vmatprep.subr.mxu0 0.0
  %3435 = vmatpush1.msra.mxu0 0.0
  %3436 = vmatprep.subr.mxu0 0.0
  %3437 = vmatpush1.msra.mxu0 0.0
  %3438 = vmatprep.subr.mxu0 0.0
  %3439 = vmatpush1.msra.mxu0 0.0
  %3440 = vmatprep.subr.mxu0 0.0
  %3441 = vmatpush1.msra.mxu0 0.0
  %3442 = vmatprep.subr.mxu0 0.0
  %3443 = vmatpush1.msra.mxu0 0.0
  %3444 = vmatprep.subr.mxu0 0.0
  %3445 = vmatpush1.msra.mxu0 0.0
  %3446 = vmatprep.subr.mxu0 0.0
  %3447 = vmatpush1.msra.mxu0 0.0
  %3448 = vmatprep.subr.mxu0 0.0
  %3449 = vmatpush1.msra.mxu0 0.0
  %3450 = vmatprep.subr.mxu0 0.0
  %3451 = vmatpush1.msra.mxu0 0.0
  %3452 = vmatprep.subr.mxu0 0.0
  %3453 = vmatpush1.msra.mxu0 0.0
  %3454 = vmatprep.subr.mxu0 0.0
  %3455 = vmatpush1.msra.mxu0 0.0
  %3456 = vmatprep.subr.mxu0 0.0
  %3457 = vmatpush1.msra.mxu0 0.0
  %3458 = vmatprep.subr.mxu0 0.0
  %3459 = vmatpush1.msra.mxu0 0.0
  %3460 = vmatprep.subr.mxu0 0.0
  %3461 = vmatpush1.msra.mxu0 0.0
  %3462 = vmatprep.mubr.f32.mxu0 0.0
  %3463 = vmatmul.mubr.f32.gmra.mrb[0].mxu0 %v3233
  %v3464 = vpop.f32.mrb[0].mxu0
  %v3465 = vadd.f32 %v3396, %v3464
  %v3466 = vpop.f32.mrb[0].mxu0
  %3467 = vmatprep.mubr.f32.mxu0 0.0
  %3468 = vmatmul.mubr.f32.gmra.mrb[0].mxu0 %v3233
  %v3469 = vpop.f32.mrb[0].mxu0
  %v3470 = vadd.f32 %v3396, %v3469
  %v3471 = vpop.f32.mrb[0].mxu0
  %3472 = vdwg.mxu0
  %v3475 = vrot.slane %v3302, 1
  %v3476 = vrot.slane %v3302, 2
  %v3477 = vrot.slane %v3302, 3
  %v3478 = vrot.slane %v3302, 4
  %v3479 = vrot.slane %v3302, 5
  %v3480 = vrot.slane %v3302, 6
  %v3481 = vrot.slane %v3302, 7
  %v3482 = vrot.slane %v3307, 1
  %v3483 = vrot.slane %v3307, 2
  %v3484 = vrot.slane %v3307, 3
  %v3497 = vadd.f32 %v3166, %v3302
  %v3498 = vadd.f32 %v3171, %v3475
  %v3499 = vadd.f32 %v3176, %v3476
  %v3500 = vadd.f32 %v3181, %v3477
  %v3501 = vadd.f32 %v3186, %v3478
  %v3502 = vadd.f32 %v3191, %v3479
  %v3503 = vadd.f32 %v3196, %v3480
  %v3504 = vadd.f32 %v3201, %v3481
  %v3505 = vadd.f32 %v3206, %v3307
  %v3506 = vadd.f32 %v3211, %v3482
  %v3507 = vadd.f32 %v3216, %v3483
  %v3508 = vadd.f32 %v3221, %v3484
  %v3509 = vxor.u32 %v3497, 2147483648
  %v3510 = vxor.u32 %v3498, 2147483648
  %v3511 = vxor.u32 %v3499, 2147483648
  %v3512 = vxor.u32 %v3500, 2147483648
  %v3513 = vxor.u32 %v3501, 2147483648
  %v3514 = vxor.u32 %v3502, 2147483648
  %v3515 = vxor.u32 %v3503, 2147483648
  %v3516 = vxor.u32 %v3504, 2147483648
  %v3517 = vxor.u32 %v3505, 2147483648
  %v3518 = vxor.u32 %v3506, 2147483648
  %v3519 = vxor.u32 %v3507, 2147483648
  %v3520 = vxor.u32 %v3508, 2147483648
  %v3521 = vmul.f32 %v3509, 1.442695
  %v3522 = vpow.pop %v3521
  %v3523 = vmul.f32 %v3510, 1.442695
  %v3524 = vpow.pop %v3523
  %v3525 = vmul.f32 %v3511, 1.442695
  %v3526 = vpow.pop %v3525
  %v3527 = vmul.f32 %v3512, 1.442695
  %v3528 = vpow.pop %v3527
  %v3529 = vmul.f32 %v3513, 1.442695
  %v3530 = vpow.pop %v3529
  %v3531 = vmul.f32 %v3514, 1.442695
  %v3532 = vpow.pop %v3531
  %v3533 = vmul.f32 %v3515, 1.442695
  %v3534 = vpow.pop %v3533
  %v3535 = vmul.f32 %v3516, 1.442695
  %v3536 = vpow.pop %v3535
  %v3537 = vmul.f32 %v3517, 1.442695
  %v3538 = vpow.pop %v3537
  %v3539 = vmul.f32 %v3518, 1.442695
  %v3540 = vpow.pop %v3539
  %v3541 = vmul.f32 %v3519, 1.442695
  %v3542 = vpow.pop %v3541
  %v3543 = vmul.f32 %v3520, 1.442695
  %v3544 = vpow.pop %v3543
  %v3545 = vadd.f32 %v3522, 1.0
  %v3546 = vadd.f32 %v3524, 1.0
  %v3547 = vadd.f32 %v3526, 1.0
  %v3548 = vadd.f32 %v3528, 1.0
  %v3549 = vadd.f32 %v3530, 1.0
  %v3550 = vadd.f32 %v3532, 1.0
  %v3551 = vadd.f32 %v3534, 1.0
  %v3552 = vadd.f32 %v3536, 1.0
  %v3553 = vadd.f32 %v3538, 1.0
  %v3554 = vadd.f32 %v3540, 1.0
  %v3555 = vadd.f32 %v3542, 1.0
  %v3556 = vadd.f32 %v3544, 1.0
  %v3557 = vrcp.pop %v3545
  %v3558 = vmul.f32 1.0, %v3557
  %v3559 = vrcp.pop %v3546
  %v3560 = vmul.f32 1.0, %v3559
  %v3561 = vrcp.pop %v3547
  %v3562 = vmul.f32 1.0, %v3561
  %v3563 = vrcp.pop %v3548
  %v3564 = vmul.f32 1.0, %v3563
  %v3565 = vrcp.pop %v3549
  %v3566 = vmul.f32 1.0, %v3565
  %v3567 = vrcp.pop %v3550
  %v3568 = vmul.f32 1.0, %v3567
  %v3569 = vrcp.pop %v3551
  %v3570 = vmul.f32 1.0, %v3569
  %v3571 = vrcp.pop %v3552
  %v3572 = vmul.f32 1.0, %v3571
  %v3573 = vrcp.pop %v3553
  %v3574 = vmul.f32 1.0, %v3573
  %v3575 = vrcp.pop %v3554
  %v3576 = vmul.f32 1.0, %v3575
  %v3577 = vrcp.pop %v3555
  %v3578 = vmul.f32 1.0, %v3577
  %v3579 = vrcp.pop %v3556
  %v3580 = vmul.f32 1.0, %v3579
  %v3583 = vrot.slane %v3384, 1
  %v3584 = vrot.slane %v3384, 2
  %v3585 = vrot.slane %v3384, 3
  %v3586 = vrot.slane %v3384, 4
  %v3587 = vrot.slane %v3384, 5
  %v3588 = vrot.slane %v3384, 6
  %v3589 = vrot.slane %v3384, 7
  %v3590 = vrot.slane %v3389, 1
  %v3591 = vrot.slane %v3389, 2
  %v3592 = vrot.slane %v3389, 3
  %3593 = vrot.lane.b32.xlu0 %v3384, 8
  %v3594 = vpop.permute.xlu0 %3593
  %3595 = vrot.lane.b32.xlu0 %v3583, 8
  %v3596 = vpop.permute.xlu0 %3595
  %3597 = vrot.lane.b32.xlu0 %v3584, 8
  %v3598 = vpop.permute.xlu0 %3597
  %3599 = vrot.lane.b32.xlu0 %v3585, 8
  %v3600 = vpop.permute.xlu0 %3599
  %3601 = vrot.lane.b32.xlu0 %v3586, 8
  %v3602 = vpop.permute.xlu0 %3601
  %3603 = vrot.lane.b32.xlu0 %v3587, 8
  %v3604 = vpop.permute.xlu0 %3603
  %3605 = vrot.lane.b32.xlu0 %v3588, 8
  %v3606 = vpop.permute.xlu0 %3605
  %3607 = vrot.lane.b32.xlu0 %v3589, 8
  %v3608 = vpop.permute.xlu0 %3607
  %3609 = vrot.lane.b32.xlu0 %v3389, 8
  %v3610 = vpop.permute.xlu0 %3609
  %3611 = vrot.lane.b32.xlu0 %v3590, 8
  %v3612 = vpop.permute.xlu0 %3611
  %3613 = vrot.lane.b32.xlu0 %v3591, 8
  %v3614 = vpop.permute.xlu0 %3613
  %3615 = vrot.lane.b32.xlu0 %v3592, 8
  %v3616 = vpop.permute.xlu0 %3615
  %v3629 = vadd.f32 %v3166, %v3594
  %v3630 = vadd.f32 %v3171, %v3596
  %v3631 = vadd.f32 %v3176, %v3598
  %v3632 = vadd.f32 %v3181, %v3600
  %v3633 = vadd.f32 %v3186, %v3602
  %v3634 = vadd.f32 %v3191, %v3604
  %v3635 = vadd.f32 %v3196, %v3606
  %v3636 = vadd.f32 %v3201, %v3608
  %v3637 = vadd.f32 %v3206, %v3610
  %v3638 = vadd.f32 %v3211, %v3612
  %v3639 = vadd.f32 %v3216, %v3614
  %v3640 = vadd.f32 %v3221, %v3616
  %v3641 = vxor.u32 %v3629, 2147483648
  %v3642 = vxor.u32 %v3630, 2147483648
  %v3643 = vxor.u32 %v3631, 2147483648
  %v3644 = vxor.u32 %v3632, 2147483648
  %v3645 = vxor.u32 %v3633, 2147483648
  %v3646 = vxor.u32 %v3634, 2147483648
  %v3647 = vxor.u32 %v3635, 2147483648
  %v3648 = vxor.u32 %v3636, 2147483648
  %v3649 = vxor.u32 %v3637, 2147483648
  %v3650 = vxor.u32 %v3638, 2147483648
  %v3651 = vxor.u32 %v3639, 2147483648
  %v3652 = vxor.u32 %v3640, 2147483648
  %v3653 = vmul.f32 %v3641, 1.442695
  %v3654 = vpow.pop %v3653
  %v3655 = vmul.f32 %v3642, 1.442695
  %v3656 = vpow.pop %v3655
  %v3657 = vmul.f32 %v3643, 1.442695
  %v3658 = vpow.pop %v3657
  %v3659 = vmul.f32 %v3644, 1.442695
  %v3660 = vpow.pop %v3659
  %v3661 = vmul.f32 %v3645, 1.442695
  %v3662 = vpow.pop %v3661
  %v3663 = vmul.f32 %v3646, 1.442695
  %v3664 = vpow.pop %v3663
  %v3665 = vmul.f32 %v3647, 1.442695
  %v3666 = vpow.pop %v3665
  %v3667 = vmul.f32 %v3648, 1.442695
  %v3668 = vpow.pop %v3667
  %v3669 = vmul.f32 %v3649, 1.442695
  %v3670 = vpow.pop %v3669
  %v3671 = vmul.f32 %v3650, 1.442695
  %v3672 = vpow.pop %v3671
  %v3673 = vmul.f32 %v3651, 1.442695
  %v3674 = vpow.pop %v3673
  %v3675 = vmul.f32 %v3652, 1.442695
  %v3676 = vpow.pop %v3675
  %v3677 = vadd.f32 %v3654, 1.0
  %v3678 = vadd.f32 %v3656, 1.0
  %v3679 = vadd.f32 %v3658, 1.0
  %v3680 = vadd.f32 %v3660, 1.0
  %v3681 = vadd.f32 %v3662, 1.0
  %v3682 = vadd.f32 %v3664, 1.0
  %v3683 = vadd.f32 %v3666, 1.0
  %v3684 = vadd.f32 %v3668, 1.0
  %v3685 = vadd.f32 %v3670, 1.0
  %v3686 = vadd.f32 %v3672, 1.0
  %v3687 = vadd.f32 %v3674, 1.0
  %v3688 = vadd.f32 %v3676, 1.0
  %v3689 = vrcp.pop %v3677
  %v3690 = vmul.f32 1.0, %v3689
  %v3691 = vrcp.pop %v3678
  %v3692 = vmul.f32 1.0, %v3691
  %v3693 = vrcp.pop %v3679
  %v3694 = vmul.f32 1.0, %v3693
  %v3695 = vrcp.pop %v3680
  %v3696 = vmul.f32 1.0, %v3695
  %v3697 = vrcp.pop %v3681
  %v3698 = vmul.f32 1.0, %v3697
  %v3699 = vrcp.pop %v3682
  %v3700 = vmul.f32 1.0, %v3699
  %v3701 = vrcp.pop %v3683
  %v3702 = vmul.f32 1.0, %v3701
  %v3703 = vrcp.pop %v3684
  %v3704 = vmul.f32 1.0, %v3703
  %v3705 = vrcp.pop %v3685
  %v3706 = vmul.f32 1.0, %v3705
  %v3707 = vrcp.pop %v3686
  %v3708 = vmul.f32 1.0, %v3707
  %v3709 = vrcp.pop %v3687
  %v3710 = vmul.f32 1.0, %v3709
  %v3711 = vrcp.pop %v3688
  %v3712 = vmul.f32 1.0, %v3711
  %v3715 = vrot.slane %v3465, 1
  %v3716 = vrot.slane %v3465, 2
  %v3717 = vrot.slane %v3465, 3
  %v3718 = vrot.slane %v3465, 4
  %v3719 = vrot.slane %v3465, 5
  %v3720 = vrot.slane %v3465, 6
  %v3721 = vrot.slane %v3465, 7
  %v3722 = vrot.slane %v3470, 1
  %v3723 = vrot.slane %v3470, 2
  %v3724 = vrot.slane %v3470, 3
  %v3737 = vmul.f32 %v3558, %v3465
  %v3738 = vmul.f32 %v3560, %v3715
  %v3739 = vmul.f32 %v3562, %v3716
  %v3740 = vmul.f32 %v3564, %v3717
  %v3741 = vmul.f32 %v3566, %v3718
  %v3742 = vmul.f32 %v3568, %v3719
  %v3743 = vmul.f32 %v3570, %v3720
  %v3744 = vmul.f32 %v3572, %v3721
  %v3745 = vmul.f32 %v3574, %v3470
  %v3746 = vmul.f32 %v3576, %v3722
  %v3747 = vmul.f32 %v3578, %v3723
  %v3748 = vmul.f32 %v3580, %v3724
  %3761 = vrot.lane.b32.xlu0 %v3737, 16
  %v3762 = vpop.permute.xlu0 %3761
  %3763 = vrot.lane.b32.xlu0 %v3738, 16
  %v3764 = vpop.permute.xlu0 %3763
  %3765 = vrot.lane.b32.xlu0 %v3739, 16
  %v3766 = vpop.permute.xlu0 %3765
  %3767 = vrot.lane.b32.xlu0 %v3740, 16
  %v3768 = vpop.permute.xlu0 %3767
  %3769 = vrot.lane.b32.xlu0 %v3741, 16
  %v3770 = vpop.permute.xlu0 %3769
  %3771 = vrot.lane.b32.xlu0 %v3742, 16
  %v3772 = vpop.permute.xlu0 %3771
  %3773 = vrot.lane.b32.xlu0 %v3743, 16
  %v3774 = vpop.permute.xlu0 %3773
  %3775 = vrot.lane.b32.xlu0 %v3744, 16
  %v3776 = vpop.permute.xlu0 %3775
  %3777 = vrot.lane.b32.xlu0 %v3745, 16
  %v3778 = vpop.permute.xlu0 %3777
  %3779 = vrot.lane.b32.xlu0 %v3746, 16
  %v3780 = vpop.permute.xlu0 %3779
  %3781 = vrot.lane.b32.xlu0 %v3747, 16
  %v3782 = vpop.permute.xlu0 %3781
  %3783 = vrot.lane.b32.xlu0 %v3748, 16
  %v3784 = vpop.permute.xlu0 %3783
  %v3797 = vadd.f32 %v3166, %v3762
  %v3798 = vadd.f32 %v3171, %v3764
  %v3799 = vadd.f32 %v3176, %v3766
  %v3800 = vadd.f32 %v3181, %v3768
  %v3801 = vadd.f32 %v3186, %v3770
  %v3802 = vadd.f32 %v3191, %v3772
  %v3803 = vadd.f32 %v3196, %v3774
  %v3804 = vadd.f32 %v3201, %v3776
  %v3805 = vadd.f32 %v3206, %v3778
  %v3806 = vadd.f32 %v3211, %v3780
  %v3807 = vadd.f32 %v3216, %v3782
  %v3808 = vadd.f32 %v3221, %v3784
  %v3809 = vtanh.pop %v3797
  %v3810 = vtanh.pop %v3798
  %v3811 = vtanh.pop %v3799
  %v3812 = vtanh.pop %v3800
  %v3813 = vtanh.pop %v3801
  %v3814 = vtanh.pop %v3802
  %v3815 = vtanh.pop %v3803
  %v3816 = vtanh.pop %v3804
  %v3817 = vtanh.pop %v3805
  %v3818 = vtanh.pop %v3806
  %v3819 = vtanh.pop %v3807
  %v3820 = vtanh.pop %v3808
  %v3821 = vsub.f32 1.0, %v3690
  %v3822 = vsub.f32 1.0, %v3692
  %v3823 = vsub.f32 1.0, %v3694
  %v3824 = vsub.f32 1.0, %v3696
  %v3825 = vsub.f32 1.0, %v3698
  %v3826 = vsub.f32 1.0, %v3700
  %v3827 = vsub.f32 1.0, %v3702
  %v3828 = vsub.f32 1.0, %v3704
  %v3829 = vsub.f32 1.0, %v3706
  %v3830 = vsub.f32 1.0, %v3708
  %v3831 = vsub.f32 1.0, %v3710
  %v3832 = vsub.f32 1.0, %v3712
  %3845 = vrot.lane.b32.xlu0 %v3809, 120
  %v3846 = vpop.permute.xlu0 %3845
  %3847 = vrot.lane.b32.xlu0 %v3810, 120
  %v3848 = vpop.permute.xlu0 %3847
  %3849 = vrot.lane.b32.xlu0 %v3811, 120
  %v3850 = vpop.permute.xlu0 %3849
  %3851 = vrot.lane.b32.xlu0 %v3812, 120
  %v3852 = vpop.permute.xlu0 %3851
  %3853 = vrot.lane.b32.xlu0 %v3813, 120
  %v3854 = vpop.permute.xlu0 %3853
  %3855 = vrot.lane.b32.xlu0 %v3814, 120
  %v3856 = vpop.permute.xlu0 %3855
  %3857 = vrot.lane.b32.xlu0 %v3815, 120
  %v3858 = vpop.permute.xlu0 %3857
  %3859 = vrot.lane.b32.xlu0 %v3816, 120
  %v3860 = vpop.permute.xlu0 %3859
  %3861 = vrot.lane.b32.xlu0 %v3817, 120
  %v3862 = vpop.permute.xlu0 %3861
  %3863 = vrot.lane.b32.xlu0 %v3818, 120
  %v3864 = vpop.permute.xlu0 %3863
  %3865 = vrot.lane.b32.xlu0 %v3819, 120
  %v3866 = vpop.permute.xlu0 %3865
  %3867 = vrot.lane.b32.xlu0 %v3820, 120
  %v3868 = vpop.permute.xlu0 %3867
  %v3881 = vmul.f32 %v3821, %v3846
  %v3882 = vmul.f32 %v3822, %v3848
  %v3883 = vmul.f32 %v3823, %v3850
  %v3884 = vmul.f32 %v3824, %v3852
  %v3885 = vmul.f32 %v3825, %v3854
  %v3886 = vmul.f32 %v3826, %v3856
  %v3887 = vmul.f32 %v3827, %v3858
  %v3888 = vmul.f32 %v3828, %v3860
  %v3889 = vmul.f32 %v3829, %v3862
  %v3890 = vmul.f32 %v3830, %v3864
  %v3891 = vmul.f32 %v3831, %v3866
  %v3892 = vmul.f32 %v3832, %v3868
  %v3893 = vmul.f32 %v3690, 0.0
  %v3894 = vmul.f32 %v3692, 0.0
  %v3895 = vmul.f32 %v3694, 0.0
  %v3896 = vmul.f32 %v3696, 0.0
  %v3897 = vmul.f32 %v3698, 0.0
  %v3898 = vmul.f32 %v3700, 0.0
  %v3899 = vmul.f32 %v3702, 0.0
  %v3900 = vmul.f32 %v3704, 0.0
  %v3901 = vmul.f32 %v3706, 0.0
  %v3902 = vmul.f32 %v3708, 0.0
  %v3903 = vmul.f32 %v3710, 0.0
  %v3904 = vmul.f32 %v3712, 0.0
  %v3905 = vadd.f32 %v3881, %v3893
  %v3906 = vadd.f32 %v3882, %v3894
  %v3907 = vadd.f32 %v3883, %v3895
  %v3908 = vadd.f32 %v3884, %v3896
  %v3909 = vadd.f32 %v3885, %v3897
  %v3910 = vadd.f32 %v3886, %v3898
  %v3911 = vadd.f32 %v3887, %v3899
  %v3912 = vadd.f32 %v3888, %v3900
  %v3913 = vadd.f32 %v3889, %v3901
  %v3914 = vadd.f32 %v3890, %v3902
  %v3915 = vadd.f32 %v3891, %v3903
  %v3916 = vadd.f32 %v3892, %v3904
  %v3929 = vrot.slane %v3906, 7
  %vm3930 = vcmask 1041409
  %v3931 = vsel %vm3930, %v3929, %v3905
  %v3932 = vrot.slane %v3907, 6
  %vm3933 = vcmask 1042434
  %v3934 = vsel %vm3933, %v3932, %v3931
  %v3935 = vrot.slane %v3908, 5
  %vm3936 = vcmask 1043459
  %v3937 = vsel %vm3936, %v3935, %v3934
  %v3938 = vrot.slane %v3909, 4
  %vm3939 = vcmask 1044484
  %v3940 = vsel %vm3939, %v3938, %v3937
  %v3941 = vrot.slane %v3910, 3
  %vm3942 = vcmask 1045509
  %v3943 = vsel %vm3942, %v3941, %v3940
  %v3944 = vrot.slane %v3911, 2
  %vm3945 = vcmask 1046534
  %v3946 = vsel %vm3945, %v3944, %v3943
  %v3947 = vrot.slane %v3912, 1
  %vm3948 = vcmask 1047559
  %v3949 = vsel %vm3948, %v3947, %v3946
  %v3950 = vrot.slane %v3914, 7
  %v3951 = vsel %vm3930, %v3950, %v3913
  %v3952 = vrot.slane %v3915, 6
  %v3953 = vsel %vm3933, %v3952, %v3951
  %v3954 = vrot.slane %v3916, 5
  %v3955 = vsel %vm3936, %v3954, %v3953
  %3956 = vrot.lane.b32.xlu0 %v3949, 120
  %v3957 = vpop.permute.xlu0 %3956
  %3958 = vrot.lane.b32.xlu0 %v3955, 120
  %v3959 = vpop.permute.xlu0 %3958
  %v3960 = vsel %vm1550, %v3957, 0
  %v3962 = vsel %vm1550, %v3959, 0
  %3964 = vmatprep.subr.mxu0 0.0
  %3965 = vmatpush1.msra.mxu0 %v3224
  %3966 = vmatprep.subr.mxu0 0.0
  %3967 = vmatpush1.msra.mxu0 0.0
  %3968 = vmatprep.subr.mxu0 0.0
  %3969 = vmatpush1.msra.mxu0 0.0
  %3970 = vmatprep.subr.mxu0 0.0
  %3971 = vmatpush1.msra.mxu0 0.0
  %3972 = vmatprep.subr.mxu0 0.0
  %3973 = vmatpush1.msra.mxu0 0.0
  %3974 = vmatprep.subr.mxu0 0.0
  %3975 = vmatpush1.msra.mxu0 0.0
  %3976 = vmatprep.subr.mxu0 0.0
  %3977 = vmatpush1.msra.mxu0 0.0
  %3978 = vmatprep.subr.mxu0 0.0
  %3979 = vmatpush1.msra.mxu0 0.0
  %3980 = vmatprep.subr.mxu0 0.0
  %3981 = vmatpush1.msra.mxu0 0.0
  %3982 = vmatprep.subr.mxu0 0.0
  %3983 = vmatpush1.msra.mxu0 0.0
  %3984 = vmatprep.subr.mxu0 0.0
  %3985 = vmatpush1.msra.mxu0 0.0
  %3986 = vmatprep.subr.mxu0 0.0
  %3987 = vmatpush1.msra.mxu0 0.0
  %3988 = vmatprep.subr.mxu0 0.0
  %3989 = vmatpush1.msra.mxu0 0.0
  %3990 = vmatprep.subr.mxu0 0.0
  %3991 = vmatpush1.msra.mxu0 0.0
  %3992 = vmatprep.subr.mxu0 0.0
  %3993 = vmatpush1.msra.mxu0 0.0
  %3994 = vmatprep.subr.mxu0 0.0
  %3995 = vmatpush1.msra.mxu0 0.0
  %3996 = vmatprep.subr.mxu0 0.0
  %3997 = vmatpush1.msra.mxu0 0.0
  %3998 = vmatprep.subr.mxu0 0.0
  %3999 = vmatpush1.msra.mxu0 0.0
  %4000 = vmatprep.subr.mxu0 0.0
  %4001 = vmatpush1.msra.mxu0 0.0
  %4002 = vmatprep.subr.mxu0 0.0
  %4003 = vmatpush1.msra.mxu0 0.0
  %4004 = vmatprep.subr.mxu0 0.0
  %4005 = vmatpush1.msra.mxu0 0.0
  %4006 = vmatprep.subr.mxu0 0.0
  %4007 = vmatpush1.msra.mxu0 0.0
  %4008 = vmatprep.subr.mxu0 0.0
  %4009 = vmatpush1.msra.mxu0 0.0
  %4010 = vmatprep.subr.mxu0 0.0
  %4011 = vmatpush1.msra.mxu0 0.0
  %4012 = vmatprep.subr.mxu0 0.0
  %4013 = vmatpush1.msra.mxu0 0.0
  %4014 = vmatprep.subr.mxu0 0.0
  %4015 = vmatpush1.msra.mxu0 0.0
  %4016 = vmatprep.subr.mxu0 0.0
  %4017 = vmatpush1.msra.mxu0 0.0
  %4018 = vmatprep.subr.mxu0 0.0
  %4019 = vmatpush1.msra.mxu0 0.0
  %4020 = vmatprep.subr.mxu0 0.0
  %4021 = vmatpush1.msra.mxu0 0.0
  %4022 = vmatprep.subr.mxu0 0.0
  %4023 = vmatpush1.msra.mxu0 0.0
  %4024 = vmatprep.subr.mxu0 0.0
  %4025 = vmatpush1.msra.mxu0 0.0
  %4026 = vmatprep.subr.mxu0 0.0
  %4027 = vmatpush1.msra.mxu0 0.0
  %4028 = vmatprep.mubr.f32.mxu0 0.0
  %4029 = vmatmul.mubr.f32.gmra.mrb[0].mxu0 %v3960
  %v4030 = vpop.f32.mrb[0].mxu0
  %v4031 = vadd.f32 %v3230, %v4030
  %v4032 = vpop.f32.mrb[0].mxu0
  %4033 = vmatprep.mubr.f32.mxu0 0.0
  %4034 = vmatmul.mubr.f32.gmra.mrb[0].mxu0 %v3962
  %v4035 = vpop.f32.mrb[0].mxu0
  %v4036 = vadd.f32 %v3230, %v4035
  %v4037 = vpop.f32.mrb[0].mxu0
  %4038 = vdwg.mxu0
  %4039 = vmatprep.subr.mxu0 0.0
  %4040 = vmatpush1.msra.mxu0 %v3312
  %4041 = vmatprep.subr.mxu0 0.0
  %4042 = vmatpush1.msra.mxu0 0.0
  %4043 = vmatprep.subr.mxu0 0.0
  %4044 = vmatpush1.msra.mxu0 0.0
  %4045 = vmatprep.subr.mxu0 0.0
  %4046 = vmatpush1.msra.mxu0 0.0
  %4047 = vmatprep.subr.mxu0 0.0
  %4048 = vmatpush1.msra.mxu0 0.0
  %4049 = vmatprep.subr.mxu0 0.0
  %4050 = vmatpush1.msra.mxu0 0.0
  %4051 = vmatprep.subr.mxu0 0.0
  %4052 = vmatpush1.msra.mxu0 0.0
  %4053 = vmatprep.subr.mxu0 0.0
  %4054 = vmatpush1.msra.mxu0 0.0
  %4055 = vmatprep.subr.mxu0 0.0
  %4056 = vmatpush1.msra.mxu0 0.0
  %4057 = vmatprep.subr.mxu0 0.0
  %4058 = vmatpush1.msra.mxu0 0.0
  %4059 = vmatprep.subr.mxu0 0.0
  %4060 = vmatpush1.msra.mxu0 0.0
  %4061 = vmatprep.subr.mxu0 0.0
  %4062 = vmatpush1.msra.mxu0 0.0
  %4063 = vmatprep.subr.mxu0 0.0
  %4064 = vmatpush1.msra.mxu0 0.0
  %4065 = vmatprep.subr.mxu0 0.0
  %4066 = vmatpush1.msra.mxu0 0.0
  %4067 = vmatprep.subr.mxu0 0.0
  %4068 = vmatpush1.msra.mxu0 0.0
  %4069 = vmatprep.subr.mxu0 0.0
  %4070 = vmatpush1.msra.mxu0 0.0
  %4071 = vmatprep.subr.mxu0 0.0
  %4072 = vmatpush1.msra.mxu0 0.0
  %4073 = vmatprep.subr.mxu0 0.0
  %4074 = vmatpush1.msra.mxu0 0.0
  %4075 = vmatprep.subr.mxu0 0.0
  %4076 = vmatpush1.msra.mxu0 0.0
  %4077 = vmatprep.subr.mxu0 0.0
  %4078 = vmatpush1.msra.mxu0 0.0
  %4079 = vmatprep.subr.mxu0 0.0
  %4080 = vmatpush1.msra.mxu0 0.0
  %4081 = vmatprep.subr.mxu0 0.0
  %4082 = vmatpush1.msra.mxu0 0.0
  %4083 = vmatprep.subr.mxu0 0.0
  %4084 = vmatpush1.msra.mxu0 0.0
  %4085 = vmatprep.subr.mxu0 0.0
  %4086 = vmatpush1.msra.mxu0 0.0
  %4087 = vmatprep.subr.mxu0 0.0
  %4088 = vmatpush1.msra.mxu0 0.0
  %4089 = vmatprep.subr.mxu0 0.0
  %4090 = vmatpush1.msra.mxu0 0.0
  %4091 = vmatprep.subr.mxu0 0.0
  %4092 = vmatpush1.msra.mxu0 0.0
  %4093 = vmatprep.subr.mxu0 0.0
  %4094 = vmatpush1.msra.mxu0 0.0
  %4095 = vmatprep.subr.mxu0 0.0
  %4096 = vmatpush1.msra.mxu0 0.0
  %4097 = vmatprep.subr.mxu0 0.0
  %4098 = vmatpush1.msra.mxu0 0.0
  %4099 = vmatprep.subr.mxu0 0.0
  %4100 = vmatpush1.msra.mxu0 0.0
  %4101 = vmatprep.subr.mxu0 0.0
  %4102 = vmatpush1.msra.mxu0 0.0
  %4103 = vmatprep.mubr.f32.mxu0 0.0
  %4104 = vmatmul.mubr.f32.gmra.mrb[0].mxu0 %v3960
  %v4105 = vpop.f32.mrb[0].mxu0
  %v4106 = vadd.f32 %v3315, %v4105
  %v4107 = vpop.f32.mrb[0].mxu0
  %4108 = vmatprep.mubr.f32.mxu0 0.0
  %4109 = vmatmul.mubr.f32.gmra.mrb[0].mxu0 %v3962
  %v4110 = vpop.f32.mrb[0].mxu0
  %v4111 = vadd.f32 %v3315, %v4110
  %v4112 = vpop.f32.mrb[0].mxu0
  %4113 = vdwg.mxu0
  %4114 = vmatprep.subr.mxu0 0.0
  %4115 = vmatpush1.msra.mxu0 %v3393
  %4116 = vmatprep.subr.mxu0 0.0
  %4117 = vmatpush1.msra.mxu0 0.0
  %4118 = vmatprep.subr.mxu0 0.0
  %4119 = vmatpush1.msra.mxu0 0.0
  %4120 = vmatprep.subr.mxu0 0.0
  %4121 = vmatpush1.msra.mxu0 0.0
  %4122 = vmatprep.subr.mxu0 0.0
  %4123 = vmatpush1.msra.mxu0 0.0
  %4124 = vmatprep.subr.mxu0 0.0
  %4125 = vmatpush1.msra.mxu0 0.0
  %4126 = vmatprep.subr.mxu0 0.0
  %4127 = vmatpush1.msra.mxu0 0.0
  %4128 = vmatprep.subr.mxu0 0.0
  %4129 = vmatpush1.msra.mxu0 0.0
  %4130 = vmatprep.subr.mxu0 0.0
  %4131 = vmatpush1.msra.mxu0 0.0
  %4132 = vmatprep.subr.mxu0 0.0
  %4133 = vmatpush1.msra.mxu0 0.0
  %4134 = vmatprep.subr.mxu0 0.0
  %4135 = vmatpush1.msra.mxu0 0.0
  %4136 = vmatprep.subr.mxu0 0.0
  %4137 = vmatpush1.msra.mxu0 0.0
  %4138 = vmatprep.subr.mxu0 0.0
  %4139 = vmatpush1.msra.mxu0 0.0
  %4140 = vmatprep.subr.mxu0 0.0
  %4141 = vmatpush1.msra.mxu0 0.0
  %4142 = vmatprep.subr.mxu0 0.0
  %4143 = vmatpush1.msra.mxu0 0.0
  %4144 = vmatprep.subr.mxu0 0.0
  %4145 = vmatpush1.msra.mxu0 0.0
  %4146 = vmatprep.subr.mxu0 0.0
  %4147 = vmatpush1.msra.mxu0 0.0
  %4148 = vmatprep.subr.mxu0 0.0
  %4149 = vmatpush1.msra.mxu0 0.0
  %4150 = vmatprep.subr.mxu0 0.0
  %4151 = vmatpush1.msra.mxu0 0.0
  %4152 = vmatprep.subr.mxu0 0.0
  %4153 = vmatpush1.msra.mxu0 0.0
  %4154 = vmatprep.subr.mxu0 0.0
  %4155 = vmatpush1.msra.mxu0 0.0
  %4156 = vmatprep.subr.mxu0 0.0
  %4157 = vmatpush1.msra.mxu0 0.0
  %4158 = vmatprep.subr.mxu0 0.0
  %4159 = vmatpush1.msra.mxu0 0.0
  %4160 = vmatprep.subr.mxu0 0.0
  %4161 = vmatpush1.msra.mxu0 0.0
  %4162 = vmatprep.subr.mxu0 0.0
  %4163 = vmatpush1.msra.mxu0 0.0
  %4164 = vmatprep.subr.mxu0 0.0
  %4165 = vmatpush1.msra.mxu0 0.0
  %4166 = vmatprep.subr.mxu0 0.0
  %4167 = vmatpush1.msra.mxu0 0.0
  %4168 = vmatprep.subr.mxu0 0.0
  %4169 = vmatpush1.msra.mxu0 0.0
  %4170 = vmatprep.subr.mxu0 0.0
  %4171 = vmatpush1.msra.mxu0 0.0
  %4172 = vmatprep.subr.mxu0 0.0
  %4173 = vmatpush1.msra.mxu0 0.0
  %4174 = vmatprep.subr.mxu0 0.0
  %4175 = vmatpush1.msra.mxu0 0.0
  %4176 = vmatprep.subr.mxu0 0.0
  %4177 = vmatpush1.msra.mxu0 0.0
  %4178 = vmatprep.mubr.f32.mxu0 0.0
  %4179 = vmatmul.mubr.f32.gmra.mrb[0].mxu0 %v3960
  %v4180 = vpop.f32.mrb[0].mxu0
  %v4181 = vadd.f32 %v3396, %v4180
  %v4182 = vpop.f32.mrb[0].mxu0
  %4183 = vmatprep.mubr.f32.mxu0 0.0
  %4184 = vmatmul.mubr.f32.gmra.mrb[0].mxu0 %v3962
  %v4185 = vpop.f32.mrb[0].mxu0
  %v4186 = vadd.f32 %v3396, %v4185
  %v4187 = vpop.f32.mrb[0].mxu0
  %4188 = vdwg.mxu0
  %v4191 = vrot.slane %v4031, 7
  %v4192 = vrot.slane %v4031, 1
  %v4193 = vrot.slane %v4031, 2
  %v4194 = vrot.slane %v4031, 3
  %v4195 = vrot.slane %v4031, 4
  %v4196 = vrot.slane %v4031, 5
  %v4197 = vrot.slane %v4031, 6
  %v4198 = vrot.slane %v4036, 7
  %v4199 = vrot.slane %v4036, 1
  %v4200 = vrot.slane %v4036, 2
  %v4213 = vadd.f32 %v3166, %v4191
  %v4214 = vadd.f32 %v3171, %v4031
  %v4215 = vadd.f32 %v3176, %v4192
  %v4216 = vadd.f32 %v3181, %v4193
  %v4217 = vadd.f32 %v3186, %v4194
  %v4218 = vadd.f32 %v3191, %v4195
  %v4219 = vadd.f32 %v3196, %v4196
  %v4220 = vadd.f32 %v3201, %v4197
  %v4221 = vadd.f32 %v3206, %v4198
  %v4222 = vadd.f32 %v3211, %v4036
  %v4223 = vadd.f32 %v3216, %v4199
  %v4224 = vadd.f32 %v3221, %v4200
  %v4225 = vxor.u32 %v4213, 2147483648
  %v4226 = vxor.u32 %v4214, 2147483648
  %v4227 = vxor.u32 %v4215, 2147483648
  %v4228 = vxor.u32 %v4216, 2147483648
  %v4229 = vxor.u32 %v4217, 2147483648
  %v4230 = vxor.u32 %v4218, 2147483648
  %v4231 = vxor.u32 %v4219, 2147483648
  %v4232 = vxor.u32 %v4220, 2147483648
  %v4233 = vxor.u32 %v4221, 2147483648
  %v4234 = vxor.u32 %v4222, 2147483648
  %v4235 = vxor.u32 %v4223, 2147483648
  %v4236 = vxor.u32 %v4224, 2147483648
  %v4237 = vmul.f32 %v4225, 1.442695
  %v4238 = vpow.pop %v4237
  %v4239 = vmul.f32 %v4226, 1.442695
  %v4240 = vpow.pop %v4239
  %v4241 = vmul.f32 %v4227, 1.442695
  %v4242 = vpow.pop %v4241
  %v4243 = vmul.f32 %v4228, 1.442695
  %v4244 = vpow.pop %v4243
  %v4245 = vmul.f32 %v4229, 1.442695
  %v4246 = vpow.pop %v4245
  %v4247 = vmul.f32 %v4230, 1.442695
  %v4248 = vpow.pop %v4247
  %v4249 = vmul.f32 %v4231, 1.442695
  %v4250 = vpow.pop %v4249
  %v4251 = vmul.f32 %v4232, 1.442695
  %v4252 = vpow.pop %v4251
  %v4253 = vmul.f32 %v4233, 1.442695
  %v4254 = vpow.pop %v4253
  %v4255 = vmul.f32 %v4234, 1.442695
  %v4256 = vpow.pop %v4255
  %v4257 = vmul.f32 %v4235, 1.442695
  %v4258 = vpow.pop %v4257
  %v4259 = vmul.f32 %v4236, 1.442695
  %v4260 = vpow.pop %v4259
  %v4261 = vadd.f32 %v4238, 1.0
  %v4262 = vadd.f32 %v4240, 1.0
  %v4263 = vadd.f32 %v4242, 1.0
  %v4264 = vadd.f32 %v4244, 1.0
  %v4265 = vadd.f32 %v4246, 1.0
  %v4266 = vadd.f32 %v4248, 1.0
  %v4267 = vadd.f32 %v4250, 1.0
  %v4268 = vadd.f32 %v4252, 1.0
  %v4269 = vadd.f32 %v4254, 1.0
  %v4270 = vadd.f32 %v4256, 1.0
  %v4271 = vadd.f32 %v4258, 1.0
  %v4272 = vadd.f32 %v4260, 1.0
  %v4273 = vrcp.pop %v4261
  %v4274 = vmul.f32 1.0, %v4273
  %v4275 = vrcp.pop %v4262
  %v4276 = vmul.f32 1.0, %v4275
  %v4277 = vrcp.pop %v4263
  %v4278 = vmul.f32 1.0, %v4277
  %v4279 = vrcp.pop %v4264
  %v4280 = vmul.f32 1.0, %v4279
  %v4281 = vrcp.pop %v4265
  %v4282 = vmul.f32 1.0, %v4281
  %v4283 = vrcp.pop %v4266
  %v4284 = vmul.f32 1.0, %v4283
  %v4285 = vrcp.pop %v4267
  %v4286 = vmul.f32 1.0, %v4285
  %v4287 = vrcp.pop %v4268
  %v4288 = vmul.f32 1.0, %v4287
  %v4289 = vrcp.pop %v4269
  %v4290 = vmul.f32 1.0, %v4289
  %v4291 = vrcp.pop %v4270
  %v4292 = vmul.f32 1.0, %v4291
  %v4293 = vrcp.pop %v4271
  %v4294 = vmul.f32 1.0, %v4293
  %v4295 = vrcp.pop %v4272
  %v4296 = vmul.f32 1.0, %v4295
  %v4299 = vrot.slane %v4106, 7
  %v4300 = vrot.slane %v4106, 1
  %v4301 = vrot.slane %v4106, 2
  %v4302 = vrot.slane %v4106, 3
  %v4303 = vrot.slane %v4106, 4
  %v4304 = vrot.slane %v4106, 5
  %v4305 = vrot.slane %v4106, 6
  %v4306 = vrot.slane %v4111, 7
  %v4307 = vrot.slane %v4111, 1
  %v4308 = vrot.slane %v4111, 2
  %4309 = vrot.lane.b32.xlu0 %v4299, 8
  %v4310 = vpop.permute.xlu0 %4309
  %4311 = vrot.lane.b32.xlu0 %v4106, 8
  %v4312 = vpop.permute.xlu0 %4311
  %4313 = vrot.lane.b32.xlu0 %v4300, 8
  %v4314 = vpop.permute.xlu0 %4313
  %4315 = vrot.lane.b32.xlu0 %v4301, 8
  %v4316 = vpop.permute.xlu0 %4315
  %4317 = vrot.lane.b32.xlu0 %v4302, 8
  %v4318 = vpop.permute.xlu0 %4317
  %4319 = vrot.lane.b32.xlu0 %v4303, 8
  %v4320 = vpop.permute.xlu0 %4319
  %4321 = vrot.lane.b32.xlu0 %v4304, 8
  %v4322 = vpop.permute.xlu0 %4321
  %4323 = vrot.lane.b32.xlu0 %v4305, 8
  %v4324 = vpop.permute.xlu0 %4323
  %4325 = vrot.lane.b32.xlu0 %v4306, 8
  %v4326 = vpop.permute.xlu0 %4325
  %4327 = vrot.lane.b32.xlu0 %v4111, 8
  %v4328 = vpop.permute.xlu0 %4327
  %4329 = vrot.lane.b32.xlu0 %v4307, 8
  %v4330 = vpop.permute.xlu0 %4329
  %4331 = vrot.lane.b32.xlu0 %v4308, 8
  %v4332 = vpop.permute.xlu0 %4331
  %v4345 = vadd.f32 %v3166, %v4310
  %v4346 = vadd.f32 %v3171, %v4312
  %v4347 = vadd.f32 %v3176, %v4314
  %v4348 = vadd.f32 %v3181, %v4316
  %v4349 = vadd.f32 %v3186, %v4318
  %v4350 = vadd.f32 %v3191, %v4320
  %v4351 = vadd.f32 %v3196, %v4322
  %v4352 = vadd.f32 %v3201, %v4324
  %v4353 = vadd.f32 %v3206, %v4326
  %v4354 = vadd.f32 %v3211, %v4328
  %v4355 = vadd.f32 %v3216, %v4330
  %v4356 = vadd.f32 %v3221, %v4332
  %v4357 = vxor.u32 %v4345, 2147483648
  %v4358 = vxor.u32 %v4346, 2147483648
  %v4359 = vxor.u32 %v4347, 2147483648
  %v4360 = vxor.u32 %v4348, 2147483648
  %v4361 = vxor.u32 %v4349, 2147483648
  %v4362 = vxor.u32 %v4350, 2147483648
  %v4363 = vxor.u32 %v4351, 2147483648
  %v4364 = vxor.u32 %v4352, 2147483648
  %v4365 = vxor.u32 %v4353, 2147483648
  %v4366 = vxor.u32 %v4354, 2147483648
  %v4367 = vxor.u32 %v4355, 2147483648
  %v4368 = vxor.u32 %v4356, 2147483648
  %v4369 = vmul.f32 %v4357, 1.442695
  %v4370 = vpow.pop %v4369
  %v4371 = vmul.f32 %v4358, 1.442695
  %v4372 = vpow.pop %v4371
  %v4373 = vmul.f32 %v4359, 1.442695
  %v4374 = vpow.pop %v4373
  %v4375 = vmul.f32 %v4360, 1.442695
  %v4376 = vpow.pop %v4375
  %v4377 = vmul.f32 %v4361, 1.442695
  %v4378 = vpow.pop %v4377
  %v4379 = vmul.f32 %v4362, 1.442695
  %v4380 = vpow.pop %v4379
  %v4381 = vmul.f32 %v4363, 1.442695
  %v4382 = vpow.pop %v4381
  %v4383 = vmul.f32 %v4364, 1.442695
  %v4384 = vpow.pop %v4383
  %v4385 = vmul.f32 %v4365, 1.442695
  %v4386 = vpow.pop %v4385
  %v4387 = vmul.f32 %v4366, 1.442695
  %v4388 = vpow.pop %v4387
  %v4389 = vmul.f32 %v4367, 1.442695
  %v4390 = vpow.pop %v4389
  %v4391 = vmul.f32 %v4368, 1.442695
  %v4392 = vpow.pop %v4391
  %v4393 = vadd.f32 %v4370, 1.0
  %v4394 = vadd.f32 %v4372, 1.0
  %v4395 = vadd.f32 %v4374, 1.0
  %v4396 = vadd.f32 %v4376, 1.0
  %v4397 = vadd.f32 %v4378, 1.0
  %v4398 = vadd.f32 %v4380, 1.0
  %v4399 = vadd.f32 %v4382, 1.0
  %v4400 = vadd.f32 %v4384, 1.0
  %v4401 = vadd.f32 %v4386, 1.0
  %v4402 = vadd.f32 %v4388, 1.0
  %v4403 = vadd.f32 %v4390, 1.0
  %v4404 = vadd.f32 %v4392, 1.0
  %v4405 = vrcp.pop %v4393
  %v4406 = vmul.f32 1.0, %v4405
  %v4407 = vrcp.pop %v4394
  %v4408 = vmul.f32 1.0, %v4407
  %v4409 = vrcp.pop %v4395
  %v4410 = vmul.f32 1.0, %v4409
  %v4411 = vrcp.pop %v4396
  %v4412 = vmul.f32 1.0, %v4411
  %v4413 = vrcp.pop %v4397
  %v4414 = vmul.f32 1.0, %v4413
  %v4415 = vrcp.pop %v4398
  %v4416 = vmul.f32 1.0, %v4415
  %v4417 = vrcp.pop %v4399
  %v4418 = vmul.f32 1.0, %v4417
  %v4419 = vrcp.pop %v4400
  %v4420 = vmul.f32 1.0, %v4419
  %v4421 = vrcp.pop %v4401
  %v4422 = vmul.f32 1.0, %v4421
  %v4423 = vrcp.pop %v4402
  %v4424 = vmul.f32 1.0, %v4423
  %v4425 = vrcp.pop %v4403
  %v4426 = vmul.f32 1.0, %v4425
  %v4427 = vrcp.pop %v4404
  %v4428 = vmul.f32 1.0, %v4427
  %v4431 = vrot.slane %v4181, 7
  %v4432 = vrot.slane %v4181, 1
  %v4433 = vrot.slane %v4181, 2
  %v4434 = vrot.slane %v4181, 3
  %v4435 = vrot.slane %v4181, 4
  %v4436 = vrot.slane %v4181, 5
  %v4437 = vrot.slane %v4181, 6
  %v4438 = vrot.slane %v4186, 7
  %v4439 = vrot.slane %v4186, 1
  %v4440 = vrot.slane %v4186, 2
  %v4453 = vmul.f32 %v4274, %v4431
  %v4454 = vmul.f32 %v4276, %v4181
  %v4455 = vmul.f32 %v4278, %v4432
  %v4456 = vmul.f32 %v4280, %v4433
  %v4457 = vmul.f32 %v4282, %v4434
  %v4458 = vmul.f32 %v4284, %v4435
  %v4459 = vmul.f32 %v4286, %v4436
  %v4460 = vmul.f32 %v4288, %v4437
  %v4461 = vmul.f32 %v4290, %v4438
  %v4462 = vmul.f32 %v4292, %v4186
  %v4463 = vmul.f32 %v4294, %v4439
  %v4464 = vmul.f32 %v4296, %v4440
  %4477 = vrot.lane.b32.xlu0 %v4453, 16
  %v4478 = vpop.permute.xlu0 %4477
  %4479 = vrot.lane.b32.xlu0 %v4454, 16
  %v4480 = vpop.permute.xlu0 %4479
  %4481 = vrot.lane.b32.xlu0 %v4455, 16
  %v4482 = vpop.permute.xlu0 %4481
  %4483 = vrot.lane.b32.xlu0 %v4456, 16
  %v4484 = vpop.permute.xlu0 %4483
  %4485 = vrot.lane.b32.xlu0 %v4457, 16
  %v4486 = vpop.permute.xlu0 %4485
  %4487 = vrot.lane.b32.xlu0 %v4458, 16
  %v4488 = vpop.permute.xlu0 %4487
  %4489 = vrot.lane.b32.xlu0 %v4459, 16
  %v4490 = vpop.permute.xlu0 %4489
  %4491 = vrot.lane.b32.xlu0 %v4460, 16
  %v4492 = vpop.permute.xlu0 %4491
  %4493 = vrot.lane.b32.xlu0 %v4461, 16
  %v4494 = vpop.permute.xlu0 %4493
  %4495 = vrot.lane.b32.xlu0 %v4462, 16
  %v4496 = vpop.permute.xlu0 %4495
  %4497 = vrot.lane.b32.xlu0 %v4463, 16
  %v4498 = vpop.permute.xlu0 %4497
  %4499 = vrot.lane.b32.xlu0 %v4464, 16
  %v4500 = vpop.permute.xlu0 %4499
  %v4513 = vadd.f32 %v3166, %v4478
  %v4514 = vadd.f32 %v3171, %v4480
  %v4515 = vadd.f32 %v3176, %v4482
  %v4516 = vadd.f32 %v3181, %v4484
  %v4517 = vadd.f32 %v3186, %v4486
  %v4518 = vadd.f32 %v3191, %v4488
  %v4519 = vadd.f32 %v3196, %v4490
  %v4520 = vadd.f32 %v3201, %v4492
  %v4521 = vadd.f32 %v3206, %v4494
  %v4522 = vadd.f32 %v3211, %v4496
  %v4523 = vadd.f32 %v3216, %v4498
  %v4524 = vadd.f32 %v3221, %v4500
  %v4525 = vtanh.pop %v4513
  %v4526 = vtanh.pop %v4514
  %v4527 = vtanh.pop %v4515
  %v4528 = vtanh.pop %v4516
  %v4529 = vtanh.pop %v4517
  %v4530 = vtanh.pop %v4518
  %v4531 = vtanh.pop %v4519
  %v4532 = vtanh.pop %v4520
  %v4533 = vtanh.pop %v4521
  %v4534 = vtanh.pop %v4522
  %v4535 = vtanh.pop %v4523
  %v4536 = vtanh.pop %v4524
  %v4537 = vsub.f32 1.0, %v4406
  %v4538 = vsub.f32 1.0, %v4408
  %v4539 = vsub.f32 1.0, %v4410
  %v4540 = vsub.f32 1.0, %v4412
  %v4541 = vsub.f32 1.0, %v4414
  %v4542 = vsub.f32 1.0, %v4416
  %v4543 = vsub.f32 1.0, %v4418
  %v4544 = vsub.f32 1.0, %v4420
  %v4545 = vsub.f32 1.0, %v4422
  %v4546 = vsub.f32 1.0, %v4424
  %v4547 = vsub.f32 1.0, %v4426
  %v4548 = vsub.f32 1.0, %v4428
  %4561 = vrot.lane.b32.xlu0 %v4525, 120
  %v4562 = vpop.permute.xlu0 %4561
  %4563 = vrot.lane.b32.xlu0 %v4526, 120
  %v4564 = vpop.permute.xlu0 %4563
  %4565 = vrot.lane.b32.xlu0 %v4527, 120
  %v4566 = vpop.permute.xlu0 %4565
  %4567 = vrot.lane.b32.xlu0 %v4528, 120
  %v4568 = vpop.permute.xlu0 %4567
  %4569 = vrot.lane.b32.xlu0 %v4529, 120
  %v4570 = vpop.permute.xlu0 %4569
  %4571 = vrot.lane.b32.xlu0 %v4530, 120
  %v4572 = vpop.permute.xlu0 %4571
  %4573 = vrot.lane.b32.xlu0 %v4531, 120
  %v4574 = vpop.permute.xlu0 %4573
  %4575 = vrot.lane.b32.xlu0 %v4532, 120
  %v4576 = vpop.permute.xlu0 %4575
  %4577 = vrot.lane.b32.xlu0 %v4533, 120
  %v4578 = vpop.permute.xlu0 %4577
  %4579 = vrot.lane.b32.xlu0 %v4534, 120
  %v4580 = vpop.permute.xlu0 %4579
  %4581 = vrot.lane.b32.xlu0 %v4535, 120
  %v4582 = vpop.permute.xlu0 %4581
  %4583 = vrot.lane.b32.xlu0 %v4536, 120
  %v4584 = vpop.permute.xlu0 %4583
  %v4597 = vmul.f32 %v4537, %v4562
  %v4598 = vmul.f32 %v4538, %v4564
  %v4599 = vmul.f32 %v4539, %v4566
  %v4600 = vmul.f32 %v4540, %v4568
  %v4601 = vmul.f32 %v4541, %v4570
  %v4602 = vmul.f32 %v4542, %v4572
  %v4603 = vmul.f32 %v4543, %v4574
  %v4604 = vmul.f32 %v4544, %v4576
  %v4605 = vmul.f32 %v4545, %v4578
  %v4606 = vmul.f32 %v4546, %v4580
  %v4607 = vmul.f32 %v4547, %v4582
  %v4608 = vmul.f32 %v4548, %v4584
  %v4609 = vrot.slane %v3905, 7
  %v4610 = vrot.slane %v3907, 7
  %v4611 = vrot.slane %v3908, 7
  %v4612 = vrot.slane %v3909, 7
  %v4613 = vrot.slane %v3910, 7
  %v4614 = vrot.slane %v3911, 7
  %v4615 = vrot.slane %v3912, 7
  %v4616 = vrot.slane %v3913, 7
  %v4617 = vrot.slane %v3915, 7
  %v4618 = vrot.slane %v3916, 7
  %v4631 = vmul.f32 %v4406, %v4609
  %v4632 = vmul.f32 %v4408, %v3929
  %v4633 = vmul.f32 %v4410, %v4610
  %v4634 = vmul.f32 %v4412, %v4611
  %v4635 = vmul.f32 %v4414, %v4612
  %v4636 = vmul.f32 %v4416, %v4613
  %v4637 = vmul.f32 %v4418, %v4614
  %v4638 = vmul.f32 %v4420, %v4615
  %v4639 = vmul.f32 %v4422, %v4616
  %v4640 = vmul.f32 %v4424, %v3950
  %v4641 = vmul.f32 %v4426, %v4617
  %v4642 = vmul.f32 %v4428, %v4618
  %v4643 = vadd.f32 %v4597, %v4631
  %v4644 = vadd.f32 %v4598, %v4632
  %v4645 = vadd.f32 %v4599, %v4633
  %v4646 = vadd.f32 %v4600, %v4634
  %v4647 = vadd.f32 %v4601, %v4635
  %v4648 = vadd.f32 %v4602, %v4636
  %v4649 = vadd.f32 %v4603, %v4637
  %v4650 = vadd.f32 %v4604, %v4638
  %v4651 = vadd.f32 %v4605, %v4639
  %v4652 = vadd.f32 %v4606, %v4640
  %v4653 = vadd.f32 %v4607, %v4641
  %v4654 = vadd.f32 %v4608, %v4642
  %v4667 = vrot.slane %v4643, 1
  %v4668 = vsel %vm3930, %v4644, %v4667
  %v4669 = vrot.slane %v4645, 7
  %v4670 = vsel %vm3933, %v4669, %v4668
  %v4671 = vrot.slane %v4646, 6
  %v4672 = vsel %vm3936, %v4671, %v4670
  %v4673 = vrot.slane %v4647, 5
  %v4674 = vsel %vm3939, %v4673, %v4672
  %v4675 = vrot.slane %v4648, 4
  %v4676 = vsel %vm3942, %v4675, %v4674
  %v4677 = vrot.slane %v4649, 3
  %v4678 = vsel %vm3945, %v4677, %v4676
  %v4679 = vrot.slane %v4650, 2
  %v4680 = vsel %vm3948, %v4679, %v4678
  %v4681 = vrot.slane %v4651, 1
  %v4682 = vsel %vm3930, %v4652, %v4681
  %v4683 = vrot.slane %v4653, 7
  %v4684 = vsel %vm3933, %v4683, %v4682
  %v4685 = vrot.slane %v4654, 6
  %v4686 = vsel %vm3936, %v4685, %v4684
  %4687 = vrot.lane.b32.xlu0 %v4680, 120
  %v4688 = vpop.permute.xlu0 %4687
  %4689 = vrot.lane.b32.xlu0 %v4686, 120
  %v4690 = vpop.permute.xlu0 %4689
  %v4691 = vsel %vm1550, %v4688, 0
  %v4693 = vsel %vm1550, %v4690, 0
  %4695 = vmatprep.subr.mxu0 0.0
  %4696 = vmatpush1.msra.mxu0 %v3224
  %4697 = vmatprep.subr.mxu0 0.0
  %4698 = vmatpush1.msra.mxu0 0.0
  %4699 = vmatprep.subr.mxu0 0.0
  %4700 = vmatpush1.msra.mxu0 0.0
  %4701 = vmatprep.subr.mxu0 0.0
  %4702 = vmatpush1.msra.mxu0 0.0
  %4703 = vmatprep.subr.mxu0 0.0
  %4704 = vmatpush1.msra.mxu0 0.0
  %4705 = vmatprep.subr.mxu0 0.0
  %4706 = vmatpush1.msra.mxu0 0.0
  %4707 = vmatprep.subr.mxu0 0.0
  %4708 = vmatpush1.msra.mxu0 0.0
  %4709 = vmatprep.subr.mxu0 0.0
  %4710 = vmatpush1.msra.mxu0 0.0
  %4711 = vmatprep.subr.mxu0 0.0
  %4712 = vmatpush1.msra.mxu0 0.0
  %4713 = vmatprep.subr.mxu0 0.0
  %4714 = vmatpush1.msra.mxu0 0.0
  %4715 = vmatprep.subr.mxu0 0.0
  %4716 = vmatpush1.msra.mxu0 0.0
  %4717 = vmatprep.subr.mxu0 0.0
  %4718 = vmatpush1.msra.mxu0 0.0
  %4719 = vmatprep.subr.mxu0 0.0
  %4720 = vmatpush1.msra.mxu0 0.0
  %4721 = vmatprep.subr.mxu0 0.0
  %4722 = vmatpush1.msra.mxu0 0.0
  %4723 = vmatprep.subr.mxu0 0.0
  %4724 = vmatpush1.msra.mxu0 0.0
  %4725 = vmatprep.subr.mxu0 0.0
  %4726 = vmatpush1.msra.mxu0 0.0
  %4727 = vmatprep.subr.mxu0 0.0
  %4728 = vmatpush1.msra.mxu0 0.0
  %4729 = vmatprep.subr.mxu0 0.0
  %4730 = vmatpush1.msra.mxu0 0.0
  %4731 = vmatprep.subr.mxu0 0.0
  %4732 = vmatpush1.msra.mxu0 0.0
  %4733 = vmatprep.subr.mxu0 0.0
  %4734 = vmatpush1.msra.mxu0 0.0
  %4735 = vmatprep.subr.mxu0 0.0
  %4736 = vmatpush1.msra.mxu0 0.0
  %4737 = vmatprep.subr.mxu0 0.0
  %4738 = vmatpush1.msra.mxu0 0.0
  %4739 = vmatprep.subr.mxu0 0.0
  %4740 = vmatpush1.msra.mxu0 0.0
  %4741 = vmatprep.subr.mxu0 0.0
  %4742 = vmatpush1.msra.mxu0 0.0
  %4743 = vmatprep.subr.mxu0 0.0
  %4744 = vmatpush1.msra.mxu0 0.0
  %4745 = vmatprep.subr.mxu0 0.0
  %4746 = vmatpush1.msra.mxu0 0.0
  %4747 = vmatprep.subr.mxu0 0.0
  %4748 = vmatpush1.msra.mxu0 0.0
  %4749 = vmatprep.subr.mxu0 0.0
  %4750 = vmatpush1.msra.mxu0 0.0
  %4751 = vmatprep.subr.mxu0 0.0
  %4752 = vmatpush1.msra.mxu0 0.0
  %4753 = vmatprep.subr.mxu0 0.0
  %4754 = vmatpush1.msra.mxu0 0.0
  %4755 = vmatprep.subr.mxu0 0.0
  %4756 = vmatpush1.msra.mxu0 0.0
  %4757 = vmatprep.subr.mxu0 0.0
  %4758 = vmatpush1.msra.mxu0 0.0
  %4759 = vmatprep.mubr.f32.mxu0 0.0
  %4760 = vmatmul.mubr.f32.gmra.mrb[0].mxu0 %v4691
  %v4761 = vpop.f32.mrb[0].mxu0
  %v4762 = vadd.f32 %v3230, %v4761
  %v4763 = vpop.f32.mrb[0].mxu0
  %4764 = vmatprep.mubr.f32.mxu0 0.0
  %4765 = vmatmul.mubr.f32.gmra.mrb[0].mxu0 %v4693
  %v4766 = vpop.f32.mrb[0].mxu0
  %v4767 = vadd.f32 %v3230, %v4766
  %v4768 = vpop.f32.mrb[0].mxu0
  %4769 = vdwg.mxu0
  %4770 = vmatprep.subr.mxu0 0.0
  %4771 = vmatpush1.msra.mxu0 %v3312
  %4772 = vmatprep.subr.mxu0 0.0
  %4773 = vmatpush1.msra.mxu0 0.0
  %4774 = vmatprep.subr.mxu0 0.0
  %4775 = vmatpush1.msra.mxu0 0.0
  %4776 = vmatprep.subr.mxu0 0.0
  %4777 = vmatpush1.msra.mxu0 0.0
  %4778 = vmatprep.subr.mxu0 0.0
  %4779 = vmatpush1.msra.mxu0 0.0
  %4780 = vmatprep.subr.mxu0 0.0
  %4781 = vmatpush1.msra.mxu0 0.0
  %4782 = vmatprep.subr.mxu0 0.0
  %4783 = vmatpush1.msra.mxu0 0.0
  %4784 = vmatprep.subr.mxu0 0.0
  %4785 = vmatpush1.msra.mxu0 0.0
  %4786 = vmatprep.subr.mxu0 0.0
  %4787 = vmatpush1.msra.mxu0 0.0
  %4788 = vmatprep.subr.mxu0 0.0
  %4789 = vmatpush1.msra.mxu0 0.0
  %4790 = vmatprep.subr.mxu0 0.0
  %4791 = vmatpush1.msra.mxu0 0.0
  %4792 = vmatprep.subr.mxu0 0.0
  %4793 = vmatpush1.msra.mxu0 0.0
  %4794 = vmatprep.subr.mxu0 0.0
  %4795 = vmatpush1.msra.mxu0 0.0
  %4796 = vmatprep.subr.mxu0 0.0
  %4797 = vmatpush1.msra.mxu0 0.0
  %4798 = vmatprep.subr.mxu0 0.0
  %4799 = vmatpush1.msra.mxu0 0.0
  %4800 = vmatprep.subr.mxu0 0.0
  %4801 = vmatpush1.msra.mxu0 0.0
  %4802 = vmatprep.subr.mxu0 0.0
  %4803 = vmatpush1.msra.mxu0 0.0
  %4804 = vmatprep.subr.mxu0 0.0
  %4805 = vmatpush1.msra.mxu0 0.0
  %4806 = vmatprep.subr.mxu0 0.0
  %4807 = vmatpush1.msra.mxu0 0.0
  %4808 = vmatprep.subr.mxu0 0.0
  %4809 = vmatpush1.msra.mxu0 0.0
  %4810 = vmatprep.subr.mxu0 0.0
  %4811 = vmatpush1.msra.mxu0 0.0
  %4812 = vmatprep.subr.mxu0 0.0
  %4813 = vmatpush1.msra.mxu0 0.0
  %4814 = vmatprep.subr.mxu0 0.0
  %4815 = vmatpush1.msra.mxu0 0.0
  %4816 = vmatprep.subr.mxu0 0.0
  %4817 = vmatpush1.msra.mxu0 0.0
  %4818 = vmatprep.subr.mxu0 0.0
  %4819 = vmatpush1.msra.mxu0 0.0
  %4820 = vmatprep.subr.mxu0 0.0
  %4821 = vmatpush1.msra.mxu0 0.0
  %4822 = vmatprep.subr.mxu0 0.0
  %4823 = vmatpush1.msra.mxu0 0.0
  %4824 = vmatprep.subr.mxu0 0.0
  %4825 = vmatpush1.msra.mxu0 0.0
  %4826 = vmatprep.subr.mxu0 0.0
  %4827 = vmatpush1.msra.mxu0 0.0
  %4828 = vmatprep.subr.mxu0 0.0
  %4829 = vmatpush1.msra.mxu0 0.0
  %4830 = vmatprep.subr.mxu0 0.0
  %4831 = vmatpush1.msra.mxu0 0.0
  %4832 = vmatprep.subr.mxu0 0.0
  %4833 = vmatpush1.msra.mxu0 0.0
  %4834 = vmatprep.mubr.f32.mxu0 0.0
  %4835 = vmatmul.mubr.f32.gmra.mrb[0].mxu0 %v4691
  %v4836 = vpop.f32.mrb[0].mxu0
  %v4837 = vadd.f32 %v3315, %v4836
  %v4838 = vpop.f32.mrb[0].mxu0
  %4839 = vmatprep.mubr.f32.mxu0 0.0
  %4840 = vmatmul.mubr.f32.gmra.mrb[0].mxu0 %v4693
  %v4841 = vpop.f32.mrb[0].mxu0
  %v4842 = vadd.f32 %v3315, %v4841
  %v4843 = vpop.f32.mrb[0].mxu0
  %4844 = vdwg.mxu0
  %4845 = vmatprep.subr.mxu0 0.0
  %4846 = vmatpush1.msra.mxu0 %v3393
  %4847 = vmatprep.subr.mxu0 0.0
  %4848 = vmatpush1.msra.mxu0 0.0
  %4849 = vmatprep.subr.mxu0 0.0
  %4850 = vmatpush1.msra.mxu0 0.0
  %4851 = vmatprep.subr.mxu0 0.0
  %4852 = vmatpush1.msra.mxu0 0.0
  %4853 = vmatprep.subr.mxu0 0.0
  %4854 = vmatpush1.msra.mxu0 0.0
  %4855 = vmatprep.subr.mxu0 0.0
  %4856 = vmatpush1.msra.mxu0 0.0
  %4857 = vmatprep.subr.mxu0 0.0
  %4858 = vmatpush1.msra.mxu0 0.0
  %4859 = vmatprep.subr.mxu0 0.0
  %4860 = vmatpush1.msra.mxu0 0.0
  %4861 = vmatprep.subr.mxu0 0.0
  %4862 = vmatpush1.msra.mxu0 0.0
  %4863 = vmatprep.subr.mxu0 0.0
  %4864 = vmatpush1.msra.mxu0 0.0
  %4865 = vmatprep.subr.mxu0 0.0
  %4866 = vmatpush1.msra.mxu0 0.0
  %4867 = vmatprep.subr.mxu0 0.0
  %4868 = vmatpush1.msra.mxu0 0.0
  %4869 = vmatprep.subr.mxu0 0.0
  %4870 = vmatpush1.msra.mxu0 0.0
  %4871 = vmatprep.subr.mxu0 0.0
  %4872 = vmatpush1.msra.mxu0 0.0
  %4873 = vmatprep.subr.mxu0 0.0
  %4874 = vmatpush1.msra.mxu0 0.0
  %4875 = vmatprep.subr.mxu0 0.0
  %4876 = vmatpush1.msra.mxu0 0.0
  %4877 = vmatprep.subr.mxu0 0.0
  %4878 = vmatpush1.msra.mxu0 0.0
  %4879 = vmatprep.subr.mxu0 0.0
  %4880 = vmatpush1.msra.mxu0 0.0
  %4881 = vmatprep.subr.mxu0 0.0
  %4882 = vmatpush1.msra.mxu0 0.0
  %4883 = vmatprep.subr.mxu0 0.0
  %4884 = vmatpush1.msra.mxu0 0.0
  %4885 = vmatprep.subr.mxu0 0.0
  %4886 = vmatpush1.msra.mxu0 0.0
  %4887 = vmatprep.subr.mxu0 0.0
  %4888 = vmatpush1.msra.mxu0 0.0
  %4889 = vmatprep.subr.mxu0 0.0
  %4890 = vmatpush1.msra.mxu0 0.0
  %4891 = vmatprep.subr.mxu0 0.0
  %4892 = vmatpush1.msra.mxu0 0.0
  %4893 = vmatprep.subr.mxu0 0.0
  %4894 = vmatpush1.msra.mxu0 0.0
  %4895 = vmatprep.subr.mxu0 0.0
  %4896 = vmatpush1.msra.mxu0 0.0
  %4897 = vmatprep.subr.mxu0 0.0
  %4898 = vmatpush1.msra.mxu0 0.0
  %4899 = vmatprep.subr.mxu0 0.0
  %4900 = vmatpush1.msra.mxu0 0.0
  %4901 = vmatprep.subr.mxu0 0.0
  %4902 = vmatpush1.msra.mxu0 0.0
  %4903 = vmatprep.subr.mxu0 0.0
  %4904 = vmatpush1.msra.mxu0 0.0
  %4905 = vmatprep.subr.mxu0 0.0
  %4906 = vmatpush1.msra.mxu0 0.0
  %4907 = vmatprep.subr.mxu0 0.0
  %4908 = vmatpush1.msra.mxu0 0.0
  %4909 = vmatprep.mubr.f32.mxu0 0.0
  %4910 = vmatmul.mubr.f32.gmra.mrb[0].mxu0 %v4691
  %v4911 = vpop.f32.mrb[0].mxu0
  %v4912 = vadd.f32 %v3396, %v4911
  %v4913 = vpop.f32.mrb[0].mxu0
  %4914 = vmatprep.mubr.f32.mxu0 0.0
  %4915 = vmatmul.mubr.f32.gmra.mrb[0].mxu0 %v4693
  %v4916 = vpop.f32.mrb[0].mxu0
  %v4917 = vadd.f32 %v3396, %v4916
  %v4918 = vpop.f32.mrb[0].mxu0
  %4919 = vdwg.mxu0
  %v4922 = vrot.slane %v4762, 6
  %v4923 = vrot.slane %v4762, 7
  %v4924 = vrot.slane %v4762, 1
  %v4925 = vrot.slane %v4762, 2
  %v4926 = vrot.slane %v4762, 3
  %v4927 = vrot.slane %v4762, 4
  %v4928 = vrot.slane %v4762, 5
  %v4929 = vrot.slane %v4767, 6
  %v4930 = vrot.slane %v4767, 7
  %v4931 = vrot.slane %v4767, 1
  %v4944 = vadd.f32 %v3166, %v4922
  %v4945 = vadd.f32 %v3171, %v4923
  %v4946 = vadd.f32 %v3176, %v4762
  %v4947 = vadd.f32 %v3181, %v4924
  %v4948 = vadd.f32 %v3186, %v4925
  %v4949 = vadd.f32 %v3191, %v4926
  %v4950 = vadd.f32 %v3196, %v4927
  %v4951 = vadd.f32 %v3201, %v4928
  %v4952 = vadd.f32 %v3206, %v4929
  %v4953 = vadd.f32 %v3211, %v4930
  %v4954 = vadd.f32 %v3216, %v4767
  %v4955 = vadd.f32 %v3221, %v4931
  %v4956 = vxor.u32 %v4944, 2147483648
  %v4957 = vxor.u32 %v4945, 2147483648
  %v4958 = vxor.u32 %v4946, 2147483648
  %v4959 = vxor.u32 %v4947, 2147483648
  %v4960 = vxor.u32 %v4948, 2147483648
  %v4961 = vxor.u32 %v4949, 2147483648
  %v4962 = vxor.u32 %v4950, 2147483648
  %v4963 = vxor.u32 %v4951, 2147483648
  %v4964 = vxor.u32 %v4952, 2147483648
  %v4965 = vxor.u32 %v4953, 2147483648
  %v4966 = vxor.u32 %v4954, 2147483648
  %v4967 = vxor.u32 %v4955, 2147483648
  %v4968 = vmul.f32 %v4956, 1.442695
  %v4969 = vpow.pop %v4968
  %v4970 = vmul.f32 %v4957, 1.442695
  %v4971 = vpow.pop %v4970
  %v4972 = vmul.f32 %v4958, 1.442695
  %v4973 = vpow.pop %v4972
  %v4974 = vmul.f32 %v4959, 1.442695
  %v4975 = vpow.pop %v4974
  %v4976 = vmul.f32 %v4960, 1.442695
  %v4977 = vpow.pop %v4976
  %v4978 = vmul.f32 %v4961, 1.442695
  %v4979 = vpow.pop %v4978
  %v4980 = vmul.f32 %v4962, 1.442695
  %v4981 = vpow.pop %v4980
  %v4982 = vmul.f32 %v4963, 1.442695
  %v4983 = vpow.pop %v4982
  %v4984 = vmul.f32 %v4964, 1.442695
  %v4985 = vpow.pop %v4984
  %v4986 = vmul.f32 %v4965, 1.442695
  %v4987 = vpow.pop %v4986
  %v4988 = vmul.f32 %v4966, 1.442695
  %v4989 = vpow.pop %v4988
  %v4990 = vmul.f32 %v4967, 1.442695
  %v4991 = vpow.pop %v4990
  %v4992 = vadd.f32 %v4969, 1.0
  %v4993 = vadd.f32 %v4971, 1.0
  %v4994 = vadd.f32 %v4973, 1.0
  %v4995 = vadd.f32 %v4975, 1.0
  %v4996 = vadd.f32 %v4977, 1.0
  %v4997 = vadd.f32 %v4979, 1.0
  %v4998 = vadd.f32 %v4981, 1.0
  %v4999 = vadd.f32 %v4983, 1.0
  %v5000 = vadd.f32 %v4985, 1.0
  %v5001 = vadd.f32 %v4987, 1.0
  %v5002 = vadd.f32 %v4989, 1.0
  %v5003 = vadd.f32 %v4991, 1.0
  %v5004 = vrcp.pop %v4992
  %v5005 = vmul.f32 1.0, %v5004
  %v5006 = vrcp.pop %v4993
  %v5007 = vmul.f32 1.0, %v5006
  %v5008 = vrcp.pop %v4994
  %v5009 = vmul.f32 1.0, %v5008
  %v5010 = vrcp.pop %v4995
  %v5011 = vmul.f32 1.0, %v5010
  %v5012 = vrcp.pop %v4996
  %v5013 = vmul.f32 1.0, %v5012
  %v5014 = vrcp.pop %v4997
  %v5015 = vmul.f32 1.0, %v5014
  %v5016 = vrcp.pop %v4998
  %v5017 = vmul.f32 1.0, %v5016
  %v5018 = vrcp.pop %v4999
  %v5019 = vmul.f32 1.0, %v5018
  %v5020 = vrcp.pop %v5000
  %v5021 = vmul.f32 1.0, %v5020
  %v5022 = vrcp.pop %v5001
  %v5023 = vmul.f32 1.0, %v5022
  %v5024 = vrcp.pop %v5002
  %v5025 = vmul.f32 1.0, %v5024
  %v5026 = vrcp.pop %v5003
  %v5027 = vmul.f32 1.0, %v5026
  %v5030 = vrot.slane %v4837, 6
  %v5031 = vrot.slane %v4837, 7
  %v5032 = vrot.slane %v4837, 1
  %v5033 = vrot.slane %v4837, 2
  %v5034 = vrot.slane %v4837, 3
  %v5035 = vrot.slane %v4837, 4
  %v5036 = vrot.slane %v4837, 5
  %v5037 = vrot.slane %v4842, 6
  %v5038 = vrot.slane %v4842, 7
  %v5039 = vrot.slane %v4842, 1
  %5040 = vrot.lane.b32.xlu0 %v5030, 8
  %v5041 = vpop.permute.xlu0 %5040
  %5042 = vrot.lane.b32.xlu0 %v5031, 8
  %v5043 = vpop.permute.xlu0 %5042
  %5044 = vrot.lane.b32.xlu0 %v4837, 8
  %v5045 = vpop.permute.xlu0 %5044
  %5046 = vrot.lane.b32.xlu0 %v5032, 8
  %v5047 = vpop.permute.xlu0 %5046
  %5048 = vrot.lane.b32.xlu0 %v5033, 8
  %v5049 = vpop.permute.xlu0 %5048
  %5050 = vrot.lane.b32.xlu0 %v5034, 8
  %v5051 = vpop.permute.xlu0 %5050
  %5052 = vrot.lane.b32.xlu0 %v5035, 8
  %v5053 = vpop.permute.xlu0 %5052
  %5054 = vrot.lane.b32.xlu0 %v5036, 8
  %v5055 = vpop.permute.xlu0 %5054
  %5056 = vrot.lane.b32.xlu0 %v5037, 8
  %v5057 = vpop.permute.xlu0 %5056
  %5058 = vrot.lane.b32.xlu0 %v5038, 8
  %v5059 = vpop.permute.xlu0 %5058
  %5060 = vrot.lane.b32.xlu0 %v4842, 8
  %v5061 = vpop.permute.xlu0 %5060
  %5062 = vrot.lane.b32.xlu0 %v5039, 8
  %v5063 = vpop.permute.xlu0 %5062
  %v5076 = vadd.f32 %v3166, %v5041
  %v5077 = vadd.f32 %v3171, %v5043
  %v5078 = vadd.f32 %v3176, %v5045
  %v5079 = vadd.f32 %v3181, %v5047
  %v5080 = vadd.f32 %v3186, %v5049
  %v5081 = vadd.f32 %v3191, %v5051
  %v5082 = vadd.f32 %v3196, %v5053
  %v5083 = vadd.f32 %v3201, %v5055
  %v5084 = vadd.f32 %v3206, %v5057
  %v5085 = vadd.f32 %v3211, %v5059
  %v5086 = vadd.f32 %v3216, %v5061
  %v5087 = vadd.f32 %v3221, %v5063
  %v5088 = vxor.u32 %v5076, 2147483648
  %v5089 = vxor.u32 %v5077, 2147483648
  %v5090 = vxor.u32 %v5078, 2147483648
  %v5091 = vxor.u32 %v5079, 2147483648
  %v5092 = vxor.u32 %v5080, 2147483648
  %v5093 = vxor.u32 %v5081, 2147483648
  %v5094 = vxor.u32 %v5082, 2147483648
  %v5095 = vxor.u32 %v5083, 2147483648
  %v5096 = vxor.u32 %v5084, 2147483648
  %v5097 = vxor.u32 %v5085, 2147483648
  %v5098 = vxor.u32 %v5086, 2147483648
  %v5099 = vxor.u32 %v5087, 2147483648
  %v5100 = vmul.f32 %v5088, 1.442695
  %v5101 = vpow.pop %v5100
  %v5102 = vmul.f32 %v5089, 1.442695
  %v5103 = vpow.pop %v5102
  %v5104 = vmul.f32 %v5090, 1.442695
  %v5105 = vpow.pop %v5104
  %v5106 = vmul.f32 %v5091, 1.442695
  %v5107 = vpow.pop %v5106
  %v5108 = vmul.f32 %v5092, 1.442695
  %v5109 = vpow.pop %v5108
  %v5110 = vmul.f32 %v5093, 1.442695
  %v5111 = vpow.pop %v5110
  %v5112 = vmul.f32 %v5094, 1.442695
  %v5113 = vpow.pop %v5112
  %v5114 = vmul.f32 %v5095, 1.442695
  %v5115 = vpow.pop %v5114
  %v5116 = vmul.f32 %v5096, 1.442695
  %v5117 = vpow.pop %v5116
  %v5118 = vmul.f32 %v5097, 1.442695
  %v5119 = vpow.pop %v5118
  %v5120 = vmul.f32 %v5098, 1.442695
  %v5121 = vpow.pop %v5120
  %v5122 = vmul.f32 %v5099, 1.442695
  %v5123 = vpow.pop %v5122
  %v5124 = vadd.f32 %v5101, 1.0
  %v5125 = vadd.f32 %v5103, 1.0
  %v5126 = vadd.f32 %v5105, 1.0
  %v5127 = vadd.f32 %v5107, 1.0
  %v5128 = vadd.f32 %v5109, 1.0
  %v5129 = vadd.f32 %v5111, 1.0
  %v5130 = vadd.f32 %v5113, 1.0
  %v5131 = vadd.f32 %v5115, 1.0
  %v5132 = vadd.f32 %v5117, 1.0
  %v5133 = vadd.f32 %v5119, 1.0
  %v5134 = vadd.f32 %v5121, 1.0
  %v5135 = vadd.f32 %v5123, 1.0
  %v5136 = vrcp.pop %v5124
  %v5137 = vmul.f32 1.0, %v5136
  %v5138 = vrcp.pop %v5125
  %v5139 = vmul.f32 1.0, %v5138
  %v5140 = vrcp.pop %v5126
  %v5141 = vmul.f32 1.0, %v5140
  %v5142 = vrcp.pop %v5127
  %v5143 = vmul.f32 1.0, %v5142
  %v5144 = vrcp.pop %v5128
  %v5145 = vmul.f32 1.0, %v5144
  %v5146 = vrcp.pop %v5129
  %v5147 = vmul.f32 1.0, %v5146
  %v5148 = vrcp.pop %v5130
  %v5149 = vmul.f32 1.0, %v5148
  %v5150 = vrcp.pop %v5131
  %v5151 = vmul.f32 1.0, %v5150
  %v5152 = vrcp.pop %v5132
  %v5153 = vmul.f32 1.0, %v5152
  %v5154 = vrcp.pop %v5133
  %v5155 = vmul.f32 1.0, %v5154
  %v5156 = vrcp.pop %v5134
  %v5157 = vmul.f32 1.0, %v5156
  %v5158 = vrcp.pop %v5135
  %v5159 = vmul.f32 1.0, %v5158
  %v5162 = vrot.slane %v4912, 6
  %v5163 = vrot.slane %v4912, 7
  %v5164 = vrot.slane %v4912, 1
  %v5165 = vrot.slane %v4912, 2
  %v5166 = vrot.slane %v4912, 3
  %v5167 = vrot.slane %v4912, 4
  %v5168 = vrot.slane %v4912, 5
  %v5169 = vrot.slane %v4917, 6
  %v5170 = vrot.slane %v4917, 7
  %v5171 = vrot.slane %v4917, 1
  %v5184 = vmul.f32 %v5005, %v5162
  %v5185 = vmul.f32 %v5007, %v5163
  %v5186 = vmul.f32 %v5009, %v4912
  %v5187 = vmul.f32 %v5011, %v5164
  %v5188 = vmul.f32 %v5013, %v5165
  %v5189 = vmul.f32 %v5015, %v5166
  %v5190 = vmul.f32 %v5017, %v5167
  %v5191 = vmul.f32 %v5019, %v5168
  %v5192 = vmul.f32 %v5021, %v5169
  %v5193 = vmul.f32 %v5023, %v5170
  %v5194 = vmul.f32 %v5025, %v4917
  %v5195 = vmul.f32 %v5027, %v5171
  %5208 = vrot.lane.b32.xlu0 %v5184, 16
  %v5209 = vpop.permute.xlu0 %5208
  %5210 = vrot.lane.b32.xlu0 %v5185, 16
  %v5211 = vpop.permute.xlu0 %5210
  %5212 = vrot.lane.b32.xlu0 %v5186, 16
  %v5213 = vpop.permute.xlu0 %5212
  %5214 = vrot.lane.b32.xlu0 %v5187, 16
  %v5215 = vpop.permute.xlu0 %5214
  %5216 = vrot.lane.b32.xlu0 %v5188, 16
  %v5217 = vpop.permute.xlu0 %5216
  %5218 = vrot.lane.b32.xlu0 %v5189, 16
  %v5219 = vpop.permute.xlu0 %5218
  %5220 = vrot.lane.b32.xlu0 %v5190, 16
  %v5221 = vpop.permute.xlu0 %5220
  %5222 = vrot.lane.b32.xlu0 %v5191, 16
  %v5223 = vpop.permute.xlu0 %5222
  %5224 = vrot.lane.b32.xlu0 %v5192, 16
  %v5225 = vpop.permute.xlu0 %5224
  %5226 = vrot.lane.b32.xlu0 %v5193, 16
  %v5227 = vpop.permute.xlu0 %5226
  %5228 = vrot.lane.b32.xlu0 %v5194, 16
  %v5229 = vpop.permute.xlu0 %5228
  %5230 = vrot.lane.b32.xlu0 %v5195, 16
  %v5231 = vpop.permute.xlu0 %5230
  %v5244 = vadd.f32 %v3166, %v5209
  %v5245 = vadd.f32 %v3171, %v5211
  %v5246 = vadd.f32 %v3176, %v5213
  %v5247 = vadd.f32 %v3181, %v5215
  %v5248 = vadd.f32 %v3186, %v5217
  %v5249 = vadd.f32 %v3191, %v5219
  %v5250 = vadd.f32 %v3196, %v5221
  %v5251 = vadd.f32 %v3201, %v5223
  %v5252 = vadd.f32 %v3206, %v5225
  %v5253 = vadd.f32 %v3211, %v5227
  %v5254 = vadd.f32 %v3216, %v5229
  %v5255 = vadd.f32 %v3221, %v5231
  %v5256 = vtanh.pop %v5244
  %v5257 = vtanh.pop %v5245
  %v5258 = vtanh.pop %v5246
  %v5259 = vtanh.pop %v5247
  %v5260 = vtanh.pop %v5248
  %v5261 = vtanh.pop %v5249
  %v5262 = vtanh.pop %v5250
  %v5263 = vtanh.pop %v5251
  %v5264 = vtanh.pop %v5252
  %v5265 = vtanh.pop %v5253
  %v5266 = vtanh.pop %v5254
  %v5267 = vtanh.pop %v5255
  %v5268 = vsub.f32 1.0, %v5137
  %v5269 = vsub.f32 1.0, %v5139
  %v5270 = vsub.f32 1.0, %v5141
  %v5271 = vsub.f32 1.0, %v5143
  %v5272 = vsub.f32 1.0, %v5145
  %v5273 = vsub.f32 1.0, %v5147
  %v5274 = vsub.f32 1.0, %v5149
  %v5275 = vsub.f32 1.0, %v5151
  %v5276 = vsub.f32 1.0, %v5153
  %v5277 = vsub.f32 1.0, %v5155
  %v5278 = vsub.f32 1.0, %v5157
  %v5279 = vsub.f32 1.0, %v5159
  %5292 = vrot.lane.b32.xlu0 %v5256, 120
  %v5293 = vpop.permute.xlu0 %5292
  %5294 = vrot.lane.b32.xlu0 %v5257, 120
  %v5295 = vpop.permute.xlu0 %5294
  %5296 = vrot.lane.b32.xlu0 %v5258, 120
  %v5297 = vpop.permute.xlu0 %5296
  %5298 = vrot.lane.b32.xlu0 %v5259, 120
  %v5299 = vpop.permute.xlu0 %5298
  %5300 = vrot.lane.b32.xlu0 %v5260, 120
  %v5301 = vpop.permute.xlu0 %5300
  %5302 = vrot.lane.b32.xlu0 %v5261, 120
  %v5303 = vpop.permute.xlu0 %5302
  %5304 = vrot.lane.b32.xlu0 %v5262, 120
  %v5305 = vpop.permute.xlu0 %5304
  %5306 = vrot.lane.b32.xlu0 %v5263, 120
  %v5307 = vpop.permute.xlu0 %5306
  %5308 = vrot.lane.b32.xlu0 %v5264, 120
  %v5309 = vpop.permute.xlu0 %5308
  %5310 = vrot.lane.b32.xlu0 %v5265, 120
  %v5311 = vpop.permute.xlu0 %5310
  %5312 = vrot.lane.b32.xlu0 %v5266, 120
  %v5313 = vpop.permute.xlu0 %5312
  %5314 = vrot.lane.b32.xlu0 %v5267, 120
  %v5315 = vpop.permute.xlu0 %5314
  %v5328 = vmul.f32 %v5268, %v5293
  %v5329 = vmul.f32 %v5269, %v5295
  %v5330 = vmul.f32 %v5270, %v5297
  %v5331 = vmul.f32 %v5271, %v5299
  %v5332 = vmul.f32 %v5272, %v5301
  %v5333 = vmul.f32 %v5273, %v5303
  %v5334 = vmul.f32 %v5274, %v5305
  %v5335 = vmul.f32 %v5275, %v5307
  %v5336 = vmul.f32 %v5276, %v5309
  %v5337 = vmul.f32 %v5277, %v5311
  %v5338 = vmul.f32 %v5278, %v5313
  %v5339 = vmul.f32 %v5279, %v5315
  %v5340 = vrot.slane %v4643, 7
  %v5341 = vrot.slane %v4644, 7
  %v5342 = vrot.slane %v4646, 7
  %v5343 = vrot.slane %v4647, 7
  %v5344 = vrot.slane %v4648, 7
  %v5345 = vrot.slane %v4649, 7
  %v5346 = vrot.slane %v4650, 7
  %v5347 = vrot.slane %v4651, 7
  %v5348 = vrot.slane %v4652, 7
  %v5349 = vrot.slane %v4654, 7
  %v5362 = vmul.f32 %v5137, %v5340
  %v5363 = vmul.f32 %v5139, %v5341
  %v5364 = vmul.f32 %v5141, %v4669
  %v5365 = vmul.f32 %v5143, %v5342
  %v5366 = vmul.f32 %v5145, %v5343
  %v5367 = vmul.f32 %v5147, %v5344
  %v5368 = vmul.f32 %v5149, %v5345
  %v5369 = vmul.f32 %v5151, %v5346
  %v5370 = vmul.f32 %v5153, %v5347
  %v5371 = vmul.f32 %v5155, %v5348
  %v5372 = vmul.f32 %v5157, %v4683
  %v5373 = vmul.f32 %v5159, %v5349
  %v5374 = vadd.f32 %v5328, %v5362
  %v5375 = vadd.f32 %v5329, %v5363
  %v5376 = vadd.f32 %v5330, %v5364
  %v5377 = vadd.f32 %v5331, %v5365
  %v5378 = vadd.f32 %v5332, %v5366
  %v5379 = vadd.f32 %v5333, %v5367
  %v5380 = vadd.f32 %v5334, %v5368
  %v5381 = vadd.f32 %v5335, %v5369
  %v5382 = vadd.f32 %v5336, %v5370
  %v5383 = vadd.f32 %v5337, %v5371
  %v5384 = vadd.f32 %v5338, %v5372
  %v5385 = vadd.f32 %v5339, %v5373
  %v5398 = vrot.slane %v5374, 2
  %v5399 = vrot.slane %v5375, 1
  %v5400 = vsel %vm3930, %v5399, %v5398
  %v5401 = vsel %vm3933, %v5376, %v5400
  %v5402 = vrot.slane %v5377, 7
  %v5403 = vsel %vm3936, %v5402, %v5401
  %v5404 = vrot.slane %v5378, 6
  %v5405 = vsel %vm3939, %v5404, %v5403
  %v5406 = vrot.slane %v5379, 5
  %v5407 = vsel %vm3942, %v5406, %v5405
  %v5408 = vrot.slane %v5380, 4
  %v5409 = vsel %vm3945, %v5408, %v5407
  %v5410 = vrot.slane %v5381, 3
  %v5411 = vsel %vm3948, %v5410, %v5409
  %v5412 = vrot.slane %v5382, 2
  %v5413 = vrot.slane %v5383, 1
  %v5414 = vsel %vm3930, %v5413, %v5412
  %v5415 = vsel %vm3933, %v5384, %v5414
  %v5416 = vrot.slane %v5385, 7
  %v5417 = vsel %vm3936, %v5416, %v5415
  %5418 = vrot.lane.b32.xlu0 %v5411, 120
  %v5419 = vpop.permute.xlu0 %5418
  %5420 = vrot.lane.b32.xlu0 %v5417, 120
  %v5421 = vpop.permute.xlu0 %5420
  %v5422 = vsel %vm1550, %v5419, 0
  %v5424 = vsel %vm1550, %v5421, 0
  %5426 = vmatprep.subr.mxu0 0.0
  %5427 = vmatpush1.msra.mxu0 %v3224
  %5428 = vmatprep.subr.mxu0 0.0
  %5429 = vmatpush1.msra.mxu0 0.0
  %5430 = vmatprep.subr.mxu0 0.0
  %5431 = vmatpush1.msra.mxu0 0.0
  %5432 = vmatprep.subr.mxu0 0.0
  %5433 = vmatpush1.msra.mxu0 0.0
  %5434 = vmatprep.subr.mxu0 0.0
  %5435 = vmatpush1.msra.mxu0 0.0
  %5436 = vmatprep.subr.mxu0 0.0
  %5437 = vmatpush1.msra.mxu0 0.0
  %5438 = vmatprep.subr.mxu0 0.0
  %5439 = vmatpush1.msra.mxu0 0.0
  %5440 = vmatprep.subr.mxu0 0.0
  %5441 = vmatpush1.msra.mxu0 0.0
  %5442 = vmatprep.subr.mxu0 0.0
  %5443 = vmatpush1.msra.mxu0 0.0
  %5444 = vmatprep.subr.mxu0 0.0
  %5445 = vmatpush1.msra.mxu0 0.0
  %5446 = vmatprep.subr.mxu0 0.0
  %5447 = vmatpush1.msra.mxu0 0.0
  %5448 = vmatprep.subr.mxu0 0.0
  %5449 = vmatpush1.msra.mxu0 0.0
  %5450 = vmatprep.subr.mxu0 0.0
  %5451 = vmatpush1.msra.mxu0 0.0
  %5452 = vmatprep.subr.mxu0 0.0
  %5453 = vmatpush1.msra.mxu0 0.0
  %5454 = vmatprep.subr.mxu0 0.0
  %5455 = vmatpush1.msra.mxu0 0.0
  %5456 = vmatprep.subr.mxu0 0.0
  %5457 = vmatpush1.msra.mxu0 0.0
  %5458 = vmatprep.subr.mxu0 0.0
  %5459 = vmatpush1.msra.mxu0 0.0
  %5460 = vmatprep.subr.mxu0 0.0
  %5461 = vmatpush1.msra.mxu0 0.0
  %5462 = vmatprep.subr.mxu0 0.0
  %5463 = vmatpush1.msra.mxu0 0.0
  %5464 = vmatprep.subr.mxu0 0.0
  %5465 = vmatpush1.msra.mxu0 0.0
  %5466 = vmatprep.subr.mxu0 0.0
  %5467 = vmatpush1.msra.mxu0 0.0
  %5468 = vmatprep.subr.mxu0 0.0
  %5469 = vmatpush1.msra.mxu0 0.0
  %5470 = vmatprep.subr.mxu0 0.0
  %5471 = vmatpush1.msra.mxu0 0.0
  %5472 = vmatprep.subr.mxu0 0.0
  %5473 = vmatpush1.msra.mxu0 0.0
  %5474 = vmatprep.subr.mxu0 0.0
  %5475 = vmatpush1.msra.mxu0 0.0
  %5476 = vmatprep.subr.mxu0 0.0
  %5477 = vmatpush1.msra.mxu0 0.0
  %5478 = vmatprep.subr.mxu0 0.0
  %5479 = vmatpush1.msra.mxu0 0.0
  %5480 = vmatprep.subr.mxu0 0.0
  %5481 = vmatpush1.msra.mxu0 0.0
  %5482 = vmatprep.subr.mxu0 0.0
  %5483 = vmatpush1.msra.mxu0 0.0
  %5484 = vmatprep.subr.mxu0 0.0
  %5485 = vmatpush1.msra.mxu0 0.0
  %5486 = vmatprep.subr.mxu0 0.0
  %5487 = vmatpush1.msra.mxu0 0.0
  %5488 = vmatprep.subr.mxu0 0.0
  %5489 = vmatpush1.msra.mxu0 0.0
  %5490 = vmatprep.mubr.f32.mxu0 0.0
  %5491 = vmatmul.mubr.f32.gmra.mrb[0].mxu0 %v5422
  %v5492 = vpop.f32.mrb[0].mxu0
  %v5493 = vadd.f32 %v3230, %v5492
  %v5494 = vpop.f32.mrb[0].mxu0
  %5495 = vmatprep.mubr.f32.mxu0 0.0
  %5496 = vmatmul.mubr.f32.gmra.mrb[0].mxu0 %v5424
  %v5497 = vpop.f32.mrb[0].mxu0
  %v5498 = vadd.f32 %v3230, %v5497
  %v5499 = vpop.f32.mrb[0].mxu0
  %5500 = vdwg.mxu0
  %5501 = vmatprep.subr.mxu0 0.0
  %5502 = vmatpush1.msra.mxu0 %v3312
  %5503 = vmatprep.subr.mxu0 0.0
  %5504 = vmatpush1.msra.mxu0 0.0
  %5505 = vmatprep.subr.mxu0 0.0
  %5506 = vmatpush1.msra.mxu0 0.0
  %5507 = vmatprep.subr.mxu0 0.0
  %5508 = vmatpush1.msra.mxu0 0.0
  %5509 = vmatprep.subr.mxu0 0.0
  %5510 = vmatpush1.msra.mxu0 0.0
  %5511 = vmatprep.subr.mxu0 0.0
  %5512 = vmatpush1.msra.mxu0 0.0
  %5513 = vmatprep.subr.mxu0 0.0
  %5514 = vmatpush1.msra.mxu0 0.0
  %5515 = vmatprep.subr.mxu0 0.0
  %5516 = vmatpush1.msra.mxu0 0.0
  %5517 = vmatprep.subr.mxu0 0.0
  %5518 = vmatpush1.msra.mxu0 0.0
  %5519 = vmatprep.subr.mxu0 0.0
  %5520 = vmatpush1.msra.mxu0 0.0
  %5521 = vmatprep.subr.mxu0 0.0
  %5522 = vmatpush1.msra.mxu0 0.0
  %5523 = vmatprep.subr.mxu0 0.0
  %5524 = vmatpush1.msra.mxu0 0.0
  %5525 = vmatprep.subr.mxu0 0.0
  %5526 = vmatpush1.msra.mxu0 0.0
  %5527 = vmatprep.subr.mxu0 0.0
  %5528 = vmatpush1.msra.mxu0 0.0
  %5529 = vmatprep.subr.mxu0 0.0
  %5530 = vmatpush1.msra.mxu0 0.0
  %5531 = vmatprep.subr.mxu0 0.0
  %5532 = vmatpush1.msra.mxu0 0.0
  %5533 = vmatprep.subr.mxu0 0.0
  %5534 = vmatpush1.msra.mxu0 0.0
  %5535 = vmatprep.subr.mxu0 0.0
  %5536 = vmatpush1.msra.mxu0 0.0
  %5537 = vmatprep.subr.mxu0 0.0
  %5538 = vmatpush1.msra.mxu0 0.0
  %5539 = vmatprep.subr.mxu0 0.0
  %5540 = vmatpush1.msra.mxu0 0.0
  %5541 = vmatprep.subr.mxu0 0.0
  %5542 = vmatpush1.msra.mxu0 0.0
  %5543 = vmatprep.subr.mxu0 0.0
  %5544 = vmatpush1.msra.mxu0 0.0
  %5545 = vmatprep.subr.mxu0 0.0
  %5546 = vmatpush1.msra.mxu0 0.0
  %5547 = vmatprep.subr.mxu0 0.0
  %5548 = vmatpush1.msra.mxu0 0.0
  %5549 = vmatprep.subr.mxu0 0.0
  %5550 = vmatpush1.msra.mxu0 0.0
  %5551 = vmatprep.subr.mxu0 0.0
  %5552 = vmatpush1.msra.mxu0 0.0
  %5553 = vmatprep.subr.mxu0 0.0
  %5554 = vmatpush1.msra.mxu0 0.0
  %5555 = vmatprep.subr.mxu0 0.0
  %5556 = vmatpush1.msra.mxu0 0.0
  %5557 = vmatprep.subr.mxu0 0.0
  %5558 = vmatpush1.msra.mxu0 0.0
  %5559 = vmatprep.subr.mxu0 0.0
  %5560 = vmatpush1.msra.mxu0 0.0
  %5561 = vmatprep.subr.mxu0 0.0
  %5562 = vmatpush1.msra.mxu0 0.0
  %5563 = vmatprep.subr.mxu0 0.0
  %5564 = vmatpush1.msra.mxu0 0.0
  %5565 = vmatprep.mubr.f32.mxu0 0.0
  %5566 = vmatmul.mubr.f32.gmra.mrb[0].mxu0 %v5422
  %v5567 = vpop.f32.mrb[0].mxu0
  %v5568 = vadd.f32 %v3315, %v5567
  %v5569 = vpop.f32.mrb[0].mxu0
  %5570 = vmatprep.mubr.f32.mxu0 0.0
  %5571 = vmatmul.mubr.f32.gmra.mrb[0].mxu0 %v5424
  %v5572 = vpop.f32.mrb[0].mxu0
  %v5573 = vadd.f32 %v3315, %v5572
  %v5574 = vpop.f32.mrb[0].mxu0
  %5575 = vdwg.mxu0
  %5576 = vmatprep.subr.mxu0 0.0
  %5577 = vmatpush1.msra.mxu0 %v3393
  %5578 = vmatprep.subr.mxu0 0.0
  %5579 = vmatpush1.msra.mxu0 0.0
  %5580 = vmatprep.subr.mxu0 0.0
  %5581 = vmatpush1.msra.mxu0 0.0
  %5582 = vmatprep.subr.mxu0 0.0
  %5583 = vmatpush1.msra.mxu0 0.0
  %5584 = vmatprep.subr.mxu0 0.0
  %5585 = vmatpush1.msra.mxu0 0.0
  %5586 = vmatprep.subr.mxu0 0.0
  %5587 = vmatpush1.msra.mxu0 0.0
  %5588 = vmatprep.subr.mxu0 0.0
  %5589 = vmatpush1.msra.mxu0 0.0
  %5590 = vmatprep.subr.mxu0 0.0
  %5591 = vmatpush1.msra.mxu0 0.0
  %5592 = vmatprep.subr.mxu0 0.0
  %5593 = vmatpush1.msra.mxu0 0.0
  %5594 = vmatprep.subr.mxu0 0.0
  %5595 = vmatpush1.msra.mxu0 0.0
  %5596 = vmatprep.subr.mxu0 0.0
  %5597 = vmatpush1.msra.mxu0 0.0
  %5598 = vmatprep.subr.mxu0 0.0
  %5599 = vmatpush1.msra.mxu0 0.0
  %5600 = vmatprep.subr.mxu0 0.0
  %5601 = vmatpush1.msra.mxu0 0.0
  %5602 = vmatprep.subr.mxu0 0.0
  %5603 = vmatpush1.msra.mxu0 0.0
  %5604 = vmatprep.subr.mxu0 0.0
  %5605 = vmatpush1.msra.mxu0 0.0
  %5606 = vmatprep.subr.mxu0 0.0
  %5607 = vmatpush1.msra.mxu0 0.0
  %5608 = vmatprep.subr.mxu0 0.0
  %5609 = vmatpush1.msra.mxu0 0.0
  %5610 = vmatprep.subr.mxu0 0.0
  %5611 = vmatpush1.msra.mxu0 0.0
  %5612 = vmatprep.subr.mxu0 0.0
  %5613 = vmatpush1.msra.mxu0 0.0
  %5614 = vmatprep.subr.mxu0 0.0
  %5615 = vmatpush1.msra.mxu0 0.0
  %5616 = vmatprep.subr.mxu0 0.0
  %5617 = vmatpush1.msra.mxu0 0.0
  %5618 = vmatprep.subr.mxu0 0.0
  %5619 = vmatpush1.msra.mxu0 0.0
  %5620 = vmatprep.subr.mxu0 0.0
  %5621 = vmatpush1.msra.mxu0 0.0
  %5622 = vmatprep.subr.mxu0 0.0
  %5623 = vmatpush1.msra.mxu0 0.0
  %5624 = vmatprep.subr.mxu0 0.0
  %5625 = vmatpush1.msra.mxu0 0.0
  %5626 = vmatprep.subr.mxu0 0.0
  %5627 = vmatpush1.msra.mxu0 0.0
  %5628 = vmatprep.subr.mxu0 0.0
  %5629 = vmatpush1.msra.mxu0 0.0
  %5630 = vmatprep.subr.mxu0 0.0
  %5631 = vmatpush1.msra.mxu0 0.0
  %5632 = vmatprep.subr.mxu0 0.0
  %5633 = vmatpush1.msra.mxu0 0.0
  %5634 = vmatprep.subr.mxu0 0.0
  %5635 = vmatpush1.msra.mxu0 0.0
  %5636 = vmatprep.subr.mxu0 0.0
  %5637 = vmatpush1.msra.mxu0 0.0
  %5638 = vmatprep.subr.mxu0 0.0
  %5639 = vmatpush1.msra.mxu0 0.0
  %5640 = vmatprep.mubr.f32.mxu0 0.0
  %5641 = vmatmul.mubr.f32.gmra.mrb[0].mxu0 %v5422
  %v5642 = vpop.f32.mrb[0].mxu0
  %v5643 = vadd.f32 %v3396, %v5642
  %v5644 = vpop.f32.mrb[0].mxu0
  %5645 = vmatprep.mubr.f32.mxu0 0.0
  %5646 = vmatmul.mubr.f32.gmra.mrb[0].mxu0 %v5424
  %v5647 = vpop.f32.mrb[0].mxu0
  %v5648 = vadd.f32 %v3396, %v5647
  %v5649 = vpop.f32.mrb[0].mxu0
  %5650 = vdwg.mxu0
  %v5653 = vrot.slane %v5493, 5
  %v5654 = vrot.slane %v5493, 6
  %v5655 = vrot.slane %v5493, 7
  %v5656 = vrot.slane %v5493, 1
  %v5657 = vrot.slane %v5493, 2
  %v5658 = vrot.slane %v5493, 3
  %v5659 = vrot.slane %v5493, 4
  %v5660 = vrot.slane %v5498, 5
  %v5661 = vrot.slane %v5498, 6
  %v5662 = vrot.slane %v5498, 7
  %v5675 = vadd.f32 %v3166, %v5653
  %v5676 = vadd.f32 %v3171, %v5654
  %v5677 = vadd.f32 %v3176, %v5655
  %v5678 = vadd.f32 %v3181, %v5493
  %v5679 = vadd.f32 %v3186, %v5656
  %v5680 = vadd.f32 %v3191, %v5657
  %v5681 = vadd.f32 %v3196, %v5658
  %v5682 = vadd.f32 %v3201, %v5659
  %v5683 = vadd.f32 %v3206, %v5660
  %v5684 = vadd.f32 %v3211, %v5661
  %v5685 = vadd.f32 %v3216, %v5662
  %v5686 = vadd.f32 %v3221, %v5498
  %v5687 = vxor.u32 %v5675, 2147483648
  %v5688 = vxor.u32 %v5676, 2147483648
  %v5689 = vxor.u32 %v5677, 2147483648
  %v5690 = vxor.u32 %v5678, 2147483648
  %v5691 = vxor.u32 %v5679, 2147483648
  %v5692 = vxor.u32 %v5680, 2147483648
  %v5693 = vxor.u32 %v5681, 2147483648
  %v5694 = vxor.u32 %v5682, 2147483648
  %v5695 = vxor.u32 %v5683, 2147483648
  %v5696 = vxor.u32 %v5684, 2147483648
  %v5697 = vxor.u32 %v5685, 2147483648
  %v5698 = vxor.u32 %v5686, 2147483648
  %v5699 = vmul.f32 %v5687, 1.442695
  %v5700 = vpow.pop %v5699
  %v5701 = vmul.f32 %v5688, 1.442695
  %v5702 = vpow.pop %v5701
  %v5703 = vmul.f32 %v5689, 1.442695
  %v5704 = vpow.pop %v5703
  %v5705 = vmul.f32 %v5690, 1.442695
  %v5706 = vpow.pop %v5705
  %v5707 = vmul.f32 %v5691, 1.442695
  %v5708 = vpow.pop %v5707
  %v5709 = vmul.f32 %v5692, 1.442695
  %v5710 = vpow.pop %v5709
  %v5711 = vmul.f32 %v5693, 1.442695
  %v5712 = vpow.pop %v5711
  %v5713 = vmul.f32 %v5694, 1.442695
  %v5714 = vpow.pop %v5713
  %v5715 = vmul.f32 %v5695, 1.442695
  %v5716 = vpow.pop %v5715
  %v5717 = vmul.f32 %v5696, 1.442695
  %v5718 = vpow.pop %v5717
  %v5719 = vmul.f32 %v5697, 1.442695
  %v5720 = vpow.pop %v5719
  %v5721 = vmul.f32 %v5698, 1.442695
  %v5722 = vpow.pop %v5721
  %v5723 = vadd.f32 %v5700, 1.0
  %v5724 = vadd.f32 %v5702, 1.0
  %v5725 = vadd.f32 %v5704, 1.0
  %v5726 = vadd.f32 %v5706, 1.0
  %v5727 = vadd.f32 %v5708, 1.0
  %v5728 = vadd.f32 %v5710, 1.0
  %v5729 = vadd.f32 %v5712, 1.0
  %v5730 = vadd.f32 %v5714, 1.0
  %v5731 = vadd.f32 %v5716, 1.0
  %v5732 = vadd.f32 %v5718, 1.0
  %v5733 = vadd.f32 %v5720, 1.0
  %v5734 = vadd.f32 %v5722, 1.0
  %v5735 = vrcp.pop %v5723
  %v5736 = vmul.f32 1.0, %v5735
  %v5737 = vrcp.pop %v5724
  %v5738 = vmul.f32 1.0, %v5737
  %v5739 = vrcp.pop %v5725
  %v5740 = vmul.f32 1.0, %v5739
  %v5741 = vrcp.pop %v5726
  %v5742 = vmul.f32 1.0, %v5741
  %v5743 = vrcp.pop %v5727
  %v5744 = vmul.f32 1.0, %v5743
  %v5745 = vrcp.pop %v5728
  %v5746 = vmul.f32 1.0, %v5745
  %v5747 = vrcp.pop %v5729
  %v5748 = vmul.f32 1.0, %v5747
  %v5749 = vrcp.pop %v5730
  %v5750 = vmul.f32 1.0, %v5749
  %v5751 = vrcp.pop %v5731
  %v5752 = vmul.f32 1.0, %v5751
  %v5753 = vrcp.pop %v5732
  %v5754 = vmul.f32 1.0, %v5753
  %v5755 = vrcp.pop %v5733
  %v5756 = vmul.f32 1.0, %v5755
  %v5757 = vrcp.pop %v5734
  %v5758 = vmul.f32 1.0, %v5757
  %v5761 = vrot.slane %v5568, 5
  %v5762 = vrot.slane %v5568, 6
  %v5763 = vrot.slane %v5568, 7
  %v5764 = vrot.slane %v5568, 1
  %v5765 = vrot.slane %v5568, 2
  %v5766 = vrot.slane %v5568, 3
  %v5767 = vrot.slane %v5568, 4
  %v5768 = vrot.slane %v5573, 5
  %v5769 = vrot.slane %v5573, 6
  %v5770 = vrot.slane %v5573, 7
  %5771 = vrot.lane.b32.xlu0 %v5761, 8
  %v5772 = vpop.permute.xlu0 %5771
  %5773 = vrot.lane.b32.xlu0 %v5762, 8
  %v5774 = vpop.permute.xlu0 %5773
  %5775 = vrot.lane.b32.xlu0 %v5763, 8
  %v5776 = vpop.permute.xlu0 %5775
  %5777 = vrot.lane.b32.xlu0 %v5568, 8
  %v5778 = vpop.permute.xlu0 %5777
  %5779 = vrot.lane.b32.xlu0 %v5764, 8
  %v5780 = vpop.permute.xlu0 %5779
  %5781 = vrot.lane.b32.xlu0 %v5765, 8
  %v5782 = vpop.permute.xlu0 %5781
  %5783 = vrot.lane.b32.xlu0 %v5766, 8
  %v5784 = vpop.permute.xlu0 %5783
  %5785 = vrot.lane.b32.xlu0 %v5767, 8
  %v5786 = vpop.permute.xlu0 %5785
  %5787 = vrot.lane.b32.xlu0 %v5768, 8
  %v5788 = vpop.permute.xlu0 %5787
  %5789 = vrot.lane.b32.xlu0 %v5769, 8
  %v5790 = vpop.permute.xlu0 %5789
  %5791 = vrot.lane.b32.xlu0 %v5770, 8
  %v5792 = vpop.permute.xlu0 %5791
  %5793 = vrot.lane.b32.xlu0 %v5573, 8
  %v5794 = vpop.permute.xlu0 %5793
  %v5807 = vadd.f32 %v3166, %v5772
  %v5808 = vadd.f32 %v3171, %v5774
  %v5809 = vadd.f32 %v3176, %v5776
  %v5810 = vadd.f32 %v3181, %v5778
  %v5811 = vadd.f32 %v3186, %v5780
  %v5812 = vadd.f32 %v3191, %v5782
  %v5813 = vadd.f32 %v3196, %v5784
  %v5814 = vadd.f32 %v3201, %v5786
  %v5815 = vadd.f32 %v3206, %v5788
  %v5816 = vadd.f32 %v3211, %v5790
  %v5817 = vadd.f32 %v3216, %v5792
  %v5818 = vadd.f32 %v3221, %v5794
  %v5819 = vxor.u32 %v5807, 2147483648
  %v5820 = vxor.u32 %v5808, 2147483648
  %v5821 = vxor.u32 %v5809, 2147483648
  %v5822 = vxor.u32 %v5810, 2147483648
  %v5823 = vxor.u32 %v5811, 2147483648
  %v5824 = vxor.u32 %v5812, 2147483648
  %v5825 = vxor.u32 %v5813, 2147483648
  %v5826 = vxor.u32 %v5814, 2147483648
  %v5827 = vxor.u32 %v5815, 2147483648
  %v5828 = vxor.u32 %v5816, 2147483648
  %v5829 = vxor.u32 %v5817, 2147483648
  %v5830 = vxor.u32 %v5818, 2147483648
  %v5831 = vmul.f32 %v5819, 1.442695
  %v5832 = vpow.pop %v5831
  %v5833 = vmul.f32 %v5820, 1.442695
  %v5834 = vpow.pop %v5833
  %v5835 = vmul.f32 %v5821, 1.442695
  %v5836 = vpow.pop %v5835
  %v5837 = vmul.f32 %v5822, 1.442695
  %v5838 = vpow.pop %v5837
  %v5839 = vmul.f32 %v5823, 1.442695
  %v5840 = vpow.pop %v5839
  %v5841 = vmul.f32 %v5824, 1.442695
  %v5842 = vpow.pop %v5841
  %v5843 = vmul.f32 %v5825, 1.442695
  %v5844 = vpow.pop %v5843
  %v5845 = vmul.f32 %v5826, 1.442695
  %v5846 = vpow.pop %v5845
  %v5847 = vmul.f32 %v5827, 1.442695
  %v5848 = vpow.pop %v5847
  %v5849 = vmul.f32 %v5828, 1.442695
  %v5850 = vpow.pop %v5849
  %v5851 = vmul.f32 %v5829, 1.442695
  %v5852 = vpow.pop %v5851
  %v5853 = vmul.f32 %v5830, 1.442695
  %v5854 = vpow.pop %v5853
  %v5855 = vadd.f32 %v5832, 1.0
  %v5856 = vadd.f32 %v5834, 1.0
  %v5857 = vadd.f32 %v5836, 1.0
  %v5858 = vadd.f32 %v5838, 1.0
  %v5859 = vadd.f32 %v5840, 1.0
  %v5860 = vadd.f32 %v5842, 1.0
  %v5861 = vadd.f32 %v5844, 1.0
  %v5862 = vadd.f32 %v5846, 1.0
  %v5863 = vadd.f32 %v5848, 1.0
  %v5864 = vadd.f32 %v5850, 1.0
  %v5865 = vadd.f32 %v5852, 1.0
  %v5866 = vadd.f32 %v5854, 1.0
  %v5867 = vrcp.pop %v5855
  %v5868 = vmul.f32 1.0, %v5867
  %v5869 = vrcp.pop %v5856
  %v5870 = vmul.f32 1.0, %v5869
  %v5871 = vrcp.pop %v5857
  %v5872 = vmul.f32 1.0, %v5871
  %v5873 = vrcp.pop %v5858
  %v5874 = vmul.f32 1.0, %v5873
  %v5875 = vrcp.pop %v5859
  %v5876 = vmul.f32 1.0, %v5875
  %v5877 = vrcp.pop %v5860
  %v5878 = vmul.f32 1.0, %v5877
  %v5879 = vrcp.pop %v5861
  %v5880 = vmul.f32 1.0, %v5879
  %v5881 = vrcp.pop %v5862
  %v5882 = vmul.f32 1.0, %v5881
  %v5883 = vrcp.pop %v5863
  %v5884 = vmul.f32 1.0, %v5883
  %v5885 = vrcp.pop %v5864
  %v5886 = vmul.f32 1.0, %v5885
  %v5887 = vrcp.pop %v5865
  %v5888 = vmul.f32 1.0, %v5887
  %v5889 = vrcp.pop %v5866
  %v5890 = vmul.f32 1.0, %v5889
  %v5893 = vrot.slane %v5643, 5
  %v5894 = vrot.slane %v5643, 6
  %v5895 = vrot.slane %v5643, 7
  %v5896 = vrot.slane %v5643, 1
  %v5897 = vrot.slane %v5643, 2
  %v5898 = vrot.slane %v5643, 3
  %v5899 = vrot.slane %v5643, 4
  %v5900 = vrot.slane %v5648, 5
  %v5901 = vrot.slane %v5648, 6
  %v5902 = vrot.slane %v5648, 7
  %v5915 = vmul.f32 %v5736, %v5893
  %v5916 = vmul.f32 %v5738, %v5894
  %v5917 = vmul.f32 %v5740, %v5895
  %v5918 = vmul.f32 %v5742, %v5643
  %v5919 = vmul.f32 %v5744, %v5896
  %v5920 = vmul.f32 %v5746, %v5897
  %v5921 = vmul.f32 %v5748, %v5898
  %v5922 = vmul.f32 %v5750, %v5899
  %v5923 = vmul.f32 %v5752, %v5900
  %v5924 = vmul.f32 %v5754, %v5901
  %v5925 = vmul.f32 %v5756, %v5902
  %v5926 = vmul.f32 %v5758, %v5648
  %5939 = vrot.lane.b32.xlu0 %v5915, 16
  %v5940 = vpop.permute.xlu0 %5939
  %5941 = vrot.lane.b32.xlu0 %v5916, 16
  %v5942 = vpop.permute.xlu0 %5941
  %5943 = vrot.lane.b32.xlu0 %v5917, 16
  %v5944 = vpop.permute.xlu0 %5943
  %5945 = vrot.lane.b32.xlu0 %v5918, 16
  %v5946 = vpop.permute.xlu0 %5945
  %5947 = vrot.lane.b32.xlu0 %v5919, 16
  %v5948 = vpop.permute.xlu0 %5947
  %5949 = vrot.lane.b32.xlu0 %v5920, 16
  %v5950 = vpop.permute.xlu0 %5949
  %5951 = vrot.lane.b32.xlu0 %v5921, 16
  %v5952 = vpop.permute.xlu0 %5951
  %5953 = vrot.lane.b32.xlu0 %v5922, 16
  %v5954 = vpop.permute.xlu0 %5953
  %5955 = vrot.lane.b32.xlu0 %v5923, 16
  %v5956 = vpop.permute.xlu0 %5955
  %5957 = vrot.lane.b32.xlu0 %v5924, 16
  %v5958 = vpop.permute.xlu0 %5957
  %5959 = vrot.lane.b32.xlu0 %v5925, 16
  %v5960 = vpop.permute.xlu0 %5959
  %5961 = vrot.lane.b32.xlu0 %v5926, 16
  %v5962 = vpop.permute.xlu0 %5961
  %v5975 = vadd.f32 %v3166, %v5940
  %v5976 = vadd.f32 %v3171, %v5942
  %v5977 = vadd.f32 %v3176, %v5944
  %v5978 = vadd.f32 %v3181, %v5946
  %v5979 = vadd.f32 %v3186, %v5948
  %v5980 = vadd.f32 %v3191, %v5950
  %v5981 = vadd.f32 %v3196, %v5952
  %v5982 = vadd.f32 %v3201, %v5954
  %v5983 = vadd.f32 %v3206, %v5956
  %v5984 = vadd.f32 %v3211, %v5958
  %v5985 = vadd.f32 %v3216, %v5960
  %v5986 = vadd.f32 %v3221, %v5962
  %v5987 = vtanh.pop %v5975
  %v5988 = vtanh.pop %v5976
  %v5989 = vtanh.pop %v5977
  %v5990 = vtanh.pop %v5978
  %v5991 = vtanh.pop %v5979
  %v5992 = vtanh.pop %v5980
  %v5993 = vtanh.pop %v5981
  %v5994 = vtanh.pop %v5982
  %v5995 = vtanh.pop %v5983
  %v5996 = vtanh.pop %v5984
  %v5997 = vtanh.pop %v5985
  %v5998 = vtanh.pop %v5986
  %v5999 = vsub.f32 1.0, %v5868
  %v6000 = vsub.f32 1.0, %v5870
  %v6001 = vsub.f32 1.0, %v5872
  %v6002 = vsub.f32 1.0, %v5874
  %v6003 = vsub.f32 1.0, %v5876
  %v6004 = vsub.f32 1.0, %v5878
  %v6005 = vsub.f32 1.0, %v5880
  %v6006 = vsub.f32 1.0, %v5882
  %v6007 = vsub.f32 1.0, %v5884
  %v6008 = vsub.f32 1.0, %v5886
  %v6009 = vsub.f32 1.0, %v5888
  %v6010 = vsub.f32 1.0, %v5890
  %6023 = vrot.lane.b32.xlu0 %v5987, 120
  %v6024 = vpop.permute.xlu0 %6023
  %6025 = vrot.lane.b32.xlu0 %v5988, 120
  %v6026 = vpop.permute.xlu0 %6025
  %6027 = vrot.lane.b32.xlu0 %v5989, 120
  %v6028 = vpop.permute.xlu0 %6027
  %6029 = vrot.lane.b32.xlu0 %v5990, 120
  %v6030 = vpop.permute.xlu0 %6029
  %6031 = vrot.lane.b32.xlu0 %v5991, 120
  %v6032 = vpop.permute.xlu0 %6031
  %6033 = vrot.lane.b32.xlu0 %v5992, 120
  %v6034 = vpop.permute.xlu0 %6033
  %6035 = vrot.lane.b32.xlu0 %v5993, 120
  %v6036 = vpop.permute.xlu0 %6035
  %6037 = vrot.lane.b32.xlu0 %v5994, 120
  %v6038 = vpop.permute.xlu0 %6037
  %6039 = vrot.lane.b32.xlu0 %v5995, 120
  %v6040 = vpop.permute.xlu0 %6039
  %6041 = vrot.lane.b32.xlu0 %v5996, 120
  %v6042 = vpop.permute.xlu0 %6041
  %6043 = vrot.lane.b32.xlu0 %v5997, 120
  %v6044 = vpop.permute.xlu0 %6043
  %6045 = vrot.lane.b32.xlu0 %v5998, 120
  %v6046 = vpop.permute.xlu0 %6045
  %v6059 = vmul.f32 %v5999, %v6024
  %v6060 = vmul.f32 %v6000, %v6026
  %v6061 = vmul.f32 %v6001, %v6028
  %v6062 = vmul.f32 %v6002, %v6030
  %v6063 = vmul.f32 %v6003, %v6032
  %v6064 = vmul.f32 %v6004, %v6034
  %v6065 = vmul.f32 %v6005, %v6036
  %v6066 = vmul.f32 %v6006, %v6038
  %v6067 = vmul.f32 %v6007, %v6040
  %v6068 = vmul.f32 %v6008, %v6042
  %v6069 = vmul.f32 %v6009, %v6044
  %v6070 = vmul.f32 %v6010, %v6046
  %v6071 = vrot.slane %v5374, 7
  %v6072 = vrot.slane %v5375, 7
  %v6073 = vrot.slane %v5376, 7
  %v6074 = vrot.slane %v5378, 7
  %v6075 = vrot.slane %v5379, 7
  %v6076 = vrot.slane %v5380, 7
  %v6077 = vrot.slane %v5381, 7
  %v6078 = vrot.slane %v5382, 7
  %v6079 = vrot.slane %v5383, 7
  %v6080 = vrot.slane %v5384, 7
  %v6093 = vmul.f32 %v5868, %v6071
  %v6094 = vmul.f32 %v5870, %v6072
  %v6095 = vmul.f32 %v5872, %v6073
  %v6096 = vmul.f32 %v5874, %v5402
  %v6097 = vmul.f32 %v5876, %v6074
  %v6098 = vmul.f32 %v5878, %v6075
  %v6099 = vmul.f32 %v5880, %v6076
  %v6100 = vmul.f32 %v5882, %v6077
  %v6101 = vmul.f32 %v5884, %v6078
  %v6102 = vmul.f32 %v5886, %v6079
  %v6103 = vmul.f32 %v5888, %v6080
  %v6104 = vmul.f32 %v5890, %v5416
  %v6105 = vadd.f32 %v6059, %v6093
  %v6106 = vadd.f32 %v6060, %v6094
  %v6107 = vadd.f32 %v6061, %v6095
  %v6108 = vadd.f32 %v6062, %v6096
  %v6109 = vadd.f32 %v6063, %v6097
  %v6110 = vadd.f32 %v6064, %v6098
  %v6111 = vadd.f32 %v6065, %v6099
  %v6112 = vadd.f32 %v6066, %v6100
  %v6113 = vadd.f32 %v6067, %v6101
  %v6114 = vadd.f32 %v6068, %v6102
  %v6115 = vadd.f32 %v6069, %v6103
  %v6116 = vadd.f32 %v6070, %v6104
  %v6129 = vrot.slane %v6105, 3
  %v6130 = vrot.slane %v6106, 2
  %v6131 = vsel %vm3930, %v6130, %v6129
  %v6132 = vrot.slane %v6107, 1
  %v6133 = vsel %vm3933, %v6132, %v6131
  %v6134 = vsel %vm3936, %v6108, %v6133
  %v6135 = vrot.slane %v6109, 7
  %v6136 = vsel %vm3939, %v6135, %v6134
  %v6137 = vrot.slane %v6110, 6
  %v6138 = vsel %vm3942, %v6137, %v6136
  %v6139 = vrot.slane %v6111, 5
  %v6140 = vsel %vm3945, %v6139, %v6138
  %v6141 = vrot.slane %v6112, 4
  %v6142 = vsel %vm3948, %v6141, %v6140
  %v6143 = vrot.slane %v6113, 3
  %v6144 = vrot.slane %v6114, 2
  %v6145 = vsel %vm3930, %v6144, %v6143
  %v6146 = vrot.slane %v6115, 1
  %v6147 = vsel %vm3933, %v6146, %v6145
  %v6148 = vsel %vm3936, %v6116, %v6147
  %6149 = vrot.lane.b32.xlu0 %v6142, 120
  %v6150 = vpop.permute.xlu0 %6149
  %6151 = vrot.lane.b32.xlu0 %v6148, 120
  %v6152 = vpop.permute.xlu0 %6151
  %v6153 = vsel %vm1550, %v6150, 0
  %v6155 = vsel %vm1550, %v6152, 0
  %6157 = vmatprep.subr.mxu0 0.0
  %6158 = vmatpush1.msra.mxu0 %v3224
  %6159 = vmatprep.subr.mxu0 0.0
  %6160 = vmatpush1.msra.mxu0 0.0
  %6161 = vmatprep.subr.mxu0 0.0
  %6162 = vmatpush1.msra.mxu0 0.0
  %6163 = vmatprep.subr.mxu0 0.0
  %6164 = vmatpush1.msra.mxu0 0.0
  %6165 = vmatprep.subr.mxu0 0.0
  %6166 = vmatpush1.msra.mxu0 0.0
  %6167 = vmatprep.subr.mxu0 0.0
  %6168 = vmatpush1.msra.mxu0 0.0
  %6169 = vmatprep.subr.mxu0 0.0
  %6170 = vmatpush1.msra.mxu0 0.0
  %6171 = vmatprep.subr.mxu0 0.0
  %6172 = vmatpush1.msra.mxu0 0.0
  %6173 = vmatprep.subr.mxu0 0.0
  %6174 = vmatpush1.msra.mxu0 0.0
  %6175 = vmatprep.subr.mxu0 0.0
  %6176 = vmatpush1.msra.mxu0 0.0
  %6177 = vmatprep.subr.mxu0 0.0
  %6178 = vmatpush1.msra.mxu0 0.0
  %6179 = vmatprep.subr.mxu0 0.0
  %6180 = vmatpush1.msra.mxu0 0.0
  %6181 = vmatprep.subr.mxu0 0.0
  %6182 = vmatpush1.msra.mxu0 0.0
  %6183 = vmatprep.subr.mxu0 0.0
  %6184 = vmatpush1.msra.mxu0 0.0
  %6185 = vmatprep.subr.mxu0 0.0
  %6186 = vmatpush1.msra.mxu0 0.0
  %6187 = vmatprep.subr.mxu0 0.0
  %6188 = vmatpush1.msra.mxu0 0.0
  %6189 = vmatprep.subr.mxu0 0.0
  %6190 = vmatpush1.msra.mxu0 0.0
  %6191 = vmatprep.subr.mxu0 0.0
  %6192 = vmatpush1.msra.mxu0 0.0
  %6193 = vmatprep.subr.mxu0 0.0
  %6194 = vmatpush1.msra.mxu0 0.0
  %6195 = vmatprep.subr.mxu0 0.0
  %6196 = vmatpush1.msra.mxu0 0.0
  %6197 = vmatprep.subr.mxu0 0.0
  %6198 = vmatpush1.msra.mxu0 0.0
  %6199 = vmatprep.subr.mxu0 0.0
  %6200 = vmatpush1.msra.mxu0 0.0
  %6201 = vmatprep.subr.mxu0 0.0
  %6202 = vmatpush1.msra.mxu0 0.0
  %6203 = vmatprep.subr.mxu0 0.0
  %6204 = vmatpush1.msra.mxu0 0.0
  %6205 = vmatprep.subr.mxu0 0.0
  %6206 = vmatpush1.msra.mxu0 0.0
  %6207 = vmatprep.subr.mxu0 0.0
  %6208 = vmatpush1.msra.mxu0 0.0
  %6209 = vmatprep.subr.mxu0 0.0
  %6210 = vmatpush1.msra.mxu0 0.0
  %6211 = vmatprep.subr.mxu0 0.0
  %6212 = vmatpush1.msra.mxu0 0.0
  %6213 = vmatprep.subr.mxu0 0.0
  %6214 = vmatpush1.msra.mxu0 0.0
  %6215 = vmatprep.subr.mxu0 0.0
  %6216 = vmatpush1.msra.mxu0 0.0
  %6217 = vmatprep.subr.mxu0 0.0
  %6218 = vmatpush1.msra.mxu0 0.0
  %6219 = vmatprep.subr.mxu0 0.0
  %6220 = vmatpush1.msra.mxu0 0.0
  %6221 = vmatprep.mubr.f32.mxu0 0.0
  %6222 = vmatmul.mubr.f32.gmra.mrb[0].mxu0 %v6153
  %v6223 = vpop.f32.mrb[0].mxu0
  %v6224 = vadd.f32 %v3230, %v6223
  %v6225 = vpop.f32.mrb[0].mxu0
  %6226 = vmatprep.mubr.f32.mxu0 0.0
  %6227 = vmatmul.mubr.f32.gmra.mrb[0].mxu0 %v6155
  %v6228 = vpop.f32.mrb[0].mxu0
  %v6229 = vadd.f32 %v3230, %v6228
  %v6230 = vpop.f32.mrb[0].mxu0
  %6231 = vdwg.mxu0
  %6232 = vmatprep.subr.mxu0 0.0
  %6233 = vmatpush1.msra.mxu0 %v3312
  %6234 = vmatprep.subr.mxu0 0.0
  %6235 = vmatpush1.msra.mxu0 0.0
  %6236 = vmatprep.subr.mxu0 0.0
  %6237 = vmatpush1.msra.mxu0 0.0
  %6238 = vmatprep.subr.mxu0 0.0
  %6239 = vmatpush1.msra.mxu0 0.0
  %6240 = vmatprep.subr.mxu0 0.0
  %6241 = vmatpush1.msra.mxu0 0.0
  %6242 = vmatprep.subr.mxu0 0.0
  %6243 = vmatpush1.msra.mxu0 0.0
  %6244 = vmatprep.subr.mxu0 0.0
  %6245 = vmatpush1.msra.mxu0 0.0
  %6246 = vmatprep.subr.mxu0 0.0
  %6247 = vmatpush1.msra.mxu0 0.0
  %6248 = vmatprep.subr.mxu0 0.0
  %6249 = vmatpush1.msra.mxu0 0.0
  %6250 = vmatprep.subr.mxu0 0.0
  %6251 = vmatpush1.msra.mxu0 0.0
  %6252 = vmatprep.subr.mxu0 0.0
  %6253 = vmatpush1.msra.mxu0 0.0
  %6254 = vmatprep.subr.mxu0 0.0
  %6255 = vmatpush1.msra.mxu0 0.0
  %6256 = vmatprep.subr.mxu0 0.0
  %6257 = vmatpush1.msra.mxu0 0.0
  %6258 = vmatprep.subr.mxu0 0.0
  %6259 = vmatpush1.msra.mxu0 0.0
  %6260 = vmatprep.subr.mxu0 0.0
  %6261 = vmatpush1.msra.mxu0 0.0
  %6262 = vmatprep.subr.mxu0 0.0
  %6263 = vmatpush1.msra.mxu0 0.0
  %6264 = vmatprep.subr.mxu0 0.0
  %6265 = vmatpush1.msra.mxu0 0.0
  %6266 = vmatprep.subr.mxu0 0.0
  %6267 = vmatpush1.msra.mxu0 0.0
  %6268 = vmatprep.subr.mxu0 0.0
  %6269 = vmatpush1.msra.mxu0 0.0
  %6270 = vmatprep.subr.mxu0 0.0
  %6271 = vmatpush1.msra.mxu0 0.0
  %6272 = vmatprep.subr.mxu0 0.0
  %6273 = vmatpush1.msra.mxu0 0.0
  %6274 = vmatprep.subr.mxu0 0.0
  %6275 = vmatpush1.msra.mxu0 0.0
  %6276 = vmatprep.subr.mxu0 0.0
  %6277 = vmatpush1.msra.mxu0 0.0
  %6278 = vmatprep.subr.mxu0 0.0
  %6279 = vmatpush1.msra.mxu0 0.0
  %6280 = vmatprep.subr.mxu0 0.0
  %6281 = vmatpush1.msra.mxu0 0.0
  %6282 = vmatprep.subr.mxu0 0.0
  %6283 = vmatpush1.msra.mxu0 0.0
  %6284 = vmatprep.subr.mxu0 0.0
  %6285 = vmatpush1.msra.mxu0 0.0
  %6286 = vmatprep.subr.mxu0 0.0
  %6287 = vmatpush1.msra.mxu0 0.0
  %6288 = vmatprep.subr.mxu0 0.0
  %6289 = vmatpush1.msra.mxu0 0.0
  %6290 = vmatprep.subr.mxu0 0.0
  %6291 = vmatpush1.msra.mxu0 0.0
  %6292 = vmatprep.subr.mxu0 0.0
  %6293 = vmatpush1.msra.mxu0 0.0
  %6294 = vmatprep.subr.mxu0 0.0
  %6295 = vmatpush1.msra.mxu0 0.0
  %6296 = vmatprep.mubr.f32.mxu0 0.0
  %6297 = vmatmul.mubr.f32.gmra.mrb[0].mxu0 %v6153
  %v6298 = vpop.f32.mrb[0].mxu0
  %v6299 = vadd.f32 %v3315, %v6298
  %v6300 = vpop.f32.mrb[0].mxu0
  %6301 = vmatprep.mubr.f32.mxu0 0.0
  %6302 = vmatmul.mubr.f32.gmra.mrb[0].mxu0 %v6155
  %v6303 = vpop.f32.mrb[0].mxu0
  %v6304 = vadd.f32 %v3315, %v6303
  %v6305 = vpop.f32.mrb[0].mxu0
  %6306 = vdwg.mxu0
  %6307 = vmatprep.subr.mxu0 0.0
  %6308 = vmatpush1.msra.mxu0 %v3393
  %6309 = vmatprep.subr.mxu0 0.0
  %6310 = vmatpush1.msra.mxu0 0.0
  %6311 = vmatprep.subr.mxu0 0.0
  %6312 = vmatpush1.msra.mxu0 0.0
  %6313 = vmatprep.subr.mxu0 0.0
  %6314 = vmatpush1.msra.mxu0 0.0
  %6315 = vmatprep.subr.mxu0 0.0
  %6316 = vmatpush1.msra.mxu0 0.0
  %6317 = vmatprep.subr.mxu0 0.0
  %6318 = vmatpush1.msra.mxu0 0.0
  %6319 = vmatprep.subr.mxu0 0.0
  %6320 = vmatpush1.msra.mxu0 0.0
  %6321 = vmatprep.subr.mxu0 0.0
  %6322 = vmatpush1.msra.mxu0 0.0
  %6323 = vmatprep.subr.mxu0 0.0
  %6324 = vmatpush1.msra.mxu0 0.0
  %6325 = vmatprep.subr.mxu0 0.0
  %6326 = vmatpush1.msra.mxu0 0.0
  %6327 = vmatprep.subr.mxu0 0.0
  %6328 = vmatpush1.msra.mxu0 0.0
  %6329 = vmatprep.subr.mxu0 0.0
  %6330 = vmatpush1.msra.mxu0 0.0
  %6331 = vmatprep.subr.mxu0 0.0
  %6332 = vmatpush1.msra.mxu0 0.0
  %6333 = vmatprep.subr.mxu0 0.0
  %6334 = vmatpush1.msra.mxu0 0.0
  %6335 = vmatprep.subr.mxu0 0.0
  %6336 = vmatpush1.msra.mxu0 0.0
  %6337 = vmatprep.subr.mxu0 0.0
  %6338 = vmatpush1.msra.mxu0 0.0
  %6339 = vmatprep.subr.mxu0 0.0
  %6340 = vmatpush1.msra.mxu0 0.0
  %6341 = vmatprep.subr.mxu0 0.0
  %6342 = vmatpush1.msra.mxu0 0.0
  %6343 = vmatprep.subr.mxu0 0.0
  %6344 = vmatpush1.msra.mxu0 0.0
  %6345 = vmatprep.subr.mxu0 0.0
  %6346 = vmatpush1.msra.mxu0 0.0
  %6347 = vmatprep.subr.mxu0 0.0
  %6348 = vmatpush1.msra.mxu0 0.0
  %6349 = vmatprep.subr.mxu0 0.0
  %6350 = vmatpush1.msra.mxu0 0.0
  %6351 = vmatprep.subr.mxu0 0.0
  %6352 = vmatpush1.msra.mxu0 0.0
  %6353 = vmatprep.subr.mxu0 0.0
  %6354 = vmatpush1.msra.mxu0 0.0
  %6355 = vmatprep.subr.mxu0 0.0
  %6356 = vmatpush1.msra.mxu0 0.0
  %6357 = vmatprep.subr.mxu0 0.0
  %6358 = vmatpush1.msra.mxu0 0.0
  %6359 = vmatprep.subr.mxu0 0.0
  %6360 = vmatpush1.msra.mxu0 0.0
  %6361 = vmatprep.subr.mxu0 0.0
  %6362 = vmatpush1.msra.mxu0 0.0
  %6363 = vmatprep.subr.mxu0 0.0
  %6364 = vmatpush1.msra.mxu0 0.0
  %6365 = vmatprep.subr.mxu0 0.0
  %6366 = vmatpush1.msra.mxu0 0.0
  %6367 = vmatprep.subr.mxu0 0.0
  %6368 = vmatpush1.msra.mxu0 0.0
  %6369 = vmatprep.subr.mxu0 0.0
  %6370 = vmatpush1.msra.mxu0 0.0
  %6371 = vmatprep.mubr.f32.mxu0 0.0
  %6372 = vmatmul.mubr.f32.gmra.mrb[0].mxu0 %v6153
  %v6373 = vpop.f32.mrb[0].mxu0
  %v6374 = vadd.f32 %v3396, %v6373
  %v6375 = vpop.f32.mrb[0].mxu0
  %6376 = vmatprep.mubr.f32.mxu0 0.0
  %6377 = vmatmul.mubr.f32.gmra.mrb[0].mxu0 %v6155
  %v6378 = vpop.f32.mrb[0].mxu0
  %v6379 = vadd.f32 %v3396, %v6378
  %v6380 = vpop.f32.mrb[0].mxu0
  %6381 = vdwg.mxu0
  %v6384 = vrot.slane %v6224, 4
  %v6385 = vrot.slane %v6224, 5
  %v6386 = vrot.slane %v6224, 6
  %v6387 = vrot.slane %v6224, 7
  %v6388 = vrot.slane %v6224, 1
  %v6389 = vrot.slane %v6224, 2
  %v6390 = vrot.slane %v6224, 3
  %v6391 = vrot.slane %v6229, 4
  %v6392 = vrot.slane %v6229, 5
  %v6393 = vrot.slane %v6229, 6
  %v6394 = vrot.slane %v6229, 7
  %v6407 = vadd.f32 %v3166, %v6384
  %v6408 = vadd.f32 %v3171, %v6385
  %v6409 = vadd.f32 %v3176, %v6386
  %v6410 = vadd.f32 %v3181, %v6387
  %v6411 = vadd.f32 %v3186, %v6224
  %v6412 = vadd.f32 %v3191, %v6388
  %v6413 = vadd.f32 %v3196, %v6389
  %v6414 = vadd.f32 %v3201, %v6390
  %v6415 = vadd.f32 %v3206, %v6391
  %v6416 = vadd.f32 %v3211, %v6392
  %v6417 = vadd.f32 %v3216, %v6393
  %v6418 = vadd.f32 %v3221, %v6394
  %v6419 = vxor.u32 %v6407, 2147483648
  %v6420 = vxor.u32 %v6408, 2147483648
  %v6421 = vxor.u32 %v6409, 2147483648
  %v6422 = vxor.u32 %v6410, 2147483648
  %v6423 = vxor.u32 %v6411, 2147483648
  %v6424 = vxor.u32 %v6412, 2147483648
  %v6425 = vxor.u32 %v6413, 2147483648
  %v6426 = vxor.u32 %v6414, 2147483648
  %v6427 = vxor.u32 %v6415, 2147483648
  %v6428 = vxor.u32 %v6416, 2147483648
  %v6429 = vxor.u32 %v6417, 2147483648
  %v6430 = vxor.u32 %v6418, 2147483648
  %v6431 = vmul.f32 %v6419, 1.442695
  %v6432 = vpow.pop %v6431
  %v6433 = vmul.f32 %v6420, 1.442695
  %v6434 = vpow.pop %v6433
  %v6435 = vmul.f32 %v6421, 1.442695
  %v6436 = vpow.pop %v6435
  %v6437 = vmul.f32 %v6422, 1.442695
  %v6438 = vpow.pop %v6437
  %v6439 = vmul.f32 %v6423, 1.442695
  %v6440 = vpow.pop %v6439
  %v6441 = vmul.f32 %v6424, 1.442695
  %v6442 = vpow.pop %v6441
  %v6443 = vmul.f32 %v6425, 1.442695
  %v6444 = vpow.pop %v6443
  %v6445 = vmul.f32 %v6426, 1.442695
  %v6446 = vpow.pop %v6445
  %v6447 = vmul.f32 %v6427, 1.442695
  %v6448 = vpow.pop %v6447
  %v6449 = vmul.f32 %v6428, 1.442695
  %v6450 = vpow.pop %v6449
  %v6451 = vmul.f32 %v6429, 1.442695
  %v6452 = vpow.pop %v6451
  %v6453 = vmul.f32 %v6430, 1.442695
  %v6454 = vpow.pop %v6453
  %v6455 = vadd.f32 %v6432, 1.0
  %v6456 = vadd.f32 %v6434, 1.0
  %v6457 = vadd.f32 %v6436, 1.0
  %v6458 = vadd.f32 %v6438, 1.0
  %v6459 = vadd.f32 %v6440, 1.0
  %v6460 = vadd.f32 %v6442, 1.0
  %v6461 = vadd.f32 %v6444, 1.0
  %v6462 = vadd.f32 %v6446, 1.0
  %v6463 = vadd.f32 %v6448, 1.0
  %v6464 = vadd.f32 %v6450, 1.0
  %v6465 = vadd.f32 %v6452, 1.0
  %v6466 = vadd.f32 %v6454, 1.0
  %v6467 = vrcp.pop %v6455
  %v6468 = vmul.f32 1.0, %v6467
  %v6469 = vrcp.pop %v6456
  %v6470 = vmul.f32 1.0, %v6469
  %v6471 = vrcp.pop %v6457
  %v6472 = vmul.f32 1.0, %v6471
  %v6473 = vrcp.pop %v6458
  %v6474 = vmul.f32 1.0, %v6473
  %v6475 = vrcp.pop %v6459
  %v6476 = vmul.f32 1.0, %v6475
  %v6477 = vrcp.pop %v6460
  %v6478 = vmul.f32 1.0, %v6477
  %v6479 = vrcp.pop %v6461
  %v6480 = vmul.f32 1.0, %v6479
  %v6481 = vrcp.pop %v6462
  %v6482 = vmul.f32 1.0, %v6481
  %v6483 = vrcp.pop %v6463
  %v6484 = vmul.f32 1.0, %v6483
  %v6485 = vrcp.pop %v6464
  %v6486 = vmul.f32 1.0, %v6485
  %v6487 = vrcp.pop %v6465
  %v6488 = vmul.f32 1.0, %v6487
  %v6489 = vrcp.pop %v6466
  %v6490 = vmul.f32 1.0, %v6489
  %v6493 = vrot.slane %v6299, 4
  %v6494 = vrot.slane %v6299, 5
  %v6495 = vrot.slane %v6299, 6
  %v6496 = vrot.slane %v6299, 7
  %v6497 = vrot.slane %v6299, 1
  %v6498 = vrot.slane %v6299, 2
  %v6499 = vrot.slane %v6299, 3
  %v6500 = vrot.slane %v6304, 4
  %v6501 = vrot.slane %v6304, 5
  %v6502 = vrot.slane %v6304, 6
  %v6503 = vrot.slane %v6304, 7
  %6504 = vrot.lane.b32.xlu0 %v6493, 8
  %v6505 = vpop.permute.xlu0 %6504
  %6506 = vrot.lane.b32.xlu0 %v6494, 8
  %v6507 = vpop.permute.xlu0 %6506
  %6508 = vrot.lane.b32.xlu0 %v6495, 8
  %v6509 = vpop.permute.xlu0 %6508
  %6510 = vrot.lane.b32.xlu0 %v6496, 8
  %v6511 = vpop.permute.xlu0 %6510
  %6512 = vrot.lane.b32.xlu0 %v6299, 8
  %v6513 = vpop.permute.xlu0 %6512
  %6514 = vrot.lane.b32.xlu0 %v6497, 8
  %v6515 = vpop.permute.xlu0 %6514
  %6516 = vrot.lane.b32.xlu0 %v6498, 8
  %v6517 = vpop.permute.xlu0 %6516
  %6518 = vrot.lane.b32.xlu0 %v6499, 8
  %v6519 = vpop.permute.xlu0 %6518
  %6520 = vrot.lane.b32.xlu0 %v6500, 8
  %v6521 = vpop.permute.xlu0 %6520
  %6522 = vrot.lane.b32.xlu0 %v6501, 8
  %v6523 = vpop.permute.xlu0 %6522
  %6524 = vrot.lane.b32.xlu0 %v6502, 8
  %v6525 = vpop.permute.xlu0 %6524
  %6526 = vrot.lane.b32.xlu0 %v6503, 8
  %v6527 = vpop.permute.xlu0 %6526
  %v6540 = vadd.f32 %v3166, %v6505
  %v6541 = vadd.f32 %v3171, %v6507
  %v6542 = vadd.f32 %v3176, %v6509
  %v6543 = vadd.f32 %v3181, %v6511
  %v6544 = vadd.f32 %v3186, %v6513
  %v6545 = vadd.f32 %v3191, %v6515
  %v6546 = vadd.f32 %v3196, %v6517
  %v6547 = vadd.f32 %v3201, %v6519
  %v6548 = vadd.f32 %v3206, %v6521
  %v6549 = vadd.f32 %v3211, %v6523
  %v6550 = vadd.f32 %v3216, %v6525
  %v6551 = vadd.f32 %v3221, %v6527
  %v6552 = vxor.u32 %v6540, 2147483648
  %v6553 = vxor.u32 %v6541, 2147483648
  %v6554 = vxor.u32 %v6542, 2147483648
  %v6555 = vxor.u32 %v6543, 2147483648
  %v6556 = vxor.u32 %v6544, 2147483648
  %v6557 = vxor.u32 %v6545, 2147483648
  %v6558 = vxor.u32 %v6546, 2147483648
  %v6559 = vxor.u32 %v6547, 2147483648
  %v6560 = vxor.u32 %v6548, 2147483648
  %v6561 = vxor.u32 %v6549, 2147483648
  %v6562 = vxor.u32 %v6550, 2147483648
  %v6563 = vxor.u32 %v6551, 2147483648
  %v6564 = vmul.f32 %v6552, 1.442695
  %v6565 = vpow.pop %v6564
  %v6566 = vmul.f32 %v6553, 1.442695
  %v6567 = vpow.pop %v6566
  %v6568 = vmul.f32 %v6554, 1.442695
  %v6569 = vpow.pop %v6568
  %v6570 = vmul.f32 %v6555, 1.442695
  %v6571 = vpow.pop %v6570
  %v6572 = vmul.f32 %v6556, 1.442695
  %v6573 = vpow.pop %v6572
  %v6574 = vmul.f32 %v6557, 1.442695
  %v6575 = vpow.pop %v6574
  %v6576 = vmul.f32 %v6558, 1.442695
  %v6577 = vpow.pop %v6576
  %v6578 = vmul.f32 %v6559, 1.442695
  %v6579 = vpow.pop %v6578
  %v6580 = vmul.f32 %v6560, 1.442695
  %v6581 = vpow.pop %v6580
  %v6582 = vmul.f32 %v6561, 1.442695
  %v6583 = vpow.pop %v6582
  %v6584 = vmul.f32 %v6562, 1.442695
  %v6585 = vpow.pop %v6584
  %v6586 = vmul.f32 %v6563, 1.442695
  %v6587 = vpow.pop %v6586
  %v6588 = vadd.f32 %v6565, 1.0
  %v6589 = vadd.f32 %v6567, 1.0
  %v6590 = vadd.f32 %v6569, 1.0
  %v6591 = vadd.f32 %v6571, 1.0
  %v6592 = vadd.f32 %v6573, 1.0
  %v6593 = vadd.f32 %v6575, 1.0
  %v6594 = vadd.f32 %v6577, 1.0
  %v6595 = vadd.f32 %v6579, 1.0
  %v6596 = vadd.f32 %v6581, 1.0
  %v6597 = vadd.f32 %v6583, 1.0
  %v6598 = vadd.f32 %v6585, 1.0
  %v6599 = vadd.f32 %v6587, 1.0
  %v6600 = vrcp.pop %v6588
  %v6601 = vmul.f32 1.0, %v6600
  %v6602 = vrcp.pop %v6589
  %v6603 = vmul.f32 1.0, %v6602
  %v6604 = vrcp.pop %v6590
  %v6605 = vmul.f32 1.0, %v6604
  %v6606 = vrcp.pop %v6591
  %v6607 = vmul.f32 1.0, %v6606
  %v6608 = vrcp.pop %v6592
  %v6609 = vmul.f32 1.0, %v6608
  %v6610 = vrcp.pop %v6593
  %v6611 = vmul.f32 1.0, %v6610
  %v6612 = vrcp.pop %v6594
  %v6613 = vmul.f32 1.0, %v6612
  %v6614 = vrcp.pop %v6595
  %v6615 = vmul.f32 1.0, %v6614
  %v6616 = vrcp.pop %v6596
  %v6617 = vmul.f32 1.0, %v6616
  %v6618 = vrcp.pop %v6597
  %v6619 = vmul.f32 1.0, %v6618
  %v6620 = vrcp.pop %v6598
  %v6621 = vmul.f32 1.0, %v6620
  %v6622 = vrcp.pop %v6599
  %v6623 = vmul.f32 1.0, %v6622
  %v6626 = vrot.slane %v6374, 4
  %v6627 = vrot.slane %v6374, 5
  %v6628 = vrot.slane %v6374, 6
  %v6629 = vrot.slane %v6374, 7
  %v6630 = vrot.slane %v6374, 1
  %v6631 = vrot.slane %v6374, 2
  %v6632 = vrot.slane %v6374, 3
  %v6633 = vrot.slane %v6379, 4
  %v6634 = vrot.slane %v6379, 5
  %v6635 = vrot.slane %v6379, 6
  %v6636 = vrot.slane %v6379, 7
  %v6649 = vmul.f32 %v6468, %v6626
  %v6650 = vmul.f32 %v6470, %v6627
  %v6651 = vmul.f32 %v6472, %v6628
  %v6652 = vmul.f32 %v6474, %v6629
  %v6653 = vmul.f32 %v6476, %v6374
  %v6654 = vmul.f32 %v6478, %v6630
  %v6655 = vmul.f32 %v6480, %v6631
  %v6656 = vmul.f32 %v6482, %v6632
  %v6657 = vmul.f32 %v6484, %v6633
  %v6658 = vmul.f32 %v6486, %v6634
  %v6659 = vmul.f32 %v6488, %v6635
  %v6660 = vmul.f32 %v6490, %v6636
  %6673 = vrot.lane.b32.xlu0 %v6649, 16
  %v6674 = vpop.permute.xlu0 %6673
  %6675 = vrot.lane.b32.xlu0 %v6650, 16
  %v6676 = vpop.permute.xlu0 %6675
  %6677 = vrot.lane.b32.xlu0 %v6651, 16
  %v6678 = vpop.permute.xlu0 %6677
  %6679 = vrot.lane.b32.xlu0 %v6652, 16
  %v6680 = vpop.permute.xlu0 %6679
  %6681 = vrot.lane.b32.xlu0 %v6653, 16
  %v6682 = vpop.permute.xlu0 %6681
  %6683 = vrot.lane.b32.xlu0 %v6654, 16
  %v6684 = vpop.permute.xlu0 %6683
  %6685 = vrot.lane.b32.xlu0 %v6655, 16
  %v6686 = vpop.permute.xlu0 %6685
  %6687 = vrot.lane.b32.xlu0 %v6656, 16
  %v6688 = vpop.permute.xlu0 %6687
  %6689 = vrot.lane.b32.xlu0 %v6657, 16
  %v6690 = vpop.permute.xlu0 %6689
  %6691 = vrot.lane.b32.xlu0 %v6658, 16
  %v6692 = vpop.permute.xlu0 %6691
  %6693 = vrot.lane.b32.xlu0 %v6659, 16
  %v6694 = vpop.permute.xlu0 %6693
  %6695 = vrot.lane.b32.xlu0 %v6660, 16
  %v6696 = vpop.permute.xlu0 %6695
  %v6709 = vadd.f32 %v3166, %v6674
  %v6710 = vadd.f32 %v3171, %v6676
  %v6711 = vadd.f32 %v3176, %v6678
  %v6712 = vadd.f32 %v3181, %v6680
  %v6713 = vadd.f32 %v3186, %v6682
  %v6714 = vadd.f32 %v3191, %v6684
  %v6715 = vadd.f32 %v3196, %v6686
  %v6716 = vadd.f32 %v3201, %v6688
  %v6717 = vadd.f32 %v3206, %v6690
  %v6718 = vadd.f32 %v3211, %v6692
  %v6719 = vadd.f32 %v3216, %v6694
  %v6720 = vadd.f32 %v3221, %v6696
  %v6721 = vtanh.pop %v6709
  %v6722 = vtanh.pop %v6710
  %v6723 = vtanh.pop %v6711
  %v6724 = vtanh.pop %v6712
  %v6725 = vtanh.pop %v6713
  %v6726 = vtanh.pop %v6714
  %v6727 = vtanh.pop %v6715
  %v6728 = vtanh.pop %v6716
  %v6729 = vtanh.pop %v6717
  %v6730 = vtanh.pop %v6718
  %v6731 = vtanh.pop %v6719
  %v6732 = vtanh.pop %v6720
  %v6733 = vsub.f32 1.0, %v6601
  %v6734 = vsub.f32 1.0, %v6603
  %v6735 = vsub.f32 1.0, %v6605
  %v6736 = vsub.f32 1.0, %v6607
  %v6737 = vsub.f32 1.0, %v6609
  %v6738 = vsub.f32 1.0, %v6611
  %v6739 = vsub.f32 1.0, %v6613
  %v6740 = vsub.f32 1.0, %v6615
  %v6741 = vsub.f32 1.0, %v6617
  %v6742 = vsub.f32 1.0, %v6619
  %v6743 = vsub.f32 1.0, %v6621
  %v6744 = vsub.f32 1.0, %v6623
  %6757 = vrot.lane.b32.xlu0 %v6721, 120
  %v6758 = vpop.permute.xlu0 %6757
  %6759 = vrot.lane.b32.xlu0 %v6722, 120
  %v6760 = vpop.permute.xlu0 %6759
  %6761 = vrot.lane.b32.xlu0 %v6723, 120
  %v6762 = vpop.permute.xlu0 %6761
  %6763 = vrot.lane.b32.xlu0 %v6724, 120
  %v6764 = vpop.permute.xlu0 %6763
  %6765 = vrot.lane.b32.xlu0 %v6725, 120
  %v6766 = vpop.permute.xlu0 %6765
  %6767 = vrot.lane.b32.xlu0 %v6726, 120
  %v6768 = vpop.permute.xlu0 %6767
  %6769 = vrot.lane.b32.xlu0 %v6727, 120
  %v6770 = vpop.permute.xlu0 %6769
  %6771 = vrot.lane.b32.xlu0 %v6728, 120
  %v6772 = vpop.permute.xlu0 %6771
  %6773 = vrot.lane.b32.xlu0 %v6729, 120
  %v6774 = vpop.permute.xlu0 %6773
  %6775 = vrot.lane.b32.xlu0 %v6730, 120
  %v6776 = vpop.permute.xlu0 %6775
  %6777 = vrot.lane.b32.xlu0 %v6731, 120
  %v6778 = vpop.permute.xlu0 %6777
  %6779 = vrot.lane.b32.xlu0 %v6732, 120
  %v6780 = vpop.permute.xlu0 %6779
  %v6793 = vmul.f32 %v6733, %v6758
  %v6794 = vmul.f32 %v6734, %v6760
  %v6795 = vmul.f32 %v6735, %v6762
  %v6796 = vmul.f32 %v6736, %v6764
  %v6797 = vmul.f32 %v6737, %v6766
  %v6798 = vmul.f32 %v6738, %v6768
  %v6799 = vmul.f32 %v6739, %v6770
  %v6800 = vmul.f32 %v6740, %v6772
  %v6801 = vmul.f32 %v6741, %v6774
  %v6802 = vmul.f32 %v6742, %v6776
  %v6803 = vmul.f32 %v6743, %v6778
  %v6804 = vmul.f32 %v6744, %v6780
  %v6805 = vrot.slane %v6105, 7
  %v6806 = vrot.slane %v6106, 7
  %v6807 = vrot.slane %v6107, 7
  %v6808 = vrot.slane %v6108, 7
  %v6809 = vrot.slane %v6110, 7
  %v6810 = vrot.slane %v6111, 7
  %v6811 = vrot.slane %v6112, 7
  %v6812 = vrot.slane %v6113, 7
  %v6813 = vrot.slane %v6114, 7
  %v6814 = vrot.slane %v6115, 7
  %v6815 = vrot.slane %v6116, 7
  %v6828 = vmul.f32 %v6601, %v6805
  %v6829 = vmul.f32 %v6603, %v6806
  %v6830 = vmul.f32 %v6605, %v6807
  %v6831 = vmul.f32 %v6607, %v6808
  %v6832 = vmul.f32 %v6609, %v6135
  %v6833 = vmul.f32 %v6611, %v6809
  %v6834 = vmul.f32 %v6613, %v6810
  %v6835 = vmul.f32 %v6615, %v6811
  %v6836 = vmul.f32 %v6617, %v6812
  %v6837 = vmul.f32 %v6619, %v6813
  %v6838 = vmul.f32 %v6621, %v6814
  %v6839 = vmul.f32 %v6623, %v6815
  %v6840 = vadd.f32 %v6793, %v6828
  %v6841 = vadd.f32 %v6794, %v6829
  %v6842 = vadd.f32 %v6795, %v6830
  %v6843 = vadd.f32 %v6796, %v6831
  %v6844 = vadd.f32 %v6797, %v6832
  %v6845 = vadd.f32 %v6798, %v6833
  %v6846 = vadd.f32 %v6799, %v6834
  %v6847 = vadd.f32 %v6800, %v6835
  %v6848 = vadd.f32 %v6801, %v6836
  %v6849 = vadd.f32 %v6802, %v6837
  %v6850 = vadd.f32 %v6803, %v6838
  %v6851 = vadd.f32 %v6804, %v6839
  %v6864 = vrot.slane %v6840, 4
  %v6865 = vrot.slane %v6841, 3
  %v6866 = vsel %vm3930, %v6865, %v6864
  %v6867 = vrot.slane %v6842, 2
  %v6868 = vsel %vm3933, %v6867, %v6866
  %v6869 = vrot.slane %v6843, 1
  %v6870 = vsel %vm3936, %v6869, %v6868
  %v6871 = vsel %vm3939, %v6844, %v6870
  %v6872 = vrot.slane %v6845, 7
  %v6873 = vsel %vm3942, %v6872, %v6871
  %v6874 = vrot.slane %v6846, 6
  %v6875 = vsel %vm3945, %v6874, %v6873
  %v6876 = vrot.slane %v6847, 5
  %v6877 = vsel %vm3948, %v6876, %v6875
  %v6878 = vrot.slane %v6848, 4
  %v6879 = vrot.slane %v6849, 3
  %v6880 = vsel %vm3930, %v6879, %v6878
  %v6881 = vrot.slane %v6850, 2
  %v6882 = vsel %vm3933, %v6881, %v6880
  %v6883 = vrot.slane %v6851, 1
  %v6884 = vsel %vm3936, %v6883, %v6882
  %6885 = vrot.lane.b32.xlu0 %v6877, 120
  %v6886 = vpop.permute.xlu0 %6885
  %6887 = vrot.lane.b32.xlu0 %v6884, 120
  %v6888 = vpop.permute.xlu0 %6887
  %v6889 = vsel %vm1550, %v6886, 0
  %v6891 = vsel %vm1550, %v6888, 0
  %6893 = vmatprep.subr.mxu0 0.0
  %6894 = vmatpush1.msra.mxu0 %v3224
  %6895 = vmatprep.subr.mxu0 0.0
  %6896 = vmatpush1.msra.mxu0 0.0
  %6897 = vmatprep.subr.mxu0 0.0
  %6898 = vmatpush1.msra.mxu0 0.0
  %6899 = vmatprep.subr.mxu0 0.0
  %6900 = vmatpush1.msra.mxu0 0.0
  %6901 = vmatprep.subr.mxu0 0.0
  %6902 = vmatpush1.msra.mxu0 0.0
  %6903 = vmatprep.subr.mxu0 0.0
  %6904 = vmatpush1.msra.mxu0 0.0
  %6905 = vmatprep.subr.mxu0 0.0
  %6906 = vmatpush1.msra.mxu0 0.0
  %6907 = vmatprep.subr.mxu0 0.0
  %6908 = vmatpush1.msra.mxu0 0.0
  %6909 = vmatprep.subr.mxu0 0.0
  %6910 = vmatpush1.msra.mxu0 0.0
  %6911 = vmatprep.subr.mxu0 0.0
  %6912 = vmatpush1.msra.mxu0 0.0
  %6913 = vmatprep.subr.mxu0 0.0
  %6914 = vmatpush1.msra.mxu0 0.0
  %6915 = vmatprep.subr.mxu0 0.0
  %6916 = vmatpush1.msra.mxu0 0.0
  %6917 = vmatprep.subr.mxu0 0.0
  %6918 = vmatpush1.msra.mxu0 0.0
  %6919 = vmatprep.subr.mxu0 0.0
  %6920 = vmatpush1.msra.mxu0 0.0
  %6921 = vmatprep.subr.mxu0 0.0
  %6922 = vmatpush1.msra.mxu0 0.0
  %6923 = vmatprep.subr.mxu0 0.0
  %6924 = vmatpush1.msra.mxu0 0.0
  %6925 = vmatprep.subr.mxu0 0.0
  %6926 = vmatpush1.msra.mxu0 0.0
  %6927 = vmatprep.subr.mxu0 0.0
  %6928 = vmatpush1.msra.mxu0 0.0
  %6929 = vmatprep.subr.mxu0 0.0
  %6930 = vmatpush1.msra.mxu0 0.0
  %6931 = vmatprep.subr.mxu0 0.0
  %6932 = vmatpush1.msra.mxu0 0.0
  %6933 = vmatprep.subr.mxu0 0.0
  %6934 = vmatpush1.msra.mxu0 0.0
  %6935 = vmatprep.subr.mxu0 0.0
  %6936 = vmatpush1.msra.mxu0 0.0
  %6937 = vmatprep.subr.mxu0 0.0
  %6938 = vmatpush1.msra.mxu0 0.0
  %6939 = vmatprep.subr.mxu0 0.0
  %6940 = vmatpush1.msra.mxu0 0.0
  %6941 = vmatprep.subr.mxu0 0.0
  %6942 = vmatpush1.msra.mxu0 0.0
  %6943 = vmatprep.subr.mxu0 0.0
  %6944 = vmatpush1.msra.mxu0 0.0
  %6945 = vmatprep.subr.mxu0 0.0
  %6946 = vmatpush1.msra.mxu0 0.0
  %6947 = vmatprep.subr.mxu0 0.0
  %6948 = vmatpush1.msra.mxu0 0.0
  %6949 = vmatprep.subr.mxu0 0.0
  %6950 = vmatpush1.msra.mxu0 0.0
  %6951 = vmatprep.subr.mxu0 0.0
  %6952 = vmatpush1.msra.mxu0 0.0
  %6953 = vmatprep.subr.mxu0 0.0
  %6954 = vmatpush1.msra.mxu0 0.0
  %6955 = vmatprep.subr.mxu0 0.0
  %6956 = vmatpush1.msra.mxu0 0.0
  %6957 = vmatprep.mubr.f32.mxu0 0.0
  %6958 = vmatmul.mubr.f32.gmra.mrb[0].mxu0 %v6889
  %v6959 = vpop.f32.mrb[0].mxu0
  %v6960 = vadd.f32 %v3230, %v6959
  %v6961 = vpop.f32.mrb[0].mxu0
  %6962 = vmatprep.mubr.f32.mxu0 0.0
  %6963 = vmatmul.mubr.f32.gmra.mrb[0].mxu0 %v6891
  %v6964 = vpop.f32.mrb[0].mxu0
  %v6965 = vadd.f32 %v3230, %v6964
  %v6966 = vpop.f32.mrb[0].mxu0
  %6967 = vdwg.mxu0
  %6968 = vmatprep.subr.mxu0 0.0
  %6969 = vmatpush1.msra.mxu0 %v3312
  %6970 = vmatprep.subr.mxu0 0.0
  %6971 = vmatpush1.msra.mxu0 0.0
  %6972 = vmatprep.subr.mxu0 0.0
  %6973 = vmatpush1.msra.mxu0 0.0
  %6974 = vmatprep.subr.mxu0 0.0
  %6975 = vmatpush1.msra.mxu0 0.0
  %6976 = vmatprep.subr.mxu0 0.0
  %6977 = vmatpush1.msra.mxu0 0.0
  %6978 = vmatprep.subr.mxu0 0.0
  %6979 = vmatpush1.msra.mxu0 0.0
  %6980 = vmatprep.subr.mxu0 0.0
  %6981 = vmatpush1.msra.mxu0 0.0
  %6982 = vmatprep.subr.mxu0 0.0
  %6983 = vmatpush1.msra.mxu0 0.0
  %6984 = vmatprep.subr.mxu0 0.0
  %6985 = vmatpush1.msra.mxu0 0.0
  %6986 = vmatprep.subr.mxu0 0.0
  %6987 = vmatpush1.msra.mxu0 0.0
  %6988 = vmatprep.subr.mxu0 0.0
  %6989 = vmatpush1.msra.mxu0 0.0
  %6990 = vmatprep.subr.mxu0 0.0
  %6991 = vmatpush1.msra.mxu0 0.0
  %6992 = vmatprep.subr.mxu0 0.0
  %6993 = vmatpush1.msra.mxu0 0.0
  %6994 = vmatprep.subr.mxu0 0.0
  %6995 = vmatpush1.msra.mxu0 0.0
  %6996 = vmatprep.subr.mxu0 0.0
  %6997 = vmatpush1.msra.mxu0 0.0
  %6998 = vmatprep.subr.mxu0 0.0
  %6999 = vmatpush1.msra.mxu0 0.0
  %7000 = vmatprep.subr.mxu0 0.0
  %7001 = vmatpush1.msra.mxu0 0.0
  %7002 = vmatprep.subr.mxu0 0.0
  %7003 = vmatpush1.msra.mxu0 0.0
  %7004 = vmatprep.subr.mxu0 0.0
  %7005 = vmatpush1.msra.mxu0 0.0
  %7006 = vmatprep.subr.mxu0 0.0
  %7007 = vmatpush1.msra.mxu0 0.0
  %7008 = vmatprep.subr.mxu0 0.0
  %7009 = vmatpush1.msra.mxu0 0.0
  %7010 = vmatprep.subr.mxu0 0.0
  %7011 = vmatpush1.msra.mxu0 0.0
  %7012 = vmatprep.subr.mxu0 0.0
  %7013 = vmatpush1.msra.mxu0 0.0
  %7014 = vmatprep.subr.mxu0 0.0
  %7015 = vmatpush1.msra.mxu0 0.0
  %7016 = vmatprep.subr.mxu0 0.0
  %7017 = vmatpush1.msra.mxu0 0.0
  %7018 = vmatprep.subr.mxu0 0.0
  %7019 = vmatpush1.msra.mxu0 0.0
  %7020 = vmatprep.subr.mxu0 0.0
  %7021 = vmatpush1.msra.mxu0 0.0
  %7022 = vmatprep.subr.mxu0 0.0
  %7023 = vmatpush1.msra.mxu0 0.0
  %7024 = vmatprep.subr.mxu0 0.0
  %7025 = vmatpush1.msra.mxu0 0.0
  %7026 = vmatprep.subr.mxu0 0.0
  %7027 = vmatpush1.msra.mxu0 0.0
  %7028 = vmatprep.subr.mxu0 0.0
  %7029 = vmatpush1.msra.mxu0 0.0
  %7030 = vmatprep.subr.mxu0 0.0
  %7031 = vmatpush1.msra.mxu0 0.0
  %7032 = vmatprep.mubr.f32.mxu0 0.0
  %7033 = vmatmul.mubr.f32.gmra.mrb[0].mxu0 %v6889
  %v7034 = vpop.f32.mrb[0].mxu0
  %v7035 = vadd.f32 %v3315, %v7034
  %v7036 = vpop.f32.mrb[0].mxu0
  %7037 = vmatprep.mubr.f32.mxu0 0.0
  %7038 = vmatmul.mubr.f32.gmra.mrb[0].mxu0 %v6891
  %v7039 = vpop.f32.mrb[0].mxu0
  %v7040 = vadd.f32 %v3315, %v7039
  %v7041 = vpop.f32.mrb[0].mxu0
  %7042 = vdwg.mxu0
  %7043 = vmatprep.subr.mxu0 0.0
  %7044 = vmatpush1.msra.mxu0 %v3393
  %7045 = vmatprep.subr.mxu0 0.0
  %7046 = vmatpush1.msra.mxu0 0.0
  %7047 = vmatprep.subr.mxu0 0.0
  %7048 = vmatpush1.msra.mxu0 0.0
  %7049 = vmatprep.subr.mxu0 0.0
  %7050 = vmatpush1.msra.mxu0 0.0
  %7051 = vmatprep.subr.mxu0 0.0
  %7052 = vmatpush1.msra.mxu0 0.0
  %7053 = vmatprep.subr.mxu0 0.0
  %7054 = vmatpush1.msra.mxu0 0.0
  %7055 = vmatprep.subr.mxu0 0.0
  %7056 = vmatpush1.msra.mxu0 0.0
  %7057 = vmatprep.subr.mxu0 0.0
  %7058 = vmatpush1.msra.mxu0 0.0
  %7059 = vmatprep.subr.mxu0 0.0
  %7060 = vmatpush1.msra.mxu0 0.0
  %7061 = vmatprep.subr.mxu0 0.0
  %7062 = vmatpush1.msra.mxu0 0.0
  %7063 = vmatprep.subr.mxu0 0.0
  %7064 = vmatpush1.msra.mxu0 0.0
  %7065 = vmatprep.subr.mxu0 0.0
  %7066 = vmatpush1.msra.mxu0 0.0
  %7067 = vmatprep.subr.mxu0 0.0
  %7068 = vmatpush1.msra.mxu0 0.0
  %7069 = vmatprep.subr.mxu0 0.0
  %7070 = vmatpush1.msra.mxu0 0.0
  %7071 = vmatprep.subr.mxu0 0.0
  %7072 = vmatpush1.msra.mxu0 0.0
  %7073 = vmatprep.subr.mxu0 0.0
  %7074 = vmatpush1.msra.mxu0 0.0
  %7075 = vmatprep.subr.mxu0 0.0
  %7076 = vmatpush1.msra.mxu0 0.0
  %7077 = vmatprep.subr.mxu0 0.0
  %7078 = vmatpush1.msra.mxu0 0.0
  %7079 = vmatprep.subr.mxu0 0.0
  %7080 = vmatpush1.msra.mxu0 0.0
  %7081 = vmatprep.subr.mxu0 0.0
  %7082 = vmatpush1.msra.mxu0 0.0
  %7083 = vmatprep.subr.mxu0 0.0
  %7084 = vmatpush1.msra.mxu0 0.0
  %7085 = vmatprep.subr.mxu0 0.0
  %7086 = vmatpush1.msra.mxu0 0.0
  %7087 = vmatprep.subr.mxu0 0.0
  %7088 = vmatpush1.msra.mxu0 0.0
  %7089 = vmatprep.subr.mxu0 0.0
  %7090 = vmatpush1.msra.mxu0 0.0
  %7091 = vmatprep.subr.mxu0 0.0
  %7092 = vmatpush1.msra.mxu0 0.0
  %7093 = vmatprep.subr.mxu0 0.0
  %7094 = vmatpush1.msra.mxu0 0.0
  %7095 = vmatprep.subr.mxu0 0.0
  %7096 = vmatpush1.msra.mxu0 0.0
  %7097 = vmatprep.subr.mxu0 0.0
  %7098 = vmatpush1.msra.mxu0 0.0
  %7099 = vmatprep.subr.mxu0 0.0
  %7100 = vmatpush1.msra.mxu0 0.0
  %7101 = vmatprep.subr.mxu0 0.0
  %7102 = vmatpush1.msra.mxu0 0.0
  %7103 = vmatprep.subr.mxu0 0.0
  %7104 = vmatpush1.msra.mxu0 0.0
  %7105 = vmatprep.subr.mxu0 0.0
  %7106 = vmatpush1.msra.mxu0 0.0
  %7107 = vmatprep.mubr.f32.mxu0 0.0
  %7108 = vmatmul.mubr.f32.gmra.mrb[0].mxu0 %v6889
  %v7109 = vpop.f32.mrb[0].mxu0
  %v7110 = vadd.f32 %v3396, %v7109
  %v7111 = vpop.f32.mrb[0].mxu0
  %7112 = vmatprep.mubr.f32.mxu0 0.0
  %7113 = vmatmul.mubr.f32.gmra.mrb[0].mxu0 %v6891
  %v7114 = vpop.f32.mrb[0].mxu0
  %v7115 = vadd.f32 %v3396, %v7114
  %v7116 = vpop.f32.mrb[0].mxu0
  %7117 = vdwg.mxu0
  %v7120 = vrot.slane %v6960, 3
  %v7121 = vrot.slane %v6960, 4
  %v7122 = vrot.slane %v6960, 5
  %v7123 = vrot.slane %v6960, 6
  %v7124 = vrot.slane %v6960, 7
  %v7125 = vrot.slane %v6960, 1
  %v7126 = vrot.slane %v6960, 2
  %v7127 = vrot.slane %v6965, 3
  %v7128 = vrot.slane %v6965, 4
  %v7129 = vrot.slane %v6965, 5
  %v7130 = vrot.slane %v6965, 6
  %v7143 = vadd.f32 %v3166, %v7120
  %v7144 = vadd.f32 %v3171, %v7121
  %v7145 = vadd.f32 %v3176, %v7122
  %v7146 = vadd.f32 %v3181, %v7123
  %v7147 = vadd.f32 %v3186, %v7124
  %v7148 = vadd.f32 %v3191, %v6960
  %v7149 = vadd.f32 %v3196, %v7125
  %v7150 = vadd.f32 %v3201, %v7126
  %v7151 = vadd.f32 %v3206, %v7127
  %v7152 = vadd.f32 %v3211, %v7128
  %v7153 = vadd.f32 %v3216, %v7129
  %v7154 = vadd.f32 %v3221, %v7130
  %v7155 = vxor.u32 %v7143, 2147483648
  %v7156 = vxor.u32 %v7144, 2147483648
  %v7157 = vxor.u32 %v7145, 2147483648
  %v7158 = vxor.u32 %v7146, 2147483648
  %v7159 = vxor.u32 %v7147, 2147483648
  %v7160 = vxor.u32 %v7148, 2147483648
  %v7161 = vxor.u32 %v7149, 2147483648
  %v7162 = vxor.u32 %v7150, 2147483648
  %v7163 = vxor.u32 %v7151, 2147483648
  %v7164 = vxor.u32 %v7152, 2147483648
  %v7165 = vxor.u32 %v7153, 2147483648
  %v7166 = vxor.u32 %v7154, 2147483648
  %v7167 = vmul.f32 %v7155, 1.442695
  %v7168 = vpow.pop %v7167
  %v7169 = vmul.f32 %v7156, 1.442695
  %v7170 = vpow.pop %v7169
  %v7171 = vmul.f32 %v7157, 1.442695
  %v7172 = vpow.pop %v7171
  %v7173 = vmul.f32 %v7158, 1.442695
  %v7174 = vpow.pop %v7173
  %v7175 = vmul.f32 %v7159, 1.442695
  %v7176 = vpow.pop %v7175
  %v7177 = vmul.f32 %v7160, 1.442695
  %v7178 = vpow.pop %v7177
  %v7179 = vmul.f32 %v7161, 1.442695
  %v7180 = vpow.pop %v7179
  %v7181 = vmul.f32 %v7162, 1.442695
  %v7182 = vpow.pop %v7181
  %v7183 = vmul.f32 %v7163, 1.442695
  %v7184 = vpow.pop %v7183
  %v7185 = vmul.f32 %v7164, 1.442695
  %v7186 = vpow.pop %v7185
  %v7187 = vmul.f32 %v7165, 1.442695
  %v7188 = vpow.pop %v7187
  %v7189 = vmul.f32 %v7166, 1.442695
  %v7190 = vpow.pop %v7189
  %v7191 = vadd.f32 %v7168, 1.0
  %v7192 = vadd.f32 %v7170, 1.0
  %v7193 = vadd.f32 %v7172, 1.0
  %v7194 = vadd.f32 %v7174, 1.0
  %v7195 = vadd.f32 %v7176, 1.0
  %v7196 = vadd.f32 %v7178, 1.0
  %v7197 = vadd.f32 %v7180, 1.0
  %v7198 = vadd.f32 %v7182, 1.0
  %v7199 = vadd.f32 %v7184, 1.0
  %v7200 = vadd.f32 %v7186, 1.0
  %v7201 = vadd.f32 %v7188, 1.0
  %v7202 = vadd.f32 %v7190, 1.0
  %v7203 = vrcp.pop %v7191
  %v7204 = vmul.f32 1.0, %v7203
  %v7205 = vrcp.pop %v7192
  %v7206 = vmul.f32 1.0, %v7205
  %v7207 = vrcp.pop %v7193
  %v7208 = vmul.f32 1.0, %v7207
  %v7209 = vrcp.pop %v7194
  %v7210 = vmul.f32 1.0, %v7209
  %v7211 = vrcp.pop %v7195
  %v7212 = vmul.f32 1.0, %v7211
  %v7213 = vrcp.pop %v7196
  %v7214 = vmul.f32 1.0, %v7213
  %v7215 = vrcp.pop %v7197
  %v7216 = vmul.f32 1.0, %v7215
  %v7217 = vrcp.pop %v7198
  %v7218 = vmul.f32 1.0, %v7217
  %v7219 = vrcp.pop %v7199
  %v7220 = vmul.f32 1.0, %v7219
  %v7221 = vrcp.pop %v7200
  %v7222 = vmul.f32 1.0, %v7221
  %v7223 = vrcp.pop %v7201
  %v7224 = vmul.f32 1.0, %v7223
  %v7225 = vrcp.pop %v7202
  %v7226 = vmul.f32 1.0, %v7225
  %v7229 = vrot.slane %v7035, 3
  %v7230 = vrot.slane %v7035, 4
  %v7231 = vrot.slane %v7035, 5
  %v7232 = vrot.slane %v7035, 6
  %v7233 = vrot.slane %v7035, 7
  %v7234 = vrot.slane %v7035, 1
  %v7235 = vrot.slane %v7035, 2
  %v7236 = vrot.slane %v7040, 3
  %v7237 = vrot.slane %v7040, 4
  %v7238 = vrot.slane %v7040, 5
  %v7239 = vrot.slane %v7040, 6
  %7240 = vrot.lane.b32.xlu0 %v7229, 8
  %v7241 = vpop.permute.xlu0 %7240
  %7242 = vrot.lane.b32.xlu0 %v7230, 8
  %v7243 = vpop.permute.xlu0 %7242
  %7244 = vrot.lane.b32.xlu0 %v7231, 8
  %v7245 = vpop.permute.xlu0 %7244
  %7246 = vrot.lane.b32.xlu0 %v7232, 8
  %v7247 = vpop.permute.xlu0 %7246
  %7248 = vrot.lane.b32.xlu0 %v7233, 8
  %v7249 = vpop.permute.xlu0 %7248
  %7250 = vrot.lane.b32.xlu0 %v7035, 8
  %v7251 = vpop.permute.xlu0 %7250
  %7252 = vrot.lane.b32.xlu0 %v7234, 8
  %v7253 = vpop.permute.xlu0 %7252
  %7254 = vrot.lane.b32.xlu0 %v7235, 8
  %v7255 = vpop.permute.xlu0 %7254
  %7256 = vrot.lane.b32.xlu0 %v7236, 8
  %v7257 = vpop.permute.xlu0 %7256
  %7258 = vrot.lane.b32.xlu0 %v7237, 8
  %v7259 = vpop.permute.xlu0 %7258
  %7260 = vrot.lane.b32.xlu0 %v7238, 8
  %v7261 = vpop.permute.xlu0 %7260
  %7262 = vrot.lane.b32.xlu0 %v7239, 8
  %v7263 = vpop.permute.xlu0 %7262
  %v7276 = vadd.f32 %v3166, %v7241
  %v7277 = vadd.f32 %v3171, %v7243
  %v7278 = vadd.f32 %v3176, %v7245
  %v7279 = vadd.f32 %v3181, %v7247
  %v7280 = vadd.f32 %v3186, %v7249
  %v7281 = vadd.f32 %v3191, %v7251
  %v7282 = vadd.f32 %v3196, %v7253
  %v7283 = vadd.f32 %v3201, %v7255
  %v7284 = vadd.f32 %v3206, %v7257
  %v7285 = vadd.f32 %v3211, %v7259
  %v7286 = vadd.f32 %v3216, %v7261
  %v7287 = vadd.f32 %v3221, %v7263
  %v7288 = vxor.u32 %v7276, 2147483648
  %v7289 = vxor.u32 %v7277, 2147483648
  %v7290 = vxor.u32 %v7278, 2147483648
  %v7291 = vxor.u32 %v7279, 2147483648
  %v7292 = vxor.u32 %v7280, 2147483648
  %v7293 = vxor.u32 %v7281, 2147483648
  %v7294 = vxor.u32 %v7282, 2147483648
  %v7295 = vxor.u32 %v7283, 2147483648
  %v7296 = vxor.u32 %v7284, 2147483648
  %v7297 = vxor.u32 %v7285, 2147483648
  %v7298 = vxor.u32 %v7286, 2147483648
  %v7299 = vxor.u32 %v7287, 2147483648
  %v7300 = vmul.f32 %v7288, 1.442695
  %v7301 = vpow.pop %v7300
  %v7302 = vmul.f32 %v7289, 1.442695
  %v7303 = vpow.pop %v7302
  %v7304 = vmul.f32 %v7290, 1.442695
  %v7305 = vpow.pop %v7304
  %v7306 = vmul.f32 %v7291, 1.442695
  %v7307 = vpow.pop %v7306
  %v7308 = vmul.f32 %v7292, 1.442695
  %v7309 = vpow.pop %v7308
  %v7310 = vmul.f32 %v7293, 1.442695
  %v7311 = vpow.pop %v7310
  %v7312 = vmul.f32 %v7294, 1.442695
  %v7313 = vpow.pop %v7312
  %v7314 = vmul.f32 %v7295, 1.442695
  %v7315 = vpow.pop %v7314
  %v7316 = vmul.f32 %v7296, 1.442695
  %v7317 = vpow.pop %v7316
  %v7318 = vmul.f32 %v7297, 1.442695
  %v7319 = vpow.pop %v7318
  %v7320 = vmul.f32 %v7298, 1.442695
  %v7321 = vpow.pop %v7320
  %v7322 = vmul.f32 %v7299, 1.442695
  %v7323 = vpow.pop %v7322
  %v7324 = vadd.f32 %v7301, 1.0
  %v7325 = vadd.f32 %v7303, 1.0
  %v7326 = vadd.f32 %v7305, 1.0
  %v7327 = vadd.f32 %v7307, 1.0
  %v7328 = vadd.f32 %v7309, 1.0
  %v7329 = vadd.f32 %v7311, 1.0
  %v7330 = vadd.f32 %v7313, 1.0
  %v7331 = vadd.f32 %v7315, 1.0
  %v7332 = vadd.f32 %v7317, 1.0
  %v7333 = vadd.f32 %v7319, 1.0
  %v7334 = vadd.f32 %v7321, 1.0
  %v7335 = vadd.f32 %v7323, 1.0
  %v7336 = vrcp.pop %v7324
  %v7337 = vmul.f32 1.0, %v7336
  %v7338 = vrcp.pop %v7325
  %v7339 = vmul.f32 1.0, %v7338
  %v7340 = vrcp.pop %v7326
  %v7341 = vmul.f32 1.0, %v7340
  %v7342 = vrcp.pop %v7327
  %v7343 = vmul.f32 1.0, %v7342
  %v7344 = vrcp.pop %v7328
  %v7345 = vmul.f32 1.0, %v7344
  %v7346 = vrcp.pop %v7329
  %v7347 = vmul.f32 1.0, %v7346
  %v7348 = vrcp.pop %v7330
  %v7349 = vmul.f32 1.0, %v7348
  %v7350 = vrcp.pop %v7331
  %v7351 = vmul.f32 1.0, %v7350
  %v7352 = vrcp.pop %v7332
  %v7353 = vmul.f32 1.0, %v7352
  %v7354 = vrcp.pop %v7333
  %v7355 = vmul.f32 1.0, %v7354
  %v7356 = vrcp.pop %v7334
  %v7357 = vmul.f32 1.0, %v7356
  %v7358 = vrcp.pop %v7335
  %v7359 = vmul.f32 1.0, %v7358
  %v7362 = vrot.slane %v7110, 3
  %v7363 = vrot.slane %v7110, 4
  %v7364 = vrot.slane %v7110, 5
  %v7365 = vrot.slane %v7110, 6
  %v7366 = vrot.slane %v7110, 7
  %v7367 = vrot.slane %v7110, 1
  %v7368 = vrot.slane %v7110, 2
  %v7369 = vrot.slane %v7115, 3
  %v7370 = vrot.slane %v7115, 4
  %v7371 = vrot.slane %v7115, 5
  %v7372 = vrot.slane %v7115, 6
  %v7385 = vmul.f32 %v7204, %v7362
  %v7386 = vmul.f32 %v7206, %v7363
  %v7387 = vmul.f32 %v7208, %v7364
  %v7388 = vmul.f32 %v7210, %v7365
  %v7389 = vmul.f32 %v7212, %v7366
  %v7390 = vmul.f32 %v7214, %v7110
  %v7391 = vmul.f32 %v7216, %v7367
  %v7392 = vmul.f32 %v7218, %v7368
  %v7393 = vmul.f32 %v7220, %v7369
  %v7394 = vmul.f32 %v7222, %v7370
  %v7395 = vmul.f32 %v7224, %v7371
  %v7396 = vmul.f32 %v7226, %v7372
  %7409 = vrot.lane.b32.xlu0 %v7385, 16
  %v7410 = vpop.permute.xlu0 %7409
  %7411 = vrot.lane.b32.xlu0 %v7386, 16
  %v7412 = vpop.permute.xlu0 %7411
  %7413 = vrot.lane.b32.xlu0 %v7387, 16
  %v7414 = vpop.permute.xlu0 %7413
  %7415 = vrot.lane.b32.xlu0 %v7388, 16
  %v7416 = vpop.permute.xlu0 %7415
  %7417 = vrot.lane.b32.xlu0 %v7389, 16
  %v7418 = vpop.permute.xlu0 %7417
  %7419 = vrot.lane.b32.xlu0 %v7390, 16
  %v7420 = vpop.permute.xlu0 %7419
  %7421 = vrot.lane.b32.xlu0 %v7391, 16
  %v7422 = vpop.permute.xlu0 %7421
  %7423 = vrot.lane.b32.xlu0 %v7392, 16
  %v7424 = vpop.permute.xlu0 %7423
  %7425 = vrot.lane.b32.xlu0 %v7393, 16
  %v7426 = vpop.permute.xlu0 %7425
  %7427 = vrot.lane.b32.xlu0 %v7394, 16
  %v7428 = vpop.permute.xlu0 %7427
  %7429 = vrot.lane.b32.xlu0 %v7395, 16
  %v7430 = vpop.permute.xlu0 %7429
  %7431 = vrot.lane.b32.xlu0 %v7396, 16
  %v7432 = vpop.permute.xlu0 %7431
  %v7445 = vadd.f32 %v3166, %v7410
  %v7446 = vadd.f32 %v3171, %v7412
  %v7447 = vadd.f32 %v3176, %v7414
  %v7448 = vadd.f32 %v3181, %v7416
  %v7449 = vadd.f32 %v3186, %v7418
  %v7450 = vadd.f32 %v3191, %v7420
  %v7451 = vadd.f32 %v3196, %v7422
  %v7452 = vadd.f32 %v3201, %v7424
  %v7453 = vadd.f32 %v3206, %v7426
  %v7454 = vadd.f32 %v3211, %v7428
  %v7455 = vadd.f32 %v3216, %v7430
  %v7456 = vadd.f32 %v3221, %v7432
  %v7457 = vtanh.pop %v7445
  %v7458 = vtanh.pop %v7446
  %v7459 = vtanh.pop %v7447
  %v7460 = vtanh.pop %v7448
  %v7461 = vtanh.pop %v7449
  %v7462 = vtanh.pop %v7450
  %v7463 = vtanh.pop %v7451
  %v7464 = vtanh.pop %v7452
  %v7465 = vtanh.pop %v7453
  %v7466 = vtanh.pop %v7454
  %v7467 = vtanh.pop %v7455
  %v7468 = vtanh.pop %v7456
  %v7469 = vsub.f32 1.0, %v7337
  %v7470 = vsub.f32 1.0, %v7339
  %v7471 = vsub.f32 1.0, %v7341
  %v7472 = vsub.f32 1.0, %v7343
  %v7473 = vsub.f32 1.0, %v7345
  %v7474 = vsub.f32 1.0, %v7347
  %v7475 = vsub.f32 1.0, %v7349
  %v7476 = vsub.f32 1.0, %v7351
  %v7477 = vsub.f32 1.0, %v7353
  %v7478 = vsub.f32 1.0, %v7355
  %v7479 = vsub.f32 1.0, %v7357
  %v7480 = vsub.f32 1.0, %v7359
  %7493 = vrot.lane.b32.xlu0 %v7457, 120
  %v7494 = vpop.permute.xlu0 %7493
  %7495 = vrot.lane.b32.xlu0 %v7458, 120
  %v7496 = vpop.permute.xlu0 %7495
  %7497 = vrot.lane.b32.xlu0 %v7459, 120
  %v7498 = vpop.permute.xlu0 %7497
  %7499 = vrot.lane.b32.xlu0 %v7460, 120
  %v7500 = vpop.permute.xlu0 %7499
  %7501 = vrot.lane.b32.xlu0 %v7461, 120
  %v7502 = vpop.permute.xlu0 %7501
  %7503 = vrot.lane.b32.xlu0 %v7462, 120
  %v7504 = vpop.permute.xlu0 %7503
  %7505 = vrot.lane.b32.xlu0 %v7463, 120
  %v7506 = vpop.permute.xlu0 %7505
  %7507 = vrot.lane.b32.xlu0 %v7464, 120
  %v7508 = vpop.permute.xlu0 %7507
  %7509 = vrot.lane.b32.xlu0 %v7465, 120
  %v7510 = vpop.permute.xlu0 %7509
  %7511 = vrot.lane.b32.xlu0 %v7466, 120
  %v7512 = vpop.permute.xlu0 %7511
  %7513 = vrot.lane.b32.xlu0 %v7467, 120
  %v7514 = vpop.permute.xlu0 %7513
  %7515 = vrot.lane.b32.xlu0 %v7468, 120
  %v7516 = vpop.permute.xlu0 %7515
  %v7529 = vmul.f32 %v7469, %v7494
  %v7530 = vmul.f32 %v7470, %v7496
  %v7531 = vmul.f32 %v7471, %v7498
  %v7532 = vmul.f32 %v7472, %v7500
  %v7533 = vmul.f32 %v7473, %v7502
  %v7534 = vmul.f32 %v7474, %v7504
  %v7535 = vmul.f32 %v7475, %v7506
  %v7536 = vmul.f32 %v7476, %v7508
  %v7537 = vmul.f32 %v7477, %v7510
  %v7538 = vmul.f32 %v7478, %v7512
  %v7539 = vmul.f32 %v7479, %v7514
  %v7540 = vmul.f32 %v7480, %v7516
  %v7541 = vrot.slane %v6840, 7
  %v7542 = vrot.slane %v6841, 7
  %v7543 = vrot.slane %v6842, 7
  %v7544 = vrot.slane %v6843, 7
  %v7545 = vrot.slane %v6844, 7
  %v7546 = vrot.slane %v6846, 7
  %v7547 = vrot.slane %v6847, 7
  %v7548 = vrot.slane %v6848, 7
  %v7549 = vrot.slane %v6849, 7
  %v7550 = vrot.slane %v6850, 7
  %v7551 = vrot.slane %v6851, 7
  %v7564 = vmul.f32 %v7337, %v7541
  %v7565 = vmul.f32 %v7339, %v7542
  %v7566 = vmul.f32 %v7341, %v7543
  %v7567 = vmul.f32 %v7343, %v7544
  %v7568 = vmul.f32 %v7345, %v7545
  %v7569 = vmul.f32 %v7347, %v6872
  %v7570 = vmul.f32 %v7349, %v7546
  %v7571 = vmul.f32 %v7351, %v7547
  %v7572 = vmul.f32 %v7353, %v7548
  %v7573 = vmul.f32 %v7355, %v7549
  %v7574 = vmul.f32 %v7357, %v7550
  %v7575 = vmul.f32 %v7359, %v7551
  %v7576 = vadd.f32 %v7529, %v7564
  %v7577 = vadd.f32 %v7530, %v7565
  %v7578 = vadd.f32 %v7531, %v7566
  %v7579 = vadd.f32 %v7532, %v7567
  %v7580 = vadd.f32 %v7533, %v7568
  %v7581 = vadd.f32 %v7534, %v7569
  %v7582 = vadd.f32 %v7535, %v7570
  %v7583 = vadd.f32 %v7536, %v7571
  %v7584 = vadd.f32 %v7537, %v7572
  %v7585 = vadd.f32 %v7538, %v7573
  %v7586 = vadd.f32 %v7539, %v7574
  %v7587 = vadd.f32 %v7540, %v7575
  %v7600 = vrot.slane %v7576, 5
  %v7601 = vrot.slane %v7577, 4
  %v7602 = vsel %vm3930, %v7601, %v7600
  %v7603 = vrot.slane %v7578, 3
  %v7604 = vsel %vm3933, %v7603, %v7602
  %v7605 = vrot.slane %v7579, 2
  %v7606 = vsel %vm3936, %v7605, %v7604
  %v7607 = vrot.slane %v7580, 1
  %v7608 = vsel %vm3939, %v7607, %v7606
  %v7609 = vsel %vm3942, %v7581, %v7608
  %v7610 = vrot.slane %v7582, 7
  %v7611 = vsel %vm3945, %v7610, %v7609
  %v7612 = vrot.slane %v7583, 6
  %v7613 = vsel %vm3948, %v7612, %v7611
  %v7614 = vrot.slane %v7584, 5
  %v7615 = vrot.slane %v7585, 4
  %v7616 = vsel %vm3930, %v7615, %v7614
  %v7617 = vrot.slane %v7586, 3
  %v7618 = vsel %vm3933, %v7617, %v7616
  %v7619 = vrot.slane %v7587, 2
  %v7620 = vsel %vm3936, %v7619, %v7618
  %7621 = vrot.lane.b32.xlu0 %v7613, 120
  %v7622 = vpop.permute.xlu0 %7621
  %7623 = vrot.lane.b32.xlu0 %v7620, 120
  %v7624 = vpop.permute.xlu0 %7623
  %v7625 = vsel %vm1550, %v7622, 0
  %v7627 = vsel %vm1550, %v7624, 0
  %7629 = vmatprep.subr.mxu0 0.0
  %7630 = vmatpush1.msra.mxu0 %v3224
  %7631 = vmatprep.subr.mxu0 0.0
  %7632 = vmatpush1.msra.mxu0 0.0
  %7633 = vmatprep.subr.mxu0 0.0
  %7634 = vmatpush1.msra.mxu0 0.0
  %7635 = vmatprep.subr.mxu0 0.0
  %7636 = vmatpush1.msra.mxu0 0.0
  %7637 = vmatprep.subr.mxu0 0.0
  %7638 = vmatpush1.msra.mxu0 0.0
  %7639 = vmatprep.subr.mxu0 0.0
  %7640 = vmatpush1.msra.mxu0 0.0
  %7641 = vmatprep.subr.mxu0 0.0
  %7642 = vmatpush1.msra.mxu0 0.0
  %7643 = vmatprep.subr.mxu0 0.0
  %7644 = vmatpush1.msra.mxu0 0.0
  %7645 = vmatprep.subr.mxu0 0.0
  %7646 = vmatpush1.msra.mxu0 0.0
  %7647 = vmatprep.subr.mxu0 0.0
  %7648 = vmatpush1.msra.mxu0 0.0
  %7649 = vmatprep.subr.mxu0 0.0
  %7650 = vmatpush1.msra.mxu0 0.0
  %7651 = vmatprep.subr.mxu0 0.0
  %7652 = vmatpush1.msra.mxu0 0.0
  %7653 = vmatprep.subr.mxu0 0.0
  %7654 = vmatpush1.msra.mxu0 0.0
  %7655 = vmatprep.subr.mxu0 0.0
  %7656 = vmatpush1.msra.mxu0 0.0
  %7657 = vmatprep.subr.mxu0 0.0
  %7658 = vmatpush1.msra.mxu0 0.0
  %7659 = vmatprep.subr.mxu0 0.0
  %7660 = vmatpush1.msra.mxu0 0.0
  %7661 = vmatprep.subr.mxu0 0.0
  %7662 = vmatpush1.msra.mxu0 0.0
  %7663 = vmatprep.subr.mxu0 0.0
  %7664 = vmatpush1.msra.mxu0 0.0
  %7665 = vmatprep.subr.mxu0 0.0
  %7666 = vmatpush1.msra.mxu0 0.0
  %7667 = vmatprep.subr.mxu0 0.0
  %7668 = vmatpush1.msra.mxu0 0.0
  %7669 = vmatprep.subr.mxu0 0.0
  %7670 = vmatpush1.msra.mxu0 0.0
  %7671 = vmatprep.subr.mxu0 0.0
  %7672 = vmatpush1.msra.mxu0 0.0
  %7673 = vmatprep.subr.mxu0 0.0
  %7674 = vmatpush1.msra.mxu0 0.0
  %7675 = vmatprep.subr.mxu0 0.0
  %7676 = vmatpush1.msra.mxu0 0.0
  %7677 = vmatprep.subr.mxu0 0.0
  %7678 = vmatpush1.msra.mxu0 0.0
  %7679 = vmatprep.subr.mxu0 0.0
  %7680 = vmatpush1.msra.mxu0 0.0
  %7681 = vmatprep.subr.mxu0 0.0
  %7682 = vmatpush1.msra.mxu0 0.0
  %7683 = vmatprep.subr.mxu0 0.0
  %7684 = vmatpush1.msra.mxu0 0.0
  %7685 = vmatprep.subr.mxu0 0.0
  %7686 = vmatpush1.msra.mxu0 0.0
  %7687 = vmatprep.subr.mxu0 0.0
  %7688 = vmatpush1.msra.mxu0 0.0
  %7689 = vmatprep.subr.mxu0 0.0
  %7690 = vmatpush1.msra.mxu0 0.0
  %7691 = vmatprep.subr.mxu0 0.0
  %7692 = vmatpush1.msra.mxu0 0.0
  %7693 = vmatprep.mubr.f32.mxu0 0.0
  %7694 = vmatmul.mubr.f32.gmra.mrb[0].mxu0 %v7625
  %v7695 = vpop.f32.mrb[0].mxu0
  %v7696 = vadd.f32 %v3230, %v7695
  %v7697 = vpop.f32.mrb[0].mxu0
  %7698 = vmatprep.mubr.f32.mxu0 0.0
  %7699 = vmatmul.mubr.f32.gmra.mrb[0].mxu0 %v7627
  %v7700 = vpop.f32.mrb[0].mxu0
  %v7701 = vadd.f32 %v3230, %v7700
  %v7702 = vpop.f32.mrb[0].mxu0
  %7703 = vdwg.mxu0
  %7704 = vmatprep.subr.mxu0 0.0
  %7705 = vmatpush1.msra.mxu0 %v3312
  %7706 = vmatprep.subr.mxu0 0.0
  %7707 = vmatpush1.msra.mxu0 0.0
  %7708 = vmatprep.subr.mxu0 0.0
  %7709 = vmatpush1.msra.mxu0 0.0
  %7710 = vmatprep.subr.mxu0 0.0
  %7711 = vmatpush1.msra.mxu0 0.0
  %7712 = vmatprep.subr.mxu0 0.0
  %7713 = vmatpush1.msra.mxu0 0.0
  %7714 = vmatprep.subr.mxu0 0.0
  %7715 = vmatpush1.msra.mxu0 0.0
  %7716 = vmatprep.subr.mxu0 0.0
  %7717 = vmatpush1.msra.mxu0 0.0
  %7718 = vmatprep.subr.mxu0 0.0
  %7719 = vmatpush1.msra.mxu0 0.0
  %7720 = vmatprep.subr.mxu0 0.0
  %7721 = vmatpush1.msra.mxu0 0.0
  %7722 = vmatprep.subr.mxu0 0.0
  %7723 = vmatpush1.msra.mxu0 0.0
  %7724 = vmatprep.subr.mxu0 0.0
  %7725 = vmatpush1.msra.mxu0 0.0
  %7726 = vmatprep.subr.mxu0 0.0
  %7727 = vmatpush1.msra.mxu0 0.0
  %7728 = vmatprep.subr.mxu0 0.0
  %7729 = vmatpush1.msra.mxu0 0.0
  %7730 = vmatprep.subr.mxu0 0.0
  %7731 = vmatpush1.msra.mxu0 0.0
  %7732 = vmatprep.subr.mxu0 0.0
  %7733 = vmatpush1.msra.mxu0 0.0
  %7734 = vmatprep.subr.mxu0 0.0
  %7735 = vmatpush1.msra.mxu0 0.0
  %7736 = vmatprep.subr.mxu0 0.0
  %7737 = vmatpush1.msra.mxu0 0.0
  %7738 = vmatprep.subr.mxu0 0.0
  %7739 = vmatpush1.msra.mxu0 0.0
  %7740 = vmatprep.subr.mxu0 0.0
  %7741 = vmatpush1.msra.mxu0 0.0
  %7742 = vmatprep.subr.mxu0 0.0
  %7743 = vmatpush1.msra.mxu0 0.0
  %7744 = vmatprep.subr.mxu0 0.0
  %7745 = vmatpush1.msra.mxu0 0.0
  %7746 = vmatprep.subr.mxu0 0.0
  %7747 = vmatpush1.msra.mxu0 0.0
  %7748 = vmatprep.subr.mxu0 0.0
  %7749 = vmatpush1.msra.mxu0 0.0
  %7750 = vmatprep.subr.mxu0 0.0
  %7751 = vmatpush1.msra.mxu0 0.0
  %7752 = vmatprep.subr.mxu0 0.0
  %7753 = vmatpush1.msra.mxu0 0.0
  %7754 = vmatprep.subr.mxu0 0.0
  %7755 = vmatpush1.msra.mxu0 0.0
  %7756 = vmatprep.subr.mxu0 0.0
  %7757 = vmatpush1.msra.mxu0 0.0
  %7758 = vmatprep.subr.mxu0 0.0
  %7759 = vmatpush1.msra.mxu0 0.0
  %7760 = vmatprep.subr.mxu0 0.0
  %7761 = vmatpush1.msra.mxu0 0.0
  %7762 = vmatprep.subr.mxu0 0.0
  %7763 = vmatpush1.msra.mxu0 0.0
  %7764 = vmatprep.subr.mxu0 0.0
  %7765 = vmatpush1.msra.mxu0 0.0
  %7766 = vmatprep.subr.mxu0 0.0
  %7767 = vmatpush1.msra.mxu0 0.0
  %7768 = vmatprep.mubr.f32.mxu0 0.0
  %7769 = vmatmul.mubr.f32.gmra.mrb[0].mxu0 %v7625
  %v7770 = vpop.f32.mrb[0].mxu0
  %v7771 = vadd.f32 %v3315, %v7770
  %v7772 = vpop.f32.mrb[0].mxu0
  %7773 = vmatprep.mubr.f32.mxu0 0.0
  %7774 = vmatmul.mubr.f32.gmra.mrb[0].mxu0 %v7627
  %v7775 = vpop.f32.mrb[0].mxu0
  %v7776 = vadd.f32 %v3315, %v7775
  %v7777 = vpop.f32.mrb[0].mxu0
  %7778 = vdwg.mxu0
  %7779 = vmatprep.subr.mxu0 0.0
  %7780 = vmatpush1.msra.mxu0 %v3393
  %7781 = vmatprep.subr.mxu0 0.0
  %7782 = vmatpush1.msra.mxu0 0.0
  %7783 = vmatprep.subr.mxu0 0.0
  %7784 = vmatpush1.msra.mxu0 0.0
  %7785 = vmatprep.subr.mxu0 0.0
  %7786 = vmatpush1.msra.mxu0 0.0
  %7787 = vmatprep.subr.mxu0 0.0
  %7788 = vmatpush1.msra.mxu0 0.0
  %7789 = vmatprep.subr.mxu0 0.0
  %7790 = vmatpush1.msra.mxu0 0.0
  %7791 = vmatprep.subr.mxu0 0.0
  %7792 = vmatpush1.msra.mxu0 0.0
  %7793 = vmatprep.subr.mxu0 0.0
  %7794 = vmatpush1.msra.mxu0 0.0
  %7795 = vmatprep.subr.mxu0 0.0
  %7796 = vmatpush1.msra.mxu0 0.0
  %7797 = vmatprep.subr.mxu0 0.0
  %7798 = vmatpush1.msra.mxu0 0.0
  %7799 = vmatprep.subr.mxu0 0.0
  %7800 = vmatpush1.msra.mxu0 0.0
  %7801 = vmatprep.subr.mxu0 0.0
  %7802 = vmatpush1.msra.mxu0 0.0
  %7803 = vmatprep.subr.mxu0 0.0
  %7804 = vmatpush1.msra.mxu0 0.0
  %7805 = vmatprep.subr.mxu0 0.0
  %7806 = vmatpush1.msra.mxu0 0.0
  %7807 = vmatprep.subr.mxu0 0.0
  %7808 = vmatpush1.msra.mxu0 0.0
  %7809 = vmatprep.subr.mxu0 0.0
  %7810 = vmatpush1.msra.mxu0 0.0
  %7811 = vmatprep.subr.mxu0 0.0
  %7812 = vmatpush1.msra.mxu0 0.0
  %7813 = vmatprep.subr.mxu0 0.0
  %7814 = vmatpush1.msra.mxu0 0.0
  %7815 = vmatprep.subr.mxu0 0.0
  %7816 = vmatpush1.msra.mxu0 0.0
  %7817 = vmatprep.subr.mxu0 0.0
  %7818 = vmatpush1.msra.mxu0 0.0
  %7819 = vmatprep.subr.mxu0 0.0
  %7820 = vmatpush1.msra.mxu0 0.0
  %7821 = vmatprep.subr.mxu0 0.0
  %7822 = vmatpush1.msra.mxu0 0.0
  %7823 = vmatprep.subr.mxu0 0.0
  %7824 = vmatpush1.msra.mxu0 0.0
  %7825 = vmatprep.subr.mxu0 0.0
  %7826 = vmatpush1.msra.mxu0 0.0
  %7827 = vmatprep.subr.mxu0 0.0
  %7828 = vmatpush1.msra.mxu0 0.0
  %7829 = vmatprep.subr.mxu0 0.0
  %7830 = vmatpush1.msra.mxu0 0.0
  %7831 = vmatprep.subr.mxu0 0.0
  %7832 = vmatpush1.msra.mxu0 0.0
  %7833 = vmatprep.subr.mxu0 0.0
  %7834 = vmatpush1.msra.mxu0 0.0
  %7835 = vmatprep.subr.mxu0 0.0
  %7836 = vmatpush1.msra.mxu0 0.0
  %7837 = vmatprep.subr.mxu0 0.0
  %7838 = vmatpush1.msra.mxu0 0.0
  %7839 = vmatprep.subr.mxu0 0.0
  %7840 = vmatpush1.msra.mxu0 0.0
  %7841 = vmatprep.subr.mxu0 0.0
  %7842 = vmatpush1.msra.mxu0 0.0
  %7843 = vmatprep.mubr.f32.mxu0 0.0
  %7844 = vmatmul.mubr.f32.gmra.mrb[0].mxu0 %v7625
  %v7845 = vpop.f32.mrb[0].mxu0
  %v7846 = vadd.f32 %v3396, %v7845
  %v7847 = vpop.f32.mrb[0].mxu0
  %7848 = vmatprep.mubr.f32.mxu0 0.0
  %7849 = vmatmul.mubr.f32.gmra.mrb[0].mxu0 %v7627
  %v7850 = vpop.f32.mrb[0].mxu0
  %v7851 = vadd.f32 %v3396, %v7850
  %v7852 = vpop.f32.mrb[0].mxu0
  %7853 = vdwg.mxu0
  %v7856 = vrot.slane %v7696, 2
  %v7857 = vrot.slane %v7696, 3
  %v7858 = vrot.slane %v7696, 4
  %v7859 = vrot.slane %v7696, 5
  %v7860 = vrot.slane %v7696, 6
  %v7861 = vrot.slane %v7696, 7
  %v7862 = vrot.slane %v7696, 1
  %v7863 = vrot.slane %v7701, 2
  %v7864 = vrot.slane %v7701, 3
  %v7865 = vrot.slane %v7701, 4
  %v7866 = vrot.slane %v7701, 5
  %v7879 = vadd.f32 %v3166, %v7856
  %v7880 = vadd.f32 %v3171, %v7857
  %v7881 = vadd.f32 %v3176, %v7858
  %v7882 = vadd.f32 %v3181, %v7859
  %v7883 = vadd.f32 %v3186, %v7860
  %v7884 = vadd.f32 %v3191, %v7861
  %v7885 = vadd.f32 %v3196, %v7696
  %v7886 = vadd.f32 %v3201, %v7862
  %v7887 = vadd.f32 %v3206, %v7863
  %v7888 = vadd.f32 %v3211, %v7864
  %v7889 = vadd.f32 %v3216, %v7865
  %v7890 = vadd.f32 %v3221, %v7866
  %v7891 = vxor.u32 %v7879, 2147483648
  %v7892 = vxor.u32 %v7880, 2147483648
  %v7893 = vxor.u32 %v7881, 2147483648
  %v7894 = vxor.u32 %v7882, 2147483648
  %v7895 = vxor.u32 %v7883, 2147483648
  %v7896 = vxor.u32 %v7884, 2147483648
  %v7897 = vxor.u32 %v7885, 2147483648
  %v7898 = vxor.u32 %v7886, 2147483648
  %v7899 = vxor.u32 %v7887, 2147483648
  %v7900 = vxor.u32 %v7888, 2147483648
  %v7901 = vxor.u32 %v7889, 2147483648
  %v7902 = vxor.u32 %v7890, 2147483648
  %v7903 = vmul.f32 %v7891, 1.442695
  %v7904 = vpow.pop %v7903
  %v7905 = vmul.f32 %v7892, 1.442695
  %v7906 = vpow.pop %v7905
  %v7907 = vmul.f32 %v7893, 1.442695
  %v7908 = vpow.pop %v7907
  %v7909 = vmul.f32 %v7894, 1.442695
  %v7910 = vpow.pop %v7909
  %v7911 = vmul.f32 %v7895, 1.442695
  %v7912 = vpow.pop %v7911
  %v7913 = vmul.f32 %v7896, 1.442695
  %v7914 = vpow.pop %v7913
  %v7915 = vmul.f32 %v7897, 1.442695
  %v7916 = vpow.pop %v7915
  %v7917 = vmul.f32 %v7898, 1.442695
  %v7918 = vpow.pop %v7917
  %v7919 = vmul.f32 %v7899, 1.442695
  %v7920 = vpow.pop %v7919
  %v7921 = vmul.f32 %v7900, 1.442695
  %v7922 = vpow.pop %v7921
  %v7923 = vmul.f32 %v7901, 1.442695
  %v7924 = vpow.pop %v7923
  %v7925 = vmul.f32 %v7902, 1.442695
  %v7926 = vpow.pop %v7925
  %v7927 = vadd.f32 %v7904, 1.0
  %v7928 = vadd.f32 %v7906, 1.0
  %v7929 = vadd.f32 %v7908, 1.0
  %v7930 = vadd.f32 %v7910, 1.0
  %v7931 = vadd.f32 %v7912, 1.0
  %v7932 = vadd.f32 %v7914, 1.0
  %v7933 = vadd.f32 %v7916, 1.0
  %v7934 = vadd.f32 %v7918, 1.0
  %v7935 = vadd.f32 %v7920, 1.0
  %v7936 = vadd.f32 %v7922, 1.0
  %v7937 = vadd.f32 %v7924, 1.0
  %v7938 = vadd.f32 %v7926, 1.0
  %v7939 = vrcp.pop %v7927
  %v7940 = vmul.f32 1.0, %v7939
  %v7941 = vrcp.pop %v7928
  %v7942 = vmul.f32 1.0, %v7941
  %v7943 = vrcp.pop %v7929
  %v7944 = vmul.f32 1.0, %v7943
  %v7945 = vrcp.pop %v7930
  %v7946 = vmul.f32 1.0, %v7945
  %v7947 = vrcp.pop %v7931
  %v7948 = vmul.f32 1.0, %v7947
  %v7949 = vrcp.pop %v7932
  %v7950 = vmul.f32 1.0, %v7949
  %v7951 = vrcp.pop %v7933
  %v7952 = vmul.f32 1.0, %v7951
  %v7953 = vrcp.pop %v7934
  %v7954 = vmul.f32 1.0, %v7953
  %v7955 = vrcp.pop %v7935
  %v7956 = vmul.f32 1.0, %v7955
  %v7957 = vrcp.pop %v7936
  %v7958 = vmul.f32 1.0, %v7957
  %v7959 = vrcp.pop %v7937
  %v7960 = vmul.f32 1.0, %v7959
  %v7961 = vrcp.pop %v7938
  %v7962 = vmul.f32 1.0, %v7961
  %v7965 = vrot.slane %v7771, 2
  %v7966 = vrot.slane %v7771, 3
  %v7967 = vrot.slane %v7771, 4
  %v7968 = vrot.slane %v7771, 5
  %v7969 = vrot.slane %v7771, 6
  %v7970 = vrot.slane %v7771, 7
  %v7971 = vrot.slane %v7771, 1
  %v7972 = vrot.slane %v7776, 2
  %v7973 = vrot.slane %v7776, 3
  %v7974 = vrot.slane %v7776, 4
  %v7975 = vrot.slane %v7776, 5
  %7976 = vrot.lane.b32.xlu0 %v7965, 8
  %v7977 = vpop.permute.xlu0 %7976
  %7978 = vrot.lane.b32.xlu0 %v7966, 8
  %v7979 = vpop.permute.xlu0 %7978
  %7980 = vrot.lane.b32.xlu0 %v7967, 8
  %v7981 = vpop.permute.xlu0 %7980
  %7982 = vrot.lane.b32.xlu0 %v7968, 8
  %v7983 = vpop.permute.xlu0 %7982
  %7984 = vrot.lane.b32.xlu0 %v7969, 8
  %v7985 = vpop.permute.xlu0 %7984
  %7986 = vrot.lane.b32.xlu0 %v7970, 8
  %v7987 = vpop.permute.xlu0 %7986
  %7988 = vrot.lane.b32.xlu0 %v7771, 8
  %v7989 = vpop.permute.xlu0 %7988
  %7990 = vrot.lane.b32.xlu0 %v7971, 8
  %v7991 = vpop.permute.xlu0 %7990
  %7992 = vrot.lane.b32.xlu0 %v7972, 8
  %v7993 = vpop.permute.xlu0 %7992
  %7994 = vrot.lane.b32.xlu0 %v7973, 8
  %v7995 = vpop.permute.xlu0 %7994
  %7996 = vrot.lane.b32.xlu0 %v7974, 8
  %v7997 = vpop.permute.xlu0 %7996
  %7998 = vrot.lane.b32.xlu0 %v7975, 8
  %v7999 = vpop.permute.xlu0 %7998
  %v8012 = vadd.f32 %v3166, %v7977
  %v8013 = vadd.f32 %v3171, %v7979
  %v8014 = vadd.f32 %v3176, %v7981
  %v8015 = vadd.f32 %v3181, %v7983
  %v8016 = vadd.f32 %v3186, %v7985
  %v8017 = vadd.f32 %v3191, %v7987
  %v8018 = vadd.f32 %v3196, %v7989
  %v8019 = vadd.f32 %v3201, %v7991
  %v8020 = vadd.f32 %v3206, %v7993
  %v8021 = vadd.f32 %v3211, %v7995
  %v8022 = vadd.f32 %v3216, %v7997
  %v8023 = vadd.f32 %v3221, %v7999
  %v8024 = vxor.u32 %v8012, 2147483648
  %v8025 = vxor.u32 %v8013, 2147483648
  %v8026 = vxor.u32 %v8014, 2147483648
  %v8027 = vxor.u32 %v8015, 2147483648
  %v8028 = vxor.u32 %v8016, 2147483648
  %v8029 = vxor.u32 %v8017, 2147483648
  %v8030 = vxor.u32 %v8018, 2147483648
  %v8031 = vxor.u32 %v8019, 2147483648
  %v8032 = vxor.u32 %v8020, 2147483648
  %v8033 = vxor.u32 %v8021, 2147483648
  %v8034 = vxor.u32 %v8022, 2147483648
  %v8035 = vxor.u32 %v8023, 2147483648
  %v8036 = vmul.f32 %v8024, 1.442695
  %v8037 = vpow.pop %v8036
  %v8038 = vmul.f32 %v8025, 1.442695
  %v8039 = vpow.pop %v8038
  %v8040 = vmul.f32 %v8026, 1.442695
  %v8041 = vpow.pop %v8040
  %v8042 = vmul.f32 %v8027, 1.442695
  %v8043 = vpow.pop %v8042
  %v8044 = vmul.f32 %v8028, 1.442695
  %v8045 = vpow.pop %v8044
  %v8046 = vmul.f32 %v8029, 1.442695
  %v8047 = vpow.pop %v8046
  %v8048 = vmul.f32 %v8030, 1.442695
  %v8049 = vpow.pop %v8048
  %v8050 = vmul.f32 %v8031, 1.442695
  %v8051 = vpow.pop %v8050
  %v8052 = vmul.f32 %v8032, 1.442695
  %v8053 = vpow.pop %v8052
  %v8054 = vmul.f32 %v8033, 1.442695
  %v8055 = vpow.pop %v8054
  %v8056 = vmul.f32 %v8034, 1.442695
  %v8057 = vpow.pop %v8056
  %v8058 = vmul.f32 %v8035, 1.442695
  %v8059 = vpow.pop %v8058
  %v8060 = vadd.f32 %v8037, 1.0
  %v8061 = vadd.f32 %v8039, 1.0
  %v8062 = vadd.f32 %v8041, 1.0
  %v8063 = vadd.f32 %v8043, 1.0
  %v8064 = vadd.f32 %v8045, 1.0
  %v8065 = vadd.f32 %v8047, 1.0
  %v8066 = vadd.f32 %v8049, 1.0
  %v8067 = vadd.f32 %v8051, 1.0
  %v8068 = vadd.f32 %v8053, 1.0
  %v8069 = vadd.f32 %v8055, 1.0
  %v8070 = vadd.f32 %v8057, 1.0
  %v8071 = vadd.f32 %v8059, 1.0
  %v8072 = vrcp.pop %v8060
  %v8073 = vmul.f32 1.0, %v8072
  %v8074 = vrcp.pop %v8061
  %v8075 = vmul.f32 1.0, %v8074
  %v8076 = vrcp.pop %v8062
  %v8077 = vmul.f32 1.0, %v8076
  %v8078 = vrcp.pop %v8063
  %v8079 = vmul.f32 1.0, %v8078
  %v8080 = vrcp.pop %v8064
  %v8081 = vmul.f32 1.0, %v8080
  %v8082 = vrcp.pop %v8065
  %v8083 = vmul.f32 1.0, %v8082
  %v8084 = vrcp.pop %v8066
  %v8085 = vmul.f32 1.0, %v8084
  %v8086 = vrcp.pop %v8067
  %v8087 = vmul.f32 1.0, %v8086
  %v8088 = vrcp.pop %v8068
  %v8089 = vmul.f32 1.0, %v8088
  %v8090 = vrcp.pop %v8069
  %v8091 = vmul.f32 1.0, %v8090
  %v8092 = vrcp.pop %v8070
  %v8093 = vmul.f32 1.0, %v8092
  %v8094 = vrcp.pop %v8071
  %v8095 = vmul.f32 1.0, %v8094
  %v8098 = vrot.slane %v7846, 2
  %v8099 = vrot.slane %v7846, 3
  %v8100 = vrot.slane %v7846, 4
  %v8101 = vrot.slane %v7846, 5
  %v8102 = vrot.slane %v7846, 6
  %v8103 = vrot.slane %v7846, 7
  %v8104 = vrot.slane %v7846, 1
  %v8105 = vrot.slane %v7851, 2
  %v8106 = vrot.slane %v7851, 3
  %v8107 = vrot.slane %v7851, 4
  %v8108 = vrot.slane %v7851, 5
  %v8121 = vmul.f32 %v7940, %v8098
  %v8122 = vmul.f32 %v7942, %v8099
  %v8123 = vmul.f32 %v7944, %v8100
  %v8124 = vmul.f32 %v7946, %v8101
  %v8125 = vmul.f32 %v7948, %v8102
  %v8126 = vmul.f32 %v7950, %v8103
  %v8127 = vmul.f32 %v7952, %v7846
  %v8128 = vmul.f32 %v7954, %v8104
  %v8129 = vmul.f32 %v7956, %v8105
  %v8130 = vmul.f32 %v7958, %v8106
  %v8131 = vmul.f32 %v7960, %v8107
  %v8132 = vmul.f32 %v7962, %v8108
  %8145 = vrot.lane.b32.xlu0 %v8121, 16
  %v8146 = vpop.permute.xlu0 %8145
  %8147 = vrot.lane.b32.xlu0 %v8122, 16
  %v8148 = vpop.permute.xlu0 %8147
  %8149 = vrot.lane.b32.xlu0 %v8123, 16
  %v8150 = vpop.permute.xlu0 %8149
  %8151 = vrot.lane.b32.xlu0 %v8124, 16
  %v8152 = vpop.permute.xlu0 %8151
  %8153 = vrot.lane.b32.xlu0 %v8125, 16
  %v8154 = vpop.permute.xlu0 %8153
  %8155 = vrot.lane.b32.xlu0 %v8126, 16
  %v8156 = vpop.permute.xlu0 %8155
  %8157 = vrot.lane.b32.xlu0 %v8127, 16
  %v8158 = vpop.permute.xlu0 %8157
  %8159 = vrot.lane.b32.xlu0 %v8128, 16
  %v8160 = vpop.permute.xlu0 %8159
  %8161 = vrot.lane.b32.xlu0 %v8129, 16
  %v8162 = vpop.permute.xlu0 %8161
  %8163 = vrot.lane.b32.xlu0 %v8130, 16
  %v8164 = vpop.permute.xlu0 %8163
  %8165 = vrot.lane.b32.xlu0 %v8131, 16
  %v8166 = vpop.permute.xlu0 %8165
  %8167 = vrot.lane.b32.xlu0 %v8132, 16
  %v8168 = vpop.permute.xlu0 %8167
  %v8181 = vadd.f32 %v3166, %v8146
  %v8182 = vadd.f32 %v3171, %v8148
  %v8183 = vadd.f32 %v3176, %v8150
  %v8184 = vadd.f32 %v3181, %v8152
  %v8185 = vadd.f32 %v3186, %v8154
  %v8186 = vadd.f32 %v3191, %v8156
  %v8187 = vadd.f32 %v3196, %v8158
  %v8188 = vadd.f32 %v3201, %v8160
  %v8189 = vadd.f32 %v3206, %v8162
  %v8190 = vadd.f32 %v3211, %v8164
  %v8191 = vadd.f32 %v3216, %v8166
  %v8192 = vadd.f32 %v3221, %v8168
  %v8193 = vtanh.pop %v8181
  %v8194 = vtanh.pop %v8182
  %v8195 = vtanh.pop %v8183
  %v8196 = vtanh.pop %v8184
  %v8197 = vtanh.pop %v8185
  %v8198 = vtanh.pop %v8186
  %v8199 = vtanh.pop %v8187
  %v8200 = vtanh.pop %v8188
  %v8201 = vtanh.pop %v8189
  %v8202 = vtanh.pop %v8190
  %v8203 = vtanh.pop %v8191
  %v8204 = vtanh.pop %v8192
  %v8205 = vsub.f32 1.0, %v8073
  %v8206 = vsub.f32 1.0, %v8075
  %v8207 = vsub.f32 1.0, %v8077
  %v8208 = vsub.f32 1.0, %v8079
  %v8209 = vsub.f32 1.0, %v8081
  %v8210 = vsub.f32 1.0, %v8083
  %v8211 = vsub.f32 1.0, %v8085
  %v8212 = vsub.f32 1.0, %v8087
  %v8213 = vsub.f32 1.0, %v8089
  %v8214 = vsub.f32 1.0, %v8091
  %v8215 = vsub.f32 1.0, %v8093
  %v8216 = vsub.f32 1.0, %v8095
  %8229 = vrot.lane.b32.xlu0 %v8193, 120
  %v8230 = vpop.permute.xlu0 %8229
  %8231 = vrot.lane.b32.xlu0 %v8194, 120
  %v8232 = vpop.permute.xlu0 %8231
  %8233 = vrot.lane.b32.xlu0 %v8195, 120
  %v8234 = vpop.permute.xlu0 %8233
  %8235 = vrot.lane.b32.xlu0 %v8196, 120
  %v8236 = vpop.permute.xlu0 %8235
  %8237 = vrot.lane.b32.xlu0 %v8197, 120
  %v8238 = vpop.permute.xlu0 %8237
  %8239 = vrot.lane.b32.xlu0 %v8198, 120
  %v8240 = vpop.permute.xlu0 %8239
  %8241 = vrot.lane.b32.xlu0 %v8199, 120
  %v8242 = vpop.permute.xlu0 %8241
  %8243 = vrot.lane.b32.xlu0 %v8200, 120
  %v8244 = vpop.permute.xlu0 %8243
  %8245 = vrot.lane.b32.xlu0 %v8201, 120
  %v8246 = vpop.permute.xlu0 %8245
  %8247 = vrot.lane.b32.xlu0 %v8202, 120
  %v8248 = vpop.permute.xlu0 %8247
  %8249 = vrot.lane.b32.xlu0 %v8203, 120
  %v8250 = vpop.permute.xlu0 %8249
  %8251 = vrot.lane.b32.xlu0 %v8204, 120
  %v8252 = vpop.permute.xlu0 %8251
  %v8265 = vmul.f32 %v8205, %v8230
  %v8266 = vmul.f32 %v8206, %v8232
  %v8267 = vmul.f32 %v8207, %v8234
  %v8268 = vmul.f32 %v8208, %v8236
  %v8269 = vmul.f32 %v8209, %v8238
  %v8270 = vmul.f32 %v8210, %v8240
  %v8271 = vmul.f32 %v8211, %v8242
  %v8272 = vmul.f32 %v8212, %v8244
  %v8273 = vmul.f32 %v8213, %v8246
  %v8274 = vmul.f32 %v8214, %v8248
  %v8275 = vmul.f32 %v8215, %v8250
  %v8276 = vmul.f32 %v8216, %v8252
  %v8277 = vrot.slane %v7576, 7
  %v8278 = vrot.slane %v7577, 7
  %v8279 = vrot.slane %v7578, 7
  %v8280 = vrot.slane %v7579, 7
  %v8281 = vrot.slane %v7580, 7
  %v8282 = vrot.slane %v7581, 7
  %v8283 = vrot.slane %v7583, 7
  %v8284 = vrot.slane %v7584, 7
  %v8285 = vrot.slane %v7585, 7
  %v8286 = vrot.slane %v7586, 7
  %v8287 = vrot.slane %v7587, 7
  %v8300 = vmul.f32 %v8073, %v8277
  %v8301 = vmul.f32 %v8075, %v8278
  %v8302 = vmul.f32 %v8077, %v8279
  %v8303 = vmul.f32 %v8079, %v8280
  %v8304 = vmul.f32 %v8081, %v8281
  %v8305 = vmul.f32 %v8083, %v8282
  %v8306 = vmul.f32 %v8085, %v7610
  %v8307 = vmul.f32 %v8087, %v8283
  %v8308 = vmul.f32 %v8089, %v8284
  %v8309 = vmul.f32 %v8091, %v8285
  %v8310 = vmul.f32 %v8093, %v8286
  %v8311 = vmul.f32 %v8095, %v8287
  %v8312 = vadd.f32 %v8265, %v8300
  %v8313 = vadd.f32 %v8266, %v8301
  %v8314 = vadd.f32 %v8267, %v8302
  %v8315 = vadd.f32 %v8268, %v8303
  %v8316 = vadd.f32 %v8269, %v8304
  %v8317 = vadd.f32 %v8270, %v8305
  %v8318 = vadd.f32 %v8271, %v8306
  %v8319 = vadd.f32 %v8272, %v8307
  %v8320 = vadd.f32 %v8273, %v8308
  %v8321 = vadd.f32 %v8274, %v8309
  %v8322 = vadd.f32 %v8275, %v8310
  %v8323 = vadd.f32 %v8276, %v8311
  %v8336 = vrot.slane %v8312, 6
  %v8337 = vrot.slane %v8313, 5
  %v8338 = vsel %vm3930, %v8337, %v8336
  %v8339 = vrot.slane %v8314, 4
  %v8340 = vsel %vm3933, %v8339, %v8338
  %v8341 = vrot.slane %v8315, 3
  %v8342 = vsel %vm3936, %v8341, %v8340
  %v8343 = vrot.slane %v8316, 2
  %v8344 = vsel %vm3939, %v8343, %v8342
  %v8345 = vrot.slane %v8317, 1
  %v8346 = vsel %vm3942, %v8345, %v8344
  %v8347 = vsel %vm3945, %v8318, %v8346
  %v8348 = vrot.slane %v8319, 7
  %v8349 = vsel %vm3948, %v8348, %v8347
  %v8350 = vrot.slane %v8320, 6
  %v8351 = vrot.slane %v8321, 5
  %v8352 = vsel %vm3930, %v8351, %v8350
  %v8353 = vrot.slane %v8322, 4
  %v8354 = vsel %vm3933, %v8353, %v8352
  %v8355 = vrot.slane %v8323, 3
  %v8356 = vsel %vm3936, %v8355, %v8354
  %8357 = vrot.lane.b32.xlu0 %v8349, 120
  %v8358 = vpop.permute.xlu0 %8357
  %8359 = vrot.lane.b32.xlu0 %v8356, 120
  %v8360 = vpop.permute.xlu0 %8359
  %v8361 = vsel %vm1550, %v8358, 0
  %v8363 = vsel %vm1550, %v8360, 0
  %8365 = vmatprep.subr.mxu0 0.0
  %8366 = vmatpush1.msra.mxu0 %v3224
  %8367 = vmatprep.subr.mxu0 0.0
  %8368 = vmatpush1.msra.mxu0 0.0
  %8369 = vmatprep.subr.mxu0 0.0
  %8370 = vmatpush1.msra.mxu0 0.0
  %8371 = vmatprep.subr.mxu0 0.0
  %8372 = vmatpush1.msra.mxu0 0.0
  %8373 = vmatprep.subr.mxu0 0.0
  %8374 = vmatpush1.msra.mxu0 0.0
  %8375 = vmatprep.subr.mxu0 0.0
  %8376 = vmatpush1.msra.mxu0 0.0
  %8377 = vmatprep.subr.mxu0 0.0
  %8378 = vmatpush1.msra.mxu0 0.0
  %8379 = vmatprep.subr.mxu0 0.0
  %8380 = vmatpush1.msra.mxu0 0.0
  %8381 = vmatprep.subr.mxu0 0.0
  %8382 = vmatpush1.msra.mxu0 0.0
  %8383 = vmatprep.subr.mxu0 0.0
  %8384 = vmatpush1.msra.mxu0 0.0
  %8385 = vmatprep.subr.mxu0 0.0
  %8386 = vmatpush1.msra.mxu0 0.0
  %8387 = vmatprep.subr.mxu0 0.0
  %8388 = vmatpush1.msra.mxu0 0.0
  %8389 = vmatprep.subr.mxu0 0.0
  %8390 = vmatpush1.msra.mxu0 0.0
  %8391 = vmatprep.subr.mxu0 0.0
  %8392 = vmatpush1.msra.mxu0 0.0
  %8393 = vmatprep.subr.mxu0 0.0
  %8394 = vmatpush1.msra.mxu0 0.0
  %8395 = vmatprep.subr.mxu0 0.0
  %8396 = vmatpush1.msra.mxu0 0.0
  %8397 = vmatprep.subr.mxu0 0.0
  %8398 = vmatpush1.msra.mxu0 0.0
  %8399 = vmatprep.subr.mxu0 0.0
  %8400 = vmatpush1.msra.mxu0 0.0
  %8401 = vmatprep.subr.mxu0 0.0
  %8402 = vmatpush1.msra.mxu0 0.0
  %8403 = vmatprep.subr.mxu0 0.0
  %8404 = vmatpush1.msra.mxu0 0.0
  %8405 = vmatprep.subr.mxu0 0.0
  %8406 = vmatpush1.msra.mxu0 0.0
  %8407 = vmatprep.subr.mxu0 0.0
  %8408 = vmatpush1.msra.mxu0 0.0
  %8409 = vmatprep.subr.mxu0 0.0
  %8410 = vmatpush1.msra.mxu0 0.0
  %8411 = vmatprep.subr.mxu0 0.0
  %8412 = vmatpush1.msra.mxu0 0.0
  %8413 = vmatprep.subr.mxu0 0.0
  %8414 = vmatpush1.msra.mxu0 0.0
  %8415 = vmatprep.subr.mxu0 0.0
  %8416 = vmatpush1.msra.mxu0 0.0
  %8417 = vmatprep.subr.mxu0 0.0
  %8418 = vmatpush1.msra.mxu0 0.0
  %8419 = vmatprep.subr.mxu0 0.0
  %8420 = vmatpush1.msra.mxu0 0.0
  %8421 = vmatprep.subr.mxu0 0.0
  %8422 = vmatpush1.msra.mxu0 0.0
  %8423 = vmatprep.subr.mxu0 0.0
  %8424 = vmatpush1.msra.mxu0 0.0
  %8425 = vmatprep.subr.mxu0 0.0
  %8426 = vmatpush1.msra.mxu0 0.0
  %8427 = vmatprep.subr.mxu0 0.0
  %8428 = vmatpush1.msra.mxu0 0.0
  %8429 = vmatprep.mubr.f32.mxu0 0.0
  %8430 = vmatmul.mubr.f32.gmra.mrb[0].mxu0 %v8361
  %v8431 = vpop.f32.mrb[0].mxu0
  %v8432 = vadd.f32 %v3230, %v8431
  %v8433 = vpop.f32.mrb[0].mxu0
  %8434 = vmatprep.mubr.f32.mxu0 0.0
  %8435 = vmatmul.mubr.f32.gmra.mrb[0].mxu0 %v8363
  %v8436 = vpop.f32.mrb[0].mxu0
  %v8437 = vadd.f32 %v3230, %v8436
  %v8438 = vpop.f32.mrb[0].mxu0
  %8439 = vdwg.mxu0
  %8440 = vmatprep.subr.mxu0 0.0
  %8441 = vmatpush1.msra.mxu0 %v3312
  %8442 = vmatprep.subr.mxu0 0.0
  %8443 = vmatpush1.msra.mxu0 0.0
  %8444 = vmatprep.subr.mxu0 0.0
  %8445 = vmatpush1.msra.mxu0 0.0
  %8446 = vmatprep.subr.mxu0 0.0
  %8447 = vmatpush1.msra.mxu0 0.0
  %8448 = vmatprep.subr.mxu0 0.0
  %8449 = vmatpush1.msra.mxu0 0.0
  %8450 = vmatprep.subr.mxu0 0.0
  %8451 = vmatpush1.msra.mxu0 0.0
  %8452 = vmatprep.subr.mxu0 0.0
  %8453 = vmatpush1.msra.mxu0 0.0
  %8454 = vmatprep.subr.mxu0 0.0
  %8455 = vmatpush1.msra.mxu0 0.0
  %8456 = vmatprep.subr.mxu0 0.0
  %8457 = vmatpush1.msra.mxu0 0.0
  %8458 = vmatprep.subr.mxu0 0.0
  %8459 = vmatpush1.msra.mxu0 0.0
  %8460 = vmatprep.subr.mxu0 0.0
  %8461 = vmatpush1.msra.mxu0 0.0
  %8462 = vmatprep.subr.mxu0 0.0
  %8463 = vmatpush1.msra.mxu0 0.0
  %8464 = vmatprep.subr.mxu0 0.0
  %8465 = vmatpush1.msra.mxu0 0.0
  %8466 = vmatprep.subr.mxu0 0.0
  %8467 = vmatpush1.msra.mxu0 0.0
  %8468 = vmatprep.subr.mxu0 0.0
  %8469 = vmatpush1.msra.mxu0 0.0
  %8470 = vmatprep.subr.mxu0 0.0
  %8471 = vmatpush1.msra.mxu0 0.0
  %8472 = vmatprep.subr.mxu0 0.0
  %8473 = vmatpush1.msra.mxu0 0.0
  %8474 = vmatprep.subr.mxu0 0.0
  %8475 = vmatpush1.msra.mxu0 0.0
  %8476 = vmatprep.subr.mxu0 0.0
  %8477 = vmatpush1.msra.mxu0 0.0
  %8478 = vmatprep.subr.mxu0 0.0
  %8479 = vmatpush1.msra.mxu0 0.0
  %8480 = vmatprep.subr.mxu0 0.0
  %8481 = vmatpush1.msra.mxu0 0.0
  %8482 = vmatprep.subr.mxu0 0.0
  %8483 = vmatpush1.msra.mxu0 0.0
  %8484 = vmatprep.subr.mxu0 0.0
  %8485 = vmatpush1.msra.mxu0 0.0
  %8486 = vmatprep.subr.mxu0 0.0
  %8487 = vmatpush1.msra.mxu0 0.0
  %8488 = vmatprep.subr.mxu0 0.0
  %8489 = vmatpush1.msra.mxu0 0.0
  %8490 = vmatprep.subr.mxu0 0.0
  %8491 = vmatpush1.msra.mxu0 0.0
  %8492 = vmatprep.subr.mxu0 0.0
  %8493 = vmatpush1.msra.mxu0 0.0
  %8494 = vmatprep.subr.mxu0 0.0
  %8495 = vmatpush1.msra.mxu0 0.0
  %8496 = vmatprep.subr.mxu0 0.0
  %8497 = vmatpush1.msra.mxu0 0.0
  %8498 = vmatprep.subr.mxu0 0.0
  %8499 = vmatpush1.msra.mxu0 0.0
  %8500 = vmatprep.subr.mxu0 0.0
  %8501 = vmatpush1.msra.mxu0 0.0
  %8502 = vmatprep.subr.mxu0 0.0
  %8503 = vmatpush1.msra.mxu0 0.0
  %8504 = vmatprep.mubr.f32.mxu0 0.0
  %8505 = vmatmul.mubr.f32.gmra.mrb[0].mxu0 %v8361
  %v8506 = vpop.f32.mrb[0].mxu0
  %v8507 = vadd.f32 %v3315, %v8506
  %v8508 = vpop.f32.mrb[0].mxu0
  %8509 = vmatprep.mubr.f32.mxu0 0.0
  %8510 = vmatmul.mubr.f32.gmra.mrb[0].mxu0 %v8363
  %v8511 = vpop.f32.mrb[0].mxu0
  %v8512 = vadd.f32 %v3315, %v8511
  %v8513 = vpop.f32.mrb[0].mxu0
  %8514 = vdwg.mxu0
  %8515 = vmatprep.subr.mxu0 0.0
  %8516 = vmatpush1.msra.mxu0 %v3393
  %8517 = vmatprep.subr.mxu0 0.0
  %8518 = vmatpush1.msra.mxu0 0.0
  %8519 = vmatprep.subr.mxu0 0.0
  %8520 = vmatpush1.msra.mxu0 0.0
  %8521 = vmatprep.subr.mxu0 0.0
  %8522 = vmatpush1.msra.mxu0 0.0
  %8523 = vmatprep.subr.mxu0 0.0
  %8524 = vmatpush1.msra.mxu0 0.0
  %8525 = vmatprep.subr.mxu0 0.0
  %8526 = vmatpush1.msra.mxu0 0.0
  %8527 = vmatprep.subr.mxu0 0.0
  %8528 = vmatpush1.msra.mxu0 0.0
  %8529 = vmatprep.subr.mxu0 0.0
  %8530 = vmatpush1.msra.mxu0 0.0
  %8531 = vmatprep.subr.mxu0 0.0
  %8532 = vmatpush1.msra.mxu0 0.0
  %8533 = vmatprep.subr.mxu0 0.0
  %8534 = vmatpush1.msra.mxu0 0.0
  %8535 = vmatprep.subr.mxu0 0.0
  %8536 = vmatpush1.msra.mxu0 0.0
  %8537 = vmatprep.subr.mxu0 0.0
  %8538 = vmatpush1.msra.mxu0 0.0
  %8539 = vmatprep.subr.mxu0 0.0
  %8540 = vmatpush1.msra.mxu0 0.0
  %8541 = vmatprep.subr.mxu0 0.0
  %8542 = vmatpush1.msra.mxu0 0.0
  %8543 = vmatprep.subr.mxu0 0.0
  %8544 = vmatpush1.msra.mxu0 0.0
  %8545 = vmatprep.subr.mxu0 0.0
  %8546 = vmatpush1.msra.mxu0 0.0
  %8547 = vmatprep.subr.mxu0 0.0
  %8548 = vmatpush1.msra.mxu0 0.0
  %8549 = vmatprep.subr.mxu0 0.0
  %8550 = vmatpush1.msra.mxu0 0.0
  %8551 = vmatprep.subr.mxu0 0.0
  %8552 = vmatpush1.msra.mxu0 0.0
  %8553 = vmatprep.subr.mxu0 0.0
  %8554 = vmatpush1.msra.mxu0 0.0
  %8555 = vmatprep.subr.mxu0 0.0
  %8556 = vmatpush1.msra.mxu0 0.0
  %8557 = vmatprep.subr.mxu0 0.0
  %8558 = vmatpush1.msra.mxu0 0.0
  %8559 = vmatprep.subr.mxu0 0.0
  %8560 = vmatpush1.msra.mxu0 0.0
  %8561 = vmatprep.subr.mxu0 0.0
  %8562 = vmatpush1.msra.mxu0 0.0
  %8563 = vmatprep.subr.mxu0 0.0
  %8564 = vmatpush1.msra.mxu0 0.0
  %8565 = vmatprep.subr.mxu0 0.0
  %8566 = vmatpush1.msra.mxu0 0.0
  %8567 = vmatprep.subr.mxu0 0.0
  %8568 = vmatpush1.msra.mxu0 0.0
  %8569 = vmatprep.subr.mxu0 0.0
  %8570 = vmatpush1.msra.mxu0 0.0
  %8571 = vmatprep.subr.mxu0 0.0
  %8572 = vmatpush1.msra.mxu0 0.0
  %8573 = vmatprep.subr.mxu0 0.0
  %8574 = vmatpush1.msra.mxu0 0.0
  %8575 = vmatprep.subr.mxu0 0.0
  %8576 = vmatpush1.msra.mxu0 0.0
  %8577 = vmatprep.subr.mxu0 0.0
  %8578 = vmatpush1.msra.mxu0 0.0
  %8579 = vmatprep.mubr.f32.mxu0 0.0
  %8580 = vmatmul.mubr.f32.gmra.mrb[0].mxu0 %v8361
  %v8581 = vpop.f32.mrb[0].mxu0
  %v8582 = vadd.f32 %v3396, %v8581
  %v8583 = vpop.f32.mrb[0].mxu0
  %8584 = vmatprep.mubr.f32.mxu0 0.0
  %8585 = vmatmul.mubr.f32.gmra.mrb[0].mxu0 %v8363
  %v8586 = vpop.f32.mrb[0].mxu0
  %v8587 = vadd.f32 %v3396, %v8586
  %v8588 = vpop.f32.mrb[0].mxu0
  %8589 = vdwg.mxu0
  %v8592 = vrot.slane %v8432, 1
  %v8593 = vrot.slane %v8432, 2
  %v8594 = vrot.slane %v8432, 3
  %v8595 = vrot.slane %v8432, 4
  %v8596 = vrot.slane %v8432, 5
  %v8597 = vrot.slane %v8432, 6
  %v8598 = vrot.slane %v8432, 7
  %v8599 = vrot.slane %v8437, 1
  %v8600 = vrot.slane %v8437, 2
  %v8601 = vrot.slane %v8437, 3
  %v8602 = vrot.slane %v8437, 4
  %v8615 = vadd.f32 %v3166, %v8592
  %v8616 = vadd.f32 %v3171, %v8593
  %v8617 = vadd.f32 %v3176, %v8594
  %v8618 = vadd.f32 %v3181, %v8595
  %v8619 = vadd.f32 %v3186, %v8596
  %v8620 = vadd.f32 %v3191, %v8597
  %v8621 = vadd.f32 %v3196, %v8598
  %v8622 = vadd.f32 %v3201, %v8432
  %v8623 = vadd.f32 %v3206, %v8599
  %v8624 = vadd.f32 %v3211, %v8600
  %v8625 = vadd.f32 %v3216, %v8601
  %v8626 = vadd.f32 %v3221, %v8602
  %v8627 = vxor.u32 %v8615, 2147483648
  %v8628 = vxor.u32 %v8616, 2147483648
  %v8629 = vxor.u32 %v8617, 2147483648
  %v8630 = vxor.u32 %v8618, 2147483648
  %v8631 = vxor.u32 %v8619, 2147483648
  %v8632 = vxor.u32 %v8620, 2147483648
  %v8633 = vxor.u32 %v8621, 2147483648
  %v8634 = vxor.u32 %v8622, 2147483648
  %v8635 = vxor.u32 %v8623, 2147483648
  %v8636 = vxor.u32 %v8624, 2147483648
  %v8637 = vxor.u32 %v8625, 2147483648
  %v8638 = vxor.u32 %v8626, 2147483648
  %v8639 = vmul.f32 %v8627, 1.442695
  %v8640 = vpow.pop %v8639
  %v8641 = vmul.f32 %v8628, 1.442695
  %v8642 = vpow.pop %v8641
  %v8643 = vmul.f32 %v8629, 1.442695
  %v8644 = vpow.pop %v8643
  %v8645 = vmul.f32 %v8630, 1.442695
  %v8646 = vpow.pop %v8645
  %v8647 = vmul.f32 %v8631, 1.442695
  %v8648 = vpow.pop %v8647
  %v8649 = vmul.f32 %v8632, 1.442695
  %v8650 = vpow.pop %v8649
  %v8651 = vmul.f32 %v8633, 1.442695
  %v8652 = vpow.pop %v8651
  %v8653 = vmul.f32 %v8634, 1.442695
  %v8654 = vpow.pop %v8653
  %v8655 = vmul.f32 %v8635, 1.442695
  %v8656 = vpow.pop %v8655
  %v8657 = vmul.f32 %v8636, 1.442695
  %v8658 = vpow.pop %v8657
  %v8659 = vmul.f32 %v8637, 1.442695
  %v8660 = vpow.pop %v8659
  %v8661 = vmul.f32 %v8638, 1.442695
  %v8662 = vpow.pop %v8661
  %v8663 = vadd.f32 %v8640, 1.0
  %v8664 = vadd.f32 %v8642, 1.0
  %v8665 = vadd.f32 %v8644, 1.0
  %v8666 = vadd.f32 %v8646, 1.0
  %v8667 = vadd.f32 %v8648, 1.0
  %v8668 = vadd.f32 %v8650, 1.0
  %v8669 = vadd.f32 %v8652, 1.0
  %v8670 = vadd.f32 %v8654, 1.0
  %v8671 = vadd.f32 %v8656, 1.0
  %v8672 = vadd.f32 %v8658, 1.0
  %v8673 = vadd.f32 %v8660, 1.0
  %v8674 = vadd.f32 %v8662, 1.0
  %v8675 = vrcp.pop %v8663
  %v8676 = vmul.f32 1.0, %v8675
  %v8677 = vrcp.pop %v8664
  %v8678 = vmul.f32 1.0, %v8677
  %v8679 = vrcp.pop %v8665
  %v8680 = vmul.f32 1.0, %v8679
  %v8681 = vrcp.pop %v8666
  %v8682 = vmul.f32 1.0, %v8681
  %v8683 = vrcp.pop %v8667
  %v8684 = vmul.f32 1.0, %v8683
  %v8685 = vrcp.pop %v8668
  %v8686 = vmul.f32 1.0, %v8685
  %v8687 = vrcp.pop %v8669
  %v8688 = vmul.f32 1.0, %v8687
  %v8689 = vrcp.pop %v8670
  %v8690 = vmul.f32 1.0, %v8689
  %v8691 = vrcp.pop %v8671
  %v8692 = vmul.f32 1.0, %v8691
  %v8693 = vrcp.pop %v8672
  %v8694 = vmul.f32 1.0, %v8693
  %v8695 = vrcp.pop %v8673
  %v8696 = vmul.f32 1.0, %v8695
  %v8697 = vrcp.pop %v8674
  %v8698 = vmul.f32 1.0, %v8697
  %v8701 = vrot.slane %v8507, 1
  %v8702 = vrot.slane %v8507, 2
  %v8703 = vrot.slane %v8507, 3
  %v8704 = vrot.slane %v8507, 4
  %v8705 = vrot.slane %v8507, 5
  %v8706 = vrot.slane %v8507, 6
  %v8707 = vrot.slane %v8507, 7
  %v8708 = vrot.slane %v8512, 1
  %v8709 = vrot.slane %v8512, 2
  %v8710 = vrot.slane %v8512, 3
  %v8711 = vrot.slane %v8512, 4
  %8712 = vrot.lane.b32.xlu0 %v8701, 8
  %v8713 = vpop.permute.xlu0 %8712
  %8714 = vrot.lane.b32.xlu0 %v8702, 8
  %v8715 = vpop.permute.xlu0 %8714
  %8716 = vrot.lane.b32.xlu0 %v8703, 8
  %v8717 = vpop.permute.xlu0 %8716
  %8718 = vrot.lane.b32.xlu0 %v8704, 8
  %v8719 = vpop.permute.xlu0 %8718
  %8720 = vrot.lane.b32.xlu0 %v8705, 8
  %v8721 = vpop.permute.xlu0 %8720
  %8722 = vrot.lane.b32.xlu0 %v8706, 8
  %v8723 = vpop.permute.xlu0 %8722
  %8724 = vrot.lane.b32.xlu0 %v8707, 8
  %v8725 = vpop.permute.xlu0 %8724
  %8726 = vrot.lane.b32.xlu0 %v8507, 8
  %v8727 = vpop.permute.xlu0 %8726
  %8728 = vrot.lane.b32.xlu0 %v8708, 8
  %v8729 = vpop.permute.xlu0 %8728
  %8730 = vrot.lane.b32.xlu0 %v8709, 8
  %v8731 = vpop.permute.xlu0 %8730
  %8732 = vrot.lane.b32.xlu0 %v8710, 8
  %v8733 = vpop.permute.xlu0 %8732
  %8734 = vrot.lane.b32.xlu0 %v8711, 8
  %v8735 = vpop.permute.xlu0 %8734
  %v8748 = vadd.f32 %v3166, %v8713
  %v8749 = vadd.f32 %v3171, %v8715
  %v8750 = vadd.f32 %v3176, %v8717
  %v8751 = vadd.f32 %v3181, %v8719
  %v8752 = vadd.f32 %v3186, %v8721
  %v8753 = vadd.f32 %v3191, %v8723
  %v8754 = vadd.f32 %v3196, %v8725
  %v8755 = vadd.f32 %v3201, %v8727
  %v8756 = vadd.f32 %v3206, %v8729
  %v8757 = vadd.f32 %v3211, %v8731
  %v8758 = vadd.f32 %v3216, %v8733
  %v8759 = vadd.f32 %v3221, %v8735
  %v8760 = vxor.u32 %v8748, 2147483648
  %v8761 = vxor.u32 %v8749, 2147483648
  %v8762 = vxor.u32 %v8750, 2147483648
  %v8763 = vxor.u32 %v8751, 2147483648
  %v8764 = vxor.u32 %v8752, 2147483648
  %v8765 = vxor.u32 %v8753, 2147483648
  %v8766 = vxor.u32 %v8754, 2147483648
  %v8767 = vxor.u32 %v8755, 2147483648
  %v8768 = vxor.u32 %v8756, 2147483648
  %v8769 = vxor.u32 %v8757, 2147483648
  %v8770 = vxor.u32 %v8758, 2147483648
  %v8771 = vxor.u32 %v8759, 2147483648
  %v8772 = vmul.f32 %v8760, 1.442695
  %v8773 = vpow.pop %v8772
  %v8774 = vmul.f32 %v8761, 1.442695
  %v8775 = vpow.pop %v8774
  %v8776 = vmul.f32 %v8762, 1.442695
  %v8777 = vpow.pop %v8776
  %v8778 = vmul.f32 %v8763, 1.442695
  %v8779 = vpow.pop %v8778
  %v8780 = vmul.f32 %v8764, 1.442695
  %v8781 = vpow.pop %v8780
  %v8782 = vmul.f32 %v8765, 1.442695
  %v8783 = vpow.pop %v8782
  %v8784 = vmul.f32 %v8766, 1.442695
  %v8785 = vpow.pop %v8784
  %v8786 = vmul.f32 %v8767, 1.442695
  %v8787 = vpow.pop %v8786
  %v8788 = vmul.f32 %v8768, 1.442695
  %v8789 = vpow.pop %v8788
  %v8790 = vmul.f32 %v8769, 1.442695
  %v8791 = vpow.pop %v8790
  %v8792 = vmul.f32 %v8770, 1.442695
  %v8793 = vpow.pop %v8792
  %v8794 = vmul.f32 %v8771, 1.442695
  %v8795 = vpow.pop %v8794
  %v8796 = vadd.f32 %v8773, 1.0
  %v8797 = vadd.f32 %v8775, 1.0
  %v8798 = vadd.f32 %v8777, 1.0
  %v8799 = vadd.f32 %v8779, 1.0
  %v8800 = vadd.f32 %v8781, 1.0
  %v8801 = vadd.f32 %v8783, 1.0
  %v8802 = vadd.f32 %v8785, 1.0
  %v8803 = vadd.f32 %v8787, 1.0
  %v8804 = vadd.f32 %v8789, 1.0
  %v8805 = vadd.f32 %v8791, 1.0
  %v8806 = vadd.f32 %v8793, 1.0
  %v8807 = vadd.f32 %v8795, 1.0
  %v8808 = vrcp.pop %v8796
  %v8809 = vmul.f32 1.0, %v8808
  %v8810 = vrcp.pop %v8797
  %v8811 = vmul.f32 1.0, %v8810
  %v8812 = vrcp.pop %v8798
  %v8813 = vmul.f32 1.0, %v8812
  %v8814 = vrcp.pop %v8799
  %v8815 = vmul.f32 1.0, %v8814
  %v8816 = vrcp.pop %v8800
  %v8817 = vmul.f32 1.0, %v8816
  %v8818 = vrcp.pop %v8801
  %v8819 = vmul.f32 1.0, %v8818
  %v8820 = vrcp.pop %v8802
  %v8821 = vmul.f32 1.0, %v8820
  %v8822 = vrcp.pop %v8803
  %v8823 = vmul.f32 1.0, %v8822
  %v8824 = vrcp.pop %v8804
  %v8825 = vmul.f32 1.0, %v8824
  %v8826 = vrcp.pop %v8805
  %v8827 = vmul.f32 1.0, %v8826
  %v8828 = vrcp.pop %v8806
  %v8829 = vmul.f32 1.0, %v8828
  %v8830 = vrcp.pop %v8807
  %v8831 = vmul.f32 1.0, %v8830
  %v8834 = vrot.slane %v8582, 1
  %v8835 = vrot.slane %v8582, 2
  %v8836 = vrot.slane %v8582, 3
  %v8837 = vrot.slane %v8582, 4
  %v8838 = vrot.slane %v8582, 5
  %v8839 = vrot.slane %v8582, 6
  %v8840 = vrot.slane %v8582, 7
  %v8841 = vrot.slane %v8587, 1
  %v8842 = vrot.slane %v8587, 2
  %v8843 = vrot.slane %v8587, 3
  %v8844 = vrot.slane %v8587, 4
  %v8857 = vmul.f32 %v8676, %v8834
  %v8858 = vmul.f32 %v8678, %v8835
  %v8859 = vmul.f32 %v8680, %v8836
  %v8860 = vmul.f32 %v8682, %v8837
  %v8861 = vmul.f32 %v8684, %v8838
  %v8862 = vmul.f32 %v8686, %v8839
  %v8863 = vmul.f32 %v8688, %v8840
  %v8864 = vmul.f32 %v8690, %v8582
  %v8865 = vmul.f32 %v8692, %v8841
  %v8866 = vmul.f32 %v8694, %v8842
  %v8867 = vmul.f32 %v8696, %v8843
  %v8868 = vmul.f32 %v8698, %v8844
  %8881 = vrot.lane.b32.xlu0 %v8857, 16
  %v8882 = vpop.permute.xlu0 %8881
  %8883 = vrot.lane.b32.xlu0 %v8858, 16
  %v8884 = vpop.permute.xlu0 %8883
  %8885 = vrot.lane.b32.xlu0 %v8859, 16
  %v8886 = vpop.permute.xlu0 %8885
  %8887 = vrot.lane.b32.xlu0 %v8860, 16
  %v8888 = vpop.permute.xlu0 %8887
  %8889 = vrot.lane.b32.xlu0 %v8861, 16
  %v8890 = vpop.permute.xlu0 %8889
  %8891 = vrot.lane.b32.xlu0 %v8862, 16
  %v8892 = vpop.permute.xlu0 %8891
  %8893 = vrot.lane.b32.xlu0 %v8863, 16
  %v8894 = vpop.permute.xlu0 %8893
  %8895 = vrot.lane.b32.xlu0 %v8864, 16
  %v8896 = vpop.permute.xlu0 %8895
  %8897 = vrot.lane.b32.xlu0 %v8865, 16
  %v8898 = vpop.permute.xlu0 %8897
  %8899 = vrot.lane.b32.xlu0 %v8866, 16
  %v8900 = vpop.permute.xlu0 %8899
  %8901 = vrot.lane.b32.xlu0 %v8867, 16
  %v8902 = vpop.permute.xlu0 %8901
  %8903 = vrot.lane.b32.xlu0 %v8868, 16
  %v8904 = vpop.permute.xlu0 %8903
  %v8917 = vadd.f32 %v3166, %v8882
  %v8918 = vadd.f32 %v3171, %v8884
  %v8919 = vadd.f32 %v3176, %v8886
  %v8920 = vadd.f32 %v3181, %v8888
  %v8921 = vadd.f32 %v3186, %v8890
  %v8922 = vadd.f32 %v3191, %v8892
  %v8923 = vadd.f32 %v3196, %v8894
  %v8924 = vadd.f32 %v3201, %v8896
  %v8925 = vadd.f32 %v3206, %v8898
  %v8926 = vadd.f32 %v3211, %v8900
  %v8927 = vadd.f32 %v3216, %v8902
  %v8928 = vadd.f32 %v3221, %v8904
  %v8929 = vtanh.pop %v8917
  %v8930 = vtanh.pop %v8918
  %v8931 = vtanh.pop %v8919
  %v8932 = vtanh.pop %v8920
  %v8933 = vtanh.pop %v8921
  %v8934 = vtanh.pop %v8922
  %v8935 = vtanh.pop %v8923
  %v8936 = vtanh.pop %v8924
  %v8937 = vtanh.pop %v8925
  %v8938 = vtanh.pop %v8926
  %v8939 = vtanh.pop %v8927
  %v8940 = vtanh.pop %v8928
  %v8941 = vsub.f32 1.0, %v8809
  %v8942 = vsub.f32 1.0, %v8811
  %v8943 = vsub.f32 1.0, %v8813
  %v8944 = vsub.f32 1.0, %v8815
  %v8945 = vsub.f32 1.0, %v8817
  %v8946 = vsub.f32 1.0, %v8819
  %v8947 = vsub.f32 1.0, %v8821
  %v8948 = vsub.f32 1.0, %v8823
  %v8949 = vsub.f32 1.0, %v8825
  %v8950 = vsub.f32 1.0, %v8827
  %v8951 = vsub.f32 1.0, %v8829
  %v8952 = vsub.f32 1.0, %v8831
  %8965 = vrot.lane.b32.xlu0 %v8929, 120
  %v8966 = vpop.permute.xlu0 %8965
  %8967 = vrot.lane.b32.xlu0 %v8930, 120
  %v8968 = vpop.permute.xlu0 %8967
  %8969 = vrot.lane.b32.xlu0 %v8931, 120
  %v8970 = vpop.permute.xlu0 %8969
  %8971 = vrot.lane.b32.xlu0 %v8932, 120
  %v8972 = vpop.permute.xlu0 %8971
  %8973 = vrot.lane.b32.xlu0 %v8933, 120
  %v8974 = vpop.permute.xlu0 %8973
  %8975 = vrot.lane.b32.xlu0 %v8934, 120
  %v8976 = vpop.permute.xlu0 %8975
  %8977 = vrot.lane.b32.xlu0 %v8935, 120
  %v8978 = vpop.permute.xlu0 %8977
  %8979 = vrot.lane.b32.xlu0 %v8936, 120
  %v8980 = vpop.permute.xlu0 %8979
  %8981 = vrot.lane.b32.xlu0 %v8937, 120
  %v8982 = vpop.permute.xlu0 %8981
  %8983 = vrot.lane.b32.xlu0 %v8938, 120
  %v8984 = vpop.permute.xlu0 %8983
  %8985 = vrot.lane.b32.xlu0 %v8939, 120
  %v8986 = vpop.permute.xlu0 %8985
  %8987 = vrot.lane.b32.xlu0 %v8940, 120
  %v8988 = vpop.permute.xlu0 %8987
  %v9001 = vmul.f32 %v8941, %v8966
  %v9002 = vmul.f32 %v8942, %v8968
  %v9003 = vmul.f32 %v8943, %v8970
  %v9004 = vmul.f32 %v8944, %v8972
  %v9005 = vmul.f32 %v8945, %v8974
  %v9006 = vmul.f32 %v8946, %v8976
  %v9007 = vmul.f32 %v8947, %v8978
  %v9008 = vmul.f32 %v8948, %v8980
  %v9009 = vmul.f32 %v8949, %v8982
  %v9010 = vmul.f32 %v8950, %v8984
  %v9011 = vmul.f32 %v8951, %v8986
  %v9012 = vmul.f32 %v8952, %v8988
  %v9013 = vrot.slane %v8312, 7
  %v9014 = vrot.slane %v8313, 7
  %v9015 = vrot.slane %v8314, 7
  %v9016 = vrot.slane %v8315, 7
  %v9017 = vrot.slane %v8316, 7
  %v9018 = vrot.slane %v8317, 7
  %v9019 = vrot.slane %v8318, 7
  %v9020 = vrot.slane %v8320, 7
  %v9021 = vrot.slane %v8321, 7
  %v9022 = vrot.slane %v8322, 7
  %v9023 = vrot.slane %v8323, 7
  %v9036 = vmul.f32 %v8809, %v9013
  %v9037 = vmul.f32 %v8811, %v9014
  %v9038 = vmul.f32 %v8813, %v9015
  %v9039 = vmul.f32 %v8815, %v9016
  %v9040 = vmul.f32 %v8817, %v9017
  %v9041 = vmul.f32 %v8819, %v9018
  %v9042 = vmul.f32 %v8821, %v9019
  %v9043 = vmul.f32 %v8823, %v8348
  %v9044 = vmul.f32 %v8825, %v9020
  %v9045 = vmul.f32 %v8827, %v9021
  %v9046 = vmul.f32 %v8829, %v9022
  %v9047 = vmul.f32 %v8831, %v9023
  %v9048 = vadd.f32 %v9001, %v9036
  %v9049 = vadd.f32 %v9002, %v9037
  %v9050 = vadd.f32 %v9003, %v9038
  %v9051 = vadd.f32 %v9004, %v9039
  %v9052 = vadd.f32 %v9005, %v9040
  %v9053 = vadd.f32 %v9006, %v9041
  %v9054 = vadd.f32 %v9007, %v9042
  %v9055 = vadd.f32 %v9008, %v9043
  %v9056 = vadd.f32 %v9009, %v9044
  %v9057 = vadd.f32 %v9010, %v9045
  %v9058 = vadd.f32 %v9011, %v9046
  %v9059 = vadd.f32 %v9012, %v9047
  %v9072 = vrot.slane %v9049, 7
  %v9073 = vrot.slane %v9050, 6
  %v9074 = vsel %vm3930, %v9073, %v9072
  %v9075 = vrot.slane %v9051, 5
  %v9076 = vsel %vm3933, %v9075, %v9074
  %v9077 = vrot.slane %v9052, 4
  %v9078 = vsel %vm3936, %v9077, %v9076
  %v9079 = vrot.slane %v9053, 3
  %v9080 = vsel %vm3939, %v9079, %v9078
  %v9081 = vrot.slane %v9054, 2
  %v9082 = vsel %vm3942, %v9081, %v9080
  %v9083 = vrot.slane %v9055, 1
  %v9084 = vsel %vm3945, %v9083, %v9082
  %v9085 = vsel %vm3948, %v9056, %v9084
  %v9086 = vrot.slane %v9057, 7
  %v9087 = vrot.slane %v9058, 6
  %v9088 = vsel %vm3930, %v9087, %v9086
  %v9089 = vrot.slane %v9059, 5
  %v9090 = vsel %vm3933, %v9089, %v9088
  %9091 = vrot.lane.b32.xlu0 %v9048, 120
  %v9092 = vpop.permute.xlu0 %9091
  %9093 = vrot.lane.b32.xlu0 %v9085, 120
  %v9094 = vpop.permute.xlu0 %9093
  %9095 = vrot.lane.b32.xlu0 %v9090, 120
  %v9096 = vpop.permute.xlu0 %9095
  %vm9100 = vcmask 64519
  %9101 = vst.msk [vmem:[%s18 - $0x7] sm:$0x80] %vm9100, %v9092
  %9102 = vst.msk [vmem:[%s18 + $0x1] sm:$0xff] %vm1550, %v9094
  %vm9103 = vcmask 59392
  %9104 = vst.msk [vmem:[%s18 + $0x9] sm:$0x7] %vm9103, %v9096
  // Predicated region
  $region74: #{gumbel_rel_rnn_discriminator.1} parent=0 // pred_check
    _
  $region75: #{gumbel_rel_rnn_discriminator.1} parent=0 // pred_check_branch
    %9106 = sbr.rel (0) target = $region77
  $region76: #{gumbel_rel_rnn_discriminator.1} parent=0 // pred_region
    _
  $region77: #{gumbel_rel_rnn_discriminator.1} parent=0 // pred_fallthru
    _
  // Predicated region
  $region78: #{gumbel_rel_rnn_discriminator.1} parent=0 // pred_check
    _
  $region79: #{gumbel_rel_rnn_discriminator.1} parent=0 // pred_check_branch
    %9108 = sbr.rel (0) target = $region81
  $region80: #{gumbel_rel_rnn_discriminator.1} parent=0 // pred_region
    _
  $region81: #{gumbel_rel_rnn_discriminator.1} parent=0 // pred_fallthru
    _

</llo_original>
